<compile_context>
chip_gen: v7x
topology: tpu7x:2x2x1
jax: 0.10.0
libtpu: 0.0.40
codegen_flags: <defaults>
</compile_context>

<pallas_src>
import jax
import jax.numpy as jnp
from jax import lax
from jax.experimental import pallas as pl
from jax.experimental.pallas import tpu as pltpu


# ---------------------------------------------------------------------------
# In-kernel helpers (traced inside the Pallas kernel body)
# ---------------------------------------------------------------------------
def _conv3x3_rowpatch(x_mm, w_ref, bt, H, W, C):
    """3x3 conv, reflect pad=1, via a row-patch buffer + 3 accumulating matmuls.

    x_mm:  (bt, H, W, C) activations already in the matmul dtype
    w_ref: (9*C, Cout) weights, rows ordered (ky, kx, cin)
    returns (bt*H*W, Cout) float32
    """
    # Reflect pad along H only (leading spatial axis -> cheap concat).
    xp = jnp.concatenate([x_mm[:, 1:2], x_mm, x_mm[:, H - 2:H - 1]], axis=1)  # (bt,H+2,W,C)

    # W-shifted variants with reflect boundaries, W extent preserved:
    #   v0[:,:,w] = xp[:,:,w-1] (w=0 -> column 1),  v2[:,:,w] = xp[:,:,w+1] (w=W-1 -> W-2)
    v0 = jnp.concatenate([xp[:, :, 1:2], xp[:, :, :W - 1]], axis=2)
    v2 = jnp.concatenate([xp[:, :, 1:W], xp[:, :, W - 2:W - 1]], axis=2)

    # Lane-concatenated row patches: [dx=0 | dx=1 | dx=2] -> (bt, H+2, W, 3C).
    # Matches the (kx, cin) ordering of each 3C-row slab of the (9C, Cout) weights.
    rowpatch = jnp.concatenate([v0, xp, v2], axis=-1)

    M = bt * H * W
    cout = w_ref.shape[-1]
    acc = jnp.zeros((M, cout), jnp.float32)
    for dy in range(3):                                      # 3 MXU matmuls, K = 3C
        lhs = rowpatch[:, dy:dy + H].reshape(M, 3 * C)       # leading-axis slice
        rhs = w_ref[dy * 3 * C:(dy + 1) * 3 * C, :]
        acc = acc + jnp.dot(lhs, rhs, preferred_element_type=jnp.float32)
    return acc


def _instance_norm_flat(y_flat, bt, hw, C, eps=1e-5):
    """InstanceNorm2d (affine=False), one reduction pass (sum & sum-of-squares).

    y_flat: (bt*hw, C) float32 -> normalized (bt*hw, C) float32
    """
    y = y_flat.reshape(bt, hw, C)
    s = jnp.sum(y, axis=1, keepdims=True)                    # (bt, 1, C)
    ss = jnp.sum(y * y, axis=1, keepdims=True)               # (bt, 1, C)
    inv_n = 1.0 / hw
    mean = s * inv_n
    var = jnp.maximum(ss * inv_n - mean * mean, 0.0)         # guard fp cancellation
    return ((y - mean) * lax.rsqrt(var + eps)).reshape(bt * hw, C)


# ---------------------------------------------------------------------------
# Pallas kernel: `bt` batch elements per grid step, whole images in VMEM
# ---------------------------------------------------------------------------
def residual_block_kernel(x_ref, w1_ref, w2_ref, o_ref):
    bt, H, W, C = x_ref.shape
    hw = H * W
    mm_dtype = w1_ref.dtype

    x_f32 = x_ref[...].astype(jnp.float32)                   # residual copy (f32)
    x_mm = x_f32.astype(mm_dtype)                            # cast ONCE for conv 1

    # ConvolutionalBlock 1: conv3x3(reflect) -> InstanceNorm -> ReLU
    # (conv bias omitted: exactly cancelled by InstanceNorm2d(affine=False))
    h = _conv3x3_rowpatch(x_mm, w1_ref, bt, H, W, C)         # (bt*hw, C) f32
    h = jnp.maximum(_instance_norm_flat(h, bt, hw, C), 0.0)

    # ConvolutionalBlock 2: conv3x3(reflect) -> InstanceNorm (no ReLU)
    h_mm = h.reshape(bt, H, W, C).astype(mm_dtype)           # cast ONCE for conv 2
    h = _conv3x3_rowpatch(h_mm, w2_ref, bt, H, W, C)
    h = _instance_norm_flat(h, bt, hw, C)

    # Residual add and store.
    o_ref[...] = (h.reshape(bt, H, W, C) + x_f32).astype(o_ref.dtype)


# ---------------------------------------------------------------------------
# Host-side helpers (generation-aware VMEM budgeting)
# ---------------------------------------------------------------------------
def _tpu_vmem_bytes():
    try:
        return int(pltpu.get_tpu_info().vmem_capacity_bytes)
    except Exception:
        return 64 * 1024 * 1024                              # conservative (v7x per-TC)


def _vmem_limit_bytes():
    return int(_tpu_vmem_bytes() * 0.8)                      # headroom for the compiler


def _pick_batch_tile(B, H, W, C, mm_bytes):
    """Images per grid step.

    Budget the kernel working set to ~55% of physical VMEM (≈35 MiB v7x,
    ≈70 MiB v5e/v6e), explicitly counting double-buffered I/O blocks and the
    (single-buffered) weight buffers, and keep >= 2 grid steps per TensorCore
    (>= 4 total when B >= 4) so DMA overlaps compute on both v7x cores.
    """
    elems = H * W * C
    # In-kernel intermediates per image: ~10x HWC in matmul dtype (x_mm, xp,
    # v0, v2, rowpatch, per-dy LHS) + ~3x HWC f32 (x copy, conv acc, norm out).
    body = elems * (10 * mm_bytes + 3 * 4)
    io = 2 * 2 * elems * 4                                   # dbl-buffered in + out blocks (f32)
    per_image = body + io
    weights = 2 * 9 * C * C * mm_bytes                       # single-buffered weight refs

    budget = max(per_image, int(_tpu_vmem_bytes() * 0.55) - weights)
    cap = max(1, budget // per_image)

    if B >= 4:
        min_steps = 4
    elif B >= 2:
        min_steps = 2
    else:
        min_steps = 1
    cap = min(cap, max(1, B // min_steps))

    bt = max(1, min(B, cap))
    while B % bt:                                            # bt must divide B
        bt -= 1
    return bt


# ---------------------------------------------------------------------------
# Wrappers
# ---------------------------------------------------------------------------
def residual_block_nhwc(x, w1_hwio, w2_hwio, *, matmul_dtype=jnp.bfloat16):
    """Transpose-free NHWC entry point.

    x: (B, H, W, C); w*: (3, 3, C, C) HWIO.  Conv biases are not inputs: any
    per-channel bias is exactly cancelled by InstanceNorm2d(affine=False).
    """
    B, H, W, C = x.shape
    assert H >= 2 and W >= 2, "reflect pad=1 requires H >= 2 and W >= 2"
    mm_bytes = jnp.dtype(matmul_dtype).itemsize

    # Host-side weight prep: HWIO (3,3,C,C) -> (9C, C) rows ordered (ky, kx, cin).
    w1 = w1_hwio.reshape(9 * C, C).astype(matmul_dtype)
    w2 = w2_hwio.reshape(9 * C, C).astype(matmul_dtype)

    bt = _pick_batch_tile(B, H, W, C, mm_bytes)
    grid = (B // bt,)

    def call(single_buffer_weights):
        if single_buffer_weights:
            # Constant index_map + single buffer: weights DMA'd once, no 2nd buffer.
            w_spec = pl.BlockSpec((9 * C, C), lambda b: (0, 0),
                                  pipeline_mode=pl.Buffered(1))
        else:
            w_spec = pl.BlockSpec((9 * C, C), lambda b: (0, 0))
        return pl.pallas_call(
            residual_block_kernel,
            out_shape=jax.ShapeDtypeStruct((B, H, W, C), x.dtype),
            grid_spec=pltpu.PrefetchScalarGridSpec(
                num_scalar_prefetch=0,
                grid=grid,
                in_specs=[
                    pl.BlockSpec((bt, H, W, C), lambda b: (b, 0, 0, 0)),
                    w_spec,
                    w_spec,
                ],
                out_specs=pl.BlockSpec((bt, H, W, C), lambda b: (b, 0, 0, 0)),
            ),
            compiler_params=pltpu.CompilerParams(
                dimension_semantics=("parallel",),
                vmem_limit_bytes=_vmem_limit_bytes()),
        )(x, w1, w2)

    try:
        return call(True)
    except Exception:
        # Fallback for JAX versions that reject pipeline_mode=Buffered(1).
        return call(False)


def residual_block(x_nchw, w1, b1, w2, b2, *, matmul_dtype=jnp.bfloat16):
    """NCHW wrapper matching the PyTorch module interface.

    b1/b2 are accepted for parity with nn.Conv2d(bias=True) but are provably
    no-ops under InstanceNorm2d(affine=False), so they are not sent on-device.
    For chained residual blocks prefer residual_block_nhwc to avoid the
    NCHW<->NHWC HBM round-trips.
    """
    del b1, b2
    x = jnp.transpose(x_nchw, (0, 2, 3, 1))                  # NHWC
    out = residual_block_nhwc(x, w1, w2, matmul_dtype=matmul_dtype)
    return jnp.transpose(out, (0, 3, 1, 2))                  # back to NCHW


# ---------------------------------------------------------------------------
# Pure-JAX reference for correctness checking (keeps the conv biases)
# ---------------------------------------------------------------------------
def residual_block_ref(x_nchw, w1, b1, w2, b2):
    def conv(x, w_hwio, b):
        xp = jnp.pad(x, ((0, 0), (0, 0), (1, 1), (1, 1)), mode="reflect")
        w_oihw = jnp.transpose(w_hwio, (3, 2, 0, 1))
        y = lax.conv_general_dilated(
            xp, w_oihw, (1, 1), "VALID",
            dimension_numbers=("NCHW", "OIHW", "NCHW"))
        return y + b[None, :, None, None]

    def inorm(x, eps=1e-5):
        mean = x.mean(axis=(2, 3), keepdims=True)
        var = ((x - mean) ** 2).mean(axis=(2, 3), keepdims=True)
        return (x - mean) * lax.rsqrt(var + eps)

    h = jnp.maximum(inorm(conv(x_nchw, w1, b1)), 0.0)
    h = inorm(conv(h, w2, b2))
    return h + x_nchw


if __name__ == "__main__":
    B, C, H, W = 2, 4, 16, 16
    key = jax.random.PRNGKey(0)
    kx, k1, kb1, k2, kb2 = jax.random.split(key, 5)

    x = jax.random.normal(kx, (B, C, H, W), jnp.float32)
    w1 = jax.random.normal(k1, (3, 3, C, C), jnp.float32) * 0.1
    b1 = jax.random.normal(kb1, (C,), jnp.float32) * 0.1
    w2 = jax.random.normal(k2, (3, 3, C, C), jnp.float32) * 0.1
    b2 = jax.random.normal(kb2, (C,), jnp.float32) * 0.1

    ref = residual_block_ref(x, w1, b1, w2, b2)

    # f32 matmul path: tight check of the row-patch conv / one-pass-norm algorithm
    # (also verifies the exact bias cancellation, since the reference keeps b).
    out_f32 = jax.block_until_ready(
        residual_block(x, w1, b1, w2, b2, matmul_dtype=jnp.float32))
    assert out_f32.shape == (B, C, H, W)
    assert jnp.allclose(out_f32, ref, rtol=1e-3, atol=1e-3), "f32 path mismatch"

    # Default bf16-operand path (~2x MXU throughput, half the patch footprint).
    out_bf16 = jax.block_until_ready(residual_block(x, w1, b1, w2, b2))
    assert out_bf16.shape == (B, C, H, W)
    assert jnp.allclose(out_bf16, ref, rtol=5e-2, atol=5e-2), "bf16 path mismatch"

    print("KERNEL_OK")
</pallas_src>

<mosaic_0001>
module attributes {stable_mosaic.version = 11 : i64} {
  func.func @residual_block_kernel(%arg0: i32, %arg1: memref<1x16x16x4xf32, #tpu.memory_space<vmem>>, %arg2: memref<36x4xf32, #tpu.memory_space<vmem>>, %arg3: memref<36x4xf32, #tpu.memory_space<vmem>>, %arg4: memref<1x16x16x4xf32, #tpu.memory_space<vmem>>) attributes {dimension_semantics = [#tpu.dimension_semantics<parallel>], iteration_bounds = array<i64: 2>, scalar_prefetch = 0 : i64, scratch_operands = 0 : i64, tpu.core_type = #tpu.core_type<tc>, window_params = [{transform_indices = @transform_0, window_bounds = array<i64: 1, 16, 16, 4>}, {pipeline_mode = #tpu.pipeline_mode<synchronous>, transform_indices = @transform_1, window_bounds = array<i64: 36, 4>}, {pipeline_mode = #tpu.pipeline_mode<synchronous>, transform_indices = @transform_2, window_bounds = array<i64: 36, 4>}, {transform_indices = @transform_3, window_bounds = array<i64: 1, 16, 16, 4>}]} {
    %c0 = arith.constant 0 : index
    %c0_0 = arith.constant 0 : index
    %c0_1 = arith.constant 0 : index
    %c0_2 = arith.constant 0 : index
    %0 = vector.load %arg1[%c0, %c0_0, %c0_1, %c0_2] : memref<1x16x16x4xf32, #tpu.memory_space<vmem>>, vector<1x16x16x4xf32>
    %1 = vector.extract_strided_slice %0 {offsets = [0, 1, 0, 0], sizes = [1, 1, 16, 4], strides = [1, 1, 1, 1]} : vector<1x16x16x4xf32> to vector<1x1x16x4xf32>
    %2 = vector.extract_strided_slice %0 {offsets = [0, 14, 0, 0], sizes = [1, 1, 16, 4], strides = [1, 1, 1, 1]} : vector<1x16x16x4xf32> to vector<1x1x16x4xf32>
    %3 = tpu.concatenate %1, %0, %2 in 1 : vector<1x1x16x4xf32>, vector<1x16x16x4xf32>, vector<1x1x16x4xf32> -> vector<1x18x16x4xf32>
    %4 = vector.extract_strided_slice %3 {offsets = [0, 0, 1, 0], sizes = [1, 18, 1, 4], strides = [1, 1, 1, 1]} : vector<1x18x16x4xf32> to vector<1x18x1x4xf32>
    %5 = vector.extract_strided_slice %3 {offsets = [0, 0, 0, 0], sizes = [1, 18, 15, 4], strides = [1, 1, 1, 1]} : vector<1x18x16x4xf32> to vector<1x18x15x4xf32>
    %6 = tpu.concatenate %4, %5 in 2 : vector<1x18x1x4xf32>, vector<1x18x15x4xf32> -> vector<1x18x16x4xf32>
    %7 = vector.extract_strided_slice %3 {offsets = [0, 0, 1, 0], sizes = [1, 18, 15, 4], strides = [1, 1, 1, 1]} : vector<1x18x16x4xf32> to vector<1x18x15x4xf32>
    %8 = vector.extract_strided_slice %3 {offsets = [0, 0, 14, 0], sizes = [1, 18, 1, 4], strides = [1, 1, 1, 1]} : vector<1x18x16x4xf32> to vector<1x18x1x4xf32>
    %9 = tpu.concatenate %7, %8 in 2 : vector<1x18x15x4xf32>, vector<1x18x1x4xf32> -> vector<1x18x16x4xf32>
    %10 = tpu.concatenate %6, %3, %9 in 3 : vector<1x18x16x4xf32>, vector<1x18x16x4xf32>, vector<1x18x16x4xf32> -> vector<1x18x16x12xf32>
    %cst = arith.constant 0.000000e+00 : f32
    %11 = vector.broadcast %cst : f32 to vector<256x4xf32>
    %12 = vector.extract_strided_slice %10 {offsets = [0, 0, 0, 0], sizes = [1, 16, 16, 12], strides = [1, 1, 1, 1]} : vector<1x18x16x12xf32> to vector<1x16x16x12xf32>
    %13 = vector.shape_cast %12 : vector<1x16x16x12xf32> to vector<256x12xf32>
    %c0_3 = arith.constant 0 : index
    %c0_4 = arith.constant 0 : index
    %14 = vector.load %arg2[%c0_3, %c0_4] : memref<36x4xf32, #tpu.memory_space<vmem>>, vector<12x4xf32>
    %cst_5 = arith.constant dense<0.000000e+00> : vector<256x4xf32>
    %15 = tpu.matmul %13, %14, %cst_5 {dimension_numbers = #tpu.dot_dimension_numbers<[1], [0], [0], [1], [0, 0, 1, 1], [], []>} : vector<256x12xf32>, vector<12x4xf32>, vector<256x4xf32> -> vector<256x4xf32>
    %16 = arith.addf %11, %15 : vector<256x4xf32>
    %17 = vector.extract_strided_slice %10 {offsets = [0, 1, 0, 0], sizes = [1, 16, 16, 12], strides = [1, 1, 1, 1]} : vector<1x18x16x12xf32> to vector<1x16x16x12xf32>
    %18 = vector.shape_cast %17 : vector<1x16x16x12xf32> to vector<256x12xf32>
    %c12 = arith.constant 12 : index
    %c0_6 = arith.constant 0 : index
    %19 = vector.load %arg2[%c12, %c0_6] : memref<36x4xf32, #tpu.memory_space<vmem>>, vector<12x4xf32>
    %cst_7 = arith.constant dense<0.000000e+00> : vector<256x4xf32>
    %20 = tpu.matmul %18, %19, %cst_7 {dimension_numbers = #tpu.dot_dimension_numbers<[1], [0], [0], [1], [0, 0, 1, 1], [], []>} : vector<256x12xf32>, vector<12x4xf32>, vector<256x4xf32> -> vector<256x4xf32>
    %21 = arith.addf %16, %20 : vector<256x4xf32>
    %22 = vector.extract_strided_slice %10 {offsets = [0, 2, 0, 0], sizes = [1, 16, 16, 12], strides = [1, 1, 1, 1]} : vector<1x18x16x12xf32> to vector<1x16x16x12xf32>
    %23 = vector.shape_cast %22 : vector<1x16x16x12xf32> to vector<256x12xf32>
    %c24 = arith.constant 24 : index
    %c0_8 = arith.constant 0 : index
    %24 = vector.load %arg2[%c24, %c0_8] : memref<36x4xf32, #tpu.memory_space<vmem>>, vector<12x4xf32>
    %cst_9 = arith.constant dense<0.000000e+00> : vector<256x4xf32>
    %25 = tpu.matmul %23, %24, %cst_9 {dimension_numbers = #tpu.dot_dimension_numbers<[1], [0], [0], [1], [0, 0, 1, 1], [], []>} : vector<256x12xf32>, vector<12x4xf32>, vector<256x4xf32> -> vector<256x4xf32>
    %26 = arith.addf %21, %25 : vector<256x4xf32>
    %27 = vector.shape_cast %26 : vector<256x4xf32> to vector<1x256x4xf32>
    %cst_10 = arith.constant dense<0.000000e+00> : vector<1x4xf32>
    %28 = vector.multi_reduction <add>, %27, %cst_10 [1] : vector<1x256x4xf32> to vector<1x4xf32>
    %29 = vector.shape_cast %28 : vector<1x4xf32> to vector<1x1x4xf32>
    %30 = arith.mulf %27, %27 : vector<1x256x4xf32>
    %cst_11 = arith.constant dense<0.000000e+00> : vector<1x4xf32>
    %31 = vector.multi_reduction <add>, %30, %cst_11 [1] : vector<1x256x4xf32> to vector<1x4xf32>
    %32 = vector.shape_cast %31 : vector<1x4xf32> to vector<1x1x4xf32>
    %cst_12 = arith.constant 3.906250e-03 : f32
    %33 = vector.broadcast %cst_12 : f32 to vector<1x1x4xf32>
    %34 = arith.mulf %29, %33 : vector<1x1x4xf32>
    %cst_13 = arith.constant 3.906250e-03 : f32
    %35 = vector.broadcast %cst_13 : f32 to vector<1x1x4xf32>
    %36 = arith.mulf %32, %35 : vector<1x1x4xf32>
    %37 = arith.mulf %34, %34 : vector<1x1x4xf32>
    %38 = arith.subf %36, %37 : vector<1x1x4xf32>
    %cst_14 = arith.constant 0.000000e+00 : f32
    %39 = vector.broadcast %cst_14 : f32 to vector<1x1x4xf32>
    %40 = arith.maximumf %38, %39 : vector<1x1x4xf32>
    %41 = vector.broadcast %34 : vector<1x1x4xf32> to vector<1x256x4xf32>
    %42 = arith.subf %27, %41 : vector<1x256x4xf32>
    %cst_15 = arith.constant 9.99999974E-6 : f32
    %43 = vector.broadcast %cst_15 : f32 to vector<1x1x4xf32>
    %44 = arith.addf %40, %43 : vector<1x1x4xf32>
    %45 = math.rsqrt %44 : vector<1x1x4xf32>
    %46 = vector.broadcast %45 : vector<1x1x4xf32> to vector<1x256x4xf32>
    %47 = arith.mulf %42, %46 : vector<1x256x4xf32>
    %48 = vector.shape_cast %47 : vector<1x256x4xf32> to vector<256x4xf32>
    %cst_16 = arith.constant 0.000000e+00 : f32
    %49 = vector.broadcast %cst_16 : f32 to vector<256x4xf32>
    %50 = arith.maximumf %48, %49 : vector<256x4xf32>
    %51 = vector.shape_cast %50 : vector<256x4xf32> to vector<1x16x16x4xf32>
    %52 = vector.extract_strided_slice %51 {offsets = [0, 1, 0, 0], sizes = [1, 1, 16, 4], strides = [1, 1, 1, 1]} : vector<1x16x16x4xf32> to vector<1x1x16x4xf32>
    %53 = vector.extract_strided_slice %51 {offsets = [0, 14, 0, 0], sizes = [1, 1, 16, 4], strides = [1, 1, 1, 1]} : vector<1x16x16x4xf32> to vector<1x1x16x4xf32>
    %54 = tpu.concatenate %52, %51, %53 in 1 : vector<1x1x16x4xf32>, vector<1x16x16x4xf32>, vector<1x1x16x4xf32> -> vector<1x18x16x4xf32>
    %55 = vector.extract_strided_slice %54 {offsets = [0, 0, 1, 0], sizes = [1, 18, 1, 4], strides = [1, 1, 1, 1]} : vector<1x18x16x4xf32> to vector<1x18x1x4xf32>
    %56 = vector.extract_strided_slice %54 {offsets = [0, 0, 0, 0], sizes = [1, 18, 15, 4], strides = [1, 1, 1, 1]} : vector<1x18x16x4xf32> to vector<1x18x15x4xf32>
    %57 = tpu.concatenate %55, %56 in 2 : vector<1x18x1x4xf32>, vector<1x18x15x4xf32> -> vector<1x18x16x4xf32>
    %58 = vector.extract_strided_slice %54 {offsets = [0, 0, 1, 0], sizes = [1, 18, 15, 4], strides = [1, 1, 1, 1]} : vector<1x18x16x4xf32> to vector<1x18x15x4xf32>
    %59 = vector.extract_strided_slice %54 {offsets = [0, 0, 14, 0], sizes = [1, 18, 1, 4], strides = [1, 1, 1, 1]} : vector<1x18x16x4xf32> to vector<1x18x1x4xf32>
    %60 = tpu.concatenate %58, %59 in 2 : vector<1x18x15x4xf32>, vector<1x18x1x4xf32> -> vector<1x18x16x4xf32>
    %61 = tpu.concatenate %57, %54, %60 in 3 : vector<1x18x16x4xf32>, vector<1x18x16x4xf32>, vector<1x18x16x4xf32> -> vector<1x18x16x12xf32>
    %cst_17 = arith.constant 0.000000e+00 : f32
    %62 = vector.broadcast %cst_17 : f32 to vector<256x4xf32>
    %63 = vector.extract_strided_slice %61 {offsets = [0, 0, 0, 0], sizes = [1, 16, 16, 12], strides = [1, 1, 1, 1]} : vector<1x18x16x12xf32> to vector<1x16x16x12xf32>
    %64 = vector.shape_cast %63 : vector<1x16x16x12xf32> to vector<256x12xf32>
    %c0_18 = arith.constant 0 : index
    %c0_19 = arith.constant 0 : index
    %65 = vector.load %arg3[%c0_18, %c0_19] : memref<36x4xf32, #tpu.memory_space<vmem>>, vector<12x4xf32>
    %cst_20 = arith.constant dense<0.000000e+00> : vector<256x4xf32>
    %66 = tpu.matmul %64, %65, %cst_20 {dimension_numbers = #tpu.dot_dimension_numbers<[1], [0], [0], [1], [0, 0, 1, 1], [], []>} : vector<256x12xf32>, vector<12x4xf32>, vector<256x4xf32> -> vector<256x4xf32>
    %67 = arith.addf %62, %66 : vector<256x4xf32>
    %68 = vector.extract_strided_slice %61 {offsets = [0, 1, 0, 0], sizes = [1, 16, 16, 12], strides = [1, 1, 1, 1]} : vector<1x18x16x12xf32> to vector<1x16x16x12xf32>
    %69 = vector.shape_cast %68 : vector<1x16x16x12xf32> to vector<256x12xf32>
    %c12_21 = arith.constant 12 : index
    %c0_22 = arith.constant 0 : index
    %70 = vector.load %arg3[%c12_21, %c0_22] : memref<36x4xf32, #tpu.memory_space<vmem>>, vector<12x4xf32>
    %cst_23 = arith.constant dense<0.000000e+00> : vector<256x4xf32>
    %71 = tpu.matmul %69, %70, %cst_23 {dimension_numbers = #tpu.dot_dimension_numbers<[1], [0], [0], [1], [0, 0, 1, 1], [], []>} : vector<256x12xf32>, vector<12x4xf32>, vector<256x4xf32> -> vector<256x4xf32>
    %72 = arith.addf %67, %71 : vector<256x4xf32>
    %73 = vector.extract_strided_slice %61 {offsets = [0, 2, 0, 0], sizes = [1, 16, 16, 12], strides = [1, 1, 1, 1]} : vector<1x18x16x12xf32> to vector<1x16x16x12xf32>
    %74 = vector.shape_cast %73 : vector<1x16x16x12xf32> to vector<256x12xf32>
    %c24_24 = arith.constant 24 : index
    %c0_25 = arith.constant 0 : index
    %75 = vector.load %arg3[%c24_24, %c0_25] : memref<36x4xf32, #tpu.memory_space<vmem>>, vector<12x4xf32>
    %cst_26 = arith.constant dense<0.000000e+00> : vector<256x4xf32>
    %76 = tpu.matmul %74, %75, %cst_26 {dimension_numbers = #tpu.dot_dimension_numbers<[1], [0], [0], [1], [0, 0, 1, 1], [], []>} : vector<256x12xf32>, vector<12x4xf32>, vector<256x4xf32> -> vector<256x4xf32>
    %77 = arith.addf %72, %76 : vector<256x4xf32>
    %78 = vector.shape_cast %77 : vector<256x4xf32> to vector<1x256x4xf32>
    %cst_27 = arith.constant dense<0.000000e+00> : vector<1x4xf32>
    %79 = vector.multi_reduction <add>, %78, %cst_27 [1] : vector<1x256x4xf32> to vector<1x4xf32>
    %80 = vector.shape_cast %79 : vector<1x4xf32> to vector<1x1x4xf32>
    %81 = arith.mulf %78, %78 : vector<1x256x4xf32>
    %cst_28 = arith.constant dense<0.000000e+00> : vector<1x4xf32>
    %82 = vector.multi_reduction <add>, %81, %cst_28 [1] : vector<1x256x4xf32> to vector<1x4xf32>
    %83 = vector.shape_cast %82 : vector<1x4xf32> to vector<1x1x4xf32>
    %cst_29 = arith.constant 3.906250e-03 : f32
    %84 = vector.broadcast %cst_29 : f32 to vector<1x1x4xf32>
    %85 = arith.mulf %80, %84 : vector<1x1x4xf32>
    %cst_30 = arith.constant 3.906250e-03 : f32
    %86 = vector.broadcast %cst_30 : f32 to vector<1x1x4xf32>
    %87 = arith.mulf %83, %86 : vector<1x1x4xf32>
    %88 = arith.mulf %85, %85 : vector<1x1x4xf32>
    %89 = arith.subf %87, %88 : vector<1x1x4xf32>
    %cst_31 = arith.constant 0.000000e+00 : f32
    %90 = vector.broadcast %cst_31 : f32 to vector<1x1x4xf32>
    %91 = arith.maximumf %89, %90 : vector<1x1x4xf32>
    %92 = vector.broadcast %85 : vector<1x1x4xf32> to vector<1x256x4xf32>
    %93 = arith.subf %78, %92 : vector<1x256x4xf32>
    %cst_32 = arith.constant 9.99999974E-6 : f32
    %94 = vector.broadcast %cst_32 : f32 to vector<1x1x4xf32>
    %95 = arith.addf %91, %94 : vector<1x1x4xf32>
    %96 = math.rsqrt %95 : vector<1x1x4xf32>
    %97 = vector.broadcast %96 : vector<1x1x4xf32> to vector<1x256x4xf32>
    %98 = arith.mulf %93, %97 : vector<1x256x4xf32>
    %99 = vector.shape_cast %98 : vector<1x256x4xf32> to vector<256x4xf32>
    %100 = vector.shape_cast %99 : vector<256x4xf32> to vector<1x16x16x4xf32>
    %101 = arith.addf %100, %0 : vector<1x16x16x4xf32>
    %c0_33 = arith.constant 0 : index
    %c0_34 = arith.constant 0 : index
    %c0_35 = arith.constant 0 : index
    %c0_36 = arith.constant 0 : index
    %102 = vector.load %arg4[%c0_33, %c0_34, %c0_35, %c0_36] : memref<1x16x16x4xf32, #tpu.memory_space<vmem>>, vector<1x16x16x4xf32>
    tpu.vector_store %arg4[%c0_33, %c0_34, %c0_35, %c0_36], %101 {strides = array<i32>} : memref<1x16x16x4xf32, #tpu.memory_space<vmem>>, vector<1x16x16x4xf32>,
    return
  }
  func.func @transform_0(%arg0: i32) -> (i32, i32, i32, i32) {
    %c0_i32 = arith.constant 0 : i32
    %c0_i32_0 = arith.constant 0 : i32
    %c0_i32_1 = arith.constant 0 : i32
    %c0_i32_2 = arith.constant 0 : i32
    return %arg0, %c0_i32, %c0_i32_0, %c0_i32_1 : i32, i32, i32, i32
  }
  func.func @transform_1(%arg0: i32) -> (i32, i32) {
    %c0_i32 = arith.constant 0 : i32
    %c0_i32_0 = arith.constant 0 : i32
    %c0_i32_1 = arith.constant 0 : i32
    return %c0_i32, %c0_i32_0 : i32, i32
  }
  func.func @transform_2(%arg0: i32) -> (i32, i32) {
    %c0_i32 = arith.constant 0 : i32
    %c0_i32_0 = arith.constant 0 : i32
    %c0_i32_1 = arith.constant 0 : i32
    return %c0_i32, %c0_i32_0 : i32, i32
  }
  func.func @transform_3(%arg0: i32) -> (i32, i32, i32, i32) {
    %c0_i32 = arith.constant 0 : i32
    %c0_i32_0 = arith.constant 0 : i32
    %c0_i32_1 = arith.constant 0 : i32
    %c0_i32_2 = arith.constant 0 : i32
    return %arg0, %c0_i32, %c0_i32_0, %c0_i32_1 : i32, i32, i32, i32
  }
}

module attributes {stable_mosaic.version = 11 : i64} {
  func.func @residual_block_kernel(%arg0: i32, %arg1: memref<1x16x16x4xf32, #tpu.memory_space<vmem>>, %arg2: memref<36x4xf32, #tpu.memory_space<vmem>>, %arg3: memref<36x4xf32, #tpu.memory_space<vmem>>, %arg4: memref<1x16x16x4xf32, #tpu.memory_space<vmem>>) attributes {dimension_semantics = [#tpu.dimension_semantics<parallel>], iteration_bounds = array<i64: 2>, scalar_prefetch = 0 : i64, scratch_operands = 0 : i64, tpu.core_type = #tpu.core_type<tc>, window_params = [{transform_indices = @transform_0, window_bounds = array<i64: 1, 16, 16, 4>}, {pipeline_mode = #tpu.pipeline_mode<synchronous>, transform_indices = @transform_1, window_bounds = array<i64: 36, 4>}, {pipeline_mode = #tpu.pipeline_mode<synchronous>, transform_indices = @transform_2, window_bounds = array<i64: 36, 4>}, {transform_indices = @transform_3, window_bounds = array<i64: 1, 16, 16, 4>}]} {
    %c0 = arith.constant 0 : index
    %c0_0 = arith.constant 0 : index
    %c0_1 = arith.constant 0 : index
    %c0_2 = arith.constant 0 : index
    %0 = vector.load %arg1[%c0, %c0_0, %c0_1, %c0_2] : memref<1x16x16x4xf32, #tpu.memory_space<vmem>>, vector<1x16x16x4xf32>
    %1 = vector.extract_strided_slice %0 {offsets = [0, 1, 0, 0], sizes = [1, 1, 16, 4], strides = [1, 1, 1, 1]} : vector<1x16x16x4xf32> to vector<1x1x16x4xf32>
    %2 = vector.extract_strided_slice %0 {offsets = [0, 14, 0, 0], sizes = [1, 1, 16, 4], strides = [1, 1, 1, 1]} : vector<1x16x16x4xf32> to vector<1x1x16x4xf32>
    %3 = tpu.concatenate %1, %0, %2 in 1 : vector<1x1x16x4xf32>, vector<1x16x16x4xf32>, vector<1x1x16x4xf32> -> vector<1x18x16x4xf32>
    %4 = vector.extract_strided_slice %3 {offsets = [0, 0, 1, 0], sizes = [1, 18, 1, 4], strides = [1, 1, 1, 1]} : vector<1x18x16x4xf32> to vector<1x18x1x4xf32>
    %5 = vector.extract_strided_slice %3 {offsets = [0, 0, 0, 0], sizes = [1, 18, 15, 4], strides = [1, 1, 1, 1]} : vector<1x18x16x4xf32> to vector<1x18x15x4xf32>
    %6 = tpu.concatenate %4, %5 in 2 : vector<1x18x1x4xf32>, vector<1x18x15x4xf32> -> vector<1x18x16x4xf32>
    %7 = vector.extract_strided_slice %3 {offsets = [0, 0, 1, 0], sizes = [1, 18, 15, 4], strides = [1, 1, 1, 1]} : vector<1x18x16x4xf32> to vector<1x18x15x4xf32>
    %8 = vector.extract_strided_slice %3 {offsets = [0, 0, 14, 0], sizes = [1, 18, 1, 4], strides = [1, 1, 1, 1]} : vector<1x18x16x4xf32> to vector<1x18x1x4xf32>
    %9 = tpu.concatenate %7, %8 in 2 : vector<1x18x15x4xf32>, vector<1x18x1x4xf32> -> vector<1x18x16x4xf32>
    %10 = tpu.concatenate %6, %3, %9 in 3 : vector<1x18x16x4xf32>, vector<1x18x16x4xf32>, vector<1x18x16x4xf32> -> vector<1x18x16x12xf32>
    %cst = arith.constant 0.000000e+00 : f32
    %11 = vector.broadcast %cst : f32 to vector<256x4xf32>
    %12 = vector.extract_strided_slice %10 {offsets = [0, 0, 0, 0], sizes = [1, 16, 16, 12], strides = [1, 1, 1, 1]} : vector<1x18x16x12xf32> to vector<1x16x16x12xf32>
    %13 = vector.shape_cast %12 : vector<1x16x16x12xf32> to vector<256x12xf32>
    %c0_3 = arith.constant 0 : index
    %c0_4 = arith.constant 0 : index
    %14 = vector.load %arg2[%c0_3, %c0_4] : memref<36x4xf32, #tpu.memory_space<vmem>>, vector<12x4xf32>
    %cst_5 = arith.constant dense<0.000000e+00> : vector<256x4xf32>
    %15 = tpu.matmul %13, %14, %cst_5 {dimension_numbers = #tpu.dot_dimension_numbers<[1], [0], [0], [1], [0, 0, 1, 1], [], []>} : vector<256x12xf32>, vector<12x4xf32>, vector<256x4xf32> -> vector<256x4xf32>
    %16 = arith.addf %11, %15 : vector<256x4xf32>
    %17 = vector.extract_strided_slice %10 {offsets = [0, 1, 0, 0], sizes = [1, 16, 16, 12], strides = [1, 1, 1, 1]} : vector<1x18x16x12xf32> to vector<1x16x16x12xf32>
    %18 = vector.shape_cast %17 : vector<1x16x16x12xf32> to vector<256x12xf32>
    %c12 = arith.constant 12 : index
    %c0_6 = arith.constant 0 : index
    %19 = vector.load %arg2[%c12, %c0_6] : memref<36x4xf32, #tpu.memory_space<vmem>>, vector<12x4xf32>
    %cst_7 = arith.constant dense<0.000000e+00> : vector<256x4xf32>
    %20 = tpu.matmul %18, %19, %cst_7 {dimension_numbers = #tpu.dot_dimension_numbers<[1], [0], [0], [1], [0, 0, 1, 1], [], []>} : vector<256x12xf32>, vector<12x4xf32>, vector<256x4xf32> -> vector<256x4xf32>
    %21 = arith.addf %16, %20 : vector<256x4xf32>
    %22 = vector.extract_strided_slice %10 {offsets = [0, 2, 0, 0], sizes = [1, 16, 16, 12], strides = [1, 1, 1, 1]} : vector<1x18x16x12xf32> to vector<1x16x16x12xf32>
    %23 = vector.shape_cast %22 : vector<1x16x16x12xf32> to vector<256x12xf32>
    %c24 = arith.constant 24 : index
    %c0_8 = arith.constant 0 : index
    %24 = vector.load %arg2[%c24, %c0_8] : memref<36x4xf32, #tpu.memory_space<vmem>>, vector<12x4xf32>
    %cst_9 = arith.constant dense<0.000000e+00> : vector<256x4xf32>
    %25 = tpu.matmul %23, %24, %cst_9 {dimension_numbers = #tpu.dot_dimension_numbers<[1], [0], [0], [1], [0, 0, 1, 1], [], []>} : vector<256x12xf32>, vector<12x4xf32>, vector<256x4xf32> -> vector<256x4xf32>
    %26 = arith.addf %21, %25 : vector<256x4xf32>
    %27 = vector.shape_cast %26 : vector<256x4xf32> to vector<1x256x4xf32>
    %cst_10 = arith.constant dense<0.000000e+00> : vector<1x4xf32>
    %28 = vector.multi_reduction <add>, %27, %cst_10 [1] : vector<1x256x4xf32> to vector<1x4xf32>
    %29 = vector.shape_cast %28 : vector<1x4xf32> to vector<1x1x4xf32>
    %30 = arith.mulf %27, %27 : vector<1x256x4xf32>
    %cst_11 = arith.constant dense<0.000000e+00> : vector<1x4xf32>
    %31 = vector.multi_reduction <add>, %30, %cst_11 [1] : vector<1x256x4xf32> to vector<1x4xf32>
    %32 = vector.shape_cast %31 : vector<1x4xf32> to vector<1x1x4xf32>
    %cst_12 = arith.constant 3.906250e-03 : f32
    %33 = vector.broadcast %cst_12 : f32 to vector<1x1x4xf32>
    %34 = arith.mulf %29, %33 : vector<1x1x4xf32>
    %cst_13 = arith.constant 3.906250e-03 : f32
    %35 = vector.broadcast %cst_13 : f32 to vector<1x1x4xf32>
    %36 = arith.mulf %32, %35 : vector<1x1x4xf32>
    %37 = arith.mulf %34, %34 : vector<1x1x4xf32>
    %38 = arith.subf %36, %37 : vector<1x1x4xf32>
    %cst_14 = arith.constant 0.000000e+00 : f32
    %39 = vector.broadcast %cst_14 : f32 to vector<1x1x4xf32>
    %40 = arith.maximumf %38, %39 : vector<1x1x4xf32>
    %41 = vector.broadcast %34 : vector<1x1x4xf32> to vector<1x256x4xf32>
    %42 = arith.subf %27, %41 : vector<1x256x4xf32>
    %cst_15 = arith.constant 9.99999974E-6 : f32
    %43 = vector.broadcast %cst_15 : f32 to vector<1x1x4xf32>
    %44 = arith.addf %40, %43 : vector<1x1x4xf32>
    %45 = math.rsqrt %44 : vector<1x1x4xf32>
    %46 = vector.broadcast %45 : vector<1x1x4xf32> to vector<1x256x4xf32>
    %47 = arith.mulf %42, %46 : vector<1x256x4xf32>
    %48 = vector.shape_cast %47 : vector<1x256x4xf32> to vector<256x4xf32>
    %cst_16 = arith.constant 0.000000e+00 : f32
    %49 = vector.broadcast %cst_16 : f32 to vector<256x4xf32>
    %50 = arith.maximumf %48, %49 : vector<256x4xf32>
    %51 = vector.shape_cast %50 : vector<256x4xf32> to vector<1x16x16x4xf32>
    %52 = vector.extract_strided_slice %51 {offsets = [0, 1, 0, 0], sizes = [1, 1, 16, 4], strides = [1, 1, 1, 1]} : vector<1x16x16x4xf32> to vector<1x1x16x4xf32>
    %53 = vector.extract_strided_slice %51 {offsets = [0, 14, 0, 0], sizes = [1, 1, 16, 4], strides = [1, 1, 1, 1]} : vector<1x16x16x4xf32> to vector<1x1x16x4xf32>
    %54 = tpu.concatenate %52, %51, %53 in 1 : vector<1x1x16x4xf32>, vector<1x16x16x4xf32>, vector<1x1x16x4xf32> -> vector<1x18x16x4xf32>
    %55 = vector.extract_strided_slice %54 {offsets = [0, 0, 1, 0], sizes = [1, 18, 1, 4], strides = [1, 1, 1, 1]} : vector<1x18x16x4xf32> to vector<1x18x1x4xf32>
    %56 = vector.extract_strided_slice %54 {offsets = [0, 0, 0, 0], sizes = [1, 18, 15, 4], strides = [1, 1, 1, 1]} : vector<1x18x16x4xf32> to vector<1x18x15x4xf32>
    %57 = tpu.concatenate %55, %56 in 2 : vector<1x18x1x4xf32>, vector<1x18x15x4xf32> -> vector<1x18x16x4xf32>
    %58 = vector.extract_strided_slice %54 {offsets = [0, 0, 1, 0], sizes = [1, 18, 15, 4], strides = [1, 1, 1, 1]} : vector<1x18x16x4xf32> to vector<1x18x15x4xf32>
    %59 = vector.extract_strided_slice %54 {offsets = [0, 0, 14, 0], sizes = [1, 18, 1, 4], strides = [1, 1, 1, 1]} : vector<1x18x16x4xf32> to vector<1x18x1x4xf32>
    %60 = tpu.concatenate %58, %59 in 2 : vector<1x18x15x4xf32>, vector<1x18x1x4xf32> -> vector<1x18x16x4xf32>
    %61 = tpu.concatenate %57, %54, %60 in 3 : vector<1x18x16x4xf32>, vector<1x18x16x4xf32>, vector<1x18x16x4xf32> -> vector<1x18x16x12xf32>
    %cst_17 = arith.constant 0.000000e+00 : f32
    %62 = vector.broadcast %cst_17 : f32 to vector<256x4xf32>
    %63 = vector.extract_strided_slice %61 {offsets = [0, 0, 0, 0], sizes = [1, 16, 16, 12], strides = [1, 1, 1, 1]} : vector<1x18x16x12xf32> to vector<1x16x16x12xf32>
    %64 = vector.shape_cast %63 : vector<1x16x16x12xf32> to vector<256x12xf32>
    %c0_18 = arith.constant 0 : index
    %c0_19 = arith.constant 0 : index
    %65 = vector.load %arg3[%c0_18, %c0_19] : memref<36x4xf32, #tpu.memory_space<vmem>>, vector<12x4xf32>
    %cst_20 = arith.constant dense<0.000000e+00> : vector<256x4xf32>
    %66 = tpu.matmul %64, %65, %cst_20 {dimension_numbers = #tpu.dot_dimension_numbers<[1], [0], [0], [1], [0, 0, 1, 1], [], []>} : vector<256x12xf32>, vector<12x4xf32>, vector<256x4xf32> -> vector<256x4xf32>
    %67 = arith.addf %62, %66 : vector<256x4xf32>
    %68 = vector.extract_strided_slice %61 {offsets = [0, 1, 0, 0], sizes = [1, 16, 16, 12], strides = [1, 1, 1, 1]} : vector<1x18x16x12xf32> to vector<1x16x16x12xf32>
    %69 = vector.shape_cast %68 : vector<1x16x16x12xf32> to vector<256x12xf32>
    %c12_21 = arith.constant 12 : index
    %c0_22 = arith.constant 0 : index
    %70 = vector.load %arg3[%c12_21, %c0_22] : memref<36x4xf32, #tpu.memory_space<vmem>>, vector<12x4xf32>
    %cst_23 = arith.constant dense<0.000000e+00> : vector<256x4xf32>
    %71 = tpu.matmul %69, %70, %cst_23 {dimension_numbers = #tpu.dot_dimension_numbers<[1], [0], [0], [1], [0, 0, 1, 1], [], []>} : vector<256x12xf32>, vector<12x4xf32>, vector<256x4xf32> -> vector<256x4xf32>
    %72 = arith.addf %67, %71 : vector<256x4xf32>
    %73 = vector.extract_strided_slice %61 {offsets = [0, 2, 0, 0], sizes = [1, 16, 16, 12], strides = [1, 1, 1, 1]} : vector<1x18x16x12xf32> to vector<1x16x16x12xf32>
    %74 = vector.shape_cast %73 : vector<1x16x16x12xf32> to vector<256x12xf32>
    %c24_24 = arith.constant 24 : index
    %c0_25 = arith.constant 0 : index
    %75 = vector.load %arg3[%c24_24, %c0_25] : memref<36x4xf32, #tpu.memory_space<vmem>>, vector<12x4xf32>
    %cst_26 = arith.constant dense<0.000000e+00> : vector<256x4xf32>
    %76 = tpu.matmul %74, %75, %cst_26 {dimension_numbers = #tpu.dot_dimension_numbers<[1], [0], [0], [1], [0, 0, 1, 1], [], []>} : vector<256x12xf32>, vector<12x4xf32>, vector<256x4xf32> -> vector<256x4xf32>
    %77 = arith.addf %72, %76 : vector<256x4xf32>
    %78 = vector.shape_cast %77 : vector<256x4xf32> to vector<1x256x4xf32>
    %cst_27 = arith.constant dense<0.000000e+00> : vector<1x4xf32>
    %79 = vector.multi_reduction <add>, %78, %cst_27 [1] : vector<1x256x4xf32> to vector<1x4xf32>
    %80 = vector.shape_cast %79 : vector<1x4xf32> to vector<1x1x4xf32>
    %81 = arith.mulf %78, %78 : vector<1x256x4xf32>
    %cst_28 = arith.constant dense<0.000000e+00> : vector<1x4xf32>
    %82 = vector.multi_reduction <add>, %81, %cst_28 [1] : vector<1x256x4xf32> to vector<1x4xf32>
    %83 = vector.shape_cast %82 : vector<1x4xf32> to vector<1x1x4xf32>
    %cst_29 = arith.constant 3.906250e-03 : f32
    %84 = vector.broadcast %cst_29 : f32 to vector<1x1x4xf32>
    %85 = arith.mulf %80, %84 : vector<1x1x4xf32>
    %cst_30 = arith.constant 3.906250e-03 : f32
    %86 = vector.broadcast %cst_30 : f32 to vector<1x1x4xf32>
    %87 = arith.mulf %83, %86 : vector<1x1x4xf32>
    %88 = arith.mulf %85, %85 : vector<1x1x4xf32>
    %89 = arith.subf %87, %88 : vector<1x1x4xf32>
    %cst_31 = arith.constant 0.000000e+00 : f32
    %90 = vector.broadcast %cst_31 : f32 to vector<1x1x4xf32>
    %91 = arith.maximumf %89, %90 : vector<1x1x4xf32>
    %92 = vector.broadcast %85 : vector<1x1x4xf32> to vector<1x256x4xf32>
    %93 = arith.subf %78, %92 : vector<1x256x4xf32>
    %cst_32 = arith.constant 9.99999974E-6 : f32
    %94 = vector.broadcast %cst_32 : f32 to vector<1x1x4xf32>
    %95 = arith.addf %91, %94 : vector<1x1x4xf32>
    %96 = math.rsqrt %95 : vector<1x1x4xf32>
    %97 = vector.broadcast %96 : vector<1x1x4xf32> to vector<1x256x4xf32>
    %98 = arith.mulf %93, %97 : vector<1x256x4xf32>
    %99 = vector.shape_cast %98 : vector<1x256x4xf32> to vector<256x4xf32>
    %100 = vector.shape_cast %99 : vector<256x4xf32> to vector<1x16x16x4xf32>
    %101 = arith.addf %100, %0 : vector<1x16x16x4xf32>
    %c0_33 = arith.constant 0 : index
    %c0_34 = arith.constant 0 : index
    %c0_35 = arith.constant 0 : index
    %c0_36 = arith.constant 0 : index
    %102 = vector.load %arg4[%c0_33, %c0_34, %c0_35, %c0_36] : memref<1x16x16x4xf32, #tpu.memory_space<vmem>>, vector<1x16x16x4xf32>
    tpu.vector_store %arg4[%c0_33, %c0_34, %c0_35, %c0_36], %101 {strides = array<i32>} : memref<1x16x16x4xf32, #tpu.memory_space<vmem>>, vector<1x16x16x4xf32>,
    return
  }
  func.func @transform_0(%arg0: i32) -> (i32, i32, i32, i32) {
    %c0_i32 = arith.constant 0 : i32
    %c0_i32_0 = arith.constant 0 : i32
    %c0_i32_1 = arith.constant 0 : i32
    %c0_i32_2 = arith.constant 0 : i32
    return %arg0, %c0_i32, %c0_i32_0, %c0_i32_1 : i32, i32, i32, i32
  }
  func.func @transform_1(%arg0: i32) -> (i32, i32) {
    %c0_i32 = arith.constant 0 : i32
    %c0_i32_0 = arith.constant 0 : i32
    %c0_i32_1 = arith.constant 0 : i32
    return %c0_i32, %c0_i32_0 : i32, i32
  }
  func.func @transform_2(%arg0: i32) -> (i32, i32) {
    %c0_i32 = arith.constant 0 : i32
    %c0_i32_0 = arith.constant 0 : i32
    %c0_i32_1 = arith.constant 0 : i32
    return %c0_i32, %c0_i32_0 : i32, i32
  }
  func.func @transform_3(%arg0: i32) -> (i32, i32, i32, i32) {
    %c0_i32 = arith.constant 0 : i32
    %c0_i32_0 = arith.constant 0 : i32
    %c0_i32_1 = arith.constant 0 : i32
    %c0_i32_2 = arith.constant 0 : i32
    return %arg0, %c0_i32, %c0_i32_0, %c0_i32_1 : i32, i32, i32, i32
  }
}

</mosaic_0001>

<llo_original>
// kernel: tpu_custom_call.1
$region0: #{tpu_custom_call.1}
  #allocation0 [shape = 'u32[]', space=smem, size = 0x4, offset = 0x4, fixed_abs, tag = 'smem constant byte address 0x4 - core index']
  #allocation1 [shape = 'u32[144,128]{1,0:T(1,128)}', space=vmem, size = 0x12000, scoped, tag = 'internal scratch']
  %s0 = inlined_call_operand.vmem [shape: f32[2,16,16,4], index: 0, kind: input, shape index: {}]
  %s1 = inlined_call_operand.vmem [shape: f32[36,4], index: 1, kind: input, shape index: {}]
  %s2 = inlined_call_operand.vmem [shape: f32[36,4], index: 2, kind: input, shape index: {}]
  %s3 = inlined_call_operand.vmem [shape: f32[2,16,16,4], index: 3, kind: output, shape index: {}]
  %s4 = sld [smem:[#allocation0]]
  $region45: #{tpu_custom_call.1} parent=0
    _
  %s6 = ssub.s32 1, %s4
  %s7 = scalar_select 0, %s6, %s4
  loop: start=0, step=1, limit=4
  $region2: #{tpu_custom_call.1} parent=0 // loop_pre_header
    _
  $region3: #{tpu_custom_call.1} parent=0 // loop_header
    %s9 = sphi 0, %s13
    %p10 = scmp.ge.s32.totalorder %s9, 4
    %s19 = sphi 0, %s21
    %s22 = sphi 0, %s19
    %s23 = sphi 0, %s22
    %s39 = sphi 0, %s23
    %s43 = sphi 0, %s43
    %s45 = sphi 0, %s43
    %s46 = sphi 0, %s45
    %s60 = sphi 0, %s46
    %s64 = sphi 0, %s64
    %s66 = sphi 0, %s64
    %s67 = sphi 0, %s66
    %s81 = sphi 0, %s67
    %s87 = sphi 0, %s89
    %s90 = sphi 0, %s87
    %s91 = sphi 0, %s90
    %s107 = sphi 0, %s91
  $region4: #{tpu_custom_call.1} parent=0 // loop_header_branch
    %12 = sbr.rel (%p10) target = $region8
  $region5: #{tpu_custom_call.1} parent=0 // loop_body
    %s14 = ssub.s32 %s9, 1
    %s15 = ssub.s32 %s9, 2
    %s16 = sadd.s32 %s9, 1
    %s17 = ssub.s32 %s9, %s16
    %p18 = scmp.eq.s32.totalorder %s17, 0
    %s20 = sadd.s32 %s19, 1
    %s21 = scalar_select %p18, %s19, %s20
    %p24 = pneg %p18
    %p25 = scmp.eq.s32.totalorder %s9, 1
    %p26 = por %p24, %p25
    %p27 = scmp.ne.s32.totalorder %s19, %s22
    %p28 = scmp.eq.s32.totalorder %s9, 0
    %p29 = por %p27, %p28
    %p30 = scmp.ne.s32.totalorder %s19, %s22
    %p31 = scmp.eq.s32.totalorder %s14, 1
    %p32 = por %p30, %p31
    %p33 = scmp.ne.s32.totalorder %s22, %s23
    %p34 = scmp.eq.s32.totalorder %s14, 0
    %p35 = por %p33, %p34
    %p36 = scmp.ne.s32.totalorder %s22, %s23
    %p37 = scmp.eq.s32.totalorder %s15, 1
    %p38 = por %p36, %p37
    %p40 = scmp.ne.s32.totalorder %s23, %s39
    %p41 = scmp.eq.s32.totalorder %s15, 0
    %p42 = por %p40, %p41
    %s44 = sadd.s32 %s43, 1
    %p47 = scmp.eq.s32.totalorder %s9, 1
    %p48 = scmp.ne.s32.totalorder %s43, %s45
    %p49 = scmp.eq.s32.totalorder %s9, 0
    %p50 = por %p48, %p49
    %p51 = scmp.ne.s32.totalorder %s43, %s45
    %p52 = scmp.eq.s32.totalorder %s14, 1
    %p53 = por %p51, %p52
    %p54 = scmp.ne.s32.totalorder %s45, %s46
    %p55 = scmp.eq.s32.totalorder %s14, 0
    %p56 = por %p54, %p55
    %p57 = scmp.ne.s32.totalorder %s45, %s46
    %p58 = scmp.eq.s32.totalorder %s15, 1
    %p59 = por %p57, %p58
    %p61 = scmp.ne.s32.totalorder %s46, %s60
    %p62 = scmp.eq.s32.totalorder %s15, 0
    %p63 = por %p61, %p62
    %s65 = sadd.s32 %s64, 1
    %p68 = scmp.eq.s32.totalorder %s9, 1
    %p69 = scmp.ne.s32.totalorder %s64, %s66
    %p70 = scmp.eq.s32.totalorder %s9, 0
    %p71 = por %p69, %p70
    %p72 = scmp.ne.s32.totalorder %s64, %s66
    %p73 = scmp.eq.s32.totalorder %s14, 1
    %p74 = por %p72, %p73
    %p75 = scmp.ne.s32.totalorder %s66, %s67
    %p76 = scmp.eq.s32.totalorder %s14, 0
    %p77 = por %p75, %p76
    %p78 = scmp.ne.s32.totalorder %s66, %s67
    %p79 = scmp.eq.s32.totalorder %s15, 1
    %p80 = por %p78, %p79
    %p82 = scmp.ne.s32.totalorder %s67, %s81
    %p83 = scmp.eq.s32.totalorder %s15, 0
    %p84 = por %p82, %p83
    %s85 = ssub.s32 %s9, %s16
    %p86 = scmp.eq.s32.totalorder %s85, 0
    %s88 = sadd.s32 %s87, 1
    %s89 = scalar_select %p86, %s87, %s88
    %p92 = pneg %p86
    %p93 = scmp.eq.s32.totalorder %s9, 1
    %p94 = por %p92, %p93
    %p95 = scmp.ne.s32.totalorder %s87, %s90
    %p96 = scmp.eq.s32.totalorder %s9, 0
    %p97 = por %p95, %p96
    %p98 = scmp.ne.s32.totalorder %s87, %s90
    %p99 = scmp.eq.s32.totalorder %s14, 1
    %p100 = por %p98, %p99
    %p101 = scmp.ne.s32.totalorder %s90, %s91
    %p102 = scmp.eq.s32.totalorder %s14, 0
    %p103 = por %p101, %p102
    %p104 = scmp.ne.s32.totalorder %s90, %s91
    %p105 = scmp.eq.s32.totalorder %s15, 1
    %p106 = por %p104, %p105
    %p108 = scmp.ne.s32.totalorder %s91, %s107
    %p109 = scmp.eq.s32.totalorder %s15, 0
    %p110 = por %p108, %p109
    %p111 = scmp.le.s32.totalorder 1, %s9
    %p112 = scmp.lt.s32.totalorder %s9, 3
    %p113 = pnand %p111, %p112
    %p114 = pneg %p113
    // Predicated region
    $region9: #{tpu_custom_call.1} parent=5 // pred_check
      _
    $region10: #{tpu_custom_call.1} parent=5 // pred_check_branch
      %116 = sbr.rel (%p113) target = $region12
    $region11: #{tpu_custom_call.1} parent=5 // pred_region
      %s117 = ssub.s32 %s9, 1
      // Predicated region
      $region13: #{tpu_custom_call.1} parent=11 // pred_check
        %p118 = pneg %p56
      $region14: #{tpu_custom_call.1} parent=11 // pred_check_branch
        %120 = sbr.rel (%p118) target = $region16
      $region15: #{tpu_custom_call.1} parent=11 // pred_region
        _
      $region16: #{tpu_custom_call.1} parent=11 // pred_fallthru
        _
      // Predicated region
      $region17: #{tpu_custom_call.1} parent=11 // pred_check
        %p121 = pneg %p77
      $region18: #{tpu_custom_call.1} parent=11 // pred_check_branch
        %123 = sbr.rel (%p121) target = $region20
      $region19: #{tpu_custom_call.1} parent=11 // pred_region
        _
      $region20: #{tpu_custom_call.1} parent=11 // pred_fallthru
        _
    $region12: #{tpu_custom_call.1} parent=5 // pred_fallthru
      _
    %p124 = scmp.lt.s32.totalorder %s9, 2
    // Predicated region
    $region21: #{tpu_custom_call.1} parent=5 // pred_check
      %p125 = pneg %p124
    $region22: #{tpu_custom_call.1} parent=5 // pred_check_branch
      %127 = sbr.rel (%p125) target = $region24
    $region23: #{tpu_custom_call.1} parent=5 // pred_region
      // Predicated region
      $region25: #{tpu_custom_call.1} parent=23 // pred_check
        %p128 = pneg %p29
      $region26: #{tpu_custom_call.1} parent=23 // pred_check_branch
        %130 = sbr.rel (%p128) target = $region28
      $region27: #{tpu_custom_call.1} parent=23 // pred_region
        %p131 = scmp.lt.s32.totalorder %s9, 1
        %s132 = scalar_select %p131, %s9, 1
        %s133 = smul.addr %s132, 32
        %s134 = smul.addr %s133, 8
        %s135 = scalar_lea.vmem %s0, %s134
      $region28: #{tpu_custom_call.1} parent=23 // pred_fallthru
        _
    $region24: #{tpu_custom_call.1} parent=5 // pred_fallthru
      _
    %p136 = scmp.le.s32.totalorder 1, %s9
    %p137 = scmp.lt.s32.totalorder %s9, 3
    %p138 = pnand %p136, %p137
    %p139 = pneg %p138
    // Predicated region
    $region29: #{tpu_custom_call.1} parent=5 // pred_check
      _
    $region30: #{tpu_custom_call.1} parent=5 // pred_check_branch
      %141 = sbr.rel (%p138) target = $region32
    $region31: #{tpu_custom_call.1} parent=5 // pred_region
      %s142 = ssub.s32 %s9, 1
      %p143 = scmp.lt.s32.totalorder %s14, 1
      %s144 = scalar_select %p143, %s14, 1
      %s145 = smul.addr %s144, 32
      %s146 = smul.addr %s145, 8
      %s147 = scalar_lea.vmem %s0, %s146
      %p148 = pneg %p35
      %p149 = pneg %p32
      %p150 = pneg %p56
      %p151 = pneg %p53
      %p152 = pneg %p77
      %p153 = pneg %p74
      %p154 = pneg %p103
      %p155 = pneg %p100
      %p156 = scmp.lt.s32.totalorder %s14, 1
      %s157 = scalar_select %p156, %s14, 1
      %s158 = smul.addr %s157, 32
      %s159 = smul.addr %s158, 8
      %s160 = scalar_lea.vmem %s3, %s159
      %p161 = scmp.lt.s32.totalorder %s14, 1
      %s162 = scalar_select %p161, %s14, 1
      %s163 = smul.addr %s162, 32
      %s164 = smul.addr %s163, 8
      %s165 = scalar_lea.vmem %s0, %s164
      %p166 = scmp.lt.s32.totalorder %s14, 1
      %s167 = scalar_select %p166, %s14, 1
      %s168 = smul.addr %s167, 32
      %s169 = smul.addr %s168, 8
      %s170 = scalar_lea.vmem %s3, %s169
      %v171 = vld [vmem:[%s165] sm:$0xff]
      %v172 = vld [vmem:[%s165 + $0x8] sm:$0xff]
      %v173 = vld [vmem:[%s165 + $0x10] sm:$0xff]
      %v174 = vld [vmem:[%s165 + $0x18] sm:$0xff]
      %v175 = vld [vmem:[%s165 + $0x20] sm:$0xff]
      %v176 = vld [vmem:[%s165 + $0x28] sm:$0xff]
      %v177 = vld [vmem:[%s165 + $0x30] sm:$0xff]
      %v178 = vld [vmem:[%s165 + $0x38] sm:$0xff]
      %v179 = vld [vmem:[%s165 + $0x40] sm:$0xff]
      %v180 = vld [vmem:[%s165 + $0x48] sm:$0xff]
      %v181 = vld [vmem:[%s165 + $0x50] sm:$0xff]
      %v182 = vld [vmem:[%s165 + $0x58] sm:$0xff]
      %v183 = vld [vmem:[%s165 + $0x60] sm:$0xff]
      %v184 = vld [vmem:[%s165 + $0x68] sm:$0xff]
      %v185 = vld [vmem:[%s165 + $0x70] sm:$0xff]
      %v186 = vld [vmem:[%s165 + $0x78] sm:$0xff]
      %v187 = vld [vmem:[%s165 + $0x80] sm:$0xff]
      %v188 = vld [vmem:[%s165 + $0x88] sm:$0xff]
      %v189 = vld [vmem:[%s165 + $0x90] sm:$0xff]
      %v190 = vld [vmem:[%s165 + $0x98] sm:$0xff]
      %v191 = vld [vmem:[%s165 + $0xa0] sm:$0xff]
      %v192 = vld [vmem:[%s165 + $0xa8] sm:$0xff]
      %v193 = vld [vmem:[%s165 + $0xb0] sm:$0xff]
      %v194 = vld [vmem:[%s165 + $0xb8] sm:$0xff]
      %v195 = vld [vmem:[%s165 + $0xc0] sm:$0xff]
      %v196 = vld [vmem:[%s165 + $0xc8] sm:$0xff]
      %v197 = vld [vmem:[%s165 + $0xd0] sm:$0xff]
      %v198 = vld [vmem:[%s165 + $0xd8] sm:$0xff]
      %v199 = vld [vmem:[%s165 + $0xe0] sm:$0xff]
      %v200 = vld [vmem:[%s165 + $0xe8] sm:$0xff]
      %v201 = vld [vmem:[%s165 + $0xf0] sm:$0xff]
      %v202 = vld [vmem:[%s165 + $0xf8] sm:$0xff]
      %v219 = vrot.slane %v173, 1
      %v220 = vrot.slane %v171, 1
      %v221 = vrot.slane %v175, 1
      %v222 = vrot.slane %v177, 1
      %v223 = vrot.slane %v179, 1
      %v224 = vrot.slane %v181, 1
      %v225 = vrot.slane %v183, 1
      %v226 = vrot.slane %v185, 1
      %v227 = vrot.slane %v187, 1
      %v228 = vrot.slane %v189, 1
      %v229 = vrot.slane %v191, 1
      %v230 = vrot.slane %v193, 1
      %v231 = vrot.slane %v195, 1
      %v232 = vrot.slane %v197, 1
      %v233 = vrot.slane %v199, 1
      %v234 = vrot.slane %v201, 1
      %vm267 = vcmask 1040384
      %v268 = vrot.slane %v173, 7
      %v269 = vrot.slane %v174, 7
      %v270 = vsel %vm267, %v268, %v269
      %v271 = vrot.slane %v171, 7
      %v272 = vrot.slane %v172, 7
      %v273 = vsel %vm267, %v271, %v272
      %v274 = vrot.slane %v175, 7
      %v275 = vrot.slane %v176, 7
      %v276 = vsel %vm267, %v274, %v275
      %v277 = vrot.slane %v177, 7
      %v278 = vrot.slane %v178, 7
      %v279 = vsel %vm267, %v277, %v278
      %v280 = vrot.slane %v179, 7
      %v281 = vrot.slane %v180, 7
      %v282 = vsel %vm267, %v280, %v281
      %v283 = vrot.slane %v181, 7
      %v284 = vrot.slane %v182, 7
      %v285 = vsel %vm267, %v283, %v284
      %v286 = vrot.slane %v183, 7
      %v287 = vrot.slane %v184, 7
      %v288 = vsel %vm267, %v286, %v287
      %v289 = vrot.slane %v185, 7
      %v290 = vrot.slane %v186, 7
      %v291 = vsel %vm267, %v289, %v290
      %v292 = vrot.slane %v187, 7
      %v293 = vrot.slane %v188, 7
      %v294 = vsel %vm267, %v292, %v293
      %v295 = vrot.slane %v189, 7
      %v296 = vrot.slane %v190, 7
      %v297 = vsel %vm267, %v295, %v296
      %v298 = vrot.slane %v191, 7
      %v299 = vrot.slane %v192, 7
      %v300 = vsel %vm267, %v298, %v299
      %v301 = vrot.slane %v193, 7
      %v302 = vrot.slane %v194, 7
      %v303 = vsel %vm267, %v301, %v302
      %v304 = vrot.slane %v195, 7
      %v305 = vrot.slane %v196, 7
      %v306 = vsel %vm267, %v304, %v305
      %v307 = vrot.slane %v197, 7
      %v308 = vrot.slane %v198, 7
      %v309 = vsel %vm267, %v307, %v308
      %v310 = vrot.slane %v199, 7
      %v311 = vrot.slane %v200, 7
      %v312 = vsel %vm267, %v310, %v311
      %v313 = vrot.slane %v201, 7
      %v314 = vrot.slane %v202, 7
      %v315 = vsel %vm267, %v313, %v314
      %v348 = vsel %vm267, %v219, %v268
      %v349 = vsel %vm267, %v220, %v271
      %v350 = vsel %vm267, %v221, %v274
      %v351 = vsel %vm267, %v222, %v277
      %v352 = vsel %vm267, %v223, %v280
      %v353 = vsel %vm267, %v224, %v283
      %v354 = vsel %vm267, %v225, %v286
      %v355 = vsel %vm267, %v226, %v289
      %v356 = vsel %vm267, %v227, %v292
      %v357 = vsel %vm267, %v228, %v295
      %v358 = vsel %vm267, %v229, %v298
      %v359 = vsel %vm267, %v230, %v301
      %v360 = vsel %vm267, %v231, %v304
      %v361 = vsel %vm267, %v232, %v307
      %v362 = vsel %vm267, %v233, %v310
      %v363 = vsel %vm267, %v234, %v313
      %vm364 = vcmask 1046528
      %v365 = vrot.slane %v174, 1
      %v366 = vsel %vm364, %v219, %v365
      %v367 = vrot.slane %v172, 1
      %v368 = vsel %vm364, %v220, %v367
      %v369 = vrot.slane %v176, 1
      %v370 = vsel %vm364, %v221, %v369
      %v371 = vrot.slane %v178, 1
      %v372 = vsel %vm364, %v222, %v371
      %v373 = vrot.slane %v180, 1
      %v374 = vsel %vm364, %v223, %v373
      %v375 = vrot.slane %v182, 1
      %v376 = vsel %vm364, %v224, %v375
      %v377 = vrot.slane %v184, 1
      %v378 = vsel %vm364, %v225, %v377
      %v379 = vrot.slane %v186, 1
      %v380 = vsel %vm364, %v226, %v379
      %v381 = vrot.slane %v188, 1
      %v382 = vsel %vm364, %v227, %v381
      %v383 = vrot.slane %v190, 1
      %v384 = vsel %vm364, %v228, %v383
      %v385 = vrot.slane %v192, 1
      %v386 = vsel %vm364, %v229, %v385
      %v387 = vrot.slane %v194, 1
      %v388 = vsel %vm364, %v230, %v387
      %v389 = vrot.slane %v196, 1
      %v390 = vsel %vm364, %v231, %v389
      %v391 = vrot.slane %v198, 1
      %v392 = vsel %vm364, %v232, %v391
      %v393 = vrot.slane %v200, 1
      %v394 = vsel %vm364, %v233, %v393
      %v395 = vrot.slane %v202, 1
      %v396 = vsel %vm364, %v234, %v395
      %v429 = vsel %vm364, %v365, %v269
      %v430 = vsel %vm364, %v367, %v272
      %v431 = vsel %vm364, %v369, %v275
      %v432 = vsel %vm364, %v371, %v278
      %v433 = vsel %vm364, %v373, %v281
      %v434 = vsel %vm364, %v375, %v284
      %v435 = vsel %vm364, %v377, %v287
      %v436 = vsel %vm364, %v379, %v290
      %v437 = vsel %vm364, %v381, %v293
      %v438 = vsel %vm364, %v383, %v296
      %v439 = vsel %vm364, %v385, %v299
      %v440 = vsel %vm364, %v387, %v302
      %v441 = vsel %vm364, %v389, %v305
      %v442 = vsel %vm364, %v391, %v308
      %v443 = vsel %vm364, %v393, %v311
      %v444 = vsel %vm364, %v395, %v314
      %445 = vrot.lane.b32.xlu0 %v173, 4
      %v446 = vpop.permute.xlu0 %445
      %447 = vrot.lane.b32.xlu0 %v174, 4
      %v448 = vpop.permute.xlu0 %447
      %449 = vrot.lane.b32.xlu0 %v171, 4
      %v450 = vpop.permute.xlu0 %449
      %451 = vrot.lane.b32.xlu0 %v172, 4
      %v452 = vpop.permute.xlu0 %451
      %453 = vrot.lane.b32.xlu0 %v175, 4
      %v454 = vpop.permute.xlu0 %453
      %455 = vrot.lane.b32.xlu0 %v176, 4
      %v456 = vpop.permute.xlu0 %455
      %457 = vrot.lane.b32.xlu0 %v177, 4
      %v458 = vpop.permute.xlu0 %457
      %459 = vrot.lane.b32.xlu0 %v178, 4
      %v460 = vpop.permute.xlu0 %459
      %461 = vrot.lane.b32.xlu0 %v179, 4
      %v462 = vpop.permute.xlu0 %461
      %463 = vrot.lane.b32.xlu0 %v180, 4
      %v464 = vpop.permute.xlu0 %463
      %465 = vrot.lane.b32.xlu0 %v181, 4
      %v466 = vpop.permute.xlu0 %465
      %467 = vrot.lane.b32.xlu0 %v182, 4
      %v468 = vpop.permute.xlu0 %467
      %469 = vrot.lane.b32.xlu0 %v183, 4
      %v470 = vpop.permute.xlu0 %469
      %471 = vrot.lane.b32.xlu0 %v184, 4
      %v472 = vpop.permute.xlu0 %471
      %473 = vrot.lane.b32.xlu0 %v185, 4
      %v474 = vpop.permute.xlu0 %473
      %475 = vrot.lane.b32.xlu0 %v186, 4
      %v476 = vpop.permute.xlu0 %475
      %477 = vrot.lane.b32.xlu0 %v187, 4
      %v478 = vpop.permute.xlu0 %477
      %479 = vrot.lane.b32.xlu0 %v188, 4
      %v480 = vpop.permute.xlu0 %479
      %481 = vrot.lane.b32.xlu0 %v189, 4
      %v482 = vpop.permute.xlu0 %481
      %483 = vrot.lane.b32.xlu0 %v190, 4
      %v484 = vpop.permute.xlu0 %483
      %485 = vrot.lane.b32.xlu0 %v191, 4
      %v486 = vpop.permute.xlu0 %485
      %487 = vrot.lane.b32.xlu0 %v192, 4
      %v488 = vpop.permute.xlu0 %487
      %489 = vrot.lane.b32.xlu0 %v193, 4
      %v490 = vpop.permute.xlu0 %489
      %491 = vrot.lane.b32.xlu0 %v194, 4
      %v492 = vpop.permute.xlu0 %491
      %493 = vrot.lane.b32.xlu0 %v195, 4
      %v494 = vpop.permute.xlu0 %493
      %495 = vrot.lane.b32.xlu0 %v196, 4
      %v496 = vpop.permute.xlu0 %495
      %497 = vrot.lane.b32.xlu0 %v197, 4
      %v498 = vpop.permute.xlu0 %497
      %499 = vrot.lane.b32.xlu0 %v198, 4
      %v500 = vpop.permute.xlu0 %499
      %501 = vrot.lane.b32.xlu0 %v199, 4
      %v502 = vpop.permute.xlu0 %501
      %503 = vrot.lane.b32.xlu0 %v200, 4
      %v504 = vpop.permute.xlu0 %503
      %505 = vrot.lane.b32.xlu0 %v201, 4
      %v506 = vpop.permute.xlu0 %505
      %507 = vrot.lane.b32.xlu0 %v202, 4
      %v508 = vpop.permute.xlu0 %507
      %557 = vrot.lane.b32.xlu0 %v366, 8
      %v558 = vpop.permute.xlu0 %557
      %559 = vrot.lane.b32.xlu0 %v429, 8
      %v560 = vpop.permute.xlu0 %559
      %561 = vrot.lane.b32.xlu0 %v368, 8
      %v562 = vpop.permute.xlu0 %561
      %563 = vrot.lane.b32.xlu0 %v430, 8
      %v564 = vpop.permute.xlu0 %563
      %565 = vrot.lane.b32.xlu0 %v370, 8
      %v566 = vpop.permute.xlu0 %565
      %567 = vrot.lane.b32.xlu0 %v431, 8
      %v568 = vpop.permute.xlu0 %567
      %569 = vrot.lane.b32.xlu0 %v372, 8
      %v570 = vpop.permute.xlu0 %569
      %571 = vrot.lane.b32.xlu0 %v432, 8
      %v572 = vpop.permute.xlu0 %571
      %573 = vrot.lane.b32.xlu0 %v374, 8
      %v574 = vpop.permute.xlu0 %573
      %575 = vrot.lane.b32.xlu0 %v433, 8
      %v576 = vpop.permute.xlu0 %575
      %577 = vrot.lane.b32.xlu0 %v376, 8
      %v578 = vpop.permute.xlu0 %577
      %579 = vrot.lane.b32.xlu0 %v434, 8
      %v580 = vpop.permute.xlu0 %579
      %581 = vrot.lane.b32.xlu0 %v378, 8
      %v582 = vpop.permute.xlu0 %581
      %583 = vrot.lane.b32.xlu0 %v435, 8
      %v584 = vpop.permute.xlu0 %583
      %585 = vrot.lane.b32.xlu0 %v380, 8
      %v586 = vpop.permute.xlu0 %585
      %587 = vrot.lane.b32.xlu0 %v436, 8
      %v588 = vpop.permute.xlu0 %587
      %589 = vrot.lane.b32.xlu0 %v382, 8
      %v590 = vpop.permute.xlu0 %589
      %591 = vrot.lane.b32.xlu0 %v437, 8
      %v592 = vpop.permute.xlu0 %591
      %593 = vrot.lane.b32.xlu0 %v384, 8
      %v594 = vpop.permute.xlu0 %593
      %595 = vrot.lane.b32.xlu0 %v438, 8
      %v596 = vpop.permute.xlu0 %595
      %597 = vrot.lane.b32.xlu0 %v386, 8
      %v598 = vpop.permute.xlu0 %597
      %599 = vrot.lane.b32.xlu0 %v439, 8
      %v600 = vpop.permute.xlu0 %599
      %601 = vrot.lane.b32.xlu0 %v388, 8
      %v602 = vpop.permute.xlu0 %601
      %603 = vrot.lane.b32.xlu0 %v440, 8
      %v604 = vpop.permute.xlu0 %603
      %605 = vrot.lane.b32.xlu0 %v390, 8
      %v606 = vpop.permute.xlu0 %605
      %607 = vrot.lane.b32.xlu0 %v441, 8
      %v608 = vpop.permute.xlu0 %607
      %609 = vrot.lane.b32.xlu0 %v392, 8
      %v610 = vpop.permute.xlu0 %609
      %611 = vrot.lane.b32.xlu0 %v442, 8
      %v612 = vpop.permute.xlu0 %611
      %613 = vrot.lane.b32.xlu0 %v394, 8
      %v614 = vpop.permute.xlu0 %613
      %615 = vrot.lane.b32.xlu0 %v443, 8
      %v616 = vpop.permute.xlu0 %615
      %617 = vrot.lane.b32.xlu0 %v396, 8
      %v618 = vpop.permute.xlu0 %617
      %619 = vrot.lane.b32.xlu0 %v444, 8
      %v620 = vpop.permute.xlu0 %619
      %vm653 = vcmask 31744
      %v654 = vsel %vm653, %v348, %v446
      %v655 = vsel %vm653, %v270, %v448
      %v656 = vsel %vm653, %v349, %v450
      %v657 = vsel %vm653, %v273, %v452
      %v658 = vsel %vm653, %v350, %v454
      %v659 = vsel %vm653, %v276, %v456
      %v660 = vsel %vm653, %v351, %v458
      %v661 = vsel %vm653, %v279, %v460
      %v662 = vsel %vm653, %v352, %v462
      %v663 = vsel %vm653, %v282, %v464
      %v664 = vsel %vm653, %v353, %v466
      %v665 = vsel %vm653, %v285, %v468
      %v666 = vsel %vm653, %v354, %v470
      %v667 = vsel %vm653, %v288, %v472
      %v668 = vsel %vm653, %v355, %v474
      %v669 = vsel %vm653, %v291, %v476
      %v670 = vsel %vm653, %v356, %v478
      %v671 = vsel %vm653, %v294, %v480
      %v672 = vsel %vm653, %v357, %v482
      %v673 = vsel %vm653, %v297, %v484
      %v674 = vsel %vm653, %v358, %v486
      %v675 = vsel %vm653, %v300, %v488
      %v676 = vsel %vm653, %v359, %v490
      %v677 = vsel %vm653, %v303, %v492
      %v678 = vsel %vm653, %v360, %v494
      %v679 = vsel %vm653, %v306, %v496
      %v680 = vsel %vm653, %v361, %v498
      %v681 = vsel %vm653, %v309, %v500
      %v682 = vsel %vm653, %v362, %v502
      %v683 = vsel %vm653, %v312, %v504
      %v684 = vsel %vm653, %v363, %v506
      %v685 = vsel %vm653, %v315, %v508
      %vm686 = vcmask 64512
      %v687 = vsel %vm686, %v654, %v558
      %v688 = vsel %vm686, %v655, %v560
      %v689 = vsel %vm686, %v656, %v562
      %v690 = vsel %vm686, %v657, %v564
      %v691 = vsel %vm686, %v658, %v566
      %v692 = vsel %vm686, %v659, %v568
      %v693 = vsel %vm686, %v660, %v570
      %v694 = vsel %vm686, %v661, %v572
      %v695 = vsel %vm686, %v662, %v574
      %v696 = vsel %vm686, %v663, %v576
      %v697 = vsel %vm686, %v664, %v578
      %v698 = vsel %vm686, %v665, %v580
      %v699 = vsel %vm686, %v666, %v582
      %v700 = vsel %vm686, %v667, %v584
      %v701 = vsel %vm686, %v668, %v586
      %v702 = vsel %vm686, %v669, %v588
      %v703 = vsel %vm686, %v670, %v590
      %v704 = vsel %vm686, %v671, %v592
      %v705 = vsel %vm686, %v672, %v594
      %v706 = vsel %vm686, %v673, %v596
      %v707 = vsel %vm686, %v674, %v598
      %v708 = vsel %vm686, %v675, %v600
      %v709 = vsel %vm686, %v676, %v602
      %v710 = vsel %vm686, %v677, %v604
      %v711 = vsel %vm686, %v678, %v606
      %v712 = vsel %vm686, %v679, %v608
      %v713 = vsel %vm686, %v680, %v610
      %v714 = vsel %vm686, %v681, %v612
      %v715 = vsel %vm686, %v682, %v614
      %v716 = vsel %vm686, %v683, %v616
      %v717 = vsel %vm686, %v684, %v618
      %v718 = vsel %vm686, %v685, %v620
      %v719 = vld [vmem:[%s1] sm:$0xff]
      %v720 = vld [vmem:[%s1 + $0x8] sm:$0xf]
      %v721 = vld [vmem:[%s1 + $0xc] sm:$0xff]
      %v722 = vld [vmem:[%s1 + $0x14] sm:$0xf]
      %vm723 = vcmask 97280
      %v725 = vsel %vm723, %v689, 0
      %v728 = vsel %vm723, %v690, 0
      %v731 = vsel %vm723, %v687, 0
      %v734 = vsel %vm723, %v688, 0
      %v737 = vsel %vm723, %v691, 0
      %v740 = vsel %vm723, %v692, 0
      %v743 = vsel %vm723, %v693, 0
      %v746 = vsel %vm723, %v694, 0
      %v749 = vsel %vm723, %v695, 0
      %v752 = vsel %vm723, %v696, 0
      %v755 = vsel %vm723, %v697, 0
      %v758 = vsel %vm723, %v698, 0
      %v761 = vsel %vm723, %v699, 0
      %v764 = vsel %vm723, %v700, 0
      %v767 = vsel %vm723, %v701, 0
      %v770 = vsel %vm723, %v702, 0
      %v773 = vsel %vm723, %v703, 0
      %v776 = vsel %vm723, %v704, 0
      %v779 = vsel %vm723, %v705, 0
      %v782 = vsel %vm723, %v706, 0
      %v785 = vsel %vm723, %v707, 0
      %v788 = vsel %vm723, %v708, 0
      %v791 = vsel %vm723, %v709, 0
      %v794 = vsel %vm723, %v710, 0
      %v797 = vsel %vm723, %v711, 0
      %v800 = vsel %vm723, %v712, 0
      %v803 = vsel %vm723, %v713, 0
      %v806 = vsel %vm723, %v714, 0
      %v809 = vsel %vm723, %v715, 0
      %v812 = vsel %vm723, %v716, 0
      %v815 = vsel %vm723, %v717, 0
      %v818 = vsel %vm723, %v718, 0
      %vm820 = vcmask 1043456
      %v822 = vsel %vm820, %v722, 0
      %824 = vmatprep.subr.mxu0 0.0
      %825 = vmatpush1.msra.mxu0 %v721
      %826 = vmatprep.subr.mxu0 0.0
      %827 = vmatpush1.msra.mxu0 %v822
      %828 = vmatprep.subr.mxu0 0.0
      %829 = vmatpush1.msra.mxu0 0.0
      %830 = vmatprep.subr.mxu0 0.0
      %831 = vmatpush1.msra.mxu0 0.0
      %832 = vmatprep.subr.mxu0 0.0
      %833 = vmatpush1.msra.mxu0 0.0
      %834 = vmatprep.subr.mxu0 0.0
      %835 = vmatpush1.msra.mxu0 0.0
      %836 = vmatprep.subr.mxu0 0.0
      %837 = vmatpush1.msra.mxu0 0.0
      %838 = vmatprep.subr.mxu0 0.0
      %839 = vmatpush1.msra.mxu0 0.0
      %840 = vmatprep.subr.mxu0 0.0
      %841 = vmatpush1.msra.mxu0 0.0
      %842 = vmatprep.subr.mxu0 0.0
      %843 = vmatpush1.msra.mxu0 0.0
      %844 = vmatprep.subr.mxu0 0.0
      %845 = vmatpush1.msra.mxu0 0.0
      %846 = vmatprep.subr.mxu0 0.0
      %847 = vmatpush1.msra.mxu0 0.0
      %848 = vmatprep.subr.mxu0 0.0
      %849 = vmatpush1.msra.mxu0 0.0
      %850 = vmatprep.subr.mxu0 0.0
      %851 = vmatpush1.msra.mxu0 0.0
      %852 = vmatprep.subr.mxu0 0.0
      %853 = vmatpush1.msra.mxu0 0.0
      %854 = vmatprep.subr.mxu0 0.0
      %855 = vmatpush1.msra.mxu0 0.0
      %856 = vmatprep.subr.mxu0 0.0
      %857 = vmatpush1.msra.mxu0 0.0
      %858 = vmatprep.subr.mxu0 0.0
      %859 = vmatpush1.msra.mxu0 0.0
      %860 = vmatprep.subr.mxu0 0.0
      %861 = vmatpush1.msra.mxu0 0.0
      %862 = vmatprep.subr.mxu0 0.0
      %863 = vmatpush1.msra.mxu0 0.0
      %864 = vmatprep.subr.mxu0 0.0
      %865 = vmatpush1.msra.mxu0 0.0
      %866 = vmatprep.subr.mxu0 0.0
      %867 = vmatpush1.msra.mxu0 0.0
      %868 = vmatprep.subr.mxu0 0.0
      %869 = vmatpush1.msra.mxu0 0.0
      %870 = vmatprep.subr.mxu0 0.0
      %871 = vmatpush1.msra.mxu0 0.0
      %872 = vmatprep.subr.mxu0 0.0
      %873 = vmatpush1.msra.mxu0 0.0
      %874 = vmatprep.subr.mxu0 0.0
      %875 = vmatpush1.msra.mxu0 0.0
      %876 = vmatprep.subr.mxu0 0.0
      %877 = vmatpush1.msra.mxu0 0.0
      %878 = vmatprep.subr.mxu0 0.0
      %879 = vmatpush1.msra.mxu0 0.0
      %880 = vmatprep.subr.mxu0 0.0
      %881 = vmatpush1.msra.mxu0 0.0
      %882 = vmatprep.subr.mxu0 0.0
      %883 = vmatpush1.msra.mxu0 0.0
      %884 = vmatprep.subr.mxu0 0.0
      %885 = vmatpush1.msra.mxu0 0.0
      %886 = vmatprep.subr.mxu0 0.0
      %887 = vmatpush1.msra.mxu0 0.0
      %888 = vmatprep.mubr.f32.mxu0 0.0
      %889 = vmatmul.mubr.f32.gmra.mrb[0].mxu0 %v725
      %v890 = vpop.f32.mrb[0].mxu0
      %v891 = vadd.f32 0.0, %v890
      %v892 = vpop.f32.mrb[0].mxu0
      %893 = vmatprep.mubr.f32.mxu0 0.0
      %894 = vmatmul.mubr.f32.gmra.mrb[0].mxu0 %v728
      %v895 = vpop.f32.mrb[0].mxu0
      %v896 = vadd.f32 0.0, %v895
      %v897 = vpop.f32.mrb[0].mxu0
      %898 = vmatprep.mubr.f32.mxu0 0.0
      %899 = vmatmul.mubr.f32.gmra.mrb[0].mxu0 %v731
      %v900 = vpop.f32.mrb[0].mxu0
      %v901 = vadd.f32 0.0, %v900
      %v902 = vpop.f32.mrb[0].mxu0
      %903 = vmatprep.mubr.f32.mxu0 0.0
      %904 = vmatmul.mubr.f32.gmra.mrb[0].mxu0 %v734
      %v905 = vpop.f32.mrb[0].mxu0
      %v906 = vadd.f32 0.0, %v905
      %v907 = vpop.f32.mrb[0].mxu0
      %908 = vmatprep.mubr.f32.mxu0 0.0
      %909 = vmatmul.mubr.f32.gmra.mrb[0].mxu0 %v737
      %v910 = vpop.f32.mrb[0].mxu0
      %v911 = vadd.f32 0.0, %v910
      %v912 = vpop.f32.mrb[0].mxu0
      %913 = vmatprep.mubr.f32.mxu0 0.0
      %914 = vmatmul.mubr.f32.gmra.mrb[0].mxu0 %v740
      %v915 = vpop.f32.mrb[0].mxu0
      %v916 = vadd.f32 0.0, %v915
      %v917 = vpop.f32.mrb[0].mxu0
      %918 = vmatprep.mubr.f32.mxu0 0.0
      %919 = vmatmul.mubr.f32.gmra.mrb[0].mxu0 %v743
      %v920 = vpop.f32.mrb[0].mxu0
      %v921 = vadd.f32 0.0, %v920
      %v922 = vpop.f32.mrb[0].mxu0
      %923 = vmatprep.mubr.f32.mxu0 0.0
      %924 = vmatmul.mubr.f32.gmra.mrb[0].mxu0 %v746
      %v925 = vpop.f32.mrb[0].mxu0
      %v926 = vadd.f32 0.0, %v925
      %v927 = vpop.f32.mrb[0].mxu0
      %928 = vmatprep.mubr.f32.mxu0 0.0
      %929 = vmatmul.mubr.f32.gmra.mrb[0].mxu0 %v749
      %v930 = vpop.f32.mrb[0].mxu0
      %v931 = vadd.f32 0.0, %v930
      %v932 = vpop.f32.mrb[0].mxu0
      %933 = vmatprep.mubr.f32.mxu0 0.0
      %934 = vmatmul.mubr.f32.gmra.mrb[0].mxu0 %v752
      %v935 = vpop.f32.mrb[0].mxu0
      %v936 = vadd.f32 0.0, %v935
      %v937 = vpop.f32.mrb[0].mxu0
      %938 = vmatprep.mubr.f32.mxu0 0.0
      %939 = vmatmul.mubr.f32.gmra.mrb[0].mxu0 %v755
      %v940 = vpop.f32.mrb[0].mxu0
      %v941 = vadd.f32 0.0, %v940
      %v942 = vpop.f32.mrb[0].mxu0
      %943 = vmatprep.mubr.f32.mxu0 0.0
      %944 = vmatmul.mubr.f32.gmra.mrb[0].mxu0 %v758
      %v945 = vpop.f32.mrb[0].mxu0
      %v946 = vadd.f32 0.0, %v945
      %v947 = vpop.f32.mrb[0].mxu0
      %948 = vmatprep.mubr.f32.mxu0 0.0
      %949 = vmatmul.mubr.f32.gmra.mrb[0].mxu0 %v761
      %v950 = vpop.f32.mrb[0].mxu0
      %v951 = vadd.f32 0.0, %v950
      %v952 = vpop.f32.mrb[0].mxu0
      %953 = vmatprep.mubr.f32.mxu0 0.0
      %954 = vmatmul.mubr.f32.gmra.mrb[0].mxu0 %v764
      %v955 = vpop.f32.mrb[0].mxu0
      %v956 = vadd.f32 0.0, %v955
      %v957 = vpop.f32.mrb[0].mxu0
      %958 = vmatprep.mubr.f32.mxu0 0.0
      %959 = vmatmul.mubr.f32.gmra.mrb[0].mxu0 %v767
      %v960 = vpop.f32.mrb[0].mxu0
      %v961 = vadd.f32 0.0, %v960
      %v962 = vpop.f32.mrb[0].mxu0
      %963 = vmatprep.mubr.f32.mxu0 0.0
      %964 = vmatmul.mubr.f32.gmra.mrb[0].mxu0 %v770
      %v965 = vpop.f32.mrb[0].mxu0
      %v966 = vadd.f32 0.0, %v965
      %v967 = vpop.f32.mrb[0].mxu0
      %968 = vmatprep.mubr.f32.mxu0 0.0
      %969 = vmatmul.mubr.f32.gmra.mrb[0].mxu0 %v773
      %v970 = vpop.f32.mrb[0].mxu0
      %v971 = vadd.f32 0.0, %v970
      %v972 = vpop.f32.mrb[0].mxu0
      %973 = vmatprep.mubr.f32.mxu0 0.0
      %974 = vmatmul.mubr.f32.gmra.mrb[0].mxu0 %v776
      %v975 = vpop.f32.mrb[0].mxu0
      %v976 = vadd.f32 0.0, %v975
      %v977 = vpop.f32.mrb[0].mxu0
      %978 = vmatprep.mubr.f32.mxu0 0.0
      %979 = vmatmul.mubr.f32.gmra.mrb[0].mxu0 %v779
      %v980 = vpop.f32.mrb[0].mxu0
      %v981 = vadd.f32 0.0, %v980
      %v982 = vpop.f32.mrb[0].mxu0
      %983 = vmatprep.mubr.f32.mxu0 0.0
      %984 = vmatmul.mubr.f32.gmra.mrb[0].mxu0 %v782
      %v985 = vpop.f32.mrb[0].mxu0
      %v986 = vadd.f32 0.0, %v985
      %v987 = vpop.f32.mrb[0].mxu0
      %988 = vmatprep.mubr.f32.mxu0 0.0
      %989 = vmatmul.mubr.f32.gmra.mrb[0].mxu0 %v785
      %v990 = vpop.f32.mrb[0].mxu0
      %v991 = vadd.f32 0.0, %v990
      %v992 = vpop.f32.mrb[0].mxu0
      %993 = vmatprep.mubr.f32.mxu0 0.0
      %994 = vmatmul.mubr.f32.gmra.mrb[0].mxu0 %v788
      %v995 = vpop.f32.mrb[0].mxu0
      %v996 = vadd.f32 0.0, %v995
      %v997 = vpop.f32.mrb[0].mxu0
      %998 = vmatprep.mubr.f32.mxu0 0.0
      %999 = vmatmul.mubr.f32.gmra.mrb[0].mxu0 %v791
      %v1000 = vpop.f32.mrb[0].mxu0
      %v1001 = vadd.f32 0.0, %v1000
      %v1002 = vpop.f32.mrb[0].mxu0
      %1003 = vmatprep.mubr.f32.mxu0 0.0
      %1004 = vmatmul.mubr.f32.gmra.mrb[0].mxu0 %v794
      %v1005 = vpop.f32.mrb[0].mxu0
      %v1006 = vadd.f32 0.0, %v1005
      %v1007 = vpop.f32.mrb[0].mxu0
      %1008 = vmatprep.mubr.f32.mxu0 0.0
      %1009 = vmatmul.mubr.f32.gmra.mrb[0].mxu0 %v797
      %v1010 = vpop.f32.mrb[0].mxu0
      %v1011 = vadd.f32 0.0, %v1010
      %v1012 = vpop.f32.mrb[0].mxu0
      %1013 = vmatprep.mubr.f32.mxu0 0.0
      %1014 = vmatmul.mubr.f32.gmra.mrb[0].mxu0 %v800
      %v1015 = vpop.f32.mrb[0].mxu0
      %v1016 = vadd.f32 0.0, %v1015
      %v1017 = vpop.f32.mrb[0].mxu0
      %1018 = vmatprep.mubr.f32.mxu0 0.0
      %1019 = vmatmul.mubr.f32.gmra.mrb[0].mxu0 %v803
      %v1020 = vpop.f32.mrb[0].mxu0
      %v1021 = vadd.f32 0.0, %v1020
      %v1022 = vpop.f32.mrb[0].mxu0
      %1023 = vmatprep.mubr.f32.mxu0 0.0
      %1024 = vmatmul.mubr.f32.gmra.mrb[0].mxu0 %v806
      %v1025 = vpop.f32.mrb[0].mxu0
      %v1026 = vadd.f32 0.0, %v1025
      %v1027 = vpop.f32.mrb[0].mxu0
      %1028 = vmatprep.mubr.f32.mxu0 0.0
      %1029 = vmatmul.mubr.f32.gmra.mrb[0].mxu0 %v809
      %v1030 = vpop.f32.mrb[0].mxu0
      %v1031 = vadd.f32 0.0, %v1030
      %v1032 = vpop.f32.mrb[0].mxu0
      %1033 = vmatprep.mubr.f32.mxu0 0.0
      %1034 = vmatmul.mubr.f32.gmra.mrb[0].mxu0 %v812
      %v1035 = vpop.f32.mrb[0].mxu0
      %v1036 = vadd.f32 0.0, %v1035
      %v1037 = vpop.f32.mrb[0].mxu0
      %1038 = vmatprep.mubr.f32.mxu0 0.0
      %1039 = vmatmul.mubr.f32.gmra.mrb[0].mxu0 %v815
      %v1040 = vpop.f32.mrb[0].mxu0
      %v1041 = vadd.f32 0.0, %v1040
      %v1042 = vpop.f32.mrb[0].mxu0
      %1043 = vmatprep.mubr.f32.mxu0 0.0
      %1044 = vmatmul.mubr.f32.gmra.mrb[0].mxu0 %v818
      %v1045 = vpop.f32.mrb[0].mxu0
      %v1046 = vadd.f32 0.0, %v1045
      %v1047 = vpop.f32.mrb[0].mxu0
      %1048 = vdwg.mxu0
      %v1050 = vsel %vm820, %v720, 0
      %1052 = vmatprep.subr.mxu0 0.0
      %1053 = vmatpush1.msra.mxu0 %v719
      %1054 = vmatprep.subr.mxu0 0.0
      %1055 = vmatpush1.msra.mxu0 %v1050
      %1056 = vmatprep.subr.mxu0 0.0
      %1057 = vmatpush1.msra.mxu0 0.0
      %1058 = vmatprep.subr.mxu0 0.0
      %1059 = vmatpush1.msra.mxu0 0.0
      %1060 = vmatprep.subr.mxu0 0.0
      %1061 = vmatpush1.msra.mxu0 0.0
      %1062 = vmatprep.subr.mxu0 0.0
      %1063 = vmatpush1.msra.mxu0 0.0
      %1064 = vmatprep.subr.mxu0 0.0
      %1065 = vmatpush1.msra.mxu0 0.0
      %1066 = vmatprep.subr.mxu0 0.0
      %1067 = vmatpush1.msra.mxu0 0.0
      %1068 = vmatprep.subr.mxu0 0.0
      %1069 = vmatpush1.msra.mxu0 0.0
      %1070 = vmatprep.subr.mxu0 0.0
      %1071 = vmatpush1.msra.mxu0 0.0
      %1072 = vmatprep.subr.mxu0 0.0
      %1073 = vmatpush1.msra.mxu0 0.0
      %1074 = vmatprep.subr.mxu0 0.0
      %1075 = vmatpush1.msra.mxu0 0.0
      %1076 = vmatprep.subr.mxu0 0.0
      %1077 = vmatpush1.msra.mxu0 0.0
      %1078 = vmatprep.subr.mxu0 0.0
      %1079 = vmatpush1.msra.mxu0 0.0
      %1080 = vmatprep.subr.mxu0 0.0
      %1081 = vmatpush1.msra.mxu0 0.0
      %1082 = vmatprep.subr.mxu0 0.0
      %1083 = vmatpush1.msra.mxu0 0.0
      %1084 = vmatprep.subr.mxu0 0.0
      %1085 = vmatpush1.msra.mxu0 0.0
      %1086 = vmatprep.subr.mxu0 0.0
      %1087 = vmatpush1.msra.mxu0 0.0
      %1088 = vmatprep.subr.mxu0 0.0
      %1089 = vmatpush1.msra.mxu0 0.0
      %1090 = vmatprep.subr.mxu0 0.0
      %1091 = vmatpush1.msra.mxu0 0.0
      %1092 = vmatprep.subr.mxu0 0.0
      %1093 = vmatpush1.msra.mxu0 0.0
      %1094 = vmatprep.subr.mxu0 0.0
      %1095 = vmatpush1.msra.mxu0 0.0
      %1096 = vmatprep.subr.mxu0 0.0
      %1097 = vmatpush1.msra.mxu0 0.0
      %1098 = vmatprep.subr.mxu0 0.0
      %1099 = vmatpush1.msra.mxu0 0.0
      %1100 = vmatprep.subr.mxu0 0.0
      %1101 = vmatpush1.msra.mxu0 0.0
      %1102 = vmatprep.subr.mxu0 0.0
      %1103 = vmatpush1.msra.mxu0 0.0
      %1104 = vmatprep.subr.mxu0 0.0
      %1105 = vmatpush1.msra.mxu0 0.0
      %1106 = vmatprep.subr.mxu0 0.0
      %1107 = vmatpush1.msra.mxu0 0.0
      %1108 = vmatprep.subr.mxu0 0.0
      %1109 = vmatpush1.msra.mxu0 0.0
      %1110 = vmatprep.subr.mxu0 0.0
      %1111 = vmatpush1.msra.mxu0 0.0
      %1112 = vmatprep.subr.mxu0 0.0
      %1113 = vmatpush1.msra.mxu0 0.0
      %1114 = vmatprep.subr.mxu0 0.0
      %1115 = vmatpush1.msra.mxu0 0.0
      %1116 = vmatprep.mubr.f32.mxu0 0.0
      %1117 = vmatmul.mubr.f32.gmra.mrb[0].mxu0 %v731
      %v1118 = vpop.f32.mrb[0].mxu0
      %v1119 = vadd.f32 %v891, %v1118
      %v1120 = vpop.f32.mrb[0].mxu0
      %1121 = vmatprep.mubr.f32.mxu0 0.0
      %1122 = vmatmul.mubr.f32.gmra.mrb[0].mxu0 %v734
      %v1123 = vpop.f32.mrb[0].mxu0
      %v1124 = vadd.f32 %v896, %v1123
      %v1125 = vpop.f32.mrb[0].mxu0
      %1126 = vmatprep.mubr.f32.mxu0 0.0
      %1127 = vmatmul.mubr.f32.gmra.mrb[0].mxu0 %v725
      %v1128 = vpop.f32.mrb[0].mxu0
      %v1129 = vadd.f32 %v901, %v1128
      %v1130 = vpop.f32.mrb[0].mxu0
      %1131 = vmatprep.mubr.f32.mxu0 0.0
      %1132 = vmatmul.mubr.f32.gmra.mrb[0].mxu0 %v728
      %v1133 = vpop.f32.mrb[0].mxu0
      %v1134 = vadd.f32 %v906, %v1133
      %v1135 = vpop.f32.mrb[0].mxu0
      %1136 = vmatprep.mubr.f32.mxu0 0.0
      %1137 = vmatmul.mubr.f32.gmra.mrb[0].mxu0 %v731
      %v1138 = vpop.f32.mrb[0].mxu0
      %v1139 = vadd.f32 %v911, %v1138
      %v1140 = vpop.f32.mrb[0].mxu0
      %1141 = vmatprep.mubr.f32.mxu0 0.0
      %1142 = vmatmul.mubr.f32.gmra.mrb[0].mxu0 %v734
      %v1143 = vpop.f32.mrb[0].mxu0
      %v1144 = vadd.f32 %v916, %v1143
      %v1145 = vpop.f32.mrb[0].mxu0
      %1146 = vmatprep.mubr.f32.mxu0 0.0
      %1147 = vmatmul.mubr.f32.gmra.mrb[0].mxu0 %v737
      %v1148 = vpop.f32.mrb[0].mxu0
      %v1149 = vadd.f32 %v921, %v1148
      %v1150 = vpop.f32.mrb[0].mxu0
      %1151 = vmatprep.mubr.f32.mxu0 0.0
      %1152 = vmatmul.mubr.f32.gmra.mrb[0].mxu0 %v740
      %v1153 = vpop.f32.mrb[0].mxu0
      %v1154 = vadd.f32 %v926, %v1153
      %v1155 = vpop.f32.mrb[0].mxu0
      %1156 = vmatprep.mubr.f32.mxu0 0.0
      %1157 = vmatmul.mubr.f32.gmra.mrb[0].mxu0 %v743
      %v1158 = vpop.f32.mrb[0].mxu0
      %v1159 = vadd.f32 %v931, %v1158
      %v1160 = vpop.f32.mrb[0].mxu0
      %1161 = vmatprep.mubr.f32.mxu0 0.0
      %1162 = vmatmul.mubr.f32.gmra.mrb[0].mxu0 %v746
      %v1163 = vpop.f32.mrb[0].mxu0
      %v1164 = vadd.f32 %v936, %v1163
      %v1165 = vpop.f32.mrb[0].mxu0
      %1166 = vmatprep.mubr.f32.mxu0 0.0
      %1167 = vmatmul.mubr.f32.gmra.mrb[0].mxu0 %v749
      %v1168 = vpop.f32.mrb[0].mxu0
      %v1169 = vadd.f32 %v941, %v1168
      %v1170 = vpop.f32.mrb[0].mxu0
      %1171 = vmatprep.mubr.f32.mxu0 0.0
      %1172 = vmatmul.mubr.f32.gmra.mrb[0].mxu0 %v752
      %v1173 = vpop.f32.mrb[0].mxu0
      %v1174 = vadd.f32 %v946, %v1173
      %v1175 = vpop.f32.mrb[0].mxu0
      %1176 = vmatprep.mubr.f32.mxu0 0.0
      %1177 = vmatmul.mubr.f32.gmra.mrb[0].mxu0 %v755
      %v1178 = vpop.f32.mrb[0].mxu0
      %v1179 = vadd.f32 %v951, %v1178
      %v1180 = vpop.f32.mrb[0].mxu0
      %1181 = vmatprep.mubr.f32.mxu0 0.0
      %1182 = vmatmul.mubr.f32.gmra.mrb[0].mxu0 %v758
      %v1183 = vpop.f32.mrb[0].mxu0
      %v1184 = vadd.f32 %v956, %v1183
      %v1185 = vpop.f32.mrb[0].mxu0
      %1186 = vmatprep.mubr.f32.mxu0 0.0
      %1187 = vmatmul.mubr.f32.gmra.mrb[0].mxu0 %v761
      %v1188 = vpop.f32.mrb[0].mxu0
      %v1189 = vadd.f32 %v961, %v1188
      %v1190 = vpop.f32.mrb[0].mxu0
      %1191 = vmatprep.mubr.f32.mxu0 0.0
      %1192 = vmatmul.mubr.f32.gmra.mrb[0].mxu0 %v764
      %v1193 = vpop.f32.mrb[0].mxu0
      %v1194 = vadd.f32 %v966, %v1193
      %v1195 = vpop.f32.mrb[0].mxu0
      %1196 = vmatprep.mubr.f32.mxu0 0.0
      %1197 = vmatmul.mubr.f32.gmra.mrb[0].mxu0 %v767
      %v1198 = vpop.f32.mrb[0].mxu0
      %v1199 = vadd.f32 %v971, %v1198
      %v1200 = vpop.f32.mrb[0].mxu0
      %1201 = vmatprep.mubr.f32.mxu0 0.0
      %1202 = vmatmul.mubr.f32.gmra.mrb[0].mxu0 %v770
      %v1203 = vpop.f32.mrb[0].mxu0
      %v1204 = vadd.f32 %v976, %v1203
      %v1205 = vpop.f32.mrb[0].mxu0
      %1206 = vmatprep.mubr.f32.mxu0 0.0
      %1207 = vmatmul.mubr.f32.gmra.mrb[0].mxu0 %v773
      %v1208 = vpop.f32.mrb[0].mxu0
      %v1209 = vadd.f32 %v981, %v1208
      %v1210 = vpop.f32.mrb[0].mxu0
      %1211 = vmatprep.mubr.f32.mxu0 0.0
      %1212 = vmatmul.mubr.f32.gmra.mrb[0].mxu0 %v776
      %v1213 = vpop.f32.mrb[0].mxu0
      %v1214 = vadd.f32 %v986, %v1213
      %v1215 = vpop.f32.mrb[0].mxu0
      %1216 = vmatprep.mubr.f32.mxu0 0.0
      %1217 = vmatmul.mubr.f32.gmra.mrb[0].mxu0 %v779
      %v1218 = vpop.f32.mrb[0].mxu0
      %v1219 = vadd.f32 %v991, %v1218
      %v1220 = vpop.f32.mrb[0].mxu0
      %1221 = vmatprep.mubr.f32.mxu0 0.0
      %1222 = vmatmul.mubr.f32.gmra.mrb[0].mxu0 %v782
      %v1223 = vpop.f32.mrb[0].mxu0
      %v1224 = vadd.f32 %v996, %v1223
      %v1225 = vpop.f32.mrb[0].mxu0
      %1226 = vmatprep.mubr.f32.mxu0 0.0
      %1227 = vmatmul.mubr.f32.gmra.mrb[0].mxu0 %v785
      %v1228 = vpop.f32.mrb[0].mxu0
      %v1229 = vadd.f32 %v1001, %v1228
      %v1230 = vpop.f32.mrb[0].mxu0
      %1231 = vmatprep.mubr.f32.mxu0 0.0
      %1232 = vmatmul.mubr.f32.gmra.mrb[0].mxu0 %v788
      %v1233 = vpop.f32.mrb[0].mxu0
      %v1234 = vadd.f32 %v1006, %v1233
      %v1235 = vpop.f32.mrb[0].mxu0
      %1236 = vmatprep.mubr.f32.mxu0 0.0
      %1237 = vmatmul.mubr.f32.gmra.mrb[0].mxu0 %v791
      %v1238 = vpop.f32.mrb[0].mxu0
      %v1239 = vadd.f32 %v1011, %v1238
      %v1240 = vpop.f32.mrb[0].mxu0
      %1241 = vmatprep.mubr.f32.mxu0 0.0
      %1242 = vmatmul.mubr.f32.gmra.mrb[0].mxu0 %v794
      %v1243 = vpop.f32.mrb[0].mxu0
      %v1244 = vadd.f32 %v1016, %v1243
      %v1245 = vpop.f32.mrb[0].mxu0
      %1246 = vmatprep.mubr.f32.mxu0 0.0
      %1247 = vmatmul.mubr.f32.gmra.mrb[0].mxu0 %v797
      %v1248 = vpop.f32.mrb[0].mxu0
      %v1249 = vadd.f32 %v1021, %v1248
      %v1250 = vpop.f32.mrb[0].mxu0
      %1251 = vmatprep.mubr.f32.mxu0 0.0
      %1252 = vmatmul.mubr.f32.gmra.mrb[0].mxu0 %v800
      %v1253 = vpop.f32.mrb[0].mxu0
      %v1254 = vadd.f32 %v1026, %v1253
      %v1255 = vpop.f32.mrb[0].mxu0
      %1256 = vmatprep.mubr.f32.mxu0 0.0
      %1257 = vmatmul.mubr.f32.gmra.mrb[0].mxu0 %v803
      %v1258 = vpop.f32.mrb[0].mxu0
      %v1259 = vadd.f32 %v1031, %v1258
      %v1260 = vpop.f32.mrb[0].mxu0
      %1261 = vmatprep.mubr.f32.mxu0 0.0
      %1262 = vmatmul.mubr.f32.gmra.mrb[0].mxu0 %v806
      %v1263 = vpop.f32.mrb[0].mxu0
      %v1264 = vadd.f32 %v1036, %v1263
      %v1265 = vpop.f32.mrb[0].mxu0
      %1266 = vmatprep.mubr.f32.mxu0 0.0
      %1267 = vmatmul.mubr.f32.gmra.mrb[0].mxu0 %v809
      %v1268 = vpop.f32.mrb[0].mxu0
      %v1269 = vadd.f32 %v1041, %v1268
      %v1270 = vpop.f32.mrb[0].mxu0
      %1271 = vmatprep.mubr.f32.mxu0 0.0
      %1272 = vmatmul.mubr.f32.gmra.mrb[0].mxu0 %v812
      %v1273 = vpop.f32.mrb[0].mxu0
      %v1274 = vadd.f32 %v1046, %v1273
      %v1275 = vpop.f32.mrb[0].mxu0
      %1276 = vdwg.mxu0
      %v1277 = vld [vmem:[%s1 + $0x18] sm:$0xff]
      %v1278 = vld [vmem:[%s1 + $0x20] sm:$0xf]
      %v1280 = vsel %vm820, %v1278, 0
      %1282 = vmatprep.subr.mxu0 0.0
      %1283 = vmatpush1.msra.mxu0 %v1277
      %1284 = vmatprep.subr.mxu0 0.0
      %1285 = vmatpush1.msra.mxu0 %v1280
      %1286 = vmatprep.subr.mxu0 0.0
      %1287 = vmatpush1.msra.mxu0 0.0
      %1288 = vmatprep.subr.mxu0 0.0
      %1289 = vmatpush1.msra.mxu0 0.0
      %1290 = vmatprep.subr.mxu0 0.0
      %1291 = vmatpush1.msra.mxu0 0.0
      %1292 = vmatprep.subr.mxu0 0.0
      %1293 = vmatpush1.msra.mxu0 0.0
      %1294 = vmatprep.subr.mxu0 0.0
      %1295 = vmatpush1.msra.mxu0 0.0
      %1296 = vmatprep.subr.mxu0 0.0
      %1297 = vmatpush1.msra.mxu0 0.0
      %1298 = vmatprep.subr.mxu0 0.0
      %1299 = vmatpush1.msra.mxu0 0.0
      %1300 = vmatprep.subr.mxu0 0.0
      %1301 = vmatpush1.msra.mxu0 0.0
      %1302 = vmatprep.subr.mxu0 0.0
      %1303 = vmatpush1.msra.mxu0 0.0
      %1304 = vmatprep.subr.mxu0 0.0
      %1305 = vmatpush1.msra.mxu0 0.0
      %1306 = vmatprep.subr.mxu0 0.0
      %1307 = vmatpush1.msra.mxu0 0.0
      %1308 = vmatprep.subr.mxu0 0.0
      %1309 = vmatpush1.msra.mxu0 0.0
      %1310 = vmatprep.subr.mxu0 0.0
      %1311 = vmatpush1.msra.mxu0 0.0
      %1312 = vmatprep.subr.mxu0 0.0
      %1313 = vmatpush1.msra.mxu0 0.0
      %1314 = vmatprep.subr.mxu0 0.0
      %1315 = vmatpush1.msra.mxu0 0.0
      %1316 = vmatprep.subr.mxu0 0.0
      %1317 = vmatpush1.msra.mxu0 0.0
      %1318 = vmatprep.subr.mxu0 0.0
      %1319 = vmatpush1.msra.mxu0 0.0
      %1320 = vmatprep.subr.mxu0 0.0
      %1321 = vmatpush1.msra.mxu0 0.0
      %1322 = vmatprep.subr.mxu0 0.0
      %1323 = vmatpush1.msra.mxu0 0.0
      %1324 = vmatprep.subr.mxu0 0.0
      %1325 = vmatpush1.msra.mxu0 0.0
      %1326 = vmatprep.subr.mxu0 0.0
      %1327 = vmatpush1.msra.mxu0 0.0
      %1328 = vmatprep.subr.mxu0 0.0
      %1329 = vmatpush1.msra.mxu0 0.0
      %1330 = vmatprep.subr.mxu0 0.0
      %1331 = vmatpush1.msra.mxu0 0.0
      %1332 = vmatprep.subr.mxu0 0.0
      %1333 = vmatpush1.msra.mxu0 0.0
      %1334 = vmatprep.subr.mxu0 0.0
      %1335 = vmatpush1.msra.mxu0 0.0
      %1336 = vmatprep.subr.mxu0 0.0
      %1337 = vmatpush1.msra.mxu0 0.0
      %1338 = vmatprep.subr.mxu0 0.0
      %1339 = vmatpush1.msra.mxu0 0.0
      %1340 = vmatprep.subr.mxu0 0.0
      %1341 = vmatpush1.msra.mxu0 0.0
      %1342 = vmatprep.subr.mxu0 0.0
      %1343 = vmatpush1.msra.mxu0 0.0
      %1344 = vmatprep.subr.mxu0 0.0
      %1345 = vmatpush1.msra.mxu0 0.0
      %1346 = vmatprep.mubr.f32.mxu0 0.0
      %1347 = vmatmul.mubr.f32.gmra.mrb[0].mxu0 %v731
      %v1348 = vpop.f32.mrb[0].mxu0
      %v1349 = vadd.f32 0.0, %v1348
      %v1350 = vpop.f32.mrb[0].mxu0
      %1351 = vmatprep.mubr.f32.mxu0 0.0
      %1352 = vmatmul.mubr.f32.gmra.mrb[0].mxu0 %v734
      %v1353 = vpop.f32.mrb[0].mxu0
      %v1354 = vadd.f32 0.0, %v1353
      %v1355 = vpop.f32.mrb[0].mxu0
      %1356 = vmatprep.mubr.f32.mxu0 0.0
      %1357 = vmatmul.mubr.f32.gmra.mrb[0].mxu0 %v737
      %v1358 = vpop.f32.mrb[0].mxu0
      %v1359 = vadd.f32 0.0, %v1358
      %v1360 = vpop.f32.mrb[0].mxu0
      %1361 = vmatprep.mubr.f32.mxu0 0.0
      %1362 = vmatmul.mubr.f32.gmra.mrb[0].mxu0 %v740
      %v1363 = vpop.f32.mrb[0].mxu0
      %v1364 = vadd.f32 0.0, %v1363
      %v1365 = vpop.f32.mrb[0].mxu0
      %1366 = vmatprep.mubr.f32.mxu0 0.0
      %1367 = vmatmul.mubr.f32.gmra.mrb[0].mxu0 %v743
      %v1368 = vpop.f32.mrb[0].mxu0
      %v1369 = vadd.f32 0.0, %v1368
      %v1370 = vpop.f32.mrb[0].mxu0
      %1371 = vmatprep.mubr.f32.mxu0 0.0
      %1372 = vmatmul.mubr.f32.gmra.mrb[0].mxu0 %v746
      %v1373 = vpop.f32.mrb[0].mxu0
      %v1374 = vadd.f32 0.0, %v1373
      %v1375 = vpop.f32.mrb[0].mxu0
      %1376 = vmatprep.mubr.f32.mxu0 0.0
      %1377 = vmatmul.mubr.f32.gmra.mrb[0].mxu0 %v749
      %v1378 = vpop.f32.mrb[0].mxu0
      %v1379 = vadd.f32 0.0, %v1378
      %v1380 = vpop.f32.mrb[0].mxu0
      %1381 = vmatprep.mubr.f32.mxu0 0.0
      %1382 = vmatmul.mubr.f32.gmra.mrb[0].mxu0 %v752
      %v1383 = vpop.f32.mrb[0].mxu0
      %v1384 = vadd.f32 0.0, %v1383
      %v1385 = vpop.f32.mrb[0].mxu0
      %1386 = vmatprep.mubr.f32.mxu0 0.0
      %1387 = vmatmul.mubr.f32.gmra.mrb[0].mxu0 %v755
      %v1388 = vpop.f32.mrb[0].mxu0
      %v1389 = vadd.f32 0.0, %v1388
      %v1390 = vpop.f32.mrb[0].mxu0
      %1391 = vmatprep.mubr.f32.mxu0 0.0
      %1392 = vmatmul.mubr.f32.gmra.mrb[0].mxu0 %v758
      %v1393 = vpop.f32.mrb[0].mxu0
      %v1394 = vadd.f32 0.0, %v1393
      %v1395 = vpop.f32.mrb[0].mxu0
      %1396 = vmatprep.mubr.f32.mxu0 0.0
      %1397 = vmatmul.mubr.f32.gmra.mrb[0].mxu0 %v761
      %v1398 = vpop.f32.mrb[0].mxu0
      %v1399 = vadd.f32 0.0, %v1398
      %v1400 = vpop.f32.mrb[0].mxu0
      %1401 = vmatprep.mubr.f32.mxu0 0.0
      %1402 = vmatmul.mubr.f32.gmra.mrb[0].mxu0 %v764
      %v1403 = vpop.f32.mrb[0].mxu0
      %v1404 = vadd.f32 0.0, %v1403
      %v1405 = vpop.f32.mrb[0].mxu0
      %1406 = vmatprep.mubr.f32.mxu0 0.0
      %1407 = vmatmul.mubr.f32.gmra.mrb[0].mxu0 %v767
      %v1408 = vpop.f32.mrb[0].mxu0
      %v1409 = vadd.f32 0.0, %v1408
      %v1410 = vpop.f32.mrb[0].mxu0
      %1411 = vmatprep.mubr.f32.mxu0 0.0
      %1412 = vmatmul.mubr.f32.gmra.mrb[0].mxu0 %v770
      %v1413 = vpop.f32.mrb[0].mxu0
      %v1414 = vadd.f32 0.0, %v1413
      %v1415 = vpop.f32.mrb[0].mxu0
      %1416 = vmatprep.mubr.f32.mxu0 0.0
      %1417 = vmatmul.mubr.f32.gmra.mrb[0].mxu0 %v773
      %v1418 = vpop.f32.mrb[0].mxu0
      %v1419 = vadd.f32 0.0, %v1418
      %v1420 = vpop.f32.mrb[0].mxu0
      %1421 = vmatprep.mubr.f32.mxu0 0.0
      %1422 = vmatmul.mubr.f32.gmra.mrb[0].mxu0 %v776
      %v1423 = vpop.f32.mrb[0].mxu0
      %v1424 = vadd.f32 0.0, %v1423
      %v1425 = vpop.f32.mrb[0].mxu0
      %1426 = vmatprep.mubr.f32.mxu0 0.0
      %1427 = vmatmul.mubr.f32.gmra.mrb[0].mxu0 %v779
      %v1428 = vpop.f32.mrb[0].mxu0
      %v1429 = vadd.f32 0.0, %v1428
      %v1430 = vpop.f32.mrb[0].mxu0
      %1431 = vmatprep.mubr.f32.mxu0 0.0
      %1432 = vmatmul.mubr.f32.gmra.mrb[0].mxu0 %v782
      %v1433 = vpop.f32.mrb[0].mxu0
      %v1434 = vadd.f32 0.0, %v1433
      %v1435 = vpop.f32.mrb[0].mxu0
      %1436 = vmatprep.mubr.f32.mxu0 0.0
      %1437 = vmatmul.mubr.f32.gmra.mrb[0].mxu0 %v785
      %v1438 = vpop.f32.mrb[0].mxu0
      %v1439 = vadd.f32 0.0, %v1438
      %v1440 = vpop.f32.mrb[0].mxu0
      %1441 = vmatprep.mubr.f32.mxu0 0.0
      %1442 = vmatmul.mubr.f32.gmra.mrb[0].mxu0 %v788
      %v1443 = vpop.f32.mrb[0].mxu0
      %v1444 = vadd.f32 0.0, %v1443
      %v1445 = vpop.f32.mrb[0].mxu0
      %1446 = vmatprep.mubr.f32.mxu0 0.0
      %1447 = vmatmul.mubr.f32.gmra.mrb[0].mxu0 %v791
      %v1448 = vpop.f32.mrb[0].mxu0
      %v1449 = vadd.f32 0.0, %v1448
      %v1450 = vpop.f32.mrb[0].mxu0
      %1451 = vmatprep.mubr.f32.mxu0 0.0
      %1452 = vmatmul.mubr.f32.gmra.mrb[0].mxu0 %v794
      %v1453 = vpop.f32.mrb[0].mxu0
      %v1454 = vadd.f32 0.0, %v1453
      %v1455 = vpop.f32.mrb[0].mxu0
      %1456 = vmatprep.mubr.f32.mxu0 0.0
      %1457 = vmatmul.mubr.f32.gmra.mrb[0].mxu0 %v797
      %v1458 = vpop.f32.mrb[0].mxu0
      %v1459 = vadd.f32 0.0, %v1458
      %v1460 = vpop.f32.mrb[0].mxu0
      %1461 = vmatprep.mubr.f32.mxu0 0.0
      %1462 = vmatmul.mubr.f32.gmra.mrb[0].mxu0 %v800
      %v1463 = vpop.f32.mrb[0].mxu0
      %v1464 = vadd.f32 0.0, %v1463
      %v1465 = vpop.f32.mrb[0].mxu0
      %1466 = vmatprep.mubr.f32.mxu0 0.0
      %1467 = vmatmul.mubr.f32.gmra.mrb[0].mxu0 %v803
      %v1468 = vpop.f32.mrb[0].mxu0
      %v1469 = vadd.f32 0.0, %v1468
      %v1470 = vpop.f32.mrb[0].mxu0
      %1471 = vmatprep.mubr.f32.mxu0 0.0
      %1472 = vmatmul.mubr.f32.gmra.mrb[0].mxu0 %v806
      %v1473 = vpop.f32.mrb[0].mxu0
      %v1474 = vadd.f32 0.0, %v1473
      %v1475 = vpop.f32.mrb[0].mxu0
      %1476 = vmatprep.mubr.f32.mxu0 0.0
      %1477 = vmatmul.mubr.f32.gmra.mrb[0].mxu0 %v809
      %v1478 = vpop.f32.mrb[0].mxu0
      %v1479 = vadd.f32 0.0, %v1478
      %v1480 = vpop.f32.mrb[0].mxu0
      %1481 = vmatprep.mubr.f32.mxu0 0.0
      %1482 = vmatmul.mubr.f32.gmra.mrb[0].mxu0 %v812
      %v1483 = vpop.f32.mrb[0].mxu0
      %v1484 = vadd.f32 0.0, %v1483
      %v1485 = vpop.f32.mrb[0].mxu0
      %1486 = vmatprep.mubr.f32.mxu0 0.0
      %1487 = vmatmul.mubr.f32.gmra.mrb[0].mxu0 %v815
      %v1488 = vpop.f32.mrb[0].mxu0
      %v1489 = vadd.f32 0.0, %v1488
      %v1490 = vpop.f32.mrb[0].mxu0
      %1491 = vmatprep.mubr.f32.mxu0 0.0
      %1492 = vmatmul.mubr.f32.gmra.mrb[0].mxu0 %v818
      %v1493 = vpop.f32.mrb[0].mxu0
      %v1494 = vadd.f32 0.0, %v1493
      %v1495 = vpop.f32.mrb[0].mxu0
      %1496 = vmatprep.mubr.f32.mxu0 0.0
      %1497 = vmatmul.mubr.f32.gmra.mrb[0].mxu0 %v809
      %v1498 = vpop.f32.mrb[0].mxu0
      %v1499 = vadd.f32 0.0, %v1498
      %v1500 = vpop.f32.mrb[0].mxu0
      %1501 = vmatprep.mubr.f32.mxu0 0.0
      %1502 = vmatmul.mubr.f32.gmra.mrb[0].mxu0 %v812
      %v1503 = vpop.f32.mrb[0].mxu0
      %v1504 = vadd.f32 0.0, %v1503
      %v1505 = vpop.f32.mrb[0].mxu0
      %1506 = vdwg.mxu0
      %v1507 = vadd.f32 %v1119, %v1349
      %v1508 = vadd.f32 %v1124, %v1354
      %v1509 = vadd.f32 %v1129, %v1359
      %v1510 = vadd.f32 %v1134, %v1364
      %v1511 = vadd.f32 %v1139, %v1369
      %v1512 = vadd.f32 %v1144, %v1374
      %v1513 = vadd.f32 %v1149, %v1379
      %v1514 = vadd.f32 %v1154, %v1384
      %v1515 = vadd.f32 %v1159, %v1389
      %v1516 = vadd.f32 %v1164, %v1394
      %v1517 = vadd.f32 %v1169, %v1399
      %v1518 = vadd.f32 %v1174, %v1404
      %v1519 = vadd.f32 %v1179, %v1409
      %v1520 = vadd.f32 %v1184, %v1414
      %v1521 = vadd.f32 %v1189, %v1419
      %v1522 = vadd.f32 %v1194, %v1424
      %v1523 = vadd.f32 %v1199, %v1429
      %v1524 = vadd.f32 %v1204, %v1434
      %v1525 = vadd.f32 %v1209, %v1439
      %v1526 = vadd.f32 %v1214, %v1444
      %v1527 = vadd.f32 %v1219, %v1449
      %v1528 = vadd.f32 %v1224, %v1454
      %v1529 = vadd.f32 %v1229, %v1459
      %v1530 = vadd.f32 %v1234, %v1464
      %v1531 = vadd.f32 %v1239, %v1469
      %v1532 = vadd.f32 %v1244, %v1474
      %v1533 = vadd.f32 %v1249, %v1479
      %v1534 = vadd.f32 %v1254, %v1484
      %v1535 = vadd.f32 %v1259, %v1489
      %v1536 = vadd.f32 %v1264, %v1494
      %v1537 = vadd.f32 %v1269, %v1499
      %v1538 = vadd.f32 %v1274, %v1504
      %v1539 = vsel %vm653, %v1507, 0.0
      %v1540 = vsel %vm653, %v1508, 0.0
      %v1541 = vadd.f32 %v1539, %v1540
      %v1542 = vsel %vm653, %v1509, 0.0
      %v1543 = vadd.f32 %v1541, %v1542
      %v1544 = vsel %vm653, %v1510, 0.0
      %v1545 = vadd.f32 %v1543, %v1544
      %v1546 = vsel %vm653, %v1511, 0.0
      %v1547 = vadd.f32 %v1545, %v1546
      %v1548 = vsel %vm653, %v1512, 0.0
      %v1549 = vadd.f32 %v1547, %v1548
      %v1550 = vsel %vm653, %v1513, 0.0
      %v1551 = vadd.f32 %v1549, %v1550
      %v1552 = vsel %vm653, %v1514, 0.0
      %v1553 = vadd.f32 %v1551, %v1552
      %v1554 = vsel %vm653, %v1515, 0.0
      %v1555 = vadd.f32 %v1553, %v1554
      %v1556 = vsel %vm653, %v1516, 0.0
      %v1557 = vadd.f32 %v1555, %v1556
      %v1558 = vsel %vm653, %v1517, 0.0
      %v1559 = vadd.f32 %v1557, %v1558
      %v1560 = vsel %vm653, %v1518, 0.0
      %v1561 = vadd.f32 %v1559, %v1560
      %v1562 = vsel %vm653, %v1519, 0.0
      %v1563 = vadd.f32 %v1561, %v1562
      %v1564 = vsel %vm653, %v1520, 0.0
      %v1565 = vadd.f32 %v1563, %v1564
      %v1566 = vsel %vm653, %v1521, 0.0
      %v1567 = vadd.f32 %v1565, %v1566
      %v1568 = vsel %vm653, %v1522, 0.0
      %v1569 = vadd.f32 %v1567, %v1568
      %v1570 = vsel %vm653, %v1523, 0.0
      %v1571 = vadd.f32 %v1569, %v1570
      %v1572 = vsel %vm653, %v1524, 0.0
      %v1573 = vadd.f32 %v1571, %v1572
      %v1574 = vsel %vm653, %v1525, 0.0
      %v1575 = vadd.f32 %v1573, %v1574
      %v1576 = vsel %vm653, %v1526, 0.0
      %v1577 = vadd.f32 %v1575, %v1576
      %v1578 = vsel %vm653, %v1527, 0.0
      %v1579 = vadd.f32 %v1577, %v1578
      %v1580 = vsel %vm653, %v1528, 0.0
      %v1581 = vadd.f32 %v1579, %v1580
      %v1582 = vsel %vm653, %v1529, 0.0
      %v1583 = vadd.f32 %v1581, %v1582
      %v1584 = vsel %vm653, %v1530, 0.0
      %v1585 = vadd.f32 %v1583, %v1584
      %v1586 = vsel %vm653, %v1531, 0.0
      %v1587 = vadd.f32 %v1585, %v1586
      %v1588 = vsel %vm653, %v1532, 0.0
      %v1589 = vadd.f32 %v1587, %v1588
      %v1590 = vsel %vm653, %v1533, 0.0
      %v1591 = vadd.f32 %v1589, %v1590
      %v1592 = vsel %vm653, %v1534, 0.0
      %v1593 = vadd.f32 %v1591, %v1592
      %v1594 = vsel %vm653, %v1535, 0.0
      %v1595 = vadd.f32 %v1593, %v1594
      %v1596 = vsel %vm653, %v1536, 0.0
      %v1597 = vadd.f32 %v1595, %v1596
      %v1598 = vsel %vm653, %v1537, 0.0
      %v1599 = vadd.f32 %v1597, %v1598
      %v1600 = vsel %vm653, %v1538, 0.0
      %v1601 = vadd.f32 %v1599, %v1600
      %v1602 = vrot.slane %v1601, 4
      %v1603 = vadd.f32 %v1601, %v1602
      %v1604 = vrot.slane %v1603, 2
      %v1605 = vadd.f32 %v1603, %v1604
      %v1606 = vrot.slane %v1605, 1
      %v1607 = vadd.f32 %v1605, %v1606
      %v1608 = vmul.f32 %v1507, %v1507
      %v1609 = vmul.f32 %v1508, %v1508
      %v1610 = vmul.f32 %v1509, %v1509
      %v1611 = vmul.f32 %v1510, %v1510
      %v1612 = vmul.f32 %v1511, %v1511
      %v1613 = vmul.f32 %v1512, %v1512
      %v1614 = vmul.f32 %v1513, %v1513
      %v1615 = vmul.f32 %v1514, %v1514
      %v1616 = vmul.f32 %v1515, %v1515
      %v1617 = vmul.f32 %v1516, %v1516
      %v1618 = vmul.f32 %v1517, %v1517
      %v1619 = vmul.f32 %v1518, %v1518
      %v1620 = vmul.f32 %v1519, %v1519
      %v1621 = vmul.f32 %v1520, %v1520
      %v1622 = vmul.f32 %v1521, %v1521
      %v1623 = vmul.f32 %v1522, %v1522
      %v1624 = vmul.f32 %v1523, %v1523
      %v1625 = vmul.f32 %v1524, %v1524
      %v1626 = vmul.f32 %v1525, %v1525
      %v1627 = vmul.f32 %v1526, %v1526
      %v1628 = vmul.f32 %v1527, %v1527
      %v1629 = vmul.f32 %v1528, %v1528
      %v1630 = vmul.f32 %v1529, %v1529
      %v1631 = vmul.f32 %v1530, %v1530
      %v1632 = vmul.f32 %v1531, %v1531
      %v1633 = vmul.f32 %v1532, %v1532
      %v1634 = vmul.f32 %v1533, %v1533
      %v1635 = vmul.f32 %v1534, %v1534
      %v1636 = vmul.f32 %v1535, %v1535
      %v1637 = vmul.f32 %v1536, %v1536
      %v1638 = vmul.f32 %v1537, %v1537
      %v1639 = vmul.f32 %v1538, %v1538
      %v1640 = vsel %vm653, %v1608, 0.0
      %v1641 = vsel %vm653, %v1609, 0.0
      %v1642 = vadd.f32 %v1640, %v1641
      %v1643 = vsel %vm653, %v1610, 0.0
      %v1644 = vadd.f32 %v1642, %v1643
      %v1645 = vsel %vm653, %v1611, 0.0
      %v1646 = vadd.f32 %v1644, %v1645
      %v1647 = vsel %vm653, %v1612, 0.0
      %v1648 = vadd.f32 %v1646, %v1647
      %v1649 = vsel %vm653, %v1613, 0.0
      %v1650 = vadd.f32 %v1648, %v1649
      %v1651 = vsel %vm653, %v1614, 0.0
      %v1652 = vadd.f32 %v1650, %v1651
      %v1653 = vsel %vm653, %v1615, 0.0
      %v1654 = vadd.f32 %v1652, %v1653
      %v1655 = vsel %vm653, %v1616, 0.0
      %v1656 = vadd.f32 %v1654, %v1655
      %v1657 = vsel %vm653, %v1617, 0.0
      %v1658 = vadd.f32 %v1656, %v1657
      %v1659 = vsel %vm653, %v1618, 0.0
      %v1660 = vadd.f32 %v1658, %v1659
      %v1661 = vsel %vm653, %v1619, 0.0
      %v1662 = vadd.f32 %v1660, %v1661
      %v1663 = vsel %vm653, %v1620, 0.0
      %v1664 = vadd.f32 %v1662, %v1663
      %v1665 = vsel %vm653, %v1621, 0.0
      %v1666 = vadd.f32 %v1664, %v1665
      %v1667 = vsel %vm653, %v1622, 0.0
      %v1668 = vadd.f32 %v1666, %v1667
      %v1669 = vsel %vm653, %v1623, 0.0
      %v1670 = vadd.f32 %v1668, %v1669
      %v1671 = vsel %vm653, %v1624, 0.0
      %v1672 = vadd.f32 %v1670, %v1671
      %v1673 = vsel %vm653, %v1625, 0.0
      %v1674 = vadd.f32 %v1672, %v1673
      %v1675 = vsel %vm653, %v1626, 0.0
      %v1676 = vadd.f32 %v1674, %v1675
      %v1677 = vsel %vm653, %v1627, 0.0
      %v1678 = vadd.f32 %v1676, %v1677
      %v1679 = vsel %vm653, %v1628, 0.0
      %v1680 = vadd.f32 %v1678, %v1679
      %v1681 = vsel %vm653, %v1629, 0.0
      %v1682 = vadd.f32 %v1680, %v1681
      %v1683 = vsel %vm653, %v1630, 0.0
      %v1684 = vadd.f32 %v1682, %v1683
      %v1685 = vsel %vm653, %v1631, 0.0
      %v1686 = vadd.f32 %v1684, %v1685
      %v1687 = vsel %vm653, %v1632, 0.0
      %v1688 = vadd.f32 %v1686, %v1687
      %v1689 = vsel %vm653, %v1633, 0.0
      %v1690 = vadd.f32 %v1688, %v1689
      %v1691 = vsel %vm653, %v1634, 0.0
      %v1692 = vadd.f32 %v1690, %v1691
      %v1693 = vsel %vm653, %v1635, 0.0
      %v1694 = vadd.f32 %v1692, %v1693
      %v1695 = vsel %vm653, %v1636, 0.0
      %v1696 = vadd.f32 %v1694, %v1695
      %v1697 = vsel %vm653, %v1637, 0.0
      %v1698 = vadd.f32 %v1696, %v1697
      %v1699 = vsel %vm653, %v1638, 0.0
      %v1700 = vadd.f32 %v1698, %v1699
      %v1701 = vsel %vm653, %v1639, 0.0
      %v1702 = vadd.f32 %v1700, %v1701
      %v1703 = vrot.slane %v1702, 4
      %v1704 = vadd.f32 %v1702, %v1703
      %v1705 = vrot.slane %v1704, 2
      %v1706 = vadd.f32 %v1704, %v1705
      %v1707 = vrot.slane %v1706, 1
      %v1708 = vadd.f32 %v1706, %v1707
      %v1709 = vmul.f32 %v1607, 0.00390625
      %v1710 = vmul.f32 %v1708, 0.00390625
      %v1711 = vmul.f32 %v1709, %v1709
      %v1712 = vsub.f32 %v1710, %v1711
      %v1713 = vmax.f32 %v1712, 0.0
      %v1714 = vsub.f32 %v1507, %v1709
      %v1715 = vsub.f32 %v1508, %v1709
      %v1716 = vsub.f32 %v1509, %v1709
      %v1717 = vsub.f32 %v1510, %v1709
      %v1718 = vsub.f32 %v1511, %v1709
      %v1719 = vsub.f32 %v1512, %v1709
      %v1720 = vsub.f32 %v1513, %v1709
      %v1721 = vsub.f32 %v1514, %v1709
      %v1722 = vsub.f32 %v1515, %v1709
      %v1723 = vsub.f32 %v1516, %v1709
      %v1724 = vsub.f32 %v1517, %v1709
      %v1725 = vsub.f32 %v1518, %v1709
      %v1726 = vsub.f32 %v1519, %v1709
      %v1727 = vsub.f32 %v1520, %v1709
      %v1728 = vsub.f32 %v1521, %v1709
      %v1729 = vsub.f32 %v1522, %v1709
      %v1730 = vsub.f32 %v1523, %v1709
      %v1731 = vsub.f32 %v1524, %v1709
      %v1732 = vsub.f32 %v1525, %v1709
      %v1733 = vsub.f32 %v1526, %v1709
      %v1734 = vsub.f32 %v1527, %v1709
      %v1735 = vsub.f32 %v1528, %v1709
      %v1736 = vsub.f32 %v1529, %v1709
      %v1737 = vsub.f32 %v1530, %v1709
      %v1738 = vsub.f32 %v1531, %v1709
      %v1739 = vsub.f32 %v1532, %v1709
      %v1740 = vsub.f32 %v1533, %v1709
      %v1741 = vsub.f32 %v1534, %v1709
      %v1742 = vsub.f32 %v1535, %v1709
      %v1743 = vsub.f32 %v1536, %v1709
      %v1744 = vsub.f32 %v1537, %v1709
      %v1745 = vsub.f32 %v1538, %v1709
      %v1746 = vadd.f32 %v1713, 1e-05
      %v1747 = vrsqrt.pop %v1746
      %v1748 = vmul.f32 %v1714, %v1747
      %v1749 = vmul.f32 %v1715, %v1747
      %v1750 = vmul.f32 %v1716, %v1747
      %v1751 = vmul.f32 %v1717, %v1747
      %v1752 = vmul.f32 %v1718, %v1747
      %v1753 = vmul.f32 %v1719, %v1747
      %v1754 = vmul.f32 %v1720, %v1747
      %v1755 = vmul.f32 %v1721, %v1747
      %v1756 = vmul.f32 %v1722, %v1747
      %v1757 = vmul.f32 %v1723, %v1747
      %v1758 = vmul.f32 %v1724, %v1747
      %v1759 = vmul.f32 %v1725, %v1747
      %v1760 = vmul.f32 %v1726, %v1747
      %v1761 = vmul.f32 %v1727, %v1747
      %v1762 = vmul.f32 %v1728, %v1747
      %v1763 = vmul.f32 %v1729, %v1747
      %v1764 = vmul.f32 %v1730, %v1747
      %v1765 = vmul.f32 %v1731, %v1747
      %v1766 = vmul.f32 %v1732, %v1747
      %v1767 = vmul.f32 %v1733, %v1747
      %v1768 = vmul.f32 %v1734, %v1747
      %v1769 = vmul.f32 %v1735, %v1747
      %v1770 = vmul.f32 %v1736, %v1747
      %v1771 = vmul.f32 %v1737, %v1747
      %v1772 = vmul.f32 %v1738, %v1747
      %v1773 = vmul.f32 %v1739, %v1747
      %v1774 = vmul.f32 %v1740, %v1747
      %v1775 = vmul.f32 %v1741, %v1747
      %v1776 = vmul.f32 %v1742, %v1747
      %v1777 = vmul.f32 %v1743, %v1747
      %v1778 = vmul.f32 %v1744, %v1747
      %v1779 = vmul.f32 %v1745, %v1747
      %v1780 = vmax.f32 %v1748, 0.0
      %v1781 = vmax.f32 %v1749, 0.0
      %v1782 = vmax.f32 %v1750, 0.0
      %v1783 = vmax.f32 %v1751, 0.0
      %v1784 = vmax.f32 %v1752, 0.0
      %v1785 = vmax.f32 %v1753, 0.0
      %v1786 = vmax.f32 %v1754, 0.0
      %v1787 = vmax.f32 %v1755, 0.0
      %v1788 = vmax.f32 %v1756, 0.0
      %v1789 = vmax.f32 %v1757, 0.0
      %v1790 = vmax.f32 %v1758, 0.0
      %v1791 = vmax.f32 %v1759, 0.0
      %v1792 = vmax.f32 %v1760, 0.0
      %v1793 = vmax.f32 %v1761, 0.0
      %v1794 = vmax.f32 %v1762, 0.0
      %v1795 = vmax.f32 %v1763, 0.0
      %v1796 = vmax.f32 %v1764, 0.0
      %v1797 = vmax.f32 %v1765, 0.0
      %v1798 = vmax.f32 %v1766, 0.0
      %v1799 = vmax.f32 %v1767, 0.0
      %v1800 = vmax.f32 %v1768, 0.0
      %v1801 = vmax.f32 %v1769, 0.0
      %v1802 = vmax.f32 %v1770, 0.0
      %v1803 = vmax.f32 %v1771, 0.0
      %v1804 = vmax.f32 %v1772, 0.0
      %v1805 = vmax.f32 %v1773, 0.0
      %v1806 = vmax.f32 %v1774, 0.0
      %v1807 = vmax.f32 %v1775, 0.0
      %v1808 = vmax.f32 %v1776, 0.0
      %v1809 = vmax.f32 %v1777, 0.0
      %v1810 = vmax.f32 %v1778, 0.0
      %v1811 = vmax.f32 %v1779, 0.0
      %v1828 = vrot.slane %v1782, 1
      %v1829 = vrot.slane %v1780, 1
      %v1830 = vrot.slane %v1784, 1
      %v1831 = vrot.slane %v1786, 1
      %v1832 = vrot.slane %v1788, 1
      %v1833 = vrot.slane %v1790, 1
      %v1834 = vrot.slane %v1792, 1
      %v1835 = vrot.slane %v1794, 1
      %v1836 = vrot.slane %v1796, 1
      %v1837 = vrot.slane %v1798, 1
      %v1838 = vrot.slane %v1800, 1
      %v1839 = vrot.slane %v1802, 1
      %v1840 = vrot.slane %v1804, 1
      %v1841 = vrot.slane %v1806, 1
      %v1842 = vrot.slane %v1808, 1
      %v1843 = vrot.slane %v1810, 1
      %v1876 = vrot.slane %v1782, 7
      %v1877 = vrot.slane %v1783, 7
      %v1878 = vsel %vm267, %v1876, %v1877
      %v1879 = vrot.slane %v1780, 7
      %v1880 = vrot.slane %v1781, 7
      %v1881 = vsel %vm267, %v1879, %v1880
      %v1882 = vrot.slane %v1784, 7
      %v1883 = vrot.slane %v1785, 7
      %v1884 = vsel %vm267, %v1882, %v1883
      %v1885 = vrot.slane %v1786, 7
      %v1886 = vrot.slane %v1787, 7
      %v1887 = vsel %vm267, %v1885, %v1886
      %v1888 = vrot.slane %v1788, 7
      %v1889 = vrot.slane %v1789, 7
      %v1890 = vsel %vm267, %v1888, %v1889
      %v1891 = vrot.slane %v1790, 7
      %v1892 = vrot.slane %v1791, 7
      %v1893 = vsel %vm267, %v1891, %v1892
      %v1894 = vrot.slane %v1792, 7
      %v1895 = vrot.slane %v1793, 7
      %v1896 = vsel %vm267, %v1894, %v1895
      %v1897 = vrot.slane %v1794, 7
      %v1898 = vrot.slane %v1795, 7
      %v1899 = vsel %vm267, %v1897, %v1898
      %v1900 = vrot.slane %v1796, 7
      %v1901 = vrot.slane %v1797, 7
      %v1902 = vsel %vm267, %v1900, %v1901
      %v1903 = vrot.slane %v1798, 7
      %v1904 = vrot.slane %v1799, 7
      %v1905 = vsel %vm267, %v1903, %v1904
      %v1906 = vrot.slane %v1800, 7
      %v1907 = vrot.slane %v1801, 7
      %v1908 = vsel %vm267, %v1906, %v1907
      %v1909 = vrot.slane %v1802, 7
      %v1910 = vrot.slane %v1803, 7
      %v1911 = vsel %vm267, %v1909, %v1910
      %v1912 = vrot.slane %v1804, 7
      %v1913 = vrot.slane %v1805, 7
      %v1914 = vsel %vm267, %v1912, %v1913
      %v1915 = vrot.slane %v1806, 7
      %v1916 = vrot.slane %v1807, 7
      %v1917 = vsel %vm267, %v1915, %v1916
      %v1918 = vrot.slane %v1808, 7
      %v1919 = vrot.slane %v1809, 7
      %v1920 = vsel %vm267, %v1918, %v1919
      %v1921 = vrot.slane %v1810, 7
      %v1922 = vrot.slane %v1811, 7
      %v1923 = vsel %vm267, %v1921, %v1922
      %v1956 = vsel %vm267, %v1828, %v1876
      %v1957 = vsel %vm267, %v1829, %v1879
      %v1958 = vsel %vm267, %v1830, %v1882
      %v1959 = vsel %vm267, %v1831, %v1885
      %v1960 = vsel %vm267, %v1832, %v1888
      %v1961 = vsel %vm267, %v1833, %v1891
      %v1962 = vsel %vm267, %v1834, %v1894
      %v1963 = vsel %vm267, %v1835, %v1897
      %v1964 = vsel %vm267, %v1836, %v1900
      %v1965 = vsel %vm267, %v1837, %v1903
      %v1966 = vsel %vm267, %v1838, %v1906
      %v1967 = vsel %vm267, %v1839, %v1909
      %v1968 = vsel %vm267, %v1840, %v1912
      %v1969 = vsel %vm267, %v1841, %v1915
      %v1970 = vsel %vm267, %v1842, %v1918
      %v1971 = vsel %vm267, %v1843, %v1921
      %v1972 = vrot.slane %v1783, 1
      %v1973 = vsel %vm364, %v1828, %v1972
      %v1974 = vrot.slane %v1781, 1
      %v1975 = vsel %vm364, %v1829, %v1974
      %v1976 = vrot.slane %v1785, 1
      %v1977 = vsel %vm364, %v1830, %v1976
      %v1978 = vrot.slane %v1787, 1
      %v1979 = vsel %vm364, %v1831, %v1978
      %v1980 = vrot.slane %v1789, 1
      %v1981 = vsel %vm364, %v1832, %v1980
      %v1982 = vrot.slane %v1791, 1
      %v1983 = vsel %vm364, %v1833, %v1982
      %v1984 = vrot.slane %v1793, 1
      %v1985 = vsel %vm364, %v1834, %v1984
      %v1986 = vrot.slane %v1795, 1
      %v1987 = vsel %vm364, %v1835, %v1986
      %v1988 = vrot.slane %v1797, 1
      %v1989 = vsel %vm364, %v1836, %v1988
      %v1990 = vrot.slane %v1799, 1
      %v1991 = vsel %vm364, %v1837, %v1990
      %v1992 = vrot.slane %v1801, 1
      %v1993 = vsel %vm364, %v1838, %v1992
      %v1994 = vrot.slane %v1803, 1
      %v1995 = vsel %vm364, %v1839, %v1994
      %v1996 = vrot.slane %v1805, 1
      %v1997 = vsel %vm364, %v1840, %v1996
      %v1998 = vrot.slane %v1807, 1
      %v1999 = vsel %vm364, %v1841, %v1998
      %v2000 = vrot.slane %v1809, 1
      %v2001 = vsel %vm364, %v1842, %v2000
      %v2002 = vrot.slane %v1811, 1
      %v2003 = vsel %vm364, %v1843, %v2002
      %v2036 = vsel %vm364, %v1972, %v1877
      %v2037 = vsel %vm364, %v1974, %v1880
      %v2038 = vsel %vm364, %v1976, %v1883
      %v2039 = vsel %vm364, %v1978, %v1886
      %v2040 = vsel %vm364, %v1980, %v1889
      %v2041 = vsel %vm364, %v1982, %v1892
      %v2042 = vsel %vm364, %v1984, %v1895
      %v2043 = vsel %vm364, %v1986, %v1898
      %v2044 = vsel %vm364, %v1988, %v1901
      %v2045 = vsel %vm364, %v1990, %v1904
      %v2046 = vsel %vm364, %v1992, %v1907
      %v2047 = vsel %vm364, %v1994, %v1910
      %v2048 = vsel %vm364, %v1996, %v1913
      %v2049 = vsel %vm364, %v1998, %v1916
      %v2050 = vsel %vm364, %v2000, %v1919
      %v2051 = vsel %vm364, %v2002, %v1922
      %2052 = vrot.lane.b32.xlu0 %v1782, 4
      %v2053 = vpop.permute.xlu0 %2052
      %2054 = vrot.lane.b32.xlu0 %v1783, 4
      %v2055 = vpop.permute.xlu0 %2054
      %2056 = vrot.lane.b32.xlu0 %v1780, 4
      %v2057 = vpop.permute.xlu0 %2056
      %2058 = vrot.lane.b32.xlu0 %v1781, 4
      %v2059 = vpop.permute.xlu0 %2058
      %2060 = vrot.lane.b32.xlu0 %v1784, 4
      %v2061 = vpop.permute.xlu0 %2060
      %2062 = vrot.lane.b32.xlu0 %v1785, 4
      %v2063 = vpop.permute.xlu0 %2062
      %2064 = vrot.lane.b32.xlu0 %v1786, 4
      %v2065 = vpop.permute.xlu0 %2064
      %2066 = vrot.lane.b32.xlu0 %v1787, 4
      %v2067 = vpop.permute.xlu0 %2066
      %2068 = vrot.lane.b32.xlu0 %v1788, 4
      %v2069 = vpop.permute.xlu0 %2068
      %2070 = vrot.lane.b32.xlu0 %v1789, 4
      %v2071 = vpop.permute.xlu0 %2070
      %2072 = vrot.lane.b32.xlu0 %v1790, 4
      %v2073 = vpop.permute.xlu0 %2072
      %2074 = vrot.lane.b32.xlu0 %v1791, 4
      %v2075 = vpop.permute.xlu0 %2074
      %2076 = vrot.lane.b32.xlu0 %v1792, 4
      %v2077 = vpop.permute.xlu0 %2076
      %2078 = vrot.lane.b32.xlu0 %v1793, 4
      %v2079 = vpop.permute.xlu0 %2078
      %2080 = vrot.lane.b32.xlu0 %v1794, 4
      %v2081 = vpop.permute.xlu0 %2080
      %2082 = vrot.lane.b32.xlu0 %v1795, 4
      %v2083 = vpop.permute.xlu0 %2082
      %2084 = vrot.lane.b32.xlu0 %v1796, 4
      %v2085 = vpop.permute.xlu0 %2084
      %2086 = vrot.lane.b32.xlu0 %v1797, 4
      %v2087 = vpop.permute.xlu0 %2086
      %2088 = vrot.lane.b32.xlu0 %v1798, 4
      %v2089 = vpop.permute.xlu0 %2088
      %2090 = vrot.lane.b32.xlu0 %v1799, 4
      %v2091 = vpop.permute.xlu0 %2090
      %2092 = vrot.lane.b32.xlu0 %v1800, 4
      %v2093 = vpop.permute.xlu0 %2092
      %2094 = vrot.lane.b32.xlu0 %v1801, 4
      %v2095 = vpop.permute.xlu0 %2094
      %2096 = vrot.lane.b32.xlu0 %v1802, 4
      %v2097 = vpop.permute.xlu0 %2096
      %2098 = vrot.lane.b32.xlu0 %v1803, 4
      %v2099 = vpop.permute.xlu0 %2098
      %2100 = vrot.lane.b32.xlu0 %v1804, 4
      %v2101 = vpop.permute.xlu0 %2100
      %2102 = vrot.lane.b32.xlu0 %v1805, 4
      %v2103 = vpop.permute.xlu0 %2102
      %2104 = vrot.lane.b32.xlu0 %v1806, 4
      %v2105 = vpop.permute.xlu0 %2104
      %2106 = vrot.lane.b32.xlu0 %v1807, 4
      %v2107 = vpop.permute.xlu0 %2106
      %2108 = vrot.lane.b32.xlu0 %v1808, 4
      %v2109 = vpop.permute.xlu0 %2108
      %2110 = vrot.lane.b32.xlu0 %v1809, 4
      %v2111 = vpop.permute.xlu0 %2110
      %2112 = vrot.lane.b32.xlu0 %v1810, 4
      %v2113 = vpop.permute.xlu0 %2112
      %2114 = vrot.lane.b32.xlu0 %v1811, 4
      %v2115 = vpop.permute.xlu0 %2114
      %2164 = vrot.lane.b32.xlu0 %v1973, 8
      %v2165 = vpop.permute.xlu0 %2164
      %2166 = vrot.lane.b32.xlu0 %v2036, 8
      %v2167 = vpop.permute.xlu0 %2166
      %2168 = vrot.lane.b32.xlu0 %v1975, 8
      %v2169 = vpop.permute.xlu0 %2168
      %2170 = vrot.lane.b32.xlu0 %v2037, 8
      %v2171 = vpop.permute.xlu0 %2170
      %2172 = vrot.lane.b32.xlu0 %v1977, 8
      %v2173 = vpop.permute.xlu0 %2172
      %2174 = vrot.lane.b32.xlu0 %v2038, 8
      %v2175 = vpop.permute.xlu0 %2174
      %2176 = vrot.lane.b32.xlu0 %v1979, 8
      %v2177 = vpop.permute.xlu0 %2176
      %2178 = vrot.lane.b32.xlu0 %v2039, 8
      %v2179 = vpop.permute.xlu0 %2178
      %2180 = vrot.lane.b32.xlu0 %v1981, 8
      %v2181 = vpop.permute.xlu0 %2180
      %2182 = vrot.lane.b32.xlu0 %v2040, 8
      %v2183 = vpop.permute.xlu0 %2182
      %2184 = vrot.lane.b32.xlu0 %v1983, 8
      %v2185 = vpop.permute.xlu0 %2184
      %2186 = vrot.lane.b32.xlu0 %v2041, 8
      %v2187 = vpop.permute.xlu0 %2186
      %2188 = vrot.lane.b32.xlu0 %v1985, 8
      %v2189 = vpop.permute.xlu0 %2188
      %2190 = vrot.lane.b32.xlu0 %v2042, 8
      %v2191 = vpop.permute.xlu0 %2190
      %2192 = vrot.lane.b32.xlu0 %v1987, 8
      %v2193 = vpop.permute.xlu0 %2192
      %2194 = vrot.lane.b32.xlu0 %v2043, 8
      %v2195 = vpop.permute.xlu0 %2194
      %2196 = vrot.lane.b32.xlu0 %v1989, 8
      %v2197 = vpop.permute.xlu0 %2196
      %2198 = vrot.lane.b32.xlu0 %v2044, 8
      %v2199 = vpop.permute.xlu0 %2198
      %2200 = vrot.lane.b32.xlu0 %v1991, 8
      %v2201 = vpop.permute.xlu0 %2200
      %2202 = vrot.lane.b32.xlu0 %v2045, 8
      %v2203 = vpop.permute.xlu0 %2202
      %2204 = vrot.lane.b32.xlu0 %v1993, 8
      %v2205 = vpop.permute.xlu0 %2204
      %2206 = vrot.lane.b32.xlu0 %v2046, 8
      %v2207 = vpop.permute.xlu0 %2206
      %2208 = vrot.lane.b32.xlu0 %v1995, 8
      %v2209 = vpop.permute.xlu0 %2208
      %2210 = vrot.lane.b32.xlu0 %v2047, 8
      %v2211 = vpop.permute.xlu0 %2210
      %2212 = vrot.lane.b32.xlu0 %v1997, 8
      %v2213 = vpop.permute.xlu0 %2212
      %2214 = vrot.lane.b32.xlu0 %v2048, 8
      %v2215 = vpop.permute.xlu0 %2214
      %2216 = vrot.lane.b32.xlu0 %v1999, 8
      %v2217 = vpop.permute.xlu0 %2216
      %2218 = vrot.lane.b32.xlu0 %v2049, 8
      %v2219 = vpop.permute.xlu0 %2218
      %2220 = vrot.lane.b32.xlu0 %v2001, 8
      %v2221 = vpop.permute.xlu0 %2220
      %2222 = vrot.lane.b32.xlu0 %v2050, 8
      %v2223 = vpop.permute.xlu0 %2222
      %2224 = vrot.lane.b32.xlu0 %v2003, 8
      %v2225 = vpop.permute.xlu0 %2224
      %2226 = vrot.lane.b32.xlu0 %v2051, 8
      %v2227 = vpop.permute.xlu0 %2226
      %v2260 = vsel %vm653, %v1956, %v2053
      %v2261 = vsel %vm653, %v1878, %v2055
      %v2262 = vsel %vm653, %v1957, %v2057
      %v2263 = vsel %vm653, %v1881, %v2059
      %v2264 = vsel %vm653, %v1958, %v2061
      %v2265 = vsel %vm653, %v1884, %v2063
      %v2266 = vsel %vm653, %v1959, %v2065
      %v2267 = vsel %vm653, %v1887, %v2067
      %v2268 = vsel %vm653, %v1960, %v2069
      %v2269 = vsel %vm653, %v1890, %v2071
      %v2270 = vsel %vm653, %v1961, %v2073
      %v2271 = vsel %vm653, %v1893, %v2075
      %v2272 = vsel %vm653, %v1962, %v2077
      %v2273 = vsel %vm653, %v1896, %v2079
      %v2274 = vsel %vm653, %v1963, %v2081
      %v2275 = vsel %vm653, %v1899, %v2083
      %v2276 = vsel %vm653, %v1964, %v2085
      %v2277 = vsel %vm653, %v1902, %v2087
      %v2278 = vsel %vm653, %v1965, %v2089
      %v2279 = vsel %vm653, %v1905, %v2091
      %v2280 = vsel %vm653, %v1966, %v2093
      %v2281 = vsel %vm653, %v1908, %v2095
      %v2282 = vsel %vm653, %v1967, %v2097
      %v2283 = vsel %vm653, %v1911, %v2099
      %v2284 = vsel %vm653, %v1968, %v2101
      %v2285 = vsel %vm653, %v1914, %v2103
      %v2286 = vsel %vm653, %v1969, %v2105
      %v2287 = vsel %vm653, %v1917, %v2107
      %v2288 = vsel %vm653, %v1970, %v2109
      %v2289 = vsel %vm653, %v1920, %v2111
      %v2290 = vsel %vm653, %v1971, %v2113
      %v2291 = vsel %vm653, %v1923, %v2115
      %v2292 = vsel %vm686, %v2260, %v2165
      %v2293 = vsel %vm686, %v2261, %v2167
      %v2294 = vsel %vm686, %v2262, %v2169
      %v2295 = vsel %vm686, %v2263, %v2171
      %v2296 = vsel %vm686, %v2264, %v2173
      %v2297 = vsel %vm686, %v2265, %v2175
      %v2298 = vsel %vm686, %v2266, %v2177
      %v2299 = vsel %vm686, %v2267, %v2179
      %v2300 = vsel %vm686, %v2268, %v2181
      %v2301 = vsel %vm686, %v2269, %v2183
      %v2302 = vsel %vm686, %v2270, %v2185
      %v2303 = vsel %vm686, %v2271, %v2187
      %v2304 = vsel %vm686, %v2272, %v2189
      %v2305 = vsel %vm686, %v2273, %v2191
      %v2306 = vsel %vm686, %v2274, %v2193
      %v2307 = vsel %vm686, %v2275, %v2195
      %v2308 = vsel %vm686, %v2276, %v2197
      %v2309 = vsel %vm686, %v2277, %v2199
      %v2310 = vsel %vm686, %v2278, %v2201
      %v2311 = vsel %vm686, %v2279, %v2203
      %v2312 = vsel %vm686, %v2280, %v2205
      %v2313 = vsel %vm686, %v2281, %v2207
      %v2314 = vsel %vm686, %v2282, %v2209
      %v2315 = vsel %vm686, %v2283, %v2211
      %v2316 = vsel %vm686, %v2284, %v2213
      %v2317 = vsel %vm686, %v2285, %v2215
      %v2318 = vsel %vm686, %v2286, %v2217
      %v2319 = vsel %vm686, %v2287, %v2219
      %v2320 = vsel %vm686, %v2288, %v2221
      %v2321 = vsel %vm686, %v2289, %v2223
      %v2322 = vsel %vm686, %v2290, %v2225
      %v2323 = vsel %vm686, %v2291, %v2227
      %v2324 = vld [vmem:[%s2] sm:$0xff]
      %v2325 = vld [vmem:[%s2 + $0x8] sm:$0xf]
      %v2326 = vld [vmem:[%s2 + $0xc] sm:$0xff]
      %v2327 = vld [vmem:[%s2 + $0x14] sm:$0xf]
      %v2329 = vsel %vm723, %v2294, 0
      %v2332 = vsel %vm723, %v2295, 0
      %v2335 = vsel %vm723, %v2292, 0
      %v2338 = vsel %vm723, %v2293, 0
      %v2341 = vsel %vm723, %v2296, 0
      %v2344 = vsel %vm723, %v2297, 0
      %v2347 = vsel %vm723, %v2298, 0
      %v2350 = vsel %vm723, %v2299, 0
      %v2353 = vsel %vm723, %v2300, 0
      %v2356 = vsel %vm723, %v2301, 0
      %v2359 = vsel %vm723, %v2302, 0
      %v2362 = vsel %vm723, %v2303, 0
      %v2365 = vsel %vm723, %v2304, 0
      %v2368 = vsel %vm723, %v2305, 0
      %v2371 = vsel %vm723, %v2306, 0
      %v2374 = vsel %vm723, %v2307, 0
      %v2377 = vsel %vm723, %v2308, 0
      %v2380 = vsel %vm723, %v2309, 0
      %v2383 = vsel %vm723, %v2310, 0
      %v2386 = vsel %vm723, %v2311, 0
      %v2389 = vsel %vm723, %v2312, 0
      %v2392 = vsel %vm723, %v2313, 0
      %v2395 = vsel %vm723, %v2314, 0
      %v2398 = vsel %vm723, %v2315, 0
      %v2401 = vsel %vm723, %v2316, 0
      %v2404 = vsel %vm723, %v2317, 0
      %v2407 = vsel %vm723, %v2318, 0
      %v2410 = vsel %vm723, %v2319, 0
      %v2413 = vsel %vm723, %v2320, 0
      %v2416 = vsel %vm723, %v2321, 0
      %v2419 = vsel %vm723, %v2322, 0
      %v2422 = vsel %vm723, %v2323, 0
      %v2425 = vsel %vm820, %v2327, 0
      %2427 = vmatprep.subr.mxu0 0.0
      %2428 = vmatpush1.msra.mxu0 %v2326
      %2429 = vmatprep.subr.mxu0 0.0
      %2430 = vmatpush1.msra.mxu0 %v2425
      %2431 = vmatprep.subr.mxu0 0.0
      %2432 = vmatpush1.msra.mxu0 0.0
      %2433 = vmatprep.subr.mxu0 0.0
      %2434 = vmatpush1.msra.mxu0 0.0
      %2435 = vmatprep.subr.mxu0 0.0
      %2436 = vmatpush1.msra.mxu0 0.0
      %2437 = vmatprep.subr.mxu0 0.0
      %2438 = vmatpush1.msra.mxu0 0.0
      %2439 = vmatprep.subr.mxu0 0.0
      %2440 = vmatpush1.msra.mxu0 0.0
      %2441 = vmatprep.subr.mxu0 0.0
      %2442 = vmatpush1.msra.mxu0 0.0
      %2443 = vmatprep.subr.mxu0 0.0
      %2444 = vmatpush1.msra.mxu0 0.0
      %2445 = vmatprep.subr.mxu0 0.0
      %2446 = vmatpush1.msra.mxu0 0.0
      %2447 = vmatprep.subr.mxu0 0.0
      %2448 = vmatpush1.msra.mxu0 0.0
      %2449 = vmatprep.subr.mxu0 0.0
      %2450 = vmatpush1.msra.mxu0 0.0
      %2451 = vmatprep.subr.mxu0 0.0
      %2452 = vmatpush1.msra.mxu0 0.0
      %2453 = vmatprep.subr.mxu0 0.0
      %2454 = vmatpush1.msra.mxu0 0.0
      %2455 = vmatprep.subr.mxu0 0.0
      %2456 = vmatpush1.msra.mxu0 0.0
      %2457 = vmatprep.subr.mxu0 0.0
      %2458 = vmatpush1.msra.mxu0 0.0
      %2459 = vmatprep.subr.mxu0 0.0
      %2460 = vmatpush1.msra.mxu0 0.0
      %2461 = vmatprep.subr.mxu0 0.0
      %2462 = vmatpush1.msra.mxu0 0.0
      %2463 = vmatprep.subr.mxu0 0.0
      %2464 = vmatpush1.msra.mxu0 0.0
      %2465 = vmatprep.subr.mxu0 0.0
      %2466 = vmatpush1.msra.mxu0 0.0
      %2467 = vmatprep.subr.mxu0 0.0
      %2468 = vmatpush1.msra.mxu0 0.0
      %2469 = vmatprep.subr.mxu0 0.0
      %2470 = vmatpush1.msra.mxu0 0.0
      %2471 = vmatprep.subr.mxu0 0.0
      %2472 = vmatpush1.msra.mxu0 0.0
      %2473 = vmatprep.subr.mxu0 0.0
      %2474 = vmatpush1.msra.mxu0 0.0
      %2475 = vmatprep.subr.mxu0 0.0
      %2476 = vmatpush1.msra.mxu0 0.0
      %2477 = vmatprep.subr.mxu0 0.0
      %2478 = vmatpush1.msra.mxu0 0.0
      %2479 = vmatprep.subr.mxu0 0.0
      %2480 = vmatpush1.msra.mxu0 0.0
      %2481 = vmatprep.subr.mxu0 0.0
      %2482 = vmatpush1.msra.mxu0 0.0
      %2483 = vmatprep.subr.mxu0 0.0
      %2484 = vmatpush1.msra.mxu0 0.0
      %2485 = vmatprep.subr.mxu0 0.0
      %2486 = vmatpush1.msra.mxu0 0.0
      %2487 = vmatprep.subr.mxu0 0.0
      %2488 = vmatpush1.msra.mxu0 0.0
      %2489 = vmatprep.subr.mxu0 0.0
      %2490 = vmatpush1.msra.mxu0 0.0
      %2491 = vmatprep.mubr.f32.mxu0 0.0
      %2492 = vmatmul.mubr.f32.gmra.mrb[0].mxu0 %v2329
      %v2493 = vpop.f32.mrb[0].mxu0
      %v2494 = vadd.f32 0.0, %v2493
      %v2495 = vpop.f32.mrb[0].mxu0
      %2496 = vmatprep.mubr.f32.mxu0 0.0
      %2497 = vmatmul.mubr.f32.gmra.mrb[0].mxu0 %v2332
      %v2498 = vpop.f32.mrb[0].mxu0
      %v2499 = vadd.f32 0.0, %v2498
      %v2500 = vpop.f32.mrb[0].mxu0
      %2501 = vmatprep.mubr.f32.mxu0 0.0
      %2502 = vmatmul.mubr.f32.gmra.mrb[0].mxu0 %v2335
      %v2503 = vpop.f32.mrb[0].mxu0
      %v2504 = vadd.f32 0.0, %v2503
      %v2505 = vpop.f32.mrb[0].mxu0
      %2506 = vmatprep.mubr.f32.mxu0 0.0
      %2507 = vmatmul.mubr.f32.gmra.mrb[0].mxu0 %v2338
      %v2508 = vpop.f32.mrb[0].mxu0
      %v2509 = vadd.f32 0.0, %v2508
      %v2510 = vpop.f32.mrb[0].mxu0
      %2511 = vmatprep.mubr.f32.mxu0 0.0
      %2512 = vmatmul.mubr.f32.gmra.mrb[0].mxu0 %v2341
      %v2513 = vpop.f32.mrb[0].mxu0
      %v2514 = vadd.f32 0.0, %v2513
      %v2515 = vpop.f32.mrb[0].mxu0
      %2516 = vmatprep.mubr.f32.mxu0 0.0
      %2517 = vmatmul.mubr.f32.gmra.mrb[0].mxu0 %v2344
      %v2518 = vpop.f32.mrb[0].mxu0
      %v2519 = vadd.f32 0.0, %v2518
      %v2520 = vpop.f32.mrb[0].mxu0
      %2521 = vmatprep.mubr.f32.mxu0 0.0
      %2522 = vmatmul.mubr.f32.gmra.mrb[0].mxu0 %v2347
      %v2523 = vpop.f32.mrb[0].mxu0
      %v2524 = vadd.f32 0.0, %v2523
      %v2525 = vpop.f32.mrb[0].mxu0
      %2526 = vmatprep.mubr.f32.mxu0 0.0
      %2527 = vmatmul.mubr.f32.gmra.mrb[0].mxu0 %v2350
      %v2528 = vpop.f32.mrb[0].mxu0
      %v2529 = vadd.f32 0.0, %v2528
      %v2530 = vpop.f32.mrb[0].mxu0
      %2531 = vmatprep.mubr.f32.mxu0 0.0
      %2532 = vmatmul.mubr.f32.gmra.mrb[0].mxu0 %v2353
      %v2533 = vpop.f32.mrb[0].mxu0
      %v2534 = vadd.f32 0.0, %v2533
      %v2535 = vpop.f32.mrb[0].mxu0
      %2536 = vmatprep.mubr.f32.mxu0 0.0
      %2537 = vmatmul.mubr.f32.gmra.mrb[0].mxu0 %v2356
      %v2538 = vpop.f32.mrb[0].mxu0
      %v2539 = vadd.f32 0.0, %v2538
      %v2540 = vpop.f32.mrb[0].mxu0
      %2541 = vmatprep.mubr.f32.mxu0 0.0
      %2542 = vmatmul.mubr.f32.gmra.mrb[0].mxu0 %v2359
      %v2543 = vpop.f32.mrb[0].mxu0
      %v2544 = vadd.f32 0.0, %v2543
      %v2545 = vpop.f32.mrb[0].mxu0
      %2546 = vmatprep.mubr.f32.mxu0 0.0
      %2547 = vmatmul.mubr.f32.gmra.mrb[0].mxu0 %v2362
      %v2548 = vpop.f32.mrb[0].mxu0
      %v2549 = vadd.f32 0.0, %v2548
      %v2550 = vpop.f32.mrb[0].mxu0
      %2551 = vmatprep.mubr.f32.mxu0 0.0
      %2552 = vmatmul.mubr.f32.gmra.mrb[0].mxu0 %v2365
      %v2553 = vpop.f32.mrb[0].mxu0
      %v2554 = vadd.f32 0.0, %v2553
      %v2555 = vpop.f32.mrb[0].mxu0
      %2556 = vmatprep.mubr.f32.mxu0 0.0
      %2557 = vmatmul.mubr.f32.gmra.mrb[0].mxu0 %v2368
      %v2558 = vpop.f32.mrb[0].mxu0
      %v2559 = vadd.f32 0.0, %v2558
      %v2560 = vpop.f32.mrb[0].mxu0
      %2561 = vmatprep.mubr.f32.mxu0 0.0
      %2562 = vmatmul.mubr.f32.gmra.mrb[0].mxu0 %v2371
      %v2563 = vpop.f32.mrb[0].mxu0
      %v2564 = vadd.f32 0.0, %v2563
      %v2565 = vpop.f32.mrb[0].mxu0
      %2566 = vmatprep.mubr.f32.mxu0 0.0
      %2567 = vmatmul.mubr.f32.gmra.mrb[0].mxu0 %v2374
      %v2568 = vpop.f32.mrb[0].mxu0
      %v2569 = vadd.f32 0.0, %v2568
      %v2570 = vpop.f32.mrb[0].mxu0
      %2571 = vmatprep.mubr.f32.mxu0 0.0
      %2572 = vmatmul.mubr.f32.gmra.mrb[0].mxu0 %v2377
      %v2573 = vpop.f32.mrb[0].mxu0
      %v2574 = vadd.f32 0.0, %v2573
      %v2575 = vpop.f32.mrb[0].mxu0
      %2576 = vmatprep.mubr.f32.mxu0 0.0
      %2577 = vmatmul.mubr.f32.gmra.mrb[0].mxu0 %v2380
      %v2578 = vpop.f32.mrb[0].mxu0
      %v2579 = vadd.f32 0.0, %v2578
      %v2580 = vpop.f32.mrb[0].mxu0
      %2581 = vmatprep.mubr.f32.mxu0 0.0
      %2582 = vmatmul.mubr.f32.gmra.mrb[0].mxu0 %v2383
      %v2583 = vpop.f32.mrb[0].mxu0
      %v2584 = vadd.f32 0.0, %v2583
      %v2585 = vpop.f32.mrb[0].mxu0
      %2586 = vmatprep.mubr.f32.mxu0 0.0
      %2587 = vmatmul.mubr.f32.gmra.mrb[0].mxu0 %v2386
      %v2588 = vpop.f32.mrb[0].mxu0
      %v2589 = vadd.f32 0.0, %v2588
      %v2590 = vpop.f32.mrb[0].mxu0
      %2591 = vmatprep.mubr.f32.mxu0 0.0
      %2592 = vmatmul.mubr.f32.gmra.mrb[0].mxu0 %v2389
      %v2593 = vpop.f32.mrb[0].mxu0
      %v2594 = vadd.f32 0.0, %v2593
      %v2595 = vpop.f32.mrb[0].mxu0
      %2596 = vmatprep.mubr.f32.mxu0 0.0
      %2597 = vmatmul.mubr.f32.gmra.mrb[0].mxu0 %v2392
      %v2598 = vpop.f32.mrb[0].mxu0
      %v2599 = vadd.f32 0.0, %v2598
      %v2600 = vpop.f32.mrb[0].mxu0
      %2601 = vmatprep.mubr.f32.mxu0 0.0
      %2602 = vmatmul.mubr.f32.gmra.mrb[0].mxu0 %v2395
      %v2603 = vpop.f32.mrb[0].mxu0
      %v2604 = vadd.f32 0.0, %v2603
      %v2605 = vpop.f32.mrb[0].mxu0
      %2606 = vmatprep.mubr.f32.mxu0 0.0
      %2607 = vmatmul.mubr.f32.gmra.mrb[0].mxu0 %v2398
      %v2608 = vpop.f32.mrb[0].mxu0
      %v2609 = vadd.f32 0.0, %v2608
      %v2610 = vpop.f32.mrb[0].mxu0
      %2611 = vmatprep.mubr.f32.mxu0 0.0
      %2612 = vmatmul.mubr.f32.gmra.mrb[0].mxu0 %v2401
      %v2613 = vpop.f32.mrb[0].mxu0
      %v2614 = vadd.f32 0.0, %v2613
      %v2615 = vpop.f32.mrb[0].mxu0
      %2616 = vmatprep.mubr.f32.mxu0 0.0
      %2617 = vmatmul.mubr.f32.gmra.mrb[0].mxu0 %v2404
      %v2618 = vpop.f32.mrb[0].mxu0
      %v2619 = vadd.f32 0.0, %v2618
      %v2620 = vpop.f32.mrb[0].mxu0
      %2621 = vmatprep.mubr.f32.mxu0 0.0
      %2622 = vmatmul.mubr.f32.gmra.mrb[0].mxu0 %v2407
      %v2623 = vpop.f32.mrb[0].mxu0
      %v2624 = vadd.f32 0.0, %v2623
      %v2625 = vpop.f32.mrb[0].mxu0
      %2626 = vmatprep.mubr.f32.mxu0 0.0
      %2627 = vmatmul.mubr.f32.gmra.mrb[0].mxu0 %v2410
      %v2628 = vpop.f32.mrb[0].mxu0
      %v2629 = vadd.f32 0.0, %v2628
      %v2630 = vpop.f32.mrb[0].mxu0
      %2631 = vmatprep.mubr.f32.mxu0 0.0
      %2632 = vmatmul.mubr.f32.gmra.mrb[0].mxu0 %v2413
      %v2633 = vpop.f32.mrb[0].mxu0
      %v2634 = vadd.f32 0.0, %v2633
      %v2635 = vpop.f32.mrb[0].mxu0
      %2636 = vmatprep.mubr.f32.mxu0 0.0
      %2637 = vmatmul.mubr.f32.gmra.mrb[0].mxu0 %v2416
      %v2638 = vpop.f32.mrb[0].mxu0
      %v2639 = vadd.f32 0.0, %v2638
      %v2640 = vpop.f32.mrb[0].mxu0
      %2641 = vmatprep.mubr.f32.mxu0 0.0
      %2642 = vmatmul.mubr.f32.gmra.mrb[0].mxu0 %v2419
      %v2643 = vpop.f32.mrb[0].mxu0
      %v2644 = vadd.f32 0.0, %v2643
      %v2645 = vpop.f32.mrb[0].mxu0
      %2646 = vmatprep.mubr.f32.mxu0 0.0
      %2647 = vmatmul.mubr.f32.gmra.mrb[0].mxu0 %v2422
      %v2648 = vpop.f32.mrb[0].mxu0
      %v2649 = vadd.f32 0.0, %v2648
      %v2650 = vpop.f32.mrb[0].mxu0
      %2651 = vdwg.mxu0
      %v2653 = vsel %vm820, %v2325, 0
      %2655 = vmatprep.subr.mxu0 0.0
      %2656 = vmatpush1.msra.mxu0 %v2324
      %2657 = vmatprep.subr.mxu0 0.0
      %2658 = vmatpush1.msra.mxu0 %v2653
      %2659 = vmatprep.subr.mxu0 0.0
      %2660 = vmatpush1.msra.mxu0 0.0
      %2661 = vmatprep.subr.mxu0 0.0
      %2662 = vmatpush1.msra.mxu0 0.0
      %2663 = vmatprep.subr.mxu0 0.0
      %2664 = vmatpush1.msra.mxu0 0.0
      %2665 = vmatprep.subr.mxu0 0.0
      %2666 = vmatpush1.msra.mxu0 0.0
      %2667 = vmatprep.subr.mxu0 0.0
      %2668 = vmatpush1.msra.mxu0 0.0
      %2669 = vmatprep.subr.mxu0 0.0
      %2670 = vmatpush1.msra.mxu0 0.0
      %2671 = vmatprep.subr.mxu0 0.0
      %2672 = vmatpush1.msra.mxu0 0.0
      %2673 = vmatprep.subr.mxu0 0.0
      %2674 = vmatpush1.msra.mxu0 0.0
      %2675 = vmatprep.subr.mxu0 0.0
      %2676 = vmatpush1.msra.mxu0 0.0
      %2677 = vmatprep.subr.mxu0 0.0
      %2678 = vmatpush1.msra.mxu0 0.0
      %2679 = vmatprep.subr.mxu0 0.0
      %2680 = vmatpush1.msra.mxu0 0.0
      %2681 = vmatprep.subr.mxu0 0.0
      %2682 = vmatpush1.msra.mxu0 0.0
      %2683 = vmatprep.subr.mxu0 0.0
      %2684 = vmatpush1.msra.mxu0 0.0
      %2685 = vmatprep.subr.mxu0 0.0
      %2686 = vmatpush1.msra.mxu0 0.0
      %2687 = vmatprep.subr.mxu0 0.0
      %2688 = vmatpush1.msra.mxu0 0.0
      %2689 = vmatprep.subr.mxu0 0.0
      %2690 = vmatpush1.msra.mxu0 0.0
      %2691 = vmatprep.subr.mxu0 0.0
      %2692 = vmatpush1.msra.mxu0 0.0
      %2693 = vmatprep.subr.mxu0 0.0
      %2694 = vmatpush1.msra.mxu0 0.0
      %2695 = vmatprep.subr.mxu0 0.0
      %2696 = vmatpush1.msra.mxu0 0.0
      %2697 = vmatprep.subr.mxu0 0.0
      %2698 = vmatpush1.msra.mxu0 0.0
      %2699 = vmatprep.subr.mxu0 0.0
      %2700 = vmatpush1.msra.mxu0 0.0
      %2701 = vmatprep.subr.mxu0 0.0
      %2702 = vmatpush1.msra.mxu0 0.0
      %2703 = vmatprep.subr.mxu0 0.0
      %2704 = vmatpush1.msra.mxu0 0.0
      %2705 = vmatprep.subr.mxu0 0.0
      %2706 = vmatpush1.msra.mxu0 0.0
      %2707 = vmatprep.subr.mxu0 0.0
      %2708 = vmatpush1.msra.mxu0 0.0
      %2709 = vmatprep.subr.mxu0 0.0
      %2710 = vmatpush1.msra.mxu0 0.0
      %2711 = vmatprep.subr.mxu0 0.0
      %2712 = vmatpush1.msra.mxu0 0.0
      %2713 = vmatprep.subr.mxu0 0.0
      %2714 = vmatpush1.msra.mxu0 0.0
      %2715 = vmatprep.subr.mxu0 0.0
      %2716 = vmatpush1.msra.mxu0 0.0
      %2717 = vmatprep.subr.mxu0 0.0
      %2718 = vmatpush1.msra.mxu0 0.0
      %2719 = vmatprep.mubr.f32.mxu0 0.0
      %2720 = vmatmul.mubr.f32.gmra.mrb[0].mxu0 %v2335
      %v2721 = vpop.f32.mrb[0].mxu0
      %v2722 = vadd.f32 %v2494, %v2721
      %v2723 = vpop.f32.mrb[0].mxu0
      %2724 = vmatprep.mubr.f32.mxu0 0.0
      %2725 = vmatmul.mubr.f32.gmra.mrb[0].mxu0 %v2338
      %v2726 = vpop.f32.mrb[0].mxu0
      %v2727 = vadd.f32 %v2499, %v2726
      %v2728 = vpop.f32.mrb[0].mxu0
      %2729 = vmatprep.mubr.f32.mxu0 0.0
      %2730 = vmatmul.mubr.f32.gmra.mrb[0].mxu0 %v2329
      %v2731 = vpop.f32.mrb[0].mxu0
      %v2732 = vadd.f32 %v2504, %v2731
      %v2733 = vpop.f32.mrb[0].mxu0
      %2734 = vmatprep.mubr.f32.mxu0 0.0
      %2735 = vmatmul.mubr.f32.gmra.mrb[0].mxu0 %v2332
      %v2736 = vpop.f32.mrb[0].mxu0
      %v2737 = vadd.f32 %v2509, %v2736
      %v2738 = vpop.f32.mrb[0].mxu0
      %2739 = vmatprep.mubr.f32.mxu0 0.0
      %2740 = vmatmul.mubr.f32.gmra.mrb[0].mxu0 %v2335
      %v2741 = vpop.f32.mrb[0].mxu0
      %v2742 = vadd.f32 %v2514, %v2741
      %v2743 = vpop.f32.mrb[0].mxu0
      %2744 = vmatprep.mubr.f32.mxu0 0.0
      %2745 = vmatmul.mubr.f32.gmra.mrb[0].mxu0 %v2338
      %v2746 = vpop.f32.mrb[0].mxu0
      %v2747 = vadd.f32 %v2519, %v2746
      %v2748 = vpop.f32.mrb[0].mxu0
      %2749 = vmatprep.mubr.f32.mxu0 0.0
      %2750 = vmatmul.mubr.f32.gmra.mrb[0].mxu0 %v2341
      %v2751 = vpop.f32.mrb[0].mxu0
      %v2752 = vadd.f32 %v2524, %v2751
      %v2753 = vpop.f32.mrb[0].mxu0
      %2754 = vmatprep.mubr.f32.mxu0 0.0
      %2755 = vmatmul.mubr.f32.gmra.mrb[0].mxu0 %v2344
      %v2756 = vpop.f32.mrb[0].mxu0
      %v2757 = vadd.f32 %v2529, %v2756
      %v2758 = vpop.f32.mrb[0].mxu0
      %2759 = vmatprep.mubr.f32.mxu0 0.0
      %2760 = vmatmul.mubr.f32.gmra.mrb[0].mxu0 %v2347
      %v2761 = vpop.f32.mrb[0].mxu0
      %v2762 = vadd.f32 %v2534, %v2761
      %v2763 = vpop.f32.mrb[0].mxu0
      %2764 = vmatprep.mubr.f32.mxu0 0.0
      %2765 = vmatmul.mubr.f32.gmra.mrb[0].mxu0 %v2350
      %v2766 = vpop.f32.mrb[0].mxu0
      %v2767 = vadd.f32 %v2539, %v2766
      %v2768 = vpop.f32.mrb[0].mxu0
      %2769 = vmatprep.mubr.f32.mxu0 0.0
      %2770 = vmatmul.mubr.f32.gmra.mrb[0].mxu0 %v2353
      %v2771 = vpop.f32.mrb[0].mxu0
      %v2772 = vadd.f32 %v2544, %v2771
      %v2773 = vpop.f32.mrb[0].mxu0
      %2774 = vmatprep.mubr.f32.mxu0 0.0
      %2775 = vmatmul.mubr.f32.gmra.mrb[0].mxu0 %v2356
      %v2776 = vpop.f32.mrb[0].mxu0
      %v2777 = vadd.f32 %v2549, %v2776
      %v2778 = vpop.f32.mrb[0].mxu0
      %2779 = vmatprep.mubr.f32.mxu0 0.0
      %2780 = vmatmul.mubr.f32.gmra.mrb[0].mxu0 %v2359
      %v2781 = vpop.f32.mrb[0].mxu0
      %v2782 = vadd.f32 %v2554, %v2781
      %v2783 = vpop.f32.mrb[0].mxu0
      %2784 = vmatprep.mubr.f32.mxu0 0.0
      %2785 = vmatmul.mubr.f32.gmra.mrb[0].mxu0 %v2362
      %v2786 = vpop.f32.mrb[0].mxu0
      %v2787 = vadd.f32 %v2559, %v2786
      %v2788 = vpop.f32.mrb[0].mxu0
      %2789 = vmatprep.mubr.f32.mxu0 0.0
      %2790 = vmatmul.mubr.f32.gmra.mrb[0].mxu0 %v2365
      %v2791 = vpop.f32.mrb[0].mxu0
      %v2792 = vadd.f32 %v2564, %v2791
      %v2793 = vpop.f32.mrb[0].mxu0
      %2794 = vmatprep.mubr.f32.mxu0 0.0
      %2795 = vmatmul.mubr.f32.gmra.mrb[0].mxu0 %v2368
      %v2796 = vpop.f32.mrb[0].mxu0
      %v2797 = vadd.f32 %v2569, %v2796
      %v2798 = vpop.f32.mrb[0].mxu0
      %2799 = vmatprep.mubr.f32.mxu0 0.0
      %2800 = vmatmul.mubr.f32.gmra.mrb[0].mxu0 %v2371
      %v2801 = vpop.f32.mrb[0].mxu0
      %v2802 = vadd.f32 %v2574, %v2801
      %v2803 = vpop.f32.mrb[0].mxu0
      %2804 = vmatprep.mubr.f32.mxu0 0.0
      %2805 = vmatmul.mubr.f32.gmra.mrb[0].mxu0 %v2374
      %v2806 = vpop.f32.mrb[0].mxu0
      %v2807 = vadd.f32 %v2579, %v2806
      %v2808 = vpop.f32.mrb[0].mxu0
      %2809 = vmatprep.mubr.f32.mxu0 0.0
      %2810 = vmatmul.mubr.f32.gmra.mrb[0].mxu0 %v2377
      %v2811 = vpop.f32.mrb[0].mxu0
      %v2812 = vadd.f32 %v2584, %v2811
      %v2813 = vpop.f32.mrb[0].mxu0
      %2814 = vmatprep.mubr.f32.mxu0 0.0
      %2815 = vmatmul.mubr.f32.gmra.mrb[0].mxu0 %v2380
      %v2816 = vpop.f32.mrb[0].mxu0
      %v2817 = vadd.f32 %v2589, %v2816
      %v2818 = vpop.f32.mrb[0].mxu0
      %2819 = vmatprep.mubr.f32.mxu0 0.0
      %2820 = vmatmul.mubr.f32.gmra.mrb[0].mxu0 %v2383
      %v2821 = vpop.f32.mrb[0].mxu0
      %v2822 = vadd.f32 %v2594, %v2821
      %v2823 = vpop.f32.mrb[0].mxu0
      %2824 = vmatprep.mubr.f32.mxu0 0.0
      %2825 = vmatmul.mubr.f32.gmra.mrb[0].mxu0 %v2386
      %v2826 = vpop.f32.mrb[0].mxu0
      %v2827 = vadd.f32 %v2599, %v2826
      %v2828 = vpop.f32.mrb[0].mxu0
      %2829 = vmatprep.mubr.f32.mxu0 0.0
      %2830 = vmatmul.mubr.f32.gmra.mrb[0].mxu0 %v2389
      %v2831 = vpop.f32.mrb[0].mxu0
      %v2832 = vadd.f32 %v2604, %v2831
      %v2833 = vpop.f32.mrb[0].mxu0
      %2834 = vmatprep.mubr.f32.mxu0 0.0
      %2835 = vmatmul.mubr.f32.gmra.mrb[0].mxu0 %v2392
      %v2836 = vpop.f32.mrb[0].mxu0
      %v2837 = vadd.f32 %v2609, %v2836
      %v2838 = vpop.f32.mrb[0].mxu0
      %2839 = vmatprep.mubr.f32.mxu0 0.0
      %2840 = vmatmul.mubr.f32.gmra.mrb[0].mxu0 %v2395
      %v2841 = vpop.f32.mrb[0].mxu0
      %v2842 = vadd.f32 %v2614, %v2841
      %v2843 = vpop.f32.mrb[0].mxu0
      %2844 = vmatprep.mubr.f32.mxu0 0.0
      %2845 = vmatmul.mubr.f32.gmra.mrb[0].mxu0 %v2398
      %v2846 = vpop.f32.mrb[0].mxu0
      %v2847 = vadd.f32 %v2619, %v2846
      %v2848 = vpop.f32.mrb[0].mxu0
      %2849 = vmatprep.mubr.f32.mxu0 0.0
      %2850 = vmatmul.mubr.f32.gmra.mrb[0].mxu0 %v2401
      %v2851 = vpop.f32.mrb[0].mxu0
      %v2852 = vadd.f32 %v2624, %v2851
      %v2853 = vpop.f32.mrb[0].mxu0
      %2854 = vmatprep.mubr.f32.mxu0 0.0
      %2855 = vmatmul.mubr.f32.gmra.mrb[0].mxu0 %v2404
      %v2856 = vpop.f32.mrb[0].mxu0
      %v2857 = vadd.f32 %v2629, %v2856
      %v2858 = vpop.f32.mrb[0].mxu0
      %2859 = vmatprep.mubr.f32.mxu0 0.0
      %2860 = vmatmul.mubr.f32.gmra.mrb[0].mxu0 %v2407
      %v2861 = vpop.f32.mrb[0].mxu0
      %v2862 = vadd.f32 %v2634, %v2861
      %v2863 = vpop.f32.mrb[0].mxu0
      %2864 = vmatprep.mubr.f32.mxu0 0.0
      %2865 = vmatmul.mubr.f32.gmra.mrb[0].mxu0 %v2410
      %v2866 = vpop.f32.mrb[0].mxu0
      %v2867 = vadd.f32 %v2639, %v2866
      %v2868 = vpop.f32.mrb[0].mxu0
      %2869 = vmatprep.mubr.f32.mxu0 0.0
      %2870 = vmatmul.mubr.f32.gmra.mrb[0].mxu0 %v2413
      %v2871 = vpop.f32.mrb[0].mxu0
      %v2872 = vadd.f32 %v2644, %v2871
      %v2873 = vpop.f32.mrb[0].mxu0
      %2874 = vmatprep.mubr.f32.mxu0 0.0
      %2875 = vmatmul.mubr.f32.gmra.mrb[0].mxu0 %v2416
      %v2876 = vpop.f32.mrb[0].mxu0
      %v2877 = vadd.f32 %v2649, %v2876
      %v2878 = vpop.f32.mrb[0].mxu0
      %2879 = vdwg.mxu0
      %v2880 = vld [vmem:[%s2 + $0x18] sm:$0xff]
      %v2881 = vld [vmem:[%s2 + $0x20] sm:$0xf]
      %v2883 = vsel %vm820, %v2881, 0
      %2885 = vmatprep.subr.mxu0 0.0
      %2886 = vmatpush1.msra.mxu0 %v2880
      %2887 = vmatprep.subr.mxu0 0.0
      %2888 = vmatpush1.msra.mxu0 %v2883
      %2889 = vmatprep.subr.mxu0 0.0
      %2890 = vmatpush1.msra.mxu0 0.0
      %2891 = vmatprep.subr.mxu0 0.0
      %2892 = vmatpush1.msra.mxu0 0.0
      %2893 = vmatprep.subr.mxu0 0.0
      %2894 = vmatpush1.msra.mxu0 0.0
      %2895 = vmatprep.subr.mxu0 0.0
      %2896 = vmatpush1.msra.mxu0 0.0
      %2897 = vmatprep.subr.mxu0 0.0
      %2898 = vmatpush1.msra.mxu0 0.0
      %2899 = vmatprep.subr.mxu0 0.0
      %2900 = vmatpush1.msra.mxu0 0.0
      %2901 = vmatprep.subr.mxu0 0.0
      %2902 = vmatpush1.msra.mxu0 0.0
      %2903 = vmatprep.subr.mxu0 0.0
      %2904 = vmatpush1.msra.mxu0 0.0
      %2905 = vmatprep.subr.mxu0 0.0
      %2906 = vmatpush1.msra.mxu0 0.0
      %2907 = vmatprep.subr.mxu0 0.0
      %2908 = vmatpush1.msra.mxu0 0.0
      %2909 = vmatprep.subr.mxu0 0.0
      %2910 = vmatpush1.msra.mxu0 0.0
      %2911 = vmatprep.subr.mxu0 0.0
      %2912 = vmatpush1.msra.mxu0 0.0
      %2913 = vmatprep.subr.mxu0 0.0
      %2914 = vmatpush1.msra.mxu0 0.0
      %2915 = vmatprep.subr.mxu0 0.0
      %2916 = vmatpush1.msra.mxu0 0.0
      %2917 = vmatprep.subr.mxu0 0.0
      %2918 = vmatpush1.msra.mxu0 0.0
      %2919 = vmatprep.subr.mxu0 0.0
      %2920 = vmatpush1.msra.mxu0 0.0
      %2921 = vmatprep.subr.mxu0 0.0
      %2922 = vmatpush1.msra.mxu0 0.0
      %2923 = vmatprep.subr.mxu0 0.0
      %2924 = vmatpush1.msra.mxu0 0.0
      %2925 = vmatprep.subr.mxu0 0.0
      %2926 = vmatpush1.msra.mxu0 0.0
      %2927 = vmatprep.subr.mxu0 0.0
      %2928 = vmatpush1.msra.mxu0 0.0
      %2929 = vmatprep.subr.mxu0 0.0
      %2930 = vmatpush1.msra.mxu0 0.0
      %2931 = vmatprep.subr.mxu0 0.0
      %2932 = vmatpush1.msra.mxu0 0.0
      %2933 = vmatprep.subr.mxu0 0.0
      %2934 = vmatpush1.msra.mxu0 0.0
      %2935 = vmatprep.subr.mxu0 0.0
      %2936 = vmatpush1.msra.mxu0 0.0
      %2937 = vmatprep.subr.mxu0 0.0
      %2938 = vmatpush1.msra.mxu0 0.0
      %2939 = vmatprep.subr.mxu0 0.0
      %2940 = vmatpush1.msra.mxu0 0.0
      %2941 = vmatprep.subr.mxu0 0.0
      %2942 = vmatpush1.msra.mxu0 0.0
      %2943 = vmatprep.subr.mxu0 0.0
      %2944 = vmatpush1.msra.mxu0 0.0
      %2945 = vmatprep.subr.mxu0 0.0
      %2946 = vmatpush1.msra.mxu0 0.0
      %2947 = vmatprep.subr.mxu0 0.0
      %2948 = vmatpush1.msra.mxu0 0.0
      %2949 = vmatprep.mubr.f32.mxu0 0.0
      %2950 = vmatmul.mubr.f32.gmra.mrb[0].mxu0 %v2335
      %v2951 = vpop.f32.mrb[0].mxu0
      %v2952 = vadd.f32 0.0, %v2951
      %v2953 = vpop.f32.mrb[0].mxu0
      %2954 = vmatprep.mubr.f32.mxu0 0.0
      %2955 = vmatmul.mubr.f32.gmra.mrb[0].mxu0 %v2338
      %v2956 = vpop.f32.mrb[0].mxu0
      %v2957 = vadd.f32 0.0, %v2956
      %v2958 = vpop.f32.mrb[0].mxu0
      %2959 = vmatprep.mubr.f32.mxu0 0.0
      %2960 = vmatmul.mubr.f32.gmra.mrb[0].mxu0 %v2341
      %v2961 = vpop.f32.mrb[0].mxu0
      %v2962 = vadd.f32 0.0, %v2961
      %v2963 = vpop.f32.mrb[0].mxu0
      %2964 = vmatprep.mubr.f32.mxu0 0.0
      %2965 = vmatmul.mubr.f32.gmra.mrb[0].mxu0 %v2344
      %v2966 = vpop.f32.mrb[0].mxu0
      %v2967 = vadd.f32 0.0, %v2966
      %v2968 = vpop.f32.mrb[0].mxu0
      %2969 = vmatprep.mubr.f32.mxu0 0.0
      %2970 = vmatmul.mubr.f32.gmra.mrb[0].mxu0 %v2347
      %v2971 = vpop.f32.mrb[0].mxu0
      %v2972 = vadd.f32 0.0, %v2971
      %v2973 = vpop.f32.mrb[0].mxu0
      %2974 = vmatprep.mubr.f32.mxu0 0.0
      %2975 = vmatmul.mubr.f32.gmra.mrb[0].mxu0 %v2350
      %v2976 = vpop.f32.mrb[0].mxu0
      %v2977 = vadd.f32 0.0, %v2976
      %v2978 = vpop.f32.mrb[0].mxu0
      %2979 = vmatprep.mubr.f32.mxu0 0.0
      %2980 = vmatmul.mubr.f32.gmra.mrb[0].mxu0 %v2353
      %v2981 = vpop.f32.mrb[0].mxu0
      %v2982 = vadd.f32 0.0, %v2981
      %v2983 = vpop.f32.mrb[0].mxu0
      %2984 = vmatprep.mubr.f32.mxu0 0.0
      %2985 = vmatmul.mubr.f32.gmra.mrb[0].mxu0 %v2356
      %v2986 = vpop.f32.mrb[0].mxu0
      %v2987 = vadd.f32 0.0, %v2986
      %v2988 = vpop.f32.mrb[0].mxu0
      %2989 = vmatprep.mubr.f32.mxu0 0.0
      %2990 = vmatmul.mubr.f32.gmra.mrb[0].mxu0 %v2359
      %v2991 = vpop.f32.mrb[0].mxu0
      %v2992 = vadd.f32 0.0, %v2991
      %v2993 = vpop.f32.mrb[0].mxu0
      %2994 = vmatprep.mubr.f32.mxu0 0.0
      %2995 = vmatmul.mubr.f32.gmra.mrb[0].mxu0 %v2362
      %v2996 = vpop.f32.mrb[0].mxu0
      %v2997 = vadd.f32 0.0, %v2996
      %v2998 = vpop.f32.mrb[0].mxu0
      %2999 = vmatprep.mubr.f32.mxu0 0.0
      %3000 = vmatmul.mubr.f32.gmra.mrb[0].mxu0 %v2365
      %v3001 = vpop.f32.mrb[0].mxu0
      %v3002 = vadd.f32 0.0, %v3001
      %v3003 = vpop.f32.mrb[0].mxu0
      %3004 = vmatprep.mubr.f32.mxu0 0.0
      %3005 = vmatmul.mubr.f32.gmra.mrb[0].mxu0 %v2368
      %v3006 = vpop.f32.mrb[0].mxu0
      %v3007 = vadd.f32 0.0, %v3006
      %v3008 = vpop.f32.mrb[0].mxu0
      %3009 = vmatprep.mubr.f32.mxu0 0.0
      %3010 = vmatmul.mubr.f32.gmra.mrb[0].mxu0 %v2371
      %v3011 = vpop.f32.mrb[0].mxu0
      %v3012 = vadd.f32 0.0, %v3011
      %v3013 = vpop.f32.mrb[0].mxu0
      %3014 = vmatprep.mubr.f32.mxu0 0.0
      %3015 = vmatmul.mubr.f32.gmra.mrb[0].mxu0 %v2374
      %v3016 = vpop.f32.mrb[0].mxu0
      %v3017 = vadd.f32 0.0, %v3016
      %v3018 = vpop.f32.mrb[0].mxu0
      %3019 = vmatprep.mubr.f32.mxu0 0.0
      %3020 = vmatmul.mubr.f32.gmra.mrb[0].mxu0 %v2377
      %v3021 = vpop.f32.mrb[0].mxu0
      %v3022 = vadd.f32 0.0, %v3021
      %v3023 = vpop.f32.mrb[0].mxu0
      %3024 = vmatprep.mubr.f32.mxu0 0.0
      %3025 = vmatmul.mubr.f32.gmra.mrb[0].mxu0 %v2380
      %v3026 = vpop.f32.mrb[0].mxu0
      %v3027 = vadd.f32 0.0, %v3026
      %v3028 = vpop.f32.mrb[0].mxu0
      %3029 = vmatprep.mubr.f32.mxu0 0.0
      %3030 = vmatmul.mubr.f32.gmra.mrb[0].mxu0 %v2383
      %v3031 = vpop.f32.mrb[0].mxu0
      %v3032 = vadd.f32 0.0, %v3031
      %v3033 = vpop.f32.mrb[0].mxu0
      %3034 = vmatprep.mubr.f32.mxu0 0.0
      %3035 = vmatmul.mubr.f32.gmra.mrb[0].mxu0 %v2386
      %v3036 = vpop.f32.mrb[0].mxu0
      %v3037 = vadd.f32 0.0, %v3036
      %v3038 = vpop.f32.mrb[0].mxu0
      %3039 = vmatprep.mubr.f32.mxu0 0.0
      %3040 = vmatmul.mubr.f32.gmra.mrb[0].mxu0 %v2389
      %v3041 = vpop.f32.mrb[0].mxu0
      %v3042 = vadd.f32 0.0, %v3041
      %v3043 = vpop.f32.mrb[0].mxu0
      %3044 = vmatprep.mubr.f32.mxu0 0.0
      %3045 = vmatmul.mubr.f32.gmra.mrb[0].mxu0 %v2392
      %v3046 = vpop.f32.mrb[0].mxu0
      %v3047 = vadd.f32 0.0, %v3046
      %v3048 = vpop.f32.mrb[0].mxu0
      %3049 = vmatprep.mubr.f32.mxu0 0.0
      %3050 = vmatmul.mubr.f32.gmra.mrb[0].mxu0 %v2395
      %v3051 = vpop.f32.mrb[0].mxu0
      %v3052 = vadd.f32 0.0, %v3051
      %v3053 = vpop.f32.mrb[0].mxu0
      %3054 = vmatprep.mubr.f32.mxu0 0.0
      %3055 = vmatmul.mubr.f32.gmra.mrb[0].mxu0 %v2398
      %v3056 = vpop.f32.mrb[0].mxu0
      %v3057 = vadd.f32 0.0, %v3056
      %v3058 = vpop.f32.mrb[0].mxu0
      %3059 = vmatprep.mubr.f32.mxu0 0.0
      %3060 = vmatmul.mubr.f32.gmra.mrb[0].mxu0 %v2401
      %v3061 = vpop.f32.mrb[0].mxu0
      %v3062 = vadd.f32 0.0, %v3061
      %v3063 = vpop.f32.mrb[0].mxu0
      %3064 = vmatprep.mubr.f32.mxu0 0.0
      %3065 = vmatmul.mubr.f32.gmra.mrb[0].mxu0 %v2404
      %v3066 = vpop.f32.mrb[0].mxu0
      %v3067 = vadd.f32 0.0, %v3066
      %v3068 = vpop.f32.mrb[0].mxu0
      %3069 = vmatprep.mubr.f32.mxu0 0.0
      %3070 = vmatmul.mubr.f32.gmra.mrb[0].mxu0 %v2407
      %v3071 = vpop.f32.mrb[0].mxu0
      %v3072 = vadd.f32 0.0, %v3071
      %v3073 = vpop.f32.mrb[0].mxu0
      %3074 = vmatprep.mubr.f32.mxu0 0.0
      %3075 = vmatmul.mubr.f32.gmra.mrb[0].mxu0 %v2410
      %v3076 = vpop.f32.mrb[0].mxu0
      %v3077 = vadd.f32 0.0, %v3076
      %v3078 = vpop.f32.mrb[0].mxu0
      %3079 = vmatprep.mubr.f32.mxu0 0.0
      %3080 = vmatmul.mubr.f32.gmra.mrb[0].mxu0 %v2413
      %v3081 = vpop.f32.mrb[0].mxu0
      %v3082 = vadd.f32 0.0, %v3081
      %v3083 = vpop.f32.mrb[0].mxu0
      %3084 = vmatprep.mubr.f32.mxu0 0.0
      %3085 = vmatmul.mubr.f32.gmra.mrb[0].mxu0 %v2416
      %v3086 = vpop.f32.mrb[0].mxu0
      %v3087 = vadd.f32 0.0, %v3086
      %v3088 = vpop.f32.mrb[0].mxu0
      %3089 = vmatprep.mubr.f32.mxu0 0.0
      %3090 = vmatmul.mubr.f32.gmra.mrb[0].mxu0 %v2419
      %v3091 = vpop.f32.mrb[0].mxu0
      %v3092 = vadd.f32 0.0, %v3091
      %v3093 = vpop.f32.mrb[0].mxu0
      %3094 = vmatprep.mubr.f32.mxu0 0.0
      %3095 = vmatmul.mubr.f32.gmra.mrb[0].mxu0 %v2422
      %v3096 = vpop.f32.mrb[0].mxu0
      %v3097 = vadd.f32 0.0, %v3096
      %v3098 = vpop.f32.mrb[0].mxu0
      %3099 = vmatprep.mubr.f32.mxu0 0.0
      %3100 = vmatmul.mubr.f32.gmra.mrb[0].mxu0 %v2413
      %v3101 = vpop.f32.mrb[0].mxu0
      %v3102 = vadd.f32 0.0, %v3101
      %v3103 = vpop.f32.mrb[0].mxu0
      %3104 = vmatprep.mubr.f32.mxu0 0.0
      %3105 = vmatmul.mubr.f32.gmra.mrb[0].mxu0 %v2416
      %v3106 = vpop.f32.mrb[0].mxu0
      %v3107 = vadd.f32 0.0, %v3106
      %v3108 = vpop.f32.mrb[0].mxu0
      %3109 = vdwg.mxu0
      %v3110 = vadd.f32 %v2722, %v2952
      %v3111 = vadd.f32 %v2727, %v2957
      %v3112 = vadd.f32 %v2732, %v2962
      %v3113 = vadd.f32 %v2737, %v2967
      %v3114 = vadd.f32 %v2742, %v2972
      %v3115 = vadd.f32 %v2747, %v2977
      %v3116 = vadd.f32 %v2752, %v2982
      %v3117 = vadd.f32 %v2757, %v2987
      %v3118 = vadd.f32 %v2762, %v2992
      %v3119 = vadd.f32 %v2767, %v2997
      %v3120 = vadd.f32 %v2772, %v3002
      %v3121 = vadd.f32 %v2777, %v3007
      %v3122 = vadd.f32 %v2782, %v3012
      %v3123 = vadd.f32 %v2787, %v3017
      %v3124 = vadd.f32 %v2792, %v3022
      %v3125 = vadd.f32 %v2797, %v3027
      %v3126 = vadd.f32 %v2802, %v3032
      %v3127 = vadd.f32 %v2807, %v3037
      %v3128 = vadd.f32 %v2812, %v3042
      %v3129 = vadd.f32 %v2817, %v3047
      %v3130 = vadd.f32 %v2822, %v3052
      %v3131 = vadd.f32 %v2827, %v3057
      %v3132 = vadd.f32 %v2832, %v3062
      %v3133 = vadd.f32 %v2837, %v3067
      %v3134 = vadd.f32 %v2842, %v3072
      %v3135 = vadd.f32 %v2847, %v3077
      %v3136 = vadd.f32 %v2852, %v3082
      %v3137 = vadd.f32 %v2857, %v3087
      %v3138 = vadd.f32 %v2862, %v3092
      %v3139 = vadd.f32 %v2867, %v3097
      %v3140 = vadd.f32 %v2872, %v3102
      %v3141 = vadd.f32 %v2877, %v3107
      %v3142 = vsel %vm653, %v3110, 0.0
      %v3143 = vsel %vm653, %v3111, 0.0
      %v3144 = vadd.f32 %v3142, %v3143
      %v3145 = vsel %vm653, %v3112, 0.0
      %v3146 = vadd.f32 %v3144, %v3145
      %v3147 = vsel %vm653, %v3113, 0.0
      %v3148 = vadd.f32 %v3146, %v3147
      %v3149 = vsel %vm653, %v3114, 0.0
      %v3150 = vadd.f32 %v3148, %v3149
      %v3151 = vsel %vm653, %v3115, 0.0
      %v3152 = vadd.f32 %v3150, %v3151
      %v3153 = vsel %vm653, %v3116, 0.0
      %v3154 = vadd.f32 %v3152, %v3153
      %v3155 = vsel %vm653, %v3117, 0.0
      %v3156 = vadd.f32 %v3154, %v3155
      %v3157 = vsel %vm653, %v3118, 0.0
      %v3158 = vadd.f32 %v3156, %v3157
      %v3159 = vsel %vm653, %v3119, 0.0
      %v3160 = vadd.f32 %v3158, %v3159
      %v3161 = vsel %vm653, %v3120, 0.0
      %v3162 = vadd.f32 %v3160, %v3161
      %v3163 = vsel %vm653, %v3121, 0.0
      %v3164 = vadd.f32 %v3162, %v3163
      %v3165 = vsel %vm653, %v3122, 0.0
      %v3166 = vadd.f32 %v3164, %v3165
      %v3167 = vsel %vm653, %v3123, 0.0
      %v3168 = vadd.f32 %v3166, %v3167
      %v3169 = vsel %vm653, %v3124, 0.0
      %v3170 = vadd.f32 %v3168, %v3169
      %v3171 = vsel %vm653, %v3125, 0.0
      %v3172 = vadd.f32 %v3170, %v3171
      %v3173 = vsel %vm653, %v3126, 0.0
      %v3174 = vadd.f32 %v3172, %v3173
      %v3175 = vsel %vm653, %v3127, 0.0
      %v3176 = vadd.f32 %v3174, %v3175
      %v3177 = vsel %vm653, %v3128, 0.0
      %v3178 = vadd.f32 %v3176, %v3177
      %v3179 = vsel %vm653, %v3129, 0.0
      %v3180 = vadd.f32 %v3178, %v3179
      %v3181 = vsel %vm653, %v3130, 0.0
      %v3182 = vadd.f32 %v3180, %v3181
      %v3183 = vsel %vm653, %v3131, 0.0
      %v3184 = vadd.f32 %v3182, %v3183
      %v3185 = vsel %vm653, %v3132, 0.0
      %v3186 = vadd.f32 %v3184, %v3185
      %v3187 = vsel %vm653, %v3133, 0.0
      %v3188 = vadd.f32 %v3186, %v3187
      %v3189 = vsel %vm653, %v3134, 0.0
      %v3190 = vadd.f32 %v3188, %v3189
      %v3191 = vsel %vm653, %v3135, 0.0
      %v3192 = vadd.f32 %v3190, %v3191
      %v3193 = vsel %vm653, %v3136, 0.0
      %v3194 = vadd.f32 %v3192, %v3193
      %v3195 = vsel %vm653, %v3137, 0.0
      %v3196 = vadd.f32 %v3194, %v3195
      %v3197 = vsel %vm653, %v3138, 0.0
      %v3198 = vadd.f32 %v3196, %v3197
      %v3199 = vsel %vm653, %v3139, 0.0
      %v3200 = vadd.f32 %v3198, %v3199
      %v3201 = vsel %vm653, %v3140, 0.0
      %v3202 = vadd.f32 %v3200, %v3201
      %v3203 = vsel %vm653, %v3141, 0.0
      %v3204 = vadd.f32 %v3202, %v3203
      %v3205 = vrot.slane %v3204, 4
      %v3206 = vadd.f32 %v3204, %v3205
      %v3207 = vrot.slane %v3206, 2
      %v3208 = vadd.f32 %v3206, %v3207
      %v3209 = vrot.slane %v3208, 1
      %v3210 = vadd.f32 %v3208, %v3209
      %v3211 = vmul.f32 %v3110, %v3110
      %v3212 = vmul.f32 %v3111, %v3111
      %v3213 = vmul.f32 %v3112, %v3112
      %v3214 = vmul.f32 %v3113, %v3113
      %v3215 = vmul.f32 %v3114, %v3114
      %v3216 = vmul.f32 %v3115, %v3115
      %v3217 = vmul.f32 %v3116, %v3116
      %v3218 = vmul.f32 %v3117, %v3117
      %v3219 = vmul.f32 %v3118, %v3118
      %v3220 = vmul.f32 %v3119, %v3119
      %v3221 = vmul.f32 %v3120, %v3120
      %v3222 = vmul.f32 %v3121, %v3121
      %v3223 = vmul.f32 %v3122, %v3122
      %v3224 = vmul.f32 %v3123, %v3123
      %v3225 = vmul.f32 %v3124, %v3124
      %v3226 = vmul.f32 %v3125, %v3125
      %v3227 = vmul.f32 %v3126, %v3126
      %v3228 = vmul.f32 %v3127, %v3127
      %v3229 = vmul.f32 %v3128, %v3128
      %v3230 = vmul.f32 %v3129, %v3129
      %v3231 = vmul.f32 %v3130, %v3130
      %v3232 = vmul.f32 %v3131, %v3131
      %v3233 = vmul.f32 %v3132, %v3132
      %v3234 = vmul.f32 %v3133, %v3133
      %v3235 = vmul.f32 %v3134, %v3134
      %v3236 = vmul.f32 %v3135, %v3135
      %v3237 = vmul.f32 %v3136, %v3136
      %v3238 = vmul.f32 %v3137, %v3137
      %v3239 = vmul.f32 %v3138, %v3138
      %v3240 = vmul.f32 %v3139, %v3139
      %v3241 = vmul.f32 %v3140, %v3140
      %v3242 = vmul.f32 %v3141, %v3141
      %v3243 = vsel %vm653, %v3211, 0.0
      %v3244 = vsel %vm653, %v3212, 0.0
      %v3245 = vadd.f32 %v3243, %v3244
      %v3246 = vsel %vm653, %v3213, 0.0
      %v3247 = vadd.f32 %v3245, %v3246
      %v3248 = vsel %vm653, %v3214, 0.0
      %v3249 = vadd.f32 %v3247, %v3248
      %v3250 = vsel %vm653, %v3215, 0.0
      %v3251 = vadd.f32 %v3249, %v3250
      %v3252 = vsel %vm653, %v3216, 0.0
      %v3253 = vadd.f32 %v3251, %v3252
      %v3254 = vsel %vm653, %v3217, 0.0
      %v3255 = vadd.f32 %v3253, %v3254
      %v3256 = vsel %vm653, %v3218, 0.0
      %v3257 = vadd.f32 %v3255, %v3256
      %v3258 = vsel %vm653, %v3219, 0.0
      %v3259 = vadd.f32 %v3257, %v3258
      %v3260 = vsel %vm653, %v3220, 0.0
      %v3261 = vadd.f32 %v3259, %v3260
      %v3262 = vsel %vm653, %v3221, 0.0
      %v3263 = vadd.f32 %v3261, %v3262
      %v3264 = vsel %vm653, %v3222, 0.0
      %v3265 = vadd.f32 %v3263, %v3264
      %v3266 = vsel %vm653, %v3223, 0.0
      %v3267 = vadd.f32 %v3265, %v3266
      %v3268 = vsel %vm653, %v3224, 0.0
      %v3269 = vadd.f32 %v3267, %v3268
      %v3270 = vsel %vm653, %v3225, 0.0
      %v3271 = vadd.f32 %v3269, %v3270
      %v3272 = vsel %vm653, %v3226, 0.0
      %v3273 = vadd.f32 %v3271, %v3272
      %v3274 = vsel %vm653, %v3227, 0.0
      %v3275 = vadd.f32 %v3273, %v3274
      %v3276 = vsel %vm653, %v3228, 0.0
      %v3277 = vadd.f32 %v3275, %v3276
      %v3278 = vsel %vm653, %v3229, 0.0
      %v3279 = vadd.f32 %v3277, %v3278
      %v3280 = vsel %vm653, %v3230, 0.0
      %v3281 = vadd.f32 %v3279, %v3280
      %v3282 = vsel %vm653, %v3231, 0.0
      %v3283 = vadd.f32 %v3281, %v3282
      %v3284 = vsel %vm653, %v3232, 0.0
      %v3285 = vadd.f32 %v3283, %v3284
      %v3286 = vsel %vm653, %v3233, 0.0
      %v3287 = vadd.f32 %v3285, %v3286
      %v3288 = vsel %vm653, %v3234, 0.0
      %v3289 = vadd.f32 %v3287, %v3288
      %v3290 = vsel %vm653, %v3235, 0.0
      %v3291 = vadd.f32 %v3289, %v3290
      %v3292 = vsel %vm653, %v3236, 0.0
      %v3293 = vadd.f32 %v3291, %v3292
      %v3294 = vsel %vm653, %v3237, 0.0
      %v3295 = vadd.f32 %v3293, %v3294
      %v3296 = vsel %vm653, %v3238, 0.0
      %v3297 = vadd.f32 %v3295, %v3296
      %v3298 = vsel %vm653, %v3239, 0.0
      %v3299 = vadd.f32 %v3297, %v3298
      %v3300 = vsel %vm653, %v3240, 0.0
      %v3301 = vadd.f32 %v3299, %v3300
      %v3302 = vsel %vm653, %v3241, 0.0
      %v3303 = vadd.f32 %v3301, %v3302
      %v3304 = vsel %vm653, %v3242, 0.0
      %v3305 = vadd.f32 %v3303, %v3304
      %v3306 = vrot.slane %v3305, 4
      %v3307 = vadd.f32 %v3305, %v3306
      %v3308 = vrot.slane %v3307, 2
      %v3309 = vadd.f32 %v3307, %v3308
      %v3310 = vrot.slane %v3309, 1
      %v3311 = vadd.f32 %v3309, %v3310
      %v3312 = vmul.f32 %v3210, 0.00390625
      %v3313 = vmul.f32 %v3311, 0.00390625
      %v3314 = vmul.f32 %v3312, %v3312
      %v3315 = vsub.f32 %v3313, %v3314
      %v3316 = vmax.f32 %v3315, 0.0
      %v3317 = vsub.f32 %v3110, %v3312
      %v3318 = vsub.f32 %v3111, %v3312
      %v3319 = vsub.f32 %v3112, %v3312
      %v3320 = vsub.f32 %v3113, %v3312
      %v3321 = vsub.f32 %v3114, %v3312
      %v3322 = vsub.f32 %v3115, %v3312
      %v3323 = vsub.f32 %v3116, %v3312
      %v3324 = vsub.f32 %v3117, %v3312
      %v3325 = vsub.f32 %v3118, %v3312
      %v3326 = vsub.f32 %v3119, %v3312
      %v3327 = vsub.f32 %v3120, %v3312
      %v3328 = vsub.f32 %v3121, %v3312
      %v3329 = vsub.f32 %v3122, %v3312
      %v3330 = vsub.f32 %v3123, %v3312
      %v3331 = vsub.f32 %v3124, %v3312
      %v3332 = vsub.f32 %v3125, %v3312
      %v3333 = vsub.f32 %v3126, %v3312
      %v3334 = vsub.f32 %v3127, %v3312
      %v3335 = vsub.f32 %v3128, %v3312
      %v3336 = vsub.f32 %v3129, %v3312
      %v3337 = vsub.f32 %v3130, %v3312
      %v3338 = vsub.f32 %v3131, %v3312
      %v3339 = vsub.f32 %v3132, %v3312
      %v3340 = vsub.f32 %v3133, %v3312
      %v3341 = vsub.f32 %v3134, %v3312
      %v3342 = vsub.f32 %v3135, %v3312
      %v3343 = vsub.f32 %v3136, %v3312
      %v3344 = vsub.f32 %v3137, %v3312
      %v3345 = vsub.f32 %v3138, %v3312
      %v3346 = vsub.f32 %v3139, %v3312
      %v3347 = vsub.f32 %v3140, %v3312
      %v3348 = vsub.f32 %v3141, %v3312
      %v3349 = vadd.f32 %v3316, 1e-05
      %v3350 = vrsqrt.pop %v3349
      %v3351 = vmul.f32 %v3317, %v3350
      %v3352 = vmul.f32 %v3318, %v3350
      %v3353 = vmul.f32 %v3319, %v3350
      %v3354 = vmul.f32 %v3320, %v3350
      %v3355 = vmul.f32 %v3321, %v3350
      %v3356 = vmul.f32 %v3322, %v3350
      %v3357 = vmul.f32 %v3323, %v3350
      %v3358 = vmul.f32 %v3324, %v3350
      %v3359 = vmul.f32 %v3325, %v3350
      %v3360 = vmul.f32 %v3326, %v3350
      %v3361 = vmul.f32 %v3327, %v3350
      %v3362 = vmul.f32 %v3328, %v3350
      %v3363 = vmul.f32 %v3329, %v3350
      %v3364 = vmul.f32 %v3330, %v3350
      %v3365 = vmul.f32 %v3331, %v3350
      %v3366 = vmul.f32 %v3332, %v3350
      %v3367 = vmul.f32 %v3333, %v3350
      %v3368 = vmul.f32 %v3334, %v3350
      %v3369 = vmul.f32 %v3335, %v3350
      %v3370 = vmul.f32 %v3336, %v3350
      %v3371 = vmul.f32 %v3337, %v3350
      %v3372 = vmul.f32 %v3338, %v3350
      %v3373 = vmul.f32 %v3339, %v3350
      %v3374 = vmul.f32 %v3340, %v3350
      %v3375 = vmul.f32 %v3341, %v3350
      %v3376 = vmul.f32 %v3342, %v3350
      %v3377 = vmul.f32 %v3343, %v3350
      %v3378 = vmul.f32 %v3344, %v3350
      %v3379 = vmul.f32 %v3345, %v3350
      %v3380 = vmul.f32 %v3346, %v3350
      %v3381 = vmul.f32 %v3347, %v3350
      %v3382 = vmul.f32 %v3348, %v3350
      %v3383 = vadd.f32 %v3351, %v171
      %v3384 = vadd.f32 %v3352, %v172
      %v3385 = vadd.f32 %v3353, %v173
      %v3386 = vadd.f32 %v3354, %v174
      %v3387 = vadd.f32 %v3355, %v175
      %v3388 = vadd.f32 %v3356, %v176
      %v3389 = vadd.f32 %v3357, %v177
      %v3390 = vadd.f32 %v3358, %v178
      %v3391 = vadd.f32 %v3359, %v179
      %v3392 = vadd.f32 %v3360, %v180
      %v3393 = vadd.f32 %v3361, %v181
      %v3394 = vadd.f32 %v3362, %v182
      %v3395 = vadd.f32 %v3363, %v183
      %v3396 = vadd.f32 %v3364, %v184
      %v3397 = vadd.f32 %v3365, %v185
      %v3398 = vadd.f32 %v3366, %v186
      %v3399 = vadd.f32 %v3367, %v187
      %v3400 = vadd.f32 %v3368, %v188
      %v3401 = vadd.f32 %v3369, %v189
      %v3402 = vadd.f32 %v3370, %v190
      %v3403 = vadd.f32 %v3371, %v191
      %v3404 = vadd.f32 %v3372, %v192
      %v3405 = vadd.f32 %v3373, %v193
      %v3406 = vadd.f32 %v3374, %v194
      %v3407 = vadd.f32 %v3375, %v195
      %v3408 = vadd.f32 %v3376, %v196
      %v3409 = vadd.f32 %v3377, %v197
      %v3410 = vadd.f32 %v3378, %v198
      %v3411 = vadd.f32 %v3379, %v199
      %v3412 = vadd.f32 %v3380, %v200
      %v3413 = vadd.f32 %v3381, %v201
      %v3414 = vadd.f32 %v3382, %v202
      %3415 = vst.msk [vmem:[%s170] sm:$0xff] %vm653, %v3383
      %3416 = vst.msk [vmem:[%s170 + $0x8] sm:$0xff] %vm653, %v3384
      %3417 = vst.msk [vmem:[%s170 + $0x10] sm:$0xff] %vm653, %v3385
      %3418 = vst.msk [vmem:[%s170 + $0x18] sm:$0xff] %vm653, %v3386
      %3419 = vst.msk [vmem:[%s170 + $0x20] sm:$0xff] %vm653, %v3387
      %3420 = vst.msk [vmem:[%s170 + $0x28] sm:$0xff] %vm653, %v3388
      %3421 = vst.msk [vmem:[%s170 + $0x30] sm:$0xff] %vm653, %v3389
      %3422 = vst.msk [vmem:[%s170 + $0x38] sm:$0xff] %vm653, %v3390
      %3423 = vst.msk [vmem:[%s170 + $0x40] sm:$0xff] %vm653, %v3391
      %3424 = vst.msk [vmem:[%s170 + $0x48] sm:$0xff] %vm653, %v3392
      %3425 = vst.msk [vmem:[%s170 + $0x50] sm:$0xff] %vm653, %v3393
      %3426 = vst.msk [vmem:[%s170 + $0x58] sm:$0xff] %vm653, %v3394
      %3427 = vst.msk [vmem:[%s170 + $0x60] sm:$0xff] %vm653, %v3395
      %3428 = vst.msk [vmem:[%s170 + $0x68] sm:$0xff] %vm653, %v3396
      %3429 = vst.msk [vmem:[%s170 + $0x70] sm:$0xff] %vm653, %v3397
      %3430 = vst.msk [vmem:[%s170 + $0x78] sm:$0xff] %vm653, %v3398
      %3431 = vst.msk [vmem:[%s170 + $0x80] sm:$0xff] %vm653, %v3399
      %3432 = vst.msk [vmem:[%s170 + $0x88] sm:$0xff] %vm653, %v3400
      %3433 = vst.msk [vmem:[%s170 + $0x90] sm:$0xff] %vm653, %v3401
      %3434 = vst.msk [vmem:[%s170 + $0x98] sm:$0xff] %vm653, %v3402
      %3435 = vst.msk [vmem:[%s170 + $0xa0] sm:$0xff] %vm653, %v3403
      %3436 = vst.msk [vmem:[%s170 + $0xa8] sm:$0xff] %vm653, %v3404
      %3437 = vst.msk [vmem:[%s170 + $0xb0] sm:$0xff] %vm653, %v3405
      %3438 = vst.msk [vmem:[%s170 + $0xb8] sm:$0xff] %vm653, %v3406
      %3439 = vst.msk [vmem:[%s170 + $0xc0] sm:$0xff] %vm653, %v3407
      %3440 = vst.msk [vmem:[%s170 + $0xc8] sm:$0xff] %vm653, %v3408
      %3441 = vst.msk [vmem:[%s170 + $0xd0] sm:$0xff] %vm653, %v3409
      %3442 = vst.msk [vmem:[%s170 + $0xd8] sm:$0xff] %vm653, %v3410
      %3443 = vst.msk [vmem:[%s170 + $0xe0] sm:$0xff] %vm653, %v3411
      %3444 = vst.msk [vmem:[%s170 + $0xe8] sm:$0xff] %vm653, %v3412
      %3445 = vst.msk [vmem:[%s170 + $0xf0] sm:$0xff] %vm653, %v3413
      %3446 = vst.msk [vmem:[%s170 + $0xf8] sm:$0xff] %vm653, %v3414
      %p3447 = scmp.lt.s32.totalorder %s14, 1
      %s3448 = scalar_select %p3447, %s14, 1
      %s3449 = smul.addr %s3448, 32
      %s3450 = smul.addr %s3449, 8
      %s3451 = scalar_lea.vmem %s3, %s3450
      // Predicated region
      $region33: #{tpu_custom_call.1} parent=31 // pred_check
        %p3452 = pneg %p100
      $region34: #{tpu_custom_call.1} parent=31 // pred_check_branch
        %3454 = sbr.rel (%p3452) target = $region36
      $region35: #{tpu_custom_call.1} parent=31 // pred_region
        _
      $region36: #{tpu_custom_call.1} parent=31 // pred_fallthru
        _
    $region32: #{tpu_custom_call.1} parent=5 // pred_fallthru
      _
    %p3455 = scmp.le.s32.totalorder 2, %s9
    // Predicated region
    $region37: #{tpu_custom_call.1} parent=5 // pred_check
      %p3456 = pneg %p3455
    $region38: #{tpu_custom_call.1} parent=5 // pred_check_branch
      %3458 = sbr.rel (%p3456) target = $region40
    $region39: #{tpu_custom_call.1} parent=5 // pred_region
      %s3459 = ssub.s32 %s9, 2
      // Predicated region
      $region41: #{tpu_custom_call.1} parent=39 // pred_check
        %p3460 = pneg %p106
      $region42: #{tpu_custom_call.1} parent=39 // pred_check_branch
        %3462 = sbr.rel (%p3460) target = $region44
      $region43: #{tpu_custom_call.1} parent=39 // pred_region
        %p3463 = scmp.lt.s32.totalorder %s15, 1
        %s3464 = scalar_select %p3463, %s15, 1
        %s3465 = smul.addr %s3464, 32
        %s3466 = smul.addr %s3465, 8
        %s3467 = scalar_lea.vmem %s3, %s3466
      $region44: #{tpu_custom_call.1} parent=39 // pred_fallthru
        _
    $region40: #{tpu_custom_call.1} parent=5 // pred_fallthru
      _
  $region6: #{tpu_custom_call.1} parent=0 // loop_footer
    %s13 = sadd.s32 1, %s9
  $region7: #{tpu_custom_call.1} parent=0 // loop_footer_branch
    %8 = sbr.rel target = $region3
  $region8: #{tpu_custom_call.1} parent=0 // loop_exit
    _

// kernel: tpu_custom_call.1
$region0: #{tpu_custom_call.1}
  #allocation0 [shape = 'u32[]', space=smem, size = 0x4, offset = 0x4, fixed_abs, tag = 'smem constant byte address 0x4 - core index']
  #allocation1 [shape = 'u32[144,128]{1,0:T(1,128)}', space=vmem, size = 0x12000, scoped, tag = 'internal scratch']
  %s0 = inlined_call_operand.vmem [shape: f32[2,16,16,4], index: 0, kind: input, shape index: {}]
  %s1 = inlined_call_operand.vmem [shape: f32[36,4], index: 1, kind: input, shape index: {}]
  %s2 = inlined_call_operand.vmem [shape: f32[36,4], index: 2, kind: input, shape index: {}]
  %s3 = inlined_call_operand.vmem [shape: f32[2,16,16,4], index: 3, kind: output, shape index: {}]
  %s4 = sld [smem:[#allocation0]]
  $region45: #{tpu_custom_call.1} parent=0
    _
  %s6 = ssub.s32 1, %s4
  %s7 = scalar_select 0, %s6, %s4
  loop: start=0, step=1, limit=4
  $region2: #{tpu_custom_call.1} parent=0 // loop_pre_header
    _
  $region3: #{tpu_custom_call.1} parent=0 // loop_header
    %s9 = sphi 0, %s13
    %p10 = scmp.ge.s32.totalorder %s9, 4
    %s19 = sphi 0, %s21
    %s22 = sphi 0, %s19
    %s23 = sphi 0, %s22
    %s39 = sphi 0, %s23
    %s43 = sphi 0, %s43
    %s45 = sphi 0, %s43
    %s46 = sphi 0, %s45
    %s60 = sphi 0, %s46
    %s64 = sphi 0, %s64
    %s66 = sphi 0, %s64
    %s67 = sphi 0, %s66
    %s81 = sphi 0, %s67
    %s87 = sphi 0, %s89
    %s90 = sphi 0, %s87
    %s91 = sphi 0, %s90
    %s107 = sphi 0, %s91
  $region4: #{tpu_custom_call.1} parent=0 // loop_header_branch
    %12 = sbr.rel (%p10) target = $region8
  $region5: #{tpu_custom_call.1} parent=0 // loop_body
    %s14 = ssub.s32 %s9, 1
    %s15 = ssub.s32 %s9, 2
    %s16 = sadd.s32 %s9, 1
    %s17 = ssub.s32 %s9, %s16
    %p18 = scmp.eq.s32.totalorder %s17, 0
    %s20 = sadd.s32 %s19, 1
    %s21 = scalar_select %p18, %s19, %s20
    %p24 = pneg %p18
    %p25 = scmp.eq.s32.totalorder %s9, 1
    %p26 = por %p24, %p25
    %p27 = scmp.ne.s32.totalorder %s19, %s22
    %p28 = scmp.eq.s32.totalorder %s9, 0
    %p29 = por %p27, %p28
    %p30 = scmp.ne.s32.totalorder %s19, %s22
    %p31 = scmp.eq.s32.totalorder %s14, 1
    %p32 = por %p30, %p31
    %p33 = scmp.ne.s32.totalorder %s22, %s23
    %p34 = scmp.eq.s32.totalorder %s14, 0
    %p35 = por %p33, %p34
    %p36 = scmp.ne.s32.totalorder %s22, %s23
    %p37 = scmp.eq.s32.totalorder %s15, 1
    %p38 = por %p36, %p37
    %p40 = scmp.ne.s32.totalorder %s23, %s39
    %p41 = scmp.eq.s32.totalorder %s15, 0
    %p42 = por %p40, %p41
    %s44 = sadd.s32 %s43, 1
    %p47 = scmp.eq.s32.totalorder %s9, 1
    %p48 = scmp.ne.s32.totalorder %s43, %s45
    %p49 = scmp.eq.s32.totalorder %s9, 0
    %p50 = por %p48, %p49
    %p51 = scmp.ne.s32.totalorder %s43, %s45
    %p52 = scmp.eq.s32.totalorder %s14, 1
    %p53 = por %p51, %p52
    %p54 = scmp.ne.s32.totalorder %s45, %s46
    %p55 = scmp.eq.s32.totalorder %s14, 0
    %p56 = por %p54, %p55
    %p57 = scmp.ne.s32.totalorder %s45, %s46
    %p58 = scmp.eq.s32.totalorder %s15, 1
    %p59 = por %p57, %p58
    %p61 = scmp.ne.s32.totalorder %s46, %s60
    %p62 = scmp.eq.s32.totalorder %s15, 0
    %p63 = por %p61, %p62
    %s65 = sadd.s32 %s64, 1
    %p68 = scmp.eq.s32.totalorder %s9, 1
    %p69 = scmp.ne.s32.totalorder %s64, %s66
    %p70 = scmp.eq.s32.totalorder %s9, 0
    %p71 = por %p69, %p70
    %p72 = scmp.ne.s32.totalorder %s64, %s66
    %p73 = scmp.eq.s32.totalorder %s14, 1
    %p74 = por %p72, %p73
    %p75 = scmp.ne.s32.totalorder %s66, %s67
    %p76 = scmp.eq.s32.totalorder %s14, 0
    %p77 = por %p75, %p76
    %p78 = scmp.ne.s32.totalorder %s66, %s67
    %p79 = scmp.eq.s32.totalorder %s15, 1
    %p80 = por %p78, %p79
    %p82 = scmp.ne.s32.totalorder %s67, %s81
    %p83 = scmp.eq.s32.totalorder %s15, 0
    %p84 = por %p82, %p83
    %s85 = ssub.s32 %s9, %s16
    %p86 = scmp.eq.s32.totalorder %s85, 0
    %s88 = sadd.s32 %s87, 1
    %s89 = scalar_select %p86, %s87, %s88
    %p92 = pneg %p86
    %p93 = scmp.eq.s32.totalorder %s9, 1
    %p94 = por %p92, %p93
    %p95 = scmp.ne.s32.totalorder %s87, %s90
    %p96 = scmp.eq.s32.totalorder %s9, 0
    %p97 = por %p95, %p96
    %p98 = scmp.ne.s32.totalorder %s87, %s90
    %p99 = scmp.eq.s32.totalorder %s14, 1
    %p100 = por %p98, %p99
    %p101 = scmp.ne.s32.totalorder %s90, %s91
    %p102 = scmp.eq.s32.totalorder %s14, 0
    %p103 = por %p101, %p102
    %p104 = scmp.ne.s32.totalorder %s90, %s91
    %p105 = scmp.eq.s32.totalorder %s15, 1
    %p106 = por %p104, %p105
    %p108 = scmp.ne.s32.totalorder %s91, %s107
    %p109 = scmp.eq.s32.totalorder %s15, 0
    %p110 = por %p108, %p109
    %p111 = scmp.le.s32.totalorder 1, %s9
    %p112 = scmp.lt.s32.totalorder %s9, 3
    %p113 = pnand %p111, %p112
    %p114 = pneg %p113
    // Predicated region
    $region9: #{tpu_custom_call.1} parent=5 // pred_check
      _
    $region10: #{tpu_custom_call.1} parent=5 // pred_check_branch
      %116 = sbr.rel (%p113) target = $region12
    $region11: #{tpu_custom_call.1} parent=5 // pred_region
      %s117 = ssub.s32 %s9, 1
      // Predicated region
      $region13: #{tpu_custom_call.1} parent=11 // pred_check
        %p118 = pneg %p56
      $region14: #{tpu_custom_call.1} parent=11 // pred_check_branch
        %120 = sbr.rel (%p118) target = $region16
      $region15: #{tpu_custom_call.1} parent=11 // pred_region
        _
      $region16: #{tpu_custom_call.1} parent=11 // pred_fallthru
        _
      // Predicated region
      $region17: #{tpu_custom_call.1} parent=11 // pred_check
        %p121 = pneg %p77
      $region18: #{tpu_custom_call.1} parent=11 // pred_check_branch
        %123 = sbr.rel (%p121) target = $region20
      $region19: #{tpu_custom_call.1} parent=11 // pred_region
        _
      $region20: #{tpu_custom_call.1} parent=11 // pred_fallthru
        _
    $region12: #{tpu_custom_call.1} parent=5 // pred_fallthru
      _
    %p124 = scmp.lt.s32.totalorder %s9, 2
    // Predicated region
    $region21: #{tpu_custom_call.1} parent=5 // pred_check
      %p125 = pneg %p124
    $region22: #{tpu_custom_call.1} parent=5 // pred_check_branch
      %127 = sbr.rel (%p125) target = $region24
    $region23: #{tpu_custom_call.1} parent=5 // pred_region
      // Predicated region
      $region25: #{tpu_custom_call.1} parent=23 // pred_check
        %p128 = pneg %p29
      $region26: #{tpu_custom_call.1} parent=23 // pred_check_branch
        %130 = sbr.rel (%p128) target = $region28
      $region27: #{tpu_custom_call.1} parent=23 // pred_region
        %p131 = scmp.lt.s32.totalorder %s9, 1
        %s132 = scalar_select %p131, %s9, 1
        %s133 = smul.addr %s132, 32
        %s134 = smul.addr %s133, 8
        %s135 = scalar_lea.vmem %s0, %s134
      $region28: #{tpu_custom_call.1} parent=23 // pred_fallthru
        _
    $region24: #{tpu_custom_call.1} parent=5 // pred_fallthru
      _
    %p136 = scmp.le.s32.totalorder 1, %s9
    %p137 = scmp.lt.s32.totalorder %s9, 3
    %p138 = pnand %p136, %p137
    %p139 = pneg %p138
    // Predicated region
    $region29: #{tpu_custom_call.1} parent=5 // pred_check
      _
    $region30: #{tpu_custom_call.1} parent=5 // pred_check_branch
      %141 = sbr.rel (%p138) target = $region32
    $region31: #{tpu_custom_call.1} parent=5 // pred_region
      %s142 = ssub.s32 %s9, 1
      %p143 = scmp.lt.s32.totalorder %s14, 1
      %s144 = scalar_select %p143, %s14, 1
      %s145 = smul.addr %s144, 32
      %s146 = smul.addr %s145, 8
      %s147 = scalar_lea.vmem %s0, %s146
      %p148 = pneg %p35
      %p149 = pneg %p32
      %p150 = pneg %p56
      %p151 = pneg %p53
      %p152 = pneg %p77
      %p153 = pneg %p74
      %p154 = pneg %p103
      %p155 = pneg %p100
      %p156 = scmp.lt.s32.totalorder %s14, 1
      %s157 = scalar_select %p156, %s14, 1
      %s158 = smul.addr %s157, 32
      %s159 = smul.addr %s158, 8
      %s160 = scalar_lea.vmem %s3, %s159
      %p161 = scmp.lt.s32.totalorder %s14, 1
      %s162 = scalar_select %p161, %s14, 1
      %s163 = smul.addr %s162, 32
      %s164 = smul.addr %s163, 8
      %s165 = scalar_lea.vmem %s0, %s164
      %p166 = scmp.lt.s32.totalorder %s14, 1
      %s167 = scalar_select %p166, %s14, 1
      %s168 = smul.addr %s167, 32
      %s169 = smul.addr %s168, 8
      %s170 = scalar_lea.vmem %s3, %s169
      %v171 = vld [vmem:[%s165] sm:$0xff]
      %v172 = vld [vmem:[%s165 + $0x8] sm:$0xff]
      %v173 = vld [vmem:[%s165 + $0x10] sm:$0xff]
      %v174 = vld [vmem:[%s165 + $0x18] sm:$0xff]
      %v175 = vld [vmem:[%s165 + $0x20] sm:$0xff]
      %v176 = vld [vmem:[%s165 + $0x28] sm:$0xff]
      %v177 = vld [vmem:[%s165 + $0x30] sm:$0xff]
      %v178 = vld [vmem:[%s165 + $0x38] sm:$0xff]
      %v179 = vld [vmem:[%s165 + $0x40] sm:$0xff]
      %v180 = vld [vmem:[%s165 + $0x48] sm:$0xff]
      %v181 = vld [vmem:[%s165 + $0x50] sm:$0xff]
      %v182 = vld [vmem:[%s165 + $0x58] sm:$0xff]
      %v183 = vld [vmem:[%s165 + $0x60] sm:$0xff]
      %v184 = vld [vmem:[%s165 + $0x68] sm:$0xff]
      %v185 = vld [vmem:[%s165 + $0x70] sm:$0xff]
      %v186 = vld [vmem:[%s165 + $0x78] sm:$0xff]
      %v187 = vld [vmem:[%s165 + $0x80] sm:$0xff]
      %v188 = vld [vmem:[%s165 + $0x88] sm:$0xff]
      %v189 = vld [vmem:[%s165 + $0x90] sm:$0xff]
      %v190 = vld [vmem:[%s165 + $0x98] sm:$0xff]
      %v191 = vld [vmem:[%s165 + $0xa0] sm:$0xff]
      %v192 = vld [vmem:[%s165 + $0xa8] sm:$0xff]
      %v193 = vld [vmem:[%s165 + $0xb0] sm:$0xff]
      %v194 = vld [vmem:[%s165 + $0xb8] sm:$0xff]
      %v195 = vld [vmem:[%s165 + $0xc0] sm:$0xff]
      %v196 = vld [vmem:[%s165 + $0xc8] sm:$0xff]
      %v197 = vld [vmem:[%s165 + $0xd0] sm:$0xff]
      %v198 = vld [vmem:[%s165 + $0xd8] sm:$0xff]
      %v199 = vld [vmem:[%s165 + $0xe0] sm:$0xff]
      %v200 = vld [vmem:[%s165 + $0xe8] sm:$0xff]
      %v201 = vld [vmem:[%s165 + $0xf0] sm:$0xff]
      %v202 = vld [vmem:[%s165 + $0xf8] sm:$0xff]
      %v219 = vrot.slane %v173, 1
      %v220 = vrot.slane %v171, 1
      %v221 = vrot.slane %v175, 1
      %v222 = vrot.slane %v177, 1
      %v223 = vrot.slane %v179, 1
      %v224 = vrot.slane %v181, 1
      %v225 = vrot.slane %v183, 1
      %v226 = vrot.slane %v185, 1
      %v227 = vrot.slane %v187, 1
      %v228 = vrot.slane %v189, 1
      %v229 = vrot.slane %v191, 1
      %v230 = vrot.slane %v193, 1
      %v231 = vrot.slane %v195, 1
      %v232 = vrot.slane %v197, 1
      %v233 = vrot.slane %v199, 1
      %v234 = vrot.slane %v201, 1
      %vm267 = vcmask 1040384
      %v268 = vrot.slane %v173, 7
      %v269 = vrot.slane %v174, 7
      %v270 = vsel %vm267, %v268, %v269
      %v271 = vrot.slane %v171, 7
      %v272 = vrot.slane %v172, 7
      %v273 = vsel %vm267, %v271, %v272
      %v274 = vrot.slane %v175, 7
      %v275 = vrot.slane %v176, 7
      %v276 = vsel %vm267, %v274, %v275
      %v277 = vrot.slane %v177, 7
      %v278 = vrot.slane %v178, 7
      %v279 = vsel %vm267, %v277, %v278
      %v280 = vrot.slane %v179, 7
      %v281 = vrot.slane %v180, 7
      %v282 = vsel %vm267, %v280, %v281
      %v283 = vrot.slane %v181, 7
      %v284 = vrot.slane %v182, 7
      %v285 = vsel %vm267, %v283, %v284
      %v286 = vrot.slane %v183, 7
      %v287 = vrot.slane %v184, 7
      %v288 = vsel %vm267, %v286, %v287
      %v289 = vrot.slane %v185, 7
      %v290 = vrot.slane %v186, 7
      %v291 = vsel %vm267, %v289, %v290
      %v292 = vrot.slane %v187, 7
      %v293 = vrot.slane %v188, 7
      %v294 = vsel %vm267, %v292, %v293
      %v295 = vrot.slane %v189, 7
      %v296 = vrot.slane %v190, 7
      %v297 = vsel %vm267, %v295, %v296
      %v298 = vrot.slane %v191, 7
      %v299 = vrot.slane %v192, 7
      %v300 = vsel %vm267, %v298, %v299
      %v301 = vrot.slane %v193, 7
      %v302 = vrot.slane %v194, 7
      %v303 = vsel %vm267, %v301, %v302
      %v304 = vrot.slane %v195, 7
      %v305 = vrot.slane %v196, 7
      %v306 = vsel %vm267, %v304, %v305
      %v307 = vrot.slane %v197, 7
      %v308 = vrot.slane %v198, 7
      %v309 = vsel %vm267, %v307, %v308
      %v310 = vrot.slane %v199, 7
      %v311 = vrot.slane %v200, 7
      %v312 = vsel %vm267, %v310, %v311
      %v313 = vrot.slane %v201, 7
      %v314 = vrot.slane %v202, 7
      %v315 = vsel %vm267, %v313, %v314
      %v348 = vsel %vm267, %v219, %v268
      %v349 = vsel %vm267, %v220, %v271
      %v350 = vsel %vm267, %v221, %v274
      %v351 = vsel %vm267, %v222, %v277
      %v352 = vsel %vm267, %v223, %v280
      %v353 = vsel %vm267, %v224, %v283
      %v354 = vsel %vm267, %v225, %v286
      %v355 = vsel %vm267, %v226, %v289
      %v356 = vsel %vm267, %v227, %v292
      %v357 = vsel %vm267, %v228, %v295
      %v358 = vsel %vm267, %v229, %v298
      %v359 = vsel %vm267, %v230, %v301
      %v360 = vsel %vm267, %v231, %v304
      %v361 = vsel %vm267, %v232, %v307
      %v362 = vsel %vm267, %v233, %v310
      %v363 = vsel %vm267, %v234, %v313
      %vm364 = vcmask 1046528
      %v365 = vrot.slane %v174, 1
      %v366 = vsel %vm364, %v219, %v365
      %v367 = vrot.slane %v172, 1
      %v368 = vsel %vm364, %v220, %v367
      %v369 = vrot.slane %v176, 1
      %v370 = vsel %vm364, %v221, %v369
      %v371 = vrot.slane %v178, 1
      %v372 = vsel %vm364, %v222, %v371
      %v373 = vrot.slane %v180, 1
      %v374 = vsel %vm364, %v223, %v373
      %v375 = vrot.slane %v182, 1
      %v376 = vsel %vm364, %v224, %v375
      %v377 = vrot.slane %v184, 1
      %v378 = vsel %vm364, %v225, %v377
      %v379 = vrot.slane %v186, 1
      %v380 = vsel %vm364, %v226, %v379
      %v381 = vrot.slane %v188, 1
      %v382 = vsel %vm364, %v227, %v381
      %v383 = vrot.slane %v190, 1
      %v384 = vsel %vm364, %v228, %v383
      %v385 = vrot.slane %v192, 1
      %v386 = vsel %vm364, %v229, %v385
      %v387 = vrot.slane %v194, 1
      %v388 = vsel %vm364, %v230, %v387
      %v389 = vrot.slane %v196, 1
      %v390 = vsel %vm364, %v231, %v389
      %v391 = vrot.slane %v198, 1
      %v392 = vsel %vm364, %v232, %v391
      %v393 = vrot.slane %v200, 1
      %v394 = vsel %vm364, %v233, %v393
      %v395 = vrot.slane %v202, 1
      %v396 = vsel %vm364, %v234, %v395
      %v429 = vsel %vm364, %v365, %v269
      %v430 = vsel %vm364, %v367, %v272
      %v431 = vsel %vm364, %v369, %v275
      %v432 = vsel %vm364, %v371, %v278
      %v433 = vsel %vm364, %v373, %v281
      %v434 = vsel %vm364, %v375, %v284
      %v435 = vsel %vm364, %v377, %v287
      %v436 = vsel %vm364, %v379, %v290
      %v437 = vsel %vm364, %v381, %v293
      %v438 = vsel %vm364, %v383, %v296
      %v439 = vsel %vm364, %v385, %v299
      %v440 = vsel %vm364, %v387, %v302
      %v441 = vsel %vm364, %v389, %v305
      %v442 = vsel %vm364, %v391, %v308
      %v443 = vsel %vm364, %v393, %v311
      %v444 = vsel %vm364, %v395, %v314
      %445 = vrot.lane.b32.xlu0 %v173, 4
      %v446 = vpop.permute.xlu0 %445
      %447 = vrot.lane.b32.xlu0 %v174, 4
      %v448 = vpop.permute.xlu0 %447
      %449 = vrot.lane.b32.xlu0 %v171, 4
      %v450 = vpop.permute.xlu0 %449
      %451 = vrot.lane.b32.xlu0 %v172, 4
      %v452 = vpop.permute.xlu0 %451
      %453 = vrot.lane.b32.xlu0 %v175, 4
      %v454 = vpop.permute.xlu0 %453
      %455 = vrot.lane.b32.xlu0 %v176, 4
      %v456 = vpop.permute.xlu0 %455
      %457 = vrot.lane.b32.xlu0 %v177, 4
      %v458 = vpop.permute.xlu0 %457
      %459 = vrot.lane.b32.xlu0 %v178, 4
      %v460 = vpop.permute.xlu0 %459
      %461 = vrot.lane.b32.xlu0 %v179, 4
      %v462 = vpop.permute.xlu0 %461
      %463 = vrot.lane.b32.xlu0 %v180, 4
      %v464 = vpop.permute.xlu0 %463
      %465 = vrot.lane.b32.xlu0 %v181, 4
      %v466 = vpop.permute.xlu0 %465
      %467 = vrot.lane.b32.xlu0 %v182, 4
      %v468 = vpop.permute.xlu0 %467
      %469 = vrot.lane.b32.xlu0 %v183, 4
      %v470 = vpop.permute.xlu0 %469
      %471 = vrot.lane.b32.xlu0 %v184, 4
      %v472 = vpop.permute.xlu0 %471
      %473 = vrot.lane.b32.xlu0 %v185, 4
      %v474 = vpop.permute.xlu0 %473
      %475 = vrot.lane.b32.xlu0 %v186, 4
      %v476 = vpop.permute.xlu0 %475
      %477 = vrot.lane.b32.xlu0 %v187, 4
      %v478 = vpop.permute.xlu0 %477
      %479 = vrot.lane.b32.xlu0 %v188, 4
      %v480 = vpop.permute.xlu0 %479
      %481 = vrot.lane.b32.xlu0 %v189, 4
      %v482 = vpop.permute.xlu0 %481
      %483 = vrot.lane.b32.xlu0 %v190, 4
      %v484 = vpop.permute.xlu0 %483
      %485 = vrot.lane.b32.xlu0 %v191, 4
      %v486 = vpop.permute.xlu0 %485
      %487 = vrot.lane.b32.xlu0 %v192, 4
      %v488 = vpop.permute.xlu0 %487
      %489 = vrot.lane.b32.xlu0 %v193, 4
      %v490 = vpop.permute.xlu0 %489
      %491 = vrot.lane.b32.xlu0 %v194, 4
      %v492 = vpop.permute.xlu0 %491
      %493 = vrot.lane.b32.xlu0 %v195, 4
      %v494 = vpop.permute.xlu0 %493
      %495 = vrot.lane.b32.xlu0 %v196, 4
      %v496 = vpop.permute.xlu0 %495
      %497 = vrot.lane.b32.xlu0 %v197, 4
      %v498 = vpop.permute.xlu0 %497
      %499 = vrot.lane.b32.xlu0 %v198, 4
      %v500 = vpop.permute.xlu0 %499
      %501 = vrot.lane.b32.xlu0 %v199, 4
      %v502 = vpop.permute.xlu0 %501
      %503 = vrot.lane.b32.xlu0 %v200, 4
      %v504 = vpop.permute.xlu0 %503
      %505 = vrot.lane.b32.xlu0 %v201, 4
      %v506 = vpop.permute.xlu0 %505
      %507 = vrot.lane.b32.xlu0 %v202, 4
      %v508 = vpop.permute.xlu0 %507
      %557 = vrot.lane.b32.xlu0 %v366, 8
      %v558 = vpop.permute.xlu0 %557
      %559 = vrot.lane.b32.xlu0 %v429, 8
      %v560 = vpop.permute.xlu0 %559
      %561 = vrot.lane.b32.xlu0 %v368, 8
      %v562 = vpop.permute.xlu0 %561
      %563 = vrot.lane.b32.xlu0 %v430, 8
      %v564 = vpop.permute.xlu0 %563
      %565 = vrot.lane.b32.xlu0 %v370, 8
      %v566 = vpop.permute.xlu0 %565
      %567 = vrot.lane.b32.xlu0 %v431, 8
      %v568 = vpop.permute.xlu0 %567
      %569 = vrot.lane.b32.xlu0 %v372, 8
      %v570 = vpop.permute.xlu0 %569
      %571 = vrot.lane.b32.xlu0 %v432, 8
      %v572 = vpop.permute.xlu0 %571
      %573 = vrot.lane.b32.xlu0 %v374, 8
      %v574 = vpop.permute.xlu0 %573
      %575 = vrot.lane.b32.xlu0 %v433, 8
      %v576 = vpop.permute.xlu0 %575
      %577 = vrot.lane.b32.xlu0 %v376, 8
      %v578 = vpop.permute.xlu0 %577
      %579 = vrot.lane.b32.xlu0 %v434, 8
      %v580 = vpop.permute.xlu0 %579
      %581 = vrot.lane.b32.xlu0 %v378, 8
      %v582 = vpop.permute.xlu0 %581
      %583 = vrot.lane.b32.xlu0 %v435, 8
      %v584 = vpop.permute.xlu0 %583
      %585 = vrot.lane.b32.xlu0 %v380, 8
      %v586 = vpop.permute.xlu0 %585
      %587 = vrot.lane.b32.xlu0 %v436, 8
      %v588 = vpop.permute.xlu0 %587
      %589 = vrot.lane.b32.xlu0 %v382, 8
      %v590 = vpop.permute.xlu0 %589
      %591 = vrot.lane.b32.xlu0 %v437, 8
      %v592 = vpop.permute.xlu0 %591
      %593 = vrot.lane.b32.xlu0 %v384, 8
      %v594 = vpop.permute.xlu0 %593
      %595 = vrot.lane.b32.xlu0 %v438, 8
      %v596 = vpop.permute.xlu0 %595
      %597 = vrot.lane.b32.xlu0 %v386, 8
      %v598 = vpop.permute.xlu0 %597
      %599 = vrot.lane.b32.xlu0 %v439, 8
      %v600 = vpop.permute.xlu0 %599
      %601 = vrot.lane.b32.xlu0 %v388, 8
      %v602 = vpop.permute.xlu0 %601
      %603 = vrot.lane.b32.xlu0 %v440, 8
      %v604 = vpop.permute.xlu0 %603
      %605 = vrot.lane.b32.xlu0 %v390, 8
      %v606 = vpop.permute.xlu0 %605
      %607 = vrot.lane.b32.xlu0 %v441, 8
      %v608 = vpop.permute.xlu0 %607
      %609 = vrot.lane.b32.xlu0 %v392, 8
      %v610 = vpop.permute.xlu0 %609
      %611 = vrot.lane.b32.xlu0 %v442, 8
      %v612 = vpop.permute.xlu0 %611
      %613 = vrot.lane.b32.xlu0 %v394, 8
      %v614 = vpop.permute.xlu0 %613
      %615 = vrot.lane.b32.xlu0 %v443, 8
      %v616 = vpop.permute.xlu0 %615
      %617 = vrot.lane.b32.xlu0 %v396, 8
      %v618 = vpop.permute.xlu0 %617
      %619 = vrot.lane.b32.xlu0 %v444, 8
      %v620 = vpop.permute.xlu0 %619
      %vm653 = vcmask 31744
      %v654 = vsel %vm653, %v348, %v446
      %v655 = vsel %vm653, %v270, %v448
      %v656 = vsel %vm653, %v349, %v450
      %v657 = vsel %vm653, %v273, %v452
      %v658 = vsel %vm653, %v350, %v454
      %v659 = vsel %vm653, %v276, %v456
      %v660 = vsel %vm653, %v351, %v458
      %v661 = vsel %vm653, %v279, %v460
      %v662 = vsel %vm653, %v352, %v462
      %v663 = vsel %vm653, %v282, %v464
      %v664 = vsel %vm653, %v353, %v466
      %v665 = vsel %vm653, %v285, %v468
      %v666 = vsel %vm653, %v354, %v470
      %v667 = vsel %vm653, %v288, %v472
      %v668 = vsel %vm653, %v355, %v474
      %v669 = vsel %vm653, %v291, %v476
      %v670 = vsel %vm653, %v356, %v478
      %v671 = vsel %vm653, %v294, %v480
      %v672 = vsel %vm653, %v357, %v482
      %v673 = vsel %vm653, %v297, %v484
      %v674 = vsel %vm653, %v358, %v486
      %v675 = vsel %vm653, %v300, %v488
      %v676 = vsel %vm653, %v359, %v490
      %v677 = vsel %vm653, %v303, %v492
      %v678 = vsel %vm653, %v360, %v494
      %v679 = vsel %vm653, %v306, %v496
      %v680 = vsel %vm653, %v361, %v498
      %v681 = vsel %vm653, %v309, %v500
      %v682 = vsel %vm653, %v362, %v502
      %v683 = vsel %vm653, %v312, %v504
      %v684 = vsel %vm653, %v363, %v506
      %v685 = vsel %vm653, %v315, %v508
      %vm686 = vcmask 64512
      %v687 = vsel %vm686, %v654, %v558
      %v688 = vsel %vm686, %v655, %v560
      %v689 = vsel %vm686, %v656, %v562
      %v690 = vsel %vm686, %v657, %v564
      %v691 = vsel %vm686, %v658, %v566
      %v692 = vsel %vm686, %v659, %v568
      %v693 = vsel %vm686, %v660, %v570
      %v694 = vsel %vm686, %v661, %v572
      %v695 = vsel %vm686, %v662, %v574
      %v696 = vsel %vm686, %v663, %v576
      %v697 = vsel %vm686, %v664, %v578
      %v698 = vsel %vm686, %v665, %v580
      %v699 = vsel %vm686, %v666, %v582
      %v700 = vsel %vm686, %v667, %v584
      %v701 = vsel %vm686, %v668, %v586
      %v702 = vsel %vm686, %v669, %v588
      %v703 = vsel %vm686, %v670, %v590
      %v704 = vsel %vm686, %v671, %v592
      %v705 = vsel %vm686, %v672, %v594
      %v706 = vsel %vm686, %v673, %v596
      %v707 = vsel %vm686, %v674, %v598
      %v708 = vsel %vm686, %v675, %v600
      %v709 = vsel %vm686, %v676, %v602
      %v710 = vsel %vm686, %v677, %v604
      %v711 = vsel %vm686, %v678, %v606
      %v712 = vsel %vm686, %v679, %v608
      %v713 = vsel %vm686, %v680, %v610
      %v714 = vsel %vm686, %v681, %v612
      %v715 = vsel %vm686, %v682, %v614
      %v716 = vsel %vm686, %v683, %v616
      %v717 = vsel %vm686, %v684, %v618
      %v718 = vsel %vm686, %v685, %v620
      %v719 = vld [vmem:[%s1] sm:$0xff]
      %v720 = vld [vmem:[%s1 + $0x8] sm:$0xf]
      %v721 = vld [vmem:[%s1 + $0xc] sm:$0xff]
      %v722 = vld [vmem:[%s1 + $0x14] sm:$0xf]
      %vm723 = vcmask 97280
      %v725 = vsel %vm723, %v689, 0
      %v728 = vsel %vm723, %v690, 0
      %v731 = vsel %vm723, %v687, 0
      %v734 = vsel %vm723, %v688, 0
      %v737 = vsel %vm723, %v691, 0
      %v740 = vsel %vm723, %v692, 0
      %v743 = vsel %vm723, %v693, 0
      %v746 = vsel %vm723, %v694, 0
      %v749 = vsel %vm723, %v695, 0
      %v752 = vsel %vm723, %v696, 0
      %v755 = vsel %vm723, %v697, 0
      %v758 = vsel %vm723, %v698, 0
      %v761 = vsel %vm723, %v699, 0
      %v764 = vsel %vm723, %v700, 0
      %v767 = vsel %vm723, %v701, 0
      %v770 = vsel %vm723, %v702, 0
      %v773 = vsel %vm723, %v703, 0
      %v776 = vsel %vm723, %v704, 0
      %v779 = vsel %vm723, %v705, 0
      %v782 = vsel %vm723, %v706, 0
      %v785 = vsel %vm723, %v707, 0
      %v788 = vsel %vm723, %v708, 0
      %v791 = vsel %vm723, %v709, 0
      %v794 = vsel %vm723, %v710, 0
      %v797 = vsel %vm723, %v711, 0
      %v800 = vsel %vm723, %v712, 0
      %v803 = vsel %vm723, %v713, 0
      %v806 = vsel %vm723, %v714, 0
      %v809 = vsel %vm723, %v715, 0
      %v812 = vsel %vm723, %v716, 0
      %v815 = vsel %vm723, %v717, 0
      %v818 = vsel %vm723, %v718, 0
      %vm820 = vcmask 1043456
      %v822 = vsel %vm820, %v722, 0
      %824 = vmatprep.subr.mxu0 0.0
      %825 = vmatpush1.msra.mxu0 %v721
      %826 = vmatprep.subr.mxu0 0.0
      %827 = vmatpush1.msra.mxu0 %v822
      %828 = vmatprep.subr.mxu0 0.0
      %829 = vmatpush1.msra.mxu0 0.0
      %830 = vmatprep.subr.mxu0 0.0
      %831 = vmatpush1.msra.mxu0 0.0
      %832 = vmatprep.subr.mxu0 0.0
      %833 = vmatpush1.msra.mxu0 0.0
      %834 = vmatprep.subr.mxu0 0.0
      %835 = vmatpush1.msra.mxu0 0.0
      %836 = vmatprep.subr.mxu0 0.0
      %837 = vmatpush1.msra.mxu0 0.0
      %838 = vmatprep.subr.mxu0 0.0
      %839 = vmatpush1.msra.mxu0 0.0
      %840 = vmatprep.subr.mxu0 0.0
      %841 = vmatpush1.msra.mxu0 0.0
      %842 = vmatprep.subr.mxu0 0.0
      %843 = vmatpush1.msra.mxu0 0.0
      %844 = vmatprep.subr.mxu0 0.0
      %845 = vmatpush1.msra.mxu0 0.0
      %846 = vmatprep.subr.mxu0 0.0
      %847 = vmatpush1.msra.mxu0 0.0
      %848 = vmatprep.subr.mxu0 0.0
      %849 = vmatpush1.msra.mxu0 0.0
      %850 = vmatprep.subr.mxu0 0.0
      %851 = vmatpush1.msra.mxu0 0.0
      %852 = vmatprep.subr.mxu0 0.0
      %853 = vmatpush1.msra.mxu0 0.0
      %854 = vmatprep.subr.mxu0 0.0
      %855 = vmatpush1.msra.mxu0 0.0
      %856 = vmatprep.subr.mxu0 0.0
      %857 = vmatpush1.msra.mxu0 0.0
      %858 = vmatprep.subr.mxu0 0.0
      %859 = vmatpush1.msra.mxu0 0.0
      %860 = vmatprep.subr.mxu0 0.0
      %861 = vmatpush1.msra.mxu0 0.0
      %862 = vmatprep.subr.mxu0 0.0
      %863 = vmatpush1.msra.mxu0 0.0
      %864 = vmatprep.subr.mxu0 0.0
      %865 = vmatpush1.msra.mxu0 0.0
      %866 = vmatprep.subr.mxu0 0.0
      %867 = vmatpush1.msra.mxu0 0.0
      %868 = vmatprep.subr.mxu0 0.0
      %869 = vmatpush1.msra.mxu0 0.0
      %870 = vmatprep.subr.mxu0 0.0
      %871 = vmatpush1.msra.mxu0 0.0
      %872 = vmatprep.subr.mxu0 0.0
      %873 = vmatpush1.msra.mxu0 0.0
      %874 = vmatprep.subr.mxu0 0.0
      %875 = vmatpush1.msra.mxu0 0.0
      %876 = vmatprep.subr.mxu0 0.0
      %877 = vmatpush1.msra.mxu0 0.0
      %878 = vmatprep.subr.mxu0 0.0
      %879 = vmatpush1.msra.mxu0 0.0
      %880 = vmatprep.subr.mxu0 0.0
      %881 = vmatpush1.msra.mxu0 0.0
      %882 = vmatprep.subr.mxu0 0.0
      %883 = vmatpush1.msra.mxu0 0.0
      %884 = vmatprep.subr.mxu0 0.0
      %885 = vmatpush1.msra.mxu0 0.0
      %886 = vmatprep.subr.mxu0 0.0
      %887 = vmatpush1.msra.mxu0 0.0
      %888 = vmatprep.mubr.f32.mxu0 0.0
      %889 = vmatmul.mubr.f32.gmra.mrb[0].mxu0 %v725
      %v890 = vpop.f32.mrb[0].mxu0
      %v891 = vadd.f32 0.0, %v890
      %v892 = vpop.f32.mrb[0].mxu0
      %893 = vmatprep.mubr.f32.mxu0 0.0
      %894 = vmatmul.mubr.f32.gmra.mrb[0].mxu0 %v728
      %v895 = vpop.f32.mrb[0].mxu0
      %v896 = vadd.f32 0.0, %v895
      %v897 = vpop.f32.mrb[0].mxu0
      %898 = vmatprep.mubr.f32.mxu0 0.0
      %899 = vmatmul.mubr.f32.gmra.mrb[0].mxu0 %v731
      %v900 = vpop.f32.mrb[0].mxu0
      %v901 = vadd.f32 0.0, %v900
      %v902 = vpop.f32.mrb[0].mxu0
      %903 = vmatprep.mubr.f32.mxu0 0.0
      %904 = vmatmul.mubr.f32.gmra.mrb[0].mxu0 %v734
      %v905 = vpop.f32.mrb[0].mxu0
      %v906 = vadd.f32 0.0, %v905
      %v907 = vpop.f32.mrb[0].mxu0
      %908 = vmatprep.mubr.f32.mxu0 0.0
      %909 = vmatmul.mubr.f32.gmra.mrb[0].mxu0 %v737
      %v910 = vpop.f32.mrb[0].mxu0
      %v911 = vadd.f32 0.0, %v910
      %v912 = vpop.f32.mrb[0].mxu0
      %913 = vmatprep.mubr.f32.mxu0 0.0
      %914 = vmatmul.mubr.f32.gmra.mrb[0].mxu0 %v740
      %v915 = vpop.f32.mrb[0].mxu0
      %v916 = vadd.f32 0.0, %v915
      %v917 = vpop.f32.mrb[0].mxu0
      %918 = vmatprep.mubr.f32.mxu0 0.0
      %919 = vmatmul.mubr.f32.gmra.mrb[0].mxu0 %v743
      %v920 = vpop.f32.mrb[0].mxu0
      %v921 = vadd.f32 0.0, %v920
      %v922 = vpop.f32.mrb[0].mxu0
      %923 = vmatprep.mubr.f32.mxu0 0.0
      %924 = vmatmul.mubr.f32.gmra.mrb[0].mxu0 %v746
      %v925 = vpop.f32.mrb[0].mxu0
      %v926 = vadd.f32 0.0, %v925
      %v927 = vpop.f32.mrb[0].mxu0
      %928 = vmatprep.mubr.f32.mxu0 0.0
      %929 = vmatmul.mubr.f32.gmra.mrb[0].mxu0 %v749
      %v930 = vpop.f32.mrb[0].mxu0
      %v931 = vadd.f32 0.0, %v930
      %v932 = vpop.f32.mrb[0].mxu0
      %933 = vmatprep.mubr.f32.mxu0 0.0
      %934 = vmatmul.mubr.f32.gmra.mrb[0].mxu0 %v752
      %v935 = vpop.f32.mrb[0].mxu0
      %v936 = vadd.f32 0.0, %v935
      %v937 = vpop.f32.mrb[0].mxu0
      %938 = vmatprep.mubr.f32.mxu0 0.0
      %939 = vmatmul.mubr.f32.gmra.mrb[0].mxu0 %v755
      %v940 = vpop.f32.mrb[0].mxu0
      %v941 = vadd.f32 0.0, %v940
      %v942 = vpop.f32.mrb[0].mxu0
      %943 = vmatprep.mubr.f32.mxu0 0.0
      %944 = vmatmul.mubr.f32.gmra.mrb[0].mxu0 %v758
      %v945 = vpop.f32.mrb[0].mxu0
      %v946 = vadd.f32 0.0, %v945
      %v947 = vpop.f32.mrb[0].mxu0
      %948 = vmatprep.mubr.f32.mxu0 0.0
      %949 = vmatmul.mubr.f32.gmra.mrb[0].mxu0 %v761
      %v950 = vpop.f32.mrb[0].mxu0
      %v951 = vadd.f32 0.0, %v950
      %v952 = vpop.f32.mrb[0].mxu0
      %953 = vmatprep.mubr.f32.mxu0 0.0
      %954 = vmatmul.mubr.f32.gmra.mrb[0].mxu0 %v764
      %v955 = vpop.f32.mrb[0].mxu0
      %v956 = vadd.f32 0.0, %v955
      %v957 = vpop.f32.mrb[0].mxu0
      %958 = vmatprep.mubr.f32.mxu0 0.0
      %959 = vmatmul.mubr.f32.gmra.mrb[0].mxu0 %v767
      %v960 = vpop.f32.mrb[0].mxu0
      %v961 = vadd.f32 0.0, %v960
      %v962 = vpop.f32.mrb[0].mxu0
      %963 = vmatprep.mubr.f32.mxu0 0.0
      %964 = vmatmul.mubr.f32.gmra.mrb[0].mxu0 %v770
      %v965 = vpop.f32.mrb[0].mxu0
      %v966 = vadd.f32 0.0, %v965
      %v967 = vpop.f32.mrb[0].mxu0
      %968 = vmatprep.mubr.f32.mxu0 0.0
      %969 = vmatmul.mubr.f32.gmra.mrb[0].mxu0 %v773
      %v970 = vpop.f32.mrb[0].mxu0
      %v971 = vadd.f32 0.0, %v970
      %v972 = vpop.f32.mrb[0].mxu0
      %973 = vmatprep.mubr.f32.mxu0 0.0
      %974 = vmatmul.mubr.f32.gmra.mrb[0].mxu0 %v776
      %v975 = vpop.f32.mrb[0].mxu0
      %v976 = vadd.f32 0.0, %v975
      %v977 = vpop.f32.mrb[0].mxu0
      %978 = vmatprep.mubr.f32.mxu0 0.0
      %979 = vmatmul.mubr.f32.gmra.mrb[0].mxu0 %v779
      %v980 = vpop.f32.mrb[0].mxu0
      %v981 = vadd.f32 0.0, %v980
      %v982 = vpop.f32.mrb[0].mxu0
      %983 = vmatprep.mubr.f32.mxu0 0.0
      %984 = vmatmul.mubr.f32.gmra.mrb[0].mxu0 %v782
      %v985 = vpop.f32.mrb[0].mxu0
      %v986 = vadd.f32 0.0, %v985
      %v987 = vpop.f32.mrb[0].mxu0
      %988 = vmatprep.mubr.f32.mxu0 0.0
      %989 = vmatmul.mubr.f32.gmra.mrb[0].mxu0 %v785
      %v990 = vpop.f32.mrb[0].mxu0
      %v991 = vadd.f32 0.0, %v990
      %v992 = vpop.f32.mrb[0].mxu0
      %993 = vmatprep.mubr.f32.mxu0 0.0
      %994 = vmatmul.mubr.f32.gmra.mrb[0].mxu0 %v788
      %v995 = vpop.f32.mrb[0].mxu0
      %v996 = vadd.f32 0.0, %v995
      %v997 = vpop.f32.mrb[0].mxu0
      %998 = vmatprep.mubr.f32.mxu0 0.0
      %999 = vmatmul.mubr.f32.gmra.mrb[0].mxu0 %v791
      %v1000 = vpop.f32.mrb[0].mxu0
      %v1001 = vadd.f32 0.0, %v1000
      %v1002 = vpop.f32.mrb[0].mxu0
      %1003 = vmatprep.mubr.f32.mxu0 0.0
      %1004 = vmatmul.mubr.f32.gmra.mrb[0].mxu0 %v794
      %v1005 = vpop.f32.mrb[0].mxu0
      %v1006 = vadd.f32 0.0, %v1005
      %v1007 = vpop.f32.mrb[0].mxu0
      %1008 = vmatprep.mubr.f32.mxu0 0.0
      %1009 = vmatmul.mubr.f32.gmra.mrb[0].mxu0 %v797
      %v1010 = vpop.f32.mrb[0].mxu0
      %v1011 = vadd.f32 0.0, %v1010
      %v1012 = vpop.f32.mrb[0].mxu0
      %1013 = vmatprep.mubr.f32.mxu0 0.0
      %1014 = vmatmul.mubr.f32.gmra.mrb[0].mxu0 %v800
      %v1015 = vpop.f32.mrb[0].mxu0
      %v1016 = vadd.f32 0.0, %v1015
      %v1017 = vpop.f32.mrb[0].mxu0
      %1018 = vmatprep.mubr.f32.mxu0 0.0
      %1019 = vmatmul.mubr.f32.gmra.mrb[0].mxu0 %v803
      %v1020 = vpop.f32.mrb[0].mxu0
      %v1021 = vadd.f32 0.0, %v1020
      %v1022 = vpop.f32.mrb[0].mxu0
      %1023 = vmatprep.mubr.f32.mxu0 0.0
      %1024 = vmatmul.mubr.f32.gmra.mrb[0].mxu0 %v806
      %v1025 = vpop.f32.mrb[0].mxu0
      %v1026 = vadd.f32 0.0, %v1025
      %v1027 = vpop.f32.mrb[0].mxu0
      %1028 = vmatprep.mubr.f32.mxu0 0.0
      %1029 = vmatmul.mubr.f32.gmra.mrb[0].mxu0 %v809
      %v1030 = vpop.f32.mrb[0].mxu0
      %v1031 = vadd.f32 0.0, %v1030
      %v1032 = vpop.f32.mrb[0].mxu0
      %1033 = vmatprep.mubr.f32.mxu0 0.0
      %1034 = vmatmul.mubr.f32.gmra.mrb[0].mxu0 %v812
      %v1035 = vpop.f32.mrb[0].mxu0
      %v1036 = vadd.f32 0.0, %v1035
      %v1037 = vpop.f32.mrb[0].mxu0
      %1038 = vmatprep.mubr.f32.mxu0 0.0
      %1039 = vmatmul.mubr.f32.gmra.mrb[0].mxu0 %v815
      %v1040 = vpop.f32.mrb[0].mxu0
      %v1041 = vadd.f32 0.0, %v1040
      %v1042 = vpop.f32.mrb[0].mxu0
      %1043 = vmatprep.mubr.f32.mxu0 0.0
      %1044 = vmatmul.mubr.f32.gmra.mrb[0].mxu0 %v818
      %v1045 = vpop.f32.mrb[0].mxu0
      %v1046 = vadd.f32 0.0, %v1045
      %v1047 = vpop.f32.mrb[0].mxu0
      %1048 = vdwg.mxu0
      %v1050 = vsel %vm820, %v720, 0
      %1052 = vmatprep.subr.mxu0 0.0
      %1053 = vmatpush1.msra.mxu0 %v719
      %1054 = vmatprep.subr.mxu0 0.0
      %1055 = vmatpush1.msra.mxu0 %v1050
      %1056 = vmatprep.subr.mxu0 0.0
      %1057 = vmatpush1.msra.mxu0 0.0
      %1058 = vmatprep.subr.mxu0 0.0
      %1059 = vmatpush1.msra.mxu0 0.0
      %1060 = vmatprep.subr.mxu0 0.0
      %1061 = vmatpush1.msra.mxu0 0.0
      %1062 = vmatprep.subr.mxu0 0.0
      %1063 = vmatpush1.msra.mxu0 0.0
      %1064 = vmatprep.subr.mxu0 0.0
      %1065 = vmatpush1.msra.mxu0 0.0
      %1066 = vmatprep.subr.mxu0 0.0
      %1067 = vmatpush1.msra.mxu0 0.0
      %1068 = vmatprep.subr.mxu0 0.0
      %1069 = vmatpush1.msra.mxu0 0.0
      %1070 = vmatprep.subr.mxu0 0.0
      %1071 = vmatpush1.msra.mxu0 0.0
      %1072 = vmatprep.subr.mxu0 0.0
      %1073 = vmatpush1.msra.mxu0 0.0
      %1074 = vmatprep.subr.mxu0 0.0
      %1075 = vmatpush1.msra.mxu0 0.0
      %1076 = vmatprep.subr.mxu0 0.0
      %1077 = vmatpush1.msra.mxu0 0.0
      %1078 = vmatprep.subr.mxu0 0.0
      %1079 = vmatpush1.msra.mxu0 0.0
      %1080 = vmatprep.subr.mxu0 0.0
      %1081 = vmatpush1.msra.mxu0 0.0
      %1082 = vmatprep.subr.mxu0 0.0
      %1083 = vmatpush1.msra.mxu0 0.0
      %1084 = vmatprep.subr.mxu0 0.0
      %1085 = vmatpush1.msra.mxu0 0.0
      %1086 = vmatprep.subr.mxu0 0.0
      %1087 = vmatpush1.msra.mxu0 0.0
      %1088 = vmatprep.subr.mxu0 0.0
      %1089 = vmatpush1.msra.mxu0 0.0
      %1090 = vmatprep.subr.mxu0 0.0
      %1091 = vmatpush1.msra.mxu0 0.0
      %1092 = vmatprep.subr.mxu0 0.0
      %1093 = vmatpush1.msra.mxu0 0.0
      %1094 = vmatprep.subr.mxu0 0.0
      %1095 = vmatpush1.msra.mxu0 0.0
      %1096 = vmatprep.subr.mxu0 0.0
      %1097 = vmatpush1.msra.mxu0 0.0
      %1098 = vmatprep.subr.mxu0 0.0
      %1099 = vmatpush1.msra.mxu0 0.0
      %1100 = vmatprep.subr.mxu0 0.0
      %1101 = vmatpush1.msra.mxu0 0.0
      %1102 = vmatprep.subr.mxu0 0.0
      %1103 = vmatpush1.msra.mxu0 0.0
      %1104 = vmatprep.subr.mxu0 0.0
      %1105 = vmatpush1.msra.mxu0 0.0
      %1106 = vmatprep.subr.mxu0 0.0
      %1107 = vmatpush1.msra.mxu0 0.0
      %1108 = vmatprep.subr.mxu0 0.0
      %1109 = vmatpush1.msra.mxu0 0.0
      %1110 = vmatprep.subr.mxu0 0.0
      %1111 = vmatpush1.msra.mxu0 0.0
      %1112 = vmatprep.subr.mxu0 0.0
      %1113 = vmatpush1.msra.mxu0 0.0
      %1114 = vmatprep.subr.mxu0 0.0
      %1115 = vmatpush1.msra.mxu0 0.0
      %1116 = vmatprep.mubr.f32.mxu0 0.0
      %1117 = vmatmul.mubr.f32.gmra.mrb[0].mxu0 %v731
      %v1118 = vpop.f32.mrb[0].mxu0
      %v1119 = vadd.f32 %v891, %v1118
      %v1120 = vpop.f32.mrb[0].mxu0
      %1121 = vmatprep.mubr.f32.mxu0 0.0
      %1122 = vmatmul.mubr.f32.gmra.mrb[0].mxu0 %v734
      %v1123 = vpop.f32.mrb[0].mxu0
      %v1124 = vadd.f32 %v896, %v1123
      %v1125 = vpop.f32.mrb[0].mxu0
      %1126 = vmatprep.mubr.f32.mxu0 0.0
      %1127 = vmatmul.mubr.f32.gmra.mrb[0].mxu0 %v725
      %v1128 = vpop.f32.mrb[0].mxu0
      %v1129 = vadd.f32 %v901, %v1128
      %v1130 = vpop.f32.mrb[0].mxu0
      %1131 = vmatprep.mubr.f32.mxu0 0.0
      %1132 = vmatmul.mubr.f32.gmra.mrb[0].mxu0 %v728
      %v1133 = vpop.f32.mrb[0].mxu0
      %v1134 = vadd.f32 %v906, %v1133
      %v1135 = vpop.f32.mrb[0].mxu0
      %1136 = vmatprep.mubr.f32.mxu0 0.0
      %1137 = vmatmul.mubr.f32.gmra.mrb[0].mxu0 %v731
      %v1138 = vpop.f32.mrb[0].mxu0
      %v1139 = vadd.f32 %v911, %v1138
      %v1140 = vpop.f32.mrb[0].mxu0
      %1141 = vmatprep.mubr.f32.mxu0 0.0
      %1142 = vmatmul.mubr.f32.gmra.mrb[0].mxu0 %v734
      %v1143 = vpop.f32.mrb[0].mxu0
      %v1144 = vadd.f32 %v916, %v1143
      %v1145 = vpop.f32.mrb[0].mxu0
      %1146 = vmatprep.mubr.f32.mxu0 0.0
      %1147 = vmatmul.mubr.f32.gmra.mrb[0].mxu0 %v737
      %v1148 = vpop.f32.mrb[0].mxu0
      %v1149 = vadd.f32 %v921, %v1148
      %v1150 = vpop.f32.mrb[0].mxu0
      %1151 = vmatprep.mubr.f32.mxu0 0.0
      %1152 = vmatmul.mubr.f32.gmra.mrb[0].mxu0 %v740
      %v1153 = vpop.f32.mrb[0].mxu0
      %v1154 = vadd.f32 %v926, %v1153
      %v1155 = vpop.f32.mrb[0].mxu0
      %1156 = vmatprep.mubr.f32.mxu0 0.0
      %1157 = vmatmul.mubr.f32.gmra.mrb[0].mxu0 %v743
      %v1158 = vpop.f32.mrb[0].mxu0
      %v1159 = vadd.f32 %v931, %v1158
      %v1160 = vpop.f32.mrb[0].mxu0
      %1161 = vmatprep.mubr.f32.mxu0 0.0
      %1162 = vmatmul.mubr.f32.gmra.mrb[0].mxu0 %v746
      %v1163 = vpop.f32.mrb[0].mxu0
      %v1164 = vadd.f32 %v936, %v1163
      %v1165 = vpop.f32.mrb[0].mxu0
      %1166 = vmatprep.mubr.f32.mxu0 0.0
      %1167 = vmatmul.mubr.f32.gmra.mrb[0].mxu0 %v749
      %v1168 = vpop.f32.mrb[0].mxu0
      %v1169 = vadd.f32 %v941, %v1168
      %v1170 = vpop.f32.mrb[0].mxu0
      %1171 = vmatprep.mubr.f32.mxu0 0.0
      %1172 = vmatmul.mubr.f32.gmra.mrb[0].mxu0 %v752
      %v1173 = vpop.f32.mrb[0].mxu0
      %v1174 = vadd.f32 %v946, %v1173
      %v1175 = vpop.f32.mrb[0].mxu0
      %1176 = vmatprep.mubr.f32.mxu0 0.0
      %1177 = vmatmul.mubr.f32.gmra.mrb[0].mxu0 %v755
      %v1178 = vpop.f32.mrb[0].mxu0
      %v1179 = vadd.f32 %v951, %v1178
      %v1180 = vpop.f32.mrb[0].mxu0
      %1181 = vmatprep.mubr.f32.mxu0 0.0
      %1182 = vmatmul.mubr.f32.gmra.mrb[0].mxu0 %v758
      %v1183 = vpop.f32.mrb[0].mxu0
      %v1184 = vadd.f32 %v956, %v1183
      %v1185 = vpop.f32.mrb[0].mxu0
      %1186 = vmatprep.mubr.f32.mxu0 0.0
      %1187 = vmatmul.mubr.f32.gmra.mrb[0].mxu0 %v761
      %v1188 = vpop.f32.mrb[0].mxu0
      %v1189 = vadd.f32 %v961, %v1188
      %v1190 = vpop.f32.mrb[0].mxu0
      %1191 = vmatprep.mubr.f32.mxu0 0.0
      %1192 = vmatmul.mubr.f32.gmra.mrb[0].mxu0 %v764
      %v1193 = vpop.f32.mrb[0].mxu0
      %v1194 = vadd.f32 %v966, %v1193
      %v1195 = vpop.f32.mrb[0].mxu0
      %1196 = vmatprep.mubr.f32.mxu0 0.0
      %1197 = vmatmul.mubr.f32.gmra.mrb[0].mxu0 %v767
      %v1198 = vpop.f32.mrb[0].mxu0
      %v1199 = vadd.f32 %v971, %v1198
      %v1200 = vpop.f32.mrb[0].mxu0
      %1201 = vmatprep.mubr.f32.mxu0 0.0
      %1202 = vmatmul.mubr.f32.gmra.mrb[0].mxu0 %v770
      %v1203 = vpop.f32.mrb[0].mxu0
      %v1204 = vadd.f32 %v976, %v1203
      %v1205 = vpop.f32.mrb[0].mxu0
      %1206 = vmatprep.mubr.f32.mxu0 0.0
      %1207 = vmatmul.mubr.f32.gmra.mrb[0].mxu0 %v773
      %v1208 = vpop.f32.mrb[0].mxu0
      %v1209 = vadd.f32 %v981, %v1208
      %v1210 = vpop.f32.mrb[0].mxu0
      %1211 = vmatprep.mubr.f32.mxu0 0.0
      %1212 = vmatmul.mubr.f32.gmra.mrb[0].mxu0 %v776
      %v1213 = vpop.f32.mrb[0].mxu0
      %v1214 = vadd.f32 %v986, %v1213
      %v1215 = vpop.f32.mrb[0].mxu0
      %1216 = vmatprep.mubr.f32.mxu0 0.0
      %1217 = vmatmul.mubr.f32.gmra.mrb[0].mxu0 %v779
      %v1218 = vpop.f32.mrb[0].mxu0
      %v1219 = vadd.f32 %v991, %v1218
      %v1220 = vpop.f32.mrb[0].mxu0
      %1221 = vmatprep.mubr.f32.mxu0 0.0
      %1222 = vmatmul.mubr.f32.gmra.mrb[0].mxu0 %v782
      %v1223 = vpop.f32.mrb[0].mxu0
      %v1224 = vadd.f32 %v996, %v1223
      %v1225 = vpop.f32.mrb[0].mxu0
      %1226 = vmatprep.mubr.f32.mxu0 0.0
      %1227 = vmatmul.mubr.f32.gmra.mrb[0].mxu0 %v785
      %v1228 = vpop.f32.mrb[0].mxu0
      %v1229 = vadd.f32 %v1001, %v1228
      %v1230 = vpop.f32.mrb[0].mxu0
      %1231 = vmatprep.mubr.f32.mxu0 0.0
      %1232 = vmatmul.mubr.f32.gmra.mrb[0].mxu0 %v788
      %v1233 = vpop.f32.mrb[0].mxu0
      %v1234 = vadd.f32 %v1006, %v1233
      %v1235 = vpop.f32.mrb[0].mxu0
      %1236 = vmatprep.mubr.f32.mxu0 0.0
      %1237 = vmatmul.mubr.f32.gmra.mrb[0].mxu0 %v791
      %v1238 = vpop.f32.mrb[0].mxu0
      %v1239 = vadd.f32 %v1011, %v1238
      %v1240 = vpop.f32.mrb[0].mxu0
      %1241 = vmatprep.mubr.f32.mxu0 0.0
      %1242 = vmatmul.mubr.f32.gmra.mrb[0].mxu0 %v794
      %v1243 = vpop.f32.mrb[0].mxu0
      %v1244 = vadd.f32 %v1016, %v1243
      %v1245 = vpop.f32.mrb[0].mxu0
      %1246 = vmatprep.mubr.f32.mxu0 0.0
      %1247 = vmatmul.mubr.f32.gmra.mrb[0].mxu0 %v797
      %v1248 = vpop.f32.mrb[0].mxu0
      %v1249 = vadd.f32 %v1021, %v1248
      %v1250 = vpop.f32.mrb[0].mxu0
      %1251 = vmatprep.mubr.f32.mxu0 0.0
      %1252 = vmatmul.mubr.f32.gmra.mrb[0].mxu0 %v800
      %v1253 = vpop.f32.mrb[0].mxu0
      %v1254 = vadd.f32 %v1026, %v1253
      %v1255 = vpop.f32.mrb[0].mxu0
      %1256 = vmatprep.mubr.f32.mxu0 0.0
      %1257 = vmatmul.mubr.f32.gmra.mrb[0].mxu0 %v803
      %v1258 = vpop.f32.mrb[0].mxu0
      %v1259 = vadd.f32 %v1031, %v1258
      %v1260 = vpop.f32.mrb[0].mxu0
      %1261 = vmatprep.mubr.f32.mxu0 0.0
      %1262 = vmatmul.mubr.f32.gmra.mrb[0].mxu0 %v806
      %v1263 = vpop.f32.mrb[0].mxu0
      %v1264 = vadd.f32 %v1036, %v1263
      %v1265 = vpop.f32.mrb[0].mxu0
      %1266 = vmatprep.mubr.f32.mxu0 0.0
      %1267 = vmatmul.mubr.f32.gmra.mrb[0].mxu0 %v809
      %v1268 = vpop.f32.mrb[0].mxu0
      %v1269 = vadd.f32 %v1041, %v1268
      %v1270 = vpop.f32.mrb[0].mxu0
      %1271 = vmatprep.mubr.f32.mxu0 0.0
      %1272 = vmatmul.mubr.f32.gmra.mrb[0].mxu0 %v812
      %v1273 = vpop.f32.mrb[0].mxu0
      %v1274 = vadd.f32 %v1046, %v1273
      %v1275 = vpop.f32.mrb[0].mxu0
      %1276 = vdwg.mxu0
      %v1277 = vld [vmem:[%s1 + $0x18] sm:$0xff]
      %v1278 = vld [vmem:[%s1 + $0x20] sm:$0xf]
      %v1280 = vsel %vm820, %v1278, 0
      %1282 = vmatprep.subr.mxu0 0.0
      %1283 = vmatpush1.msra.mxu0 %v1277
      %1284 = vmatprep.subr.mxu0 0.0
      %1285 = vmatpush1.msra.mxu0 %v1280
      %1286 = vmatprep.subr.mxu0 0.0
      %1287 = vmatpush1.msra.mxu0 0.0
      %1288 = vmatprep.subr.mxu0 0.0
      %1289 = vmatpush1.msra.mxu0 0.0
      %1290 = vmatprep.subr.mxu0 0.0
      %1291 = vmatpush1.msra.mxu0 0.0
      %1292 = vmatprep.subr.mxu0 0.0
      %1293 = vmatpush1.msra.mxu0 0.0
      %1294 = vmatprep.subr.mxu0 0.0
      %1295 = vmatpush1.msra.mxu0 0.0
      %1296 = vmatprep.subr.mxu0 0.0
      %1297 = vmatpush1.msra.mxu0 0.0
      %1298 = vmatprep.subr.mxu0 0.0
      %1299 = vmatpush1.msra.mxu0 0.0
      %1300 = vmatprep.subr.mxu0 0.0
      %1301 = vmatpush1.msra.mxu0 0.0
      %1302 = vmatprep.subr.mxu0 0.0
      %1303 = vmatpush1.msra.mxu0 0.0
      %1304 = vmatprep.subr.mxu0 0.0
      %1305 = vmatpush1.msra.mxu0 0.0
      %1306 = vmatprep.subr.mxu0 0.0
      %1307 = vmatpush1.msra.mxu0 0.0
      %1308 = vmatprep.subr.mxu0 0.0
      %1309 = vmatpush1.msra.mxu0 0.0
      %1310 = vmatprep.subr.mxu0 0.0
      %1311 = vmatpush1.msra.mxu0 0.0
      %1312 = vmatprep.subr.mxu0 0.0
      %1313 = vmatpush1.msra.mxu0 0.0
      %1314 = vmatprep.subr.mxu0 0.0
      %1315 = vmatpush1.msra.mxu0 0.0
      %1316 = vmatprep.subr.mxu0 0.0
      %1317 = vmatpush1.msra.mxu0 0.0
      %1318 = vmatprep.subr.mxu0 0.0
      %1319 = vmatpush1.msra.mxu0 0.0
      %1320 = vmatprep.subr.mxu0 0.0
      %1321 = vmatpush1.msra.mxu0 0.0
      %1322 = vmatprep.subr.mxu0 0.0
      %1323 = vmatpush1.msra.mxu0 0.0
      %1324 = vmatprep.subr.mxu0 0.0
      %1325 = vmatpush1.msra.mxu0 0.0
      %1326 = vmatprep.subr.mxu0 0.0
      %1327 = vmatpush1.msra.mxu0 0.0
      %1328 = vmatprep.subr.mxu0 0.0
      %1329 = vmatpush1.msra.mxu0 0.0
      %1330 = vmatprep.subr.mxu0 0.0
      %1331 = vmatpush1.msra.mxu0 0.0
      %1332 = vmatprep.subr.mxu0 0.0
      %1333 = vmatpush1.msra.mxu0 0.0
      %1334 = vmatprep.subr.mxu0 0.0
      %1335 = vmatpush1.msra.mxu0 0.0
      %1336 = vmatprep.subr.mxu0 0.0
      %1337 = vmatpush1.msra.mxu0 0.0
      %1338 = vmatprep.subr.mxu0 0.0
      %1339 = vmatpush1.msra.mxu0 0.0
      %1340 = vmatprep.subr.mxu0 0.0
      %1341 = vmatpush1.msra.mxu0 0.0
      %1342 = vmatprep.subr.mxu0 0.0
      %1343 = vmatpush1.msra.mxu0 0.0
      %1344 = vmatprep.subr.mxu0 0.0
      %1345 = vmatpush1.msra.mxu0 0.0
      %1346 = vmatprep.mubr.f32.mxu0 0.0
      %1347 = vmatmul.mubr.f32.gmra.mrb[0].mxu0 %v731
      %v1348 = vpop.f32.mrb[0].mxu0
      %v1349 = vadd.f32 0.0, %v1348
      %v1350 = vpop.f32.mrb[0].mxu0
      %1351 = vmatprep.mubr.f32.mxu0 0.0
      %1352 = vmatmul.mubr.f32.gmra.mrb[0].mxu0 %v734
      %v1353 = vpop.f32.mrb[0].mxu0
      %v1354 = vadd.f32 0.0, %v1353
      %v1355 = vpop.f32.mrb[0].mxu0
      %1356 = vmatprep.mubr.f32.mxu0 0.0
      %1357 = vmatmul.mubr.f32.gmra.mrb[0].mxu0 %v737
      %v1358 = vpop.f32.mrb[0].mxu0
      %v1359 = vadd.f32 0.0, %v1358
      %v1360 = vpop.f32.mrb[0].mxu0
      %1361 = vmatprep.mubr.f32.mxu0 0.0
      %1362 = vmatmul.mubr.f32.gmra.mrb[0].mxu0 %v740
      %v1363 = vpop.f32.mrb[0].mxu0
      %v1364 = vadd.f32 0.0, %v1363
      %v1365 = vpop.f32.mrb[0].mxu0
      %1366 = vmatprep.mubr.f32.mxu0 0.0
      %1367 = vmatmul.mubr.f32.gmra.mrb[0].mxu0 %v743
      %v1368 = vpop.f32.mrb[0].mxu0
      %v1369 = vadd.f32 0.0, %v1368
      %v1370 = vpop.f32.mrb[0].mxu0
      %1371 = vmatprep.mubr.f32.mxu0 0.0
      %1372 = vmatmul.mubr.f32.gmra.mrb[0].mxu0 %v746
      %v1373 = vpop.f32.mrb[0].mxu0
      %v1374 = vadd.f32 0.0, %v1373
      %v1375 = vpop.f32.mrb[0].mxu0
      %1376 = vmatprep.mubr.f32.mxu0 0.0
      %1377 = vmatmul.mubr.f32.gmra.mrb[0].mxu0 %v749
      %v1378 = vpop.f32.mrb[0].mxu0
      %v1379 = vadd.f32 0.0, %v1378
      %v1380 = vpop.f32.mrb[0].mxu0
      %1381 = vmatprep.mubr.f32.mxu0 0.0
      %1382 = vmatmul.mubr.f32.gmra.mrb[0].mxu0 %v752
      %v1383 = vpop.f32.mrb[0].mxu0
      %v1384 = vadd.f32 0.0, %v1383
      %v1385 = vpop.f32.mrb[0].mxu0
      %1386 = vmatprep.mubr.f32.mxu0 0.0
      %1387 = vmatmul.mubr.f32.gmra.mrb[0].mxu0 %v755
      %v1388 = vpop.f32.mrb[0].mxu0
      %v1389 = vadd.f32 0.0, %v1388
      %v1390 = vpop.f32.mrb[0].mxu0
      %1391 = vmatprep.mubr.f32.mxu0 0.0
      %1392 = vmatmul.mubr.f32.gmra.mrb[0].mxu0 %v758
      %v1393 = vpop.f32.mrb[0].mxu0
      %v1394 = vadd.f32 0.0, %v1393
      %v1395 = vpop.f32.mrb[0].mxu0
      %1396 = vmatprep.mubr.f32.mxu0 0.0
      %1397 = vmatmul.mubr.f32.gmra.mrb[0].mxu0 %v761
      %v1398 = vpop.f32.mrb[0].mxu0
      %v1399 = vadd.f32 0.0, %v1398
      %v1400 = vpop.f32.mrb[0].mxu0
      %1401 = vmatprep.mubr.f32.mxu0 0.0
      %1402 = vmatmul.mubr.f32.gmra.mrb[0].mxu0 %v764
      %v1403 = vpop.f32.mrb[0].mxu0
      %v1404 = vadd.f32 0.0, %v1403
      %v1405 = vpop.f32.mrb[0].mxu0
      %1406 = vmatprep.mubr.f32.mxu0 0.0
      %1407 = vmatmul.mubr.f32.gmra.mrb[0].mxu0 %v767
      %v1408 = vpop.f32.mrb[0].mxu0
      %v1409 = vadd.f32 0.0, %v1408
      %v1410 = vpop.f32.mrb[0].mxu0
      %1411 = vmatprep.mubr.f32.mxu0 0.0
      %1412 = vmatmul.mubr.f32.gmra.mrb[0].mxu0 %v770
      %v1413 = vpop.f32.mrb[0].mxu0
      %v1414 = vadd.f32 0.0, %v1413
      %v1415 = vpop.f32.mrb[0].mxu0
      %1416 = vmatprep.mubr.f32.mxu0 0.0
      %1417 = vmatmul.mubr.f32.gmra.mrb[0].mxu0 %v773
      %v1418 = vpop.f32.mrb[0].mxu0
      %v1419 = vadd.f32 0.0, %v1418
      %v1420 = vpop.f32.mrb[0].mxu0
      %1421 = vmatprep.mubr.f32.mxu0 0.0
      %1422 = vmatmul.mubr.f32.gmra.mrb[0].mxu0 %v776
      %v1423 = vpop.f32.mrb[0].mxu0
      %v1424 = vadd.f32 0.0, %v1423
      %v1425 = vpop.f32.mrb[0].mxu0
      %1426 = vmatprep.mubr.f32.mxu0 0.0
      %1427 = vmatmul.mubr.f32.gmra.mrb[0].mxu0 %v779
      %v1428 = vpop.f32.mrb[0].mxu0
      %v1429 = vadd.f32 0.0, %v1428
      %v1430 = vpop.f32.mrb[0].mxu0
      %1431 = vmatprep.mubr.f32.mxu0 0.0
      %1432 = vmatmul.mubr.f32.gmra.mrb[0].mxu0 %v782
      %v1433 = vpop.f32.mrb[0].mxu0
      %v1434 = vadd.f32 0.0, %v1433
      %v1435 = vpop.f32.mrb[0].mxu0
      %1436 = vmatprep.mubr.f32.mxu0 0.0
      %1437 = vmatmul.mubr.f32.gmra.mrb[0].mxu0 %v785
      %v1438 = vpop.f32.mrb[0].mxu0
      %v1439 = vadd.f32 0.0, %v1438
      %v1440 = vpop.f32.mrb[0].mxu0
      %1441 = vmatprep.mubr.f32.mxu0 0.0
      %1442 = vmatmul.mubr.f32.gmra.mrb[0].mxu0 %v788
      %v1443 = vpop.f32.mrb[0].mxu0
      %v1444 = vadd.f32 0.0, %v1443
      %v1445 = vpop.f32.mrb[0].mxu0
      %1446 = vmatprep.mubr.f32.mxu0 0.0
      %1447 = vmatmul.mubr.f32.gmra.mrb[0].mxu0 %v791
      %v1448 = vpop.f32.mrb[0].mxu0
      %v1449 = vadd.f32 0.0, %v1448
      %v1450 = vpop.f32.mrb[0].mxu0
      %1451 = vmatprep.mubr.f32.mxu0 0.0
      %1452 = vmatmul.mubr.f32.gmra.mrb[0].mxu0 %v794
      %v1453 = vpop.f32.mrb[0].mxu0
      %v1454 = vadd.f32 0.0, %v1453
      %v1455 = vpop.f32.mrb[0].mxu0
      %1456 = vmatprep.mubr.f32.mxu0 0.0
      %1457 = vmatmul.mubr.f32.gmra.mrb[0].mxu0 %v797
      %v1458 = vpop.f32.mrb[0].mxu0
      %v1459 = vadd.f32 0.0, %v1458
      %v1460 = vpop.f32.mrb[0].mxu0
      %1461 = vmatprep.mubr.f32.mxu0 0.0
      %1462 = vmatmul.mubr.f32.gmra.mrb[0].mxu0 %v800
      %v1463 = vpop.f32.mrb[0].mxu0
      %v1464 = vadd.f32 0.0, %v1463
      %v1465 = vpop.f32.mrb[0].mxu0
      %1466 = vmatprep.mubr.f32.mxu0 0.0
      %1467 = vmatmul.mubr.f32.gmra.mrb[0].mxu0 %v803
      %v1468 = vpop.f32.mrb[0].mxu0
      %v1469 = vadd.f32 0.0, %v1468
      %v1470 = vpop.f32.mrb[0].mxu0
      %1471 = vmatprep.mubr.f32.mxu0 0.0
      %1472 = vmatmul.mubr.f32.gmra.mrb[0].mxu0 %v806
      %v1473 = vpop.f32.mrb[0].mxu0
      %v1474 = vadd.f32 0.0, %v1473
      %v1475 = vpop.f32.mrb[0].mxu0
      %1476 = vmatprep.mubr.f32.mxu0 0.0
      %1477 = vmatmul.mubr.f32.gmra.mrb[0].mxu0 %v809
      %v1478 = vpop.f32.mrb[0].mxu0
      %v1479 = vadd.f32 0.0, %v1478
      %v1480 = vpop.f32.mrb[0].mxu0
      %1481 = vmatprep.mubr.f32.mxu0 0.0
      %1482 = vmatmul.mubr.f32.gmra.mrb[0].mxu0 %v812
      %v1483 = vpop.f32.mrb[0].mxu0
      %v1484 = vadd.f32 0.0, %v1483
      %v1485 = vpop.f32.mrb[0].mxu0
      %1486 = vmatprep.mubr.f32.mxu0 0.0
      %1487 = vmatmul.mubr.f32.gmra.mrb[0].mxu0 %v815
      %v1488 = vpop.f32.mrb[0].mxu0
      %v1489 = vadd.f32 0.0, %v1488
      %v1490 = vpop.f32.mrb[0].mxu0
      %1491 = vmatprep.mubr.f32.mxu0 0.0
      %1492 = vmatmul.mubr.f32.gmra.mrb[0].mxu0 %v818
      %v1493 = vpop.f32.mrb[0].mxu0
      %v1494 = vadd.f32 0.0, %v1493
      %v1495 = vpop.f32.mrb[0].mxu0
      %1496 = vmatprep.mubr.f32.mxu0 0.0
      %1497 = vmatmul.mubr.f32.gmra.mrb[0].mxu0 %v809
      %v1498 = vpop.f32.mrb[0].mxu0
      %v1499 = vadd.f32 0.0, %v1498
      %v1500 = vpop.f32.mrb[0].mxu0
      %1501 = vmatprep.mubr.f32.mxu0 0.0
      %1502 = vmatmul.mubr.f32.gmra.mrb[0].mxu0 %v812
      %v1503 = vpop.f32.mrb[0].mxu0
      %v1504 = vadd.f32 0.0, %v1503
      %v1505 = vpop.f32.mrb[0].mxu0
      %1506 = vdwg.mxu0
      %v1507 = vadd.f32 %v1119, %v1349
      %v1508 = vadd.f32 %v1124, %v1354
      %v1509 = vadd.f32 %v1129, %v1359
      %v1510 = vadd.f32 %v1134, %v1364
      %v1511 = vadd.f32 %v1139, %v1369
      %v1512 = vadd.f32 %v1144, %v1374
      %v1513 = vadd.f32 %v1149, %v1379
      %v1514 = vadd.f32 %v1154, %v1384
      %v1515 = vadd.f32 %v1159, %v1389
      %v1516 = vadd.f32 %v1164, %v1394
      %v1517 = vadd.f32 %v1169, %v1399
      %v1518 = vadd.f32 %v1174, %v1404
      %v1519 = vadd.f32 %v1179, %v1409
      %v1520 = vadd.f32 %v1184, %v1414
      %v1521 = vadd.f32 %v1189, %v1419
      %v1522 = vadd.f32 %v1194, %v1424
      %v1523 = vadd.f32 %v1199, %v1429
      %v1524 = vadd.f32 %v1204, %v1434
      %v1525 = vadd.f32 %v1209, %v1439
      %v1526 = vadd.f32 %v1214, %v1444
      %v1527 = vadd.f32 %v1219, %v1449
      %v1528 = vadd.f32 %v1224, %v1454
      %v1529 = vadd.f32 %v1229, %v1459
      %v1530 = vadd.f32 %v1234, %v1464
      %v1531 = vadd.f32 %v1239, %v1469
      %v1532 = vadd.f32 %v1244, %v1474
      %v1533 = vadd.f32 %v1249, %v1479
      %v1534 = vadd.f32 %v1254, %v1484
      %v1535 = vadd.f32 %v1259, %v1489
      %v1536 = vadd.f32 %v1264, %v1494
      %v1537 = vadd.f32 %v1269, %v1499
      %v1538 = vadd.f32 %v1274, %v1504
      %v1539 = vsel %vm653, %v1507, 0.0
      %v1540 = vsel %vm653, %v1508, 0.0
      %v1541 = vadd.f32 %v1539, %v1540
      %v1542 = vsel %vm653, %v1509, 0.0
      %v1543 = vadd.f32 %v1541, %v1542
      %v1544 = vsel %vm653, %v1510, 0.0
      %v1545 = vadd.f32 %v1543, %v1544
      %v1546 = vsel %vm653, %v1511, 0.0
      %v1547 = vadd.f32 %v1545, %v1546
      %v1548 = vsel %vm653, %v1512, 0.0
      %v1549 = vadd.f32 %v1547, %v1548
      %v1550 = vsel %vm653, %v1513, 0.0
      %v1551 = vadd.f32 %v1549, %v1550
      %v1552 = vsel %vm653, %v1514, 0.0
      %v1553 = vadd.f32 %v1551, %v1552
      %v1554 = vsel %vm653, %v1515, 0.0
      %v1555 = vadd.f32 %v1553, %v1554
      %v1556 = vsel %vm653, %v1516, 0.0
      %v1557 = vadd.f32 %v1555, %v1556
      %v1558 = vsel %vm653, %v1517, 0.0
      %v1559 = vadd.f32 %v1557, %v1558
      %v1560 = vsel %vm653, %v1518, 0.0
      %v1561 = vadd.f32 %v1559, %v1560
      %v1562 = vsel %vm653, %v1519, 0.0
      %v1563 = vadd.f32 %v1561, %v1562
      %v1564 = vsel %vm653, %v1520, 0.0
      %v1565 = vadd.f32 %v1563, %v1564
      %v1566 = vsel %vm653, %v1521, 0.0
      %v1567 = vadd.f32 %v1565, %v1566
      %v1568 = vsel %vm653, %v1522, 0.0
      %v1569 = vadd.f32 %v1567, %v1568
      %v1570 = vsel %vm653, %v1523, 0.0
      %v1571 = vadd.f32 %v1569, %v1570
      %v1572 = vsel %vm653, %v1524, 0.0
      %v1573 = vadd.f32 %v1571, %v1572
      %v1574 = vsel %vm653, %v1525, 0.0
      %v1575 = vadd.f32 %v1573, %v1574
      %v1576 = vsel %vm653, %v1526, 0.0
      %v1577 = vadd.f32 %v1575, %v1576
      %v1578 = vsel %vm653, %v1527, 0.0
      %v1579 = vadd.f32 %v1577, %v1578
      %v1580 = vsel %vm653, %v1528, 0.0
      %v1581 = vadd.f32 %v1579, %v1580
      %v1582 = vsel %vm653, %v1529, 0.0
      %v1583 = vadd.f32 %v1581, %v1582
      %v1584 = vsel %vm653, %v1530, 0.0
      %v1585 = vadd.f32 %v1583, %v1584
      %v1586 = vsel %vm653, %v1531, 0.0
      %v1587 = vadd.f32 %v1585, %v1586
      %v1588 = vsel %vm653, %v1532, 0.0
      %v1589 = vadd.f32 %v1587, %v1588
      %v1590 = vsel %vm653, %v1533, 0.0
      %v1591 = vadd.f32 %v1589, %v1590
      %v1592 = vsel %vm653, %v1534, 0.0
      %v1593 = vadd.f32 %v1591, %v1592
      %v1594 = vsel %vm653, %v1535, 0.0
      %v1595 = vadd.f32 %v1593, %v1594
      %v1596 = vsel %vm653, %v1536, 0.0
      %v1597 = vadd.f32 %v1595, %v1596
      %v1598 = vsel %vm653, %v1537, 0.0
      %v1599 = vadd.f32 %v1597, %v1598
      %v1600 = vsel %vm653, %v1538, 0.0
      %v1601 = vadd.f32 %v1599, %v1600
      %v1602 = vrot.slane %v1601, 4
      %v1603 = vadd.f32 %v1601, %v1602
      %v1604 = vrot.slane %v1603, 2
      %v1605 = vadd.f32 %v1603, %v1604
      %v1606 = vrot.slane %v1605, 1
      %v1607 = vadd.f32 %v1605, %v1606
      %v1608 = vmul.f32 %v1507, %v1507
      %v1609 = vmul.f32 %v1508, %v1508
      %v1610 = vmul.f32 %v1509, %v1509
      %v1611 = vmul.f32 %v1510, %v1510
      %v1612 = vmul.f32 %v1511, %v1511
      %v1613 = vmul.f32 %v1512, %v1512
      %v1614 = vmul.f32 %v1513, %v1513
      %v1615 = vmul.f32 %v1514, %v1514
      %v1616 = vmul.f32 %v1515, %v1515
      %v1617 = vmul.f32 %v1516, %v1516
      %v1618 = vmul.f32 %v1517, %v1517
      %v1619 = vmul.f32 %v1518, %v1518
      %v1620 = vmul.f32 %v1519, %v1519
      %v1621 = vmul.f32 %v1520, %v1520
      %v1622 = vmul.f32 %v1521, %v1521
      %v1623 = vmul.f32 %v1522, %v1522
      %v1624 = vmul.f32 %v1523, %v1523
      %v1625 = vmul.f32 %v1524, %v1524
      %v1626 = vmul.f32 %v1525, %v1525
      %v1627 = vmul.f32 %v1526, %v1526
      %v1628 = vmul.f32 %v1527, %v1527
      %v1629 = vmul.f32 %v1528, %v1528
      %v1630 = vmul.f32 %v1529, %v1529
      %v1631 = vmul.f32 %v1530, %v1530
      %v1632 = vmul.f32 %v1531, %v1531
      %v1633 = vmul.f32 %v1532, %v1532
      %v1634 = vmul.f32 %v1533, %v1533
      %v1635 = vmul.f32 %v1534, %v1534
      %v1636 = vmul.f32 %v1535, %v1535
      %v1637 = vmul.f32 %v1536, %v1536
      %v1638 = vmul.f32 %v1537, %v1537
      %v1639 = vmul.f32 %v1538, %v1538
      %v1640 = vsel %vm653, %v1608, 0.0
      %v1641 = vsel %vm653, %v1609, 0.0
      %v1642 = vadd.f32 %v1640, %v1641
      %v1643 = vsel %vm653, %v1610, 0.0
      %v1644 = vadd.f32 %v1642, %v1643
      %v1645 = vsel %vm653, %v1611, 0.0
      %v1646 = vadd.f32 %v1644, %v1645
      %v1647 = vsel %vm653, %v1612, 0.0
      %v1648 = vadd.f32 %v1646, %v1647
      %v1649 = vsel %vm653, %v1613, 0.0
      %v1650 = vadd.f32 %v1648, %v1649
      %v1651 = vsel %vm653, %v1614, 0.0
      %v1652 = vadd.f32 %v1650, %v1651
      %v1653 = vsel %vm653, %v1615, 0.0
      %v1654 = vadd.f32 %v1652, %v1653
      %v1655 = vsel %vm653, %v1616, 0.0
      %v1656 = vadd.f32 %v1654, %v1655
      %v1657 = vsel %vm653, %v1617, 0.0
      %v1658 = vadd.f32 %v1656, %v1657
      %v1659 = vsel %vm653, %v1618, 0.0
      %v1660 = vadd.f32 %v1658, %v1659
      %v1661 = vsel %vm653, %v1619, 0.0
      %v1662 = vadd.f32 %v1660, %v1661
      %v1663 = vsel %vm653, %v1620, 0.0
      %v1664 = vadd.f32 %v1662, %v1663
      %v1665 = vsel %vm653, %v1621, 0.0
      %v1666 = vadd.f32 %v1664, %v1665
      %v1667 = vsel %vm653, %v1622, 0.0
      %v1668 = vadd.f32 %v1666, %v1667
      %v1669 = vsel %vm653, %v1623, 0.0
      %v1670 = vadd.f32 %v1668, %v1669
      %v1671 = vsel %vm653, %v1624, 0.0
      %v1672 = vadd.f32 %v1670, %v1671
      %v1673 = vsel %vm653, %v1625, 0.0
      %v1674 = vadd.f32 %v1672, %v1673
      %v1675 = vsel %vm653, %v1626, 0.0
      %v1676 = vadd.f32 %v1674, %v1675
      %v1677 = vsel %vm653, %v1627, 0.0
      %v1678 = vadd.f32 %v1676, %v1677
      %v1679 = vsel %vm653, %v1628, 0.0
      %v1680 = vadd.f32 %v1678, %v1679
      %v1681 = vsel %vm653, %v1629, 0.0
      %v1682 = vadd.f32 %v1680, %v1681
      %v1683 = vsel %vm653, %v1630, 0.0
      %v1684 = vadd.f32 %v1682, %v1683
      %v1685 = vsel %vm653, %v1631, 0.0
      %v1686 = vadd.f32 %v1684, %v1685
      %v1687 = vsel %vm653, %v1632, 0.0
      %v1688 = vadd.f32 %v1686, %v1687
      %v1689 = vsel %vm653, %v1633, 0.0
      %v1690 = vadd.f32 %v1688, %v1689
      %v1691 = vsel %vm653, %v1634, 0.0
      %v1692 = vadd.f32 %v1690, %v1691
      %v1693 = vsel %vm653, %v1635, 0.0
      %v1694 = vadd.f32 %v1692, %v1693
      %v1695 = vsel %vm653, %v1636, 0.0
      %v1696 = vadd.f32 %v1694, %v1695
      %v1697 = vsel %vm653, %v1637, 0.0
      %v1698 = vadd.f32 %v1696, %v1697
      %v1699 = vsel %vm653, %v1638, 0.0
      %v1700 = vadd.f32 %v1698, %v1699
      %v1701 = vsel %vm653, %v1639, 0.0
      %v1702 = vadd.f32 %v1700, %v1701
      %v1703 = vrot.slane %v1702, 4
      %v1704 = vadd.f32 %v1702, %v1703
      %v1705 = vrot.slane %v1704, 2
      %v1706 = vadd.f32 %v1704, %v1705
      %v1707 = vrot.slane %v1706, 1
      %v1708 = vadd.f32 %v1706, %v1707
      %v1709 = vmul.f32 %v1607, 0.00390625
      %v1710 = vmul.f32 %v1708, 0.00390625
      %v1711 = vmul.f32 %v1709, %v1709
      %v1712 = vsub.f32 %v1710, %v1711
      %v1713 = vmax.f32 %v1712, 0.0
      %v1714 = vsub.f32 %v1507, %v1709
      %v1715 = vsub.f32 %v1508, %v1709
      %v1716 = vsub.f32 %v1509, %v1709
      %v1717 = vsub.f32 %v1510, %v1709
      %v1718 = vsub.f32 %v1511, %v1709
      %v1719 = vsub.f32 %v1512, %v1709
      %v1720 = vsub.f32 %v1513, %v1709
      %v1721 = vsub.f32 %v1514, %v1709
      %v1722 = vsub.f32 %v1515, %v1709
      %v1723 = vsub.f32 %v1516, %v1709
      %v1724 = vsub.f32 %v1517, %v1709
      %v1725 = vsub.f32 %v1518, %v1709
      %v1726 = vsub.f32 %v1519, %v1709
      %v1727 = vsub.f32 %v1520, %v1709
      %v1728 = vsub.f32 %v1521, %v1709
      %v1729 = vsub.f32 %v1522, %v1709
      %v1730 = vsub.f32 %v1523, %v1709
      %v1731 = vsub.f32 %v1524, %v1709
      %v1732 = vsub.f32 %v1525, %v1709
      %v1733 = vsub.f32 %v1526, %v1709
      %v1734 = vsub.f32 %v1527, %v1709
      %v1735 = vsub.f32 %v1528, %v1709
      %v1736 = vsub.f32 %v1529, %v1709
      %v1737 = vsub.f32 %v1530, %v1709
      %v1738 = vsub.f32 %v1531, %v1709
      %v1739 = vsub.f32 %v1532, %v1709
      %v1740 = vsub.f32 %v1533, %v1709
      %v1741 = vsub.f32 %v1534, %v1709
      %v1742 = vsub.f32 %v1535, %v1709
      %v1743 = vsub.f32 %v1536, %v1709
      %v1744 = vsub.f32 %v1537, %v1709
      %v1745 = vsub.f32 %v1538, %v1709
      %v1746 = vadd.f32 %v1713, 1e-05
      %v1747 = vrsqrt.pop %v1746
      %v1748 = vmul.f32 %v1714, %v1747
      %v1749 = vmul.f32 %v1715, %v1747
      %v1750 = vmul.f32 %v1716, %v1747
      %v1751 = vmul.f32 %v1717, %v1747
      %v1752 = vmul.f32 %v1718, %v1747
      %v1753 = vmul.f32 %v1719, %v1747
      %v1754 = vmul.f32 %v1720, %v1747
      %v1755 = vmul.f32 %v1721, %v1747
      %v1756 = vmul.f32 %v1722, %v1747
      %v1757 = vmul.f32 %v1723, %v1747
      %v1758 = vmul.f32 %v1724, %v1747
      %v1759 = vmul.f32 %v1725, %v1747
      %v1760 = vmul.f32 %v1726, %v1747
      %v1761 = vmul.f32 %v1727, %v1747
      %v1762 = vmul.f32 %v1728, %v1747
      %v1763 = vmul.f32 %v1729, %v1747
      %v1764 = vmul.f32 %v1730, %v1747
      %v1765 = vmul.f32 %v1731, %v1747
      %v1766 = vmul.f32 %v1732, %v1747
      %v1767 = vmul.f32 %v1733, %v1747
      %v1768 = vmul.f32 %v1734, %v1747
      %v1769 = vmul.f32 %v1735, %v1747
      %v1770 = vmul.f32 %v1736, %v1747
      %v1771 = vmul.f32 %v1737, %v1747
      %v1772 = vmul.f32 %v1738, %v1747
      %v1773 = vmul.f32 %v1739, %v1747
      %v1774 = vmul.f32 %v1740, %v1747
      %v1775 = vmul.f32 %v1741, %v1747
      %v1776 = vmul.f32 %v1742, %v1747
      %v1777 = vmul.f32 %v1743, %v1747
      %v1778 = vmul.f32 %v1744, %v1747
      %v1779 = vmul.f32 %v1745, %v1747
      %v1780 = vmax.f32 %v1748, 0.0
      %v1781 = vmax.f32 %v1749, 0.0
      %v1782 = vmax.f32 %v1750, 0.0
      %v1783 = vmax.f32 %v1751, 0.0
      %v1784 = vmax.f32 %v1752, 0.0
      %v1785 = vmax.f32 %v1753, 0.0
      %v1786 = vmax.f32 %v1754, 0.0
      %v1787 = vmax.f32 %v1755, 0.0
      %v1788 = vmax.f32 %v1756, 0.0
      %v1789 = vmax.f32 %v1757, 0.0
      %v1790 = vmax.f32 %v1758, 0.0
      %v1791 = vmax.f32 %v1759, 0.0
      %v1792 = vmax.f32 %v1760, 0.0
      %v1793 = vmax.f32 %v1761, 0.0
      %v1794 = vmax.f32 %v1762, 0.0
      %v1795 = vmax.f32 %v1763, 0.0
      %v1796 = vmax.f32 %v1764, 0.0
      %v1797 = vmax.f32 %v1765, 0.0
      %v1798 = vmax.f32 %v1766, 0.0
      %v1799 = vmax.f32 %v1767, 0.0
      %v1800 = vmax.f32 %v1768, 0.0
      %v1801 = vmax.f32 %v1769, 0.0
      %v1802 = vmax.f32 %v1770, 0.0
      %v1803 = vmax.f32 %v1771, 0.0
      %v1804 = vmax.f32 %v1772, 0.0
      %v1805 = vmax.f32 %v1773, 0.0
      %v1806 = vmax.f32 %v1774, 0.0
      %v1807 = vmax.f32 %v1775, 0.0
      %v1808 = vmax.f32 %v1776, 0.0
      %v1809 = vmax.f32 %v1777, 0.0
      %v1810 = vmax.f32 %v1778, 0.0
      %v1811 = vmax.f32 %v1779, 0.0
      %v1828 = vrot.slane %v1782, 1
      %v1829 = vrot.slane %v1780, 1
      %v1830 = vrot.slane %v1784, 1
      %v1831 = vrot.slane %v1786, 1
      %v1832 = vrot.slane %v1788, 1
      %v1833 = vrot.slane %v1790, 1
      %v1834 = vrot.slane %v1792, 1
      %v1835 = vrot.slane %v1794, 1
      %v1836 = vrot.slane %v1796, 1
      %v1837 = vrot.slane %v1798, 1
      %v1838 = vrot.slane %v1800, 1
      %v1839 = vrot.slane %v1802, 1
      %v1840 = vrot.slane %v1804, 1
      %v1841 = vrot.slane %v1806, 1
      %v1842 = vrot.slane %v1808, 1
      %v1843 = vrot.slane %v1810, 1
      %v1876 = vrot.slane %v1782, 7
      %v1877 = vrot.slane %v1783, 7
      %v1878 = vsel %vm267, %v1876, %v1877
      %v1879 = vrot.slane %v1780, 7
      %v1880 = vrot.slane %v1781, 7
      %v1881 = vsel %vm267, %v1879, %v1880
      %v1882 = vrot.slane %v1784, 7
      %v1883 = vrot.slane %v1785, 7
      %v1884 = vsel %vm267, %v1882, %v1883
      %v1885 = vrot.slane %v1786, 7
      %v1886 = vrot.slane %v1787, 7
      %v1887 = vsel %vm267, %v1885, %v1886
      %v1888 = vrot.slane %v1788, 7
      %v1889 = vrot.slane %v1789, 7
      %v1890 = vsel %vm267, %v1888, %v1889
      %v1891 = vrot.slane %v1790, 7
      %v1892 = vrot.slane %v1791, 7
      %v1893 = vsel %vm267, %v1891, %v1892
      %v1894 = vrot.slane %v1792, 7
      %v1895 = vrot.slane %v1793, 7
      %v1896 = vsel %vm267, %v1894, %v1895
      %v1897 = vrot.slane %v1794, 7
      %v1898 = vrot.slane %v1795, 7
      %v1899 = vsel %vm267, %v1897, %v1898
      %v1900 = vrot.slane %v1796, 7
      %v1901 = vrot.slane %v1797, 7
      %v1902 = vsel %vm267, %v1900, %v1901
      %v1903 = vrot.slane %v1798, 7
      %v1904 = vrot.slane %v1799, 7
      %v1905 = vsel %vm267, %v1903, %v1904
      %v1906 = vrot.slane %v1800, 7
      %v1907 = vrot.slane %v1801, 7
      %v1908 = vsel %vm267, %v1906, %v1907
      %v1909 = vrot.slane %v1802, 7
      %v1910 = vrot.slane %v1803, 7
      %v1911 = vsel %vm267, %v1909, %v1910
      %v1912 = vrot.slane %v1804, 7
      %v1913 = vrot.slane %v1805, 7
      %v1914 = vsel %vm267, %v1912, %v1913
      %v1915 = vrot.slane %v1806, 7
      %v1916 = vrot.slane %v1807, 7
      %v1917 = vsel %vm267, %v1915, %v1916
      %v1918 = vrot.slane %v1808, 7
      %v1919 = vrot.slane %v1809, 7
      %v1920 = vsel %vm267, %v1918, %v1919
      %v1921 = vrot.slane %v1810, 7
      %v1922 = vrot.slane %v1811, 7
      %v1923 = vsel %vm267, %v1921, %v1922
      %v1956 = vsel %vm267, %v1828, %v1876
      %v1957 = vsel %vm267, %v1829, %v1879
      %v1958 = vsel %vm267, %v1830, %v1882
      %v1959 = vsel %vm267, %v1831, %v1885
      %v1960 = vsel %vm267, %v1832, %v1888
      %v1961 = vsel %vm267, %v1833, %v1891
      %v1962 = vsel %vm267, %v1834, %v1894
      %v1963 = vsel %vm267, %v1835, %v1897
      %v1964 = vsel %vm267, %v1836, %v1900
      %v1965 = vsel %vm267, %v1837, %v1903
      %v1966 = vsel %vm267, %v1838, %v1906
      %v1967 = vsel %vm267, %v1839, %v1909
      %v1968 = vsel %vm267, %v1840, %v1912
      %v1969 = vsel %vm267, %v1841, %v1915
      %v1970 = vsel %vm267, %v1842, %v1918
      %v1971 = vsel %vm267, %v1843, %v1921
      %v1972 = vrot.slane %v1783, 1
      %v1973 = vsel %vm364, %v1828, %v1972
      %v1974 = vrot.slane %v1781, 1
      %v1975 = vsel %vm364, %v1829, %v1974
      %v1976 = vrot.slane %v1785, 1
      %v1977 = vsel %vm364, %v1830, %v1976
      %v1978 = vrot.slane %v1787, 1
      %v1979 = vsel %vm364, %v1831, %v1978
      %v1980 = vrot.slane %v1789, 1
      %v1981 = vsel %vm364, %v1832, %v1980
      %v1982 = vrot.slane %v1791, 1
      %v1983 = vsel %vm364, %v1833, %v1982
      %v1984 = vrot.slane %v1793, 1
      %v1985 = vsel %vm364, %v1834, %v1984
      %v1986 = vrot.slane %v1795, 1
      %v1987 = vsel %vm364, %v1835, %v1986
      %v1988 = vrot.slane %v1797, 1
      %v1989 = vsel %vm364, %v1836, %v1988
      %v1990 = vrot.slane %v1799, 1
      %v1991 = vsel %vm364, %v1837, %v1990
      %v1992 = vrot.slane %v1801, 1
      %v1993 = vsel %vm364, %v1838, %v1992
      %v1994 = vrot.slane %v1803, 1
      %v1995 = vsel %vm364, %v1839, %v1994
      %v1996 = vrot.slane %v1805, 1
      %v1997 = vsel %vm364, %v1840, %v1996
      %v1998 = vrot.slane %v1807, 1
      %v1999 = vsel %vm364, %v1841, %v1998
      %v2000 = vrot.slane %v1809, 1
      %v2001 = vsel %vm364, %v1842, %v2000
      %v2002 = vrot.slane %v1811, 1
      %v2003 = vsel %vm364, %v1843, %v2002
      %v2036 = vsel %vm364, %v1972, %v1877
      %v2037 = vsel %vm364, %v1974, %v1880
      %v2038 = vsel %vm364, %v1976, %v1883
      %v2039 = vsel %vm364, %v1978, %v1886
      %v2040 = vsel %vm364, %v1980, %v1889
      %v2041 = vsel %vm364, %v1982, %v1892
      %v2042 = vsel %vm364, %v1984, %v1895
      %v2043 = vsel %vm364, %v1986, %v1898
      %v2044 = vsel %vm364, %v1988, %v1901
      %v2045 = vsel %vm364, %v1990, %v1904
      %v2046 = vsel %vm364, %v1992, %v1907
      %v2047 = vsel %vm364, %v1994, %v1910
      %v2048 = vsel %vm364, %v1996, %v1913
      %v2049 = vsel %vm364, %v1998, %v1916
      %v2050 = vsel %vm364, %v2000, %v1919
      %v2051 = vsel %vm364, %v2002, %v1922
      %2052 = vrot.lane.b32.xlu0 %v1782, 4
      %v2053 = vpop.permute.xlu0 %2052
      %2054 = vrot.lane.b32.xlu0 %v1783, 4
      %v2055 = vpop.permute.xlu0 %2054
      %2056 = vrot.lane.b32.xlu0 %v1780, 4
      %v2057 = vpop.permute.xlu0 %2056
      %2058 = vrot.lane.b32.xlu0 %v1781, 4
      %v2059 = vpop.permute.xlu0 %2058
      %2060 = vrot.lane.b32.xlu0 %v1784, 4
      %v2061 = vpop.permute.xlu0 %2060
      %2062 = vrot.lane.b32.xlu0 %v1785, 4
      %v2063 = vpop.permute.xlu0 %2062
      %2064 = vrot.lane.b32.xlu0 %v1786, 4
      %v2065 = vpop.permute.xlu0 %2064
      %2066 = vrot.lane.b32.xlu0 %v1787, 4
      %v2067 = vpop.permute.xlu0 %2066
      %2068 = vrot.lane.b32.xlu0 %v1788, 4
      %v2069 = vpop.permute.xlu0 %2068
      %2070 = vrot.lane.b32.xlu0 %v1789, 4
      %v2071 = vpop.permute.xlu0 %2070
      %2072 = vrot.lane.b32.xlu0 %v1790, 4
      %v2073 = vpop.permute.xlu0 %2072
      %2074 = vrot.lane.b32.xlu0 %v1791, 4
      %v2075 = vpop.permute.xlu0 %2074
      %2076 = vrot.lane.b32.xlu0 %v1792, 4
      %v2077 = vpop.permute.xlu0 %2076
      %2078 = vrot.lane.b32.xlu0 %v1793, 4
      %v2079 = vpop.permute.xlu0 %2078
      %2080 = vrot.lane.b32.xlu0 %v1794, 4
      %v2081 = vpop.permute.xlu0 %2080
      %2082 = vrot.lane.b32.xlu0 %v1795, 4
      %v2083 = vpop.permute.xlu0 %2082
      %2084 = vrot.lane.b32.xlu0 %v1796, 4
      %v2085 = vpop.permute.xlu0 %2084
      %2086 = vrot.lane.b32.xlu0 %v1797, 4
      %v2087 = vpop.permute.xlu0 %2086
      %2088 = vrot.lane.b32.xlu0 %v1798, 4
      %v2089 = vpop.permute.xlu0 %2088
      %2090 = vrot.lane.b32.xlu0 %v1799, 4
      %v2091 = vpop.permute.xlu0 %2090
      %2092 = vrot.lane.b32.xlu0 %v1800, 4
      %v2093 = vpop.permute.xlu0 %2092
      %2094 = vrot.lane.b32.xlu0 %v1801, 4
      %v2095 = vpop.permute.xlu0 %2094
      %2096 = vrot.lane.b32.xlu0 %v1802, 4
      %v2097 = vpop.permute.xlu0 %2096
      %2098 = vrot.lane.b32.xlu0 %v1803, 4
      %v2099 = vpop.permute.xlu0 %2098
      %2100 = vrot.lane.b32.xlu0 %v1804, 4
      %v2101 = vpop.permute.xlu0 %2100
      %2102 = vrot.lane.b32.xlu0 %v1805, 4
      %v2103 = vpop.permute.xlu0 %2102
      %2104 = vrot.lane.b32.xlu0 %v1806, 4
      %v2105 = vpop.permute.xlu0 %2104
      %2106 = vrot.lane.b32.xlu0 %v1807, 4
      %v2107 = vpop.permute.xlu0 %2106
      %2108 = vrot.lane.b32.xlu0 %v1808, 4
      %v2109 = vpop.permute.xlu0 %2108
      %2110 = vrot.lane.b32.xlu0 %v1809, 4
      %v2111 = vpop.permute.xlu0 %2110
      %2112 = vrot.lane.b32.xlu0 %v1810, 4
      %v2113 = vpop.permute.xlu0 %2112
      %2114 = vrot.lane.b32.xlu0 %v1811, 4
      %v2115 = vpop.permute.xlu0 %2114
      %2164 = vrot.lane.b32.xlu0 %v1973, 8
      %v2165 = vpop.permute.xlu0 %2164
      %2166 = vrot.lane.b32.xlu0 %v2036, 8
      %v2167 = vpop.permute.xlu0 %2166
      %2168 = vrot.lane.b32.xlu0 %v1975, 8
      %v2169 = vpop.permute.xlu0 %2168
      %2170 = vrot.lane.b32.xlu0 %v2037, 8
      %v2171 = vpop.permute.xlu0 %2170
      %2172 = vrot.lane.b32.xlu0 %v1977, 8
      %v2173 = vpop.permute.xlu0 %2172
      %2174 = vrot.lane.b32.xlu0 %v2038, 8
      %v2175 = vpop.permute.xlu0 %2174
      %2176 = vrot.lane.b32.xlu0 %v1979, 8
      %v2177 = vpop.permute.xlu0 %2176
      %2178 = vrot.lane.b32.xlu0 %v2039, 8
      %v2179 = vpop.permute.xlu0 %2178
      %2180 = vrot.lane.b32.xlu0 %v1981, 8
      %v2181 = vpop.permute.xlu0 %2180
      %2182 = vrot.lane.b32.xlu0 %v2040, 8
      %v2183 = vpop.permute.xlu0 %2182
      %2184 = vrot.lane.b32.xlu0 %v1983, 8
      %v2185 = vpop.permute.xlu0 %2184
      %2186 = vrot.lane.b32.xlu0 %v2041, 8
      %v2187 = vpop.permute.xlu0 %2186
      %2188 = vrot.lane.b32.xlu0 %v1985, 8
      %v2189 = vpop.permute.xlu0 %2188
      %2190 = vrot.lane.b32.xlu0 %v2042, 8
      %v2191 = vpop.permute.xlu0 %2190
      %2192 = vrot.lane.b32.xlu0 %v1987, 8
      %v2193 = vpop.permute.xlu0 %2192
      %2194 = vrot.lane.b32.xlu0 %v2043, 8
      %v2195 = vpop.permute.xlu0 %2194
      %2196 = vrot.lane.b32.xlu0 %v1989, 8
      %v2197 = vpop.permute.xlu0 %2196
      %2198 = vrot.lane.b32.xlu0 %v2044, 8
      %v2199 = vpop.permute.xlu0 %2198
      %2200 = vrot.lane.b32.xlu0 %v1991, 8
      %v2201 = vpop.permute.xlu0 %2200
      %2202 = vrot.lane.b32.xlu0 %v2045, 8
      %v2203 = vpop.permute.xlu0 %2202
      %2204 = vrot.lane.b32.xlu0 %v1993, 8
      %v2205 = vpop.permute.xlu0 %2204
      %2206 = vrot.lane.b32.xlu0 %v2046, 8
      %v2207 = vpop.permute.xlu0 %2206
      %2208 = vrot.lane.b32.xlu0 %v1995, 8
      %v2209 = vpop.permute.xlu0 %2208
      %2210 = vrot.lane.b32.xlu0 %v2047, 8
      %v2211 = vpop.permute.xlu0 %2210
      %2212 = vrot.lane.b32.xlu0 %v1997, 8
      %v2213 = vpop.permute.xlu0 %2212
      %2214 = vrot.lane.b32.xlu0 %v2048, 8
      %v2215 = vpop.permute.xlu0 %2214
      %2216 = vrot.lane.b32.xlu0 %v1999, 8
      %v2217 = vpop.permute.xlu0 %2216
      %2218 = vrot.lane.b32.xlu0 %v2049, 8
      %v2219 = vpop.permute.xlu0 %2218
      %2220 = vrot.lane.b32.xlu0 %v2001, 8
      %v2221 = vpop.permute.xlu0 %2220
      %2222 = vrot.lane.b32.xlu0 %v2050, 8
      %v2223 = vpop.permute.xlu0 %2222
      %2224 = vrot.lane.b32.xlu0 %v2003, 8
      %v2225 = vpop.permute.xlu0 %2224
      %2226 = vrot.lane.b32.xlu0 %v2051, 8
      %v2227 = vpop.permute.xlu0 %2226
      %v2260 = vsel %vm653, %v1956, %v2053
      %v2261 = vsel %vm653, %v1878, %v2055
      %v2262 = vsel %vm653, %v1957, %v2057
      %v2263 = vsel %vm653, %v1881, %v2059
      %v2264 = vsel %vm653, %v1958, %v2061
      %v2265 = vsel %vm653, %v1884, %v2063
      %v2266 = vsel %vm653, %v1959, %v2065
      %v2267 = vsel %vm653, %v1887, %v2067
      %v2268 = vsel %vm653, %v1960, %v2069
      %v2269 = vsel %vm653, %v1890, %v2071
      %v2270 = vsel %vm653, %v1961, %v2073
      %v2271 = vsel %vm653, %v1893, %v2075
      %v2272 = vsel %vm653, %v1962, %v2077
      %v2273 = vsel %vm653, %v1896, %v2079
      %v2274 = vsel %vm653, %v1963, %v2081
      %v2275 = vsel %vm653, %v1899, %v2083
      %v2276 = vsel %vm653, %v1964, %v2085
      %v2277 = vsel %vm653, %v1902, %v2087
      %v2278 = vsel %vm653, %v1965, %v2089
      %v2279 = vsel %vm653, %v1905, %v2091
      %v2280 = vsel %vm653, %v1966, %v2093
      %v2281 = vsel %vm653, %v1908, %v2095
      %v2282 = vsel %vm653, %v1967, %v2097
      %v2283 = vsel %vm653, %v1911, %v2099
      %v2284 = vsel %vm653, %v1968, %v2101
      %v2285 = vsel %vm653, %v1914, %v2103
      %v2286 = vsel %vm653, %v1969, %v2105
      %v2287 = vsel %vm653, %v1917, %v2107
      %v2288 = vsel %vm653, %v1970, %v2109
      %v2289 = vsel %vm653, %v1920, %v2111
      %v2290 = vsel %vm653, %v1971, %v2113
      %v2291 = vsel %vm653, %v1923, %v2115
      %v2292 = vsel %vm686, %v2260, %v2165
      %v2293 = vsel %vm686, %v2261, %v2167
      %v2294 = vsel %vm686, %v2262, %v2169
      %v2295 = vsel %vm686, %v2263, %v2171
      %v2296 = vsel %vm686, %v2264, %v2173
      %v2297 = vsel %vm686, %v2265, %v2175
      %v2298 = vsel %vm686, %v2266, %v2177
      %v2299 = vsel %vm686, %v2267, %v2179
      %v2300 = vsel %vm686, %v2268, %v2181
      %v2301 = vsel %vm686, %v2269, %v2183
      %v2302 = vsel %vm686, %v2270, %v2185
      %v2303 = vsel %vm686, %v2271, %v2187
      %v2304 = vsel %vm686, %v2272, %v2189
      %v2305 = vsel %vm686, %v2273, %v2191
      %v2306 = vsel %vm686, %v2274, %v2193
      %v2307 = vsel %vm686, %v2275, %v2195
      %v2308 = vsel %vm686, %v2276, %v2197
      %v2309 = vsel %vm686, %v2277, %v2199
      %v2310 = vsel %vm686, %v2278, %v2201
      %v2311 = vsel %vm686, %v2279, %v2203
      %v2312 = vsel %vm686, %v2280, %v2205
      %v2313 = vsel %vm686, %v2281, %v2207
      %v2314 = vsel %vm686, %v2282, %v2209
      %v2315 = vsel %vm686, %v2283, %v2211
      %v2316 = vsel %vm686, %v2284, %v2213
      %v2317 = vsel %vm686, %v2285, %v2215
      %v2318 = vsel %vm686, %v2286, %v2217
      %v2319 = vsel %vm686, %v2287, %v2219
      %v2320 = vsel %vm686, %v2288, %v2221
      %v2321 = vsel %vm686, %v2289, %v2223
      %v2322 = vsel %vm686, %v2290, %v2225
      %v2323 = vsel %vm686, %v2291, %v2227
      %v2324 = vld [vmem:[%s2] sm:$0xff]
      %v2325 = vld [vmem:[%s2 + $0x8] sm:$0xf]
      %v2326 = vld [vmem:[%s2 + $0xc] sm:$0xff]
      %v2327 = vld [vmem:[%s2 + $0x14] sm:$0xf]
      %v2329 = vsel %vm723, %v2294, 0
      %v2332 = vsel %vm723, %v2295, 0
      %v2335 = vsel %vm723, %v2292, 0
      %v2338 = vsel %vm723, %v2293, 0
      %v2341 = vsel %vm723, %v2296, 0
      %v2344 = vsel %vm723, %v2297, 0
      %v2347 = vsel %vm723, %v2298, 0
      %v2350 = vsel %vm723, %v2299, 0
      %v2353 = vsel %vm723, %v2300, 0
      %v2356 = vsel %vm723, %v2301, 0
      %v2359 = vsel %vm723, %v2302, 0
      %v2362 = vsel %vm723, %v2303, 0
      %v2365 = vsel %vm723, %v2304, 0
      %v2368 = vsel %vm723, %v2305, 0
      %v2371 = vsel %vm723, %v2306, 0
      %v2374 = vsel %vm723, %v2307, 0
      %v2377 = vsel %vm723, %v2308, 0
      %v2380 = vsel %vm723, %v2309, 0
      %v2383 = vsel %vm723, %v2310, 0
      %v2386 = vsel %vm723, %v2311, 0
      %v2389 = vsel %vm723, %v2312, 0
      %v2392 = vsel %vm723, %v2313, 0
      %v2395 = vsel %vm723, %v2314, 0
      %v2398 = vsel %vm723, %v2315, 0
      %v2401 = vsel %vm723, %v2316, 0
      %v2404 = vsel %vm723, %v2317, 0
      %v2407 = vsel %vm723, %v2318, 0
      %v2410 = vsel %vm723, %v2319, 0
      %v2413 = vsel %vm723, %v2320, 0
      %v2416 = vsel %vm723, %v2321, 0
      %v2419 = vsel %vm723, %v2322, 0
      %v2422 = vsel %vm723, %v2323, 0
      %v2425 = vsel %vm820, %v2327, 0
      %2427 = vmatprep.subr.mxu0 0.0
      %2428 = vmatpush1.msra.mxu0 %v2326
      %2429 = vmatprep.subr.mxu0 0.0
      %2430 = vmatpush1.msra.mxu0 %v2425
      %2431 = vmatprep.subr.mxu0 0.0
      %2432 = vmatpush1.msra.mxu0 0.0
      %2433 = vmatprep.subr.mxu0 0.0
      %2434 = vmatpush1.msra.mxu0 0.0
      %2435 = vmatprep.subr.mxu0 0.0
      %2436 = vmatpush1.msra.mxu0 0.0
      %2437 = vmatprep.subr.mxu0 0.0
      %2438 = vmatpush1.msra.mxu0 0.0
      %2439 = vmatprep.subr.mxu0 0.0
      %2440 = vmatpush1.msra.mxu0 0.0
      %2441 = vmatprep.subr.mxu0 0.0
      %2442 = vmatpush1.msra.mxu0 0.0
      %2443 = vmatprep.subr.mxu0 0.0
      %2444 = vmatpush1.msra.mxu0 0.0
      %2445 = vmatprep.subr.mxu0 0.0
      %2446 = vmatpush1.msra.mxu0 0.0
      %2447 = vmatprep.subr.mxu0 0.0
      %2448 = vmatpush1.msra.mxu0 0.0
      %2449 = vmatprep.subr.mxu0 0.0
      %2450 = vmatpush1.msra.mxu0 0.0
      %2451 = vmatprep.subr.mxu0 0.0
      %2452 = vmatpush1.msra.mxu0 0.0
      %2453 = vmatprep.subr.mxu0 0.0
      %2454 = vmatpush1.msra.mxu0 0.0
      %2455 = vmatprep.subr.mxu0 0.0
      %2456 = vmatpush1.msra.mxu0 0.0
      %2457 = vmatprep.subr.mxu0 0.0
      %2458 = vmatpush1.msra.mxu0 0.0
      %2459 = vmatprep.subr.mxu0 0.0
      %2460 = vmatpush1.msra.mxu0 0.0
      %2461 = vmatprep.subr.mxu0 0.0
      %2462 = vmatpush1.msra.mxu0 0.0
      %2463 = vmatprep.subr.mxu0 0.0
      %2464 = vmatpush1.msra.mxu0 0.0
      %2465 = vmatprep.subr.mxu0 0.0
      %2466 = vmatpush1.msra.mxu0 0.0
      %2467 = vmatprep.subr.mxu0 0.0
      %2468 = vmatpush1.msra.mxu0 0.0
      %2469 = vmatprep.subr.mxu0 0.0
      %2470 = vmatpush1.msra.mxu0 0.0
      %2471 = vmatprep.subr.mxu0 0.0
      %2472 = vmatpush1.msra.mxu0 0.0
      %2473 = vmatprep.subr.mxu0 0.0
      %2474 = vmatpush1.msra.mxu0 0.0
      %2475 = vmatprep.subr.mxu0 0.0
      %2476 = vmatpush1.msra.mxu0 0.0
      %2477 = vmatprep.subr.mxu0 0.0
      %2478 = vmatpush1.msra.mxu0 0.0
      %2479 = vmatprep.subr.mxu0 0.0
      %2480 = vmatpush1.msra.mxu0 0.0
      %2481 = vmatprep.subr.mxu0 0.0
      %2482 = vmatpush1.msra.mxu0 0.0
      %2483 = vmatprep.subr.mxu0 0.0
      %2484 = vmatpush1.msra.mxu0 0.0
      %2485 = vmatprep.subr.mxu0 0.0
      %2486 = vmatpush1.msra.mxu0 0.0
      %2487 = vmatprep.subr.mxu0 0.0
      %2488 = vmatpush1.msra.mxu0 0.0
      %2489 = vmatprep.subr.mxu0 0.0
      %2490 = vmatpush1.msra.mxu0 0.0
      %2491 = vmatprep.mubr.f32.mxu0 0.0
      %2492 = vmatmul.mubr.f32.gmra.mrb[0].mxu0 %v2329
      %v2493 = vpop.f32.mrb[0].mxu0
      %v2494 = vadd.f32 0.0, %v2493
      %v2495 = vpop.f32.mrb[0].mxu0
      %2496 = vmatprep.mubr.f32.mxu0 0.0
      %2497 = vmatmul.mubr.f32.gmra.mrb[0].mxu0 %v2332
      %v2498 = vpop.f32.mrb[0].mxu0
      %v2499 = vadd.f32 0.0, %v2498
      %v2500 = vpop.f32.mrb[0].mxu0
      %2501 = vmatprep.mubr.f32.mxu0 0.0
      %2502 = vmatmul.mubr.f32.gmra.mrb[0].mxu0 %v2335
      %v2503 = vpop.f32.mrb[0].mxu0
      %v2504 = vadd.f32 0.0, %v2503
      %v2505 = vpop.f32.mrb[0].mxu0
      %2506 = vmatprep.mubr.f32.mxu0 0.0
      %2507 = vmatmul.mubr.f32.gmra.mrb[0].mxu0 %v2338
      %v2508 = vpop.f32.mrb[0].mxu0
      %v2509 = vadd.f32 0.0, %v2508
      %v2510 = vpop.f32.mrb[0].mxu0
      %2511 = vmatprep.mubr.f32.mxu0 0.0
      %2512 = vmatmul.mubr.f32.gmra.mrb[0].mxu0 %v2341
      %v2513 = vpop.f32.mrb[0].mxu0
      %v2514 = vadd.f32 0.0, %v2513
      %v2515 = vpop.f32.mrb[0].mxu0
      %2516 = vmatprep.mubr.f32.mxu0 0.0
      %2517 = vmatmul.mubr.f32.gmra.mrb[0].mxu0 %v2344
      %v2518 = vpop.f32.mrb[0].mxu0
      %v2519 = vadd.f32 0.0, %v2518
      %v2520 = vpop.f32.mrb[0].mxu0
      %2521 = vmatprep.mubr.f32.mxu0 0.0
      %2522 = vmatmul.mubr.f32.gmra.mrb[0].mxu0 %v2347
      %v2523 = vpop.f32.mrb[0].mxu0
      %v2524 = vadd.f32 0.0, %v2523
      %v2525 = vpop.f32.mrb[0].mxu0
      %2526 = vmatprep.mubr.f32.mxu0 0.0
      %2527 = vmatmul.mubr.f32.gmra.mrb[0].mxu0 %v2350
      %v2528 = vpop.f32.mrb[0].mxu0
      %v2529 = vadd.f32 0.0, %v2528
      %v2530 = vpop.f32.mrb[0].mxu0
      %2531 = vmatprep.mubr.f32.mxu0 0.0
      %2532 = vmatmul.mubr.f32.gmra.mrb[0].mxu0 %v2353
      %v2533 = vpop.f32.mrb[0].mxu0
      %v2534 = vadd.f32 0.0, %v2533
      %v2535 = vpop.f32.mrb[0].mxu0
      %2536 = vmatprep.mubr.f32.mxu0 0.0
      %2537 = vmatmul.mubr.f32.gmra.mrb[0].mxu0 %v2356
      %v2538 = vpop.f32.mrb[0].mxu0
      %v2539 = vadd.f32 0.0, %v2538
      %v2540 = vpop.f32.mrb[0].mxu0
      %2541 = vmatprep.mubr.f32.mxu0 0.0
      %2542 = vmatmul.mubr.f32.gmra.mrb[0].mxu0 %v2359
      %v2543 = vpop.f32.mrb[0].mxu0
      %v2544 = vadd.f32 0.0, %v2543
      %v2545 = vpop.f32.mrb[0].mxu0
      %2546 = vmatprep.mubr.f32.mxu0 0.0
      %2547 = vmatmul.mubr.f32.gmra.mrb[0].mxu0 %v2362
      %v2548 = vpop.f32.mrb[0].mxu0
      %v2549 = vadd.f32 0.0, %v2548
      %v2550 = vpop.f32.mrb[0].mxu0
      %2551 = vmatprep.mubr.f32.mxu0 0.0
      %2552 = vmatmul.mubr.f32.gmra.mrb[0].mxu0 %v2365
      %v2553 = vpop.f32.mrb[0].mxu0
      %v2554 = vadd.f32 0.0, %v2553
      %v2555 = vpop.f32.mrb[0].mxu0
      %2556 = vmatprep.mubr.f32.mxu0 0.0
      %2557 = vmatmul.mubr.f32.gmra.mrb[0].mxu0 %v2368
      %v2558 = vpop.f32.mrb[0].mxu0
      %v2559 = vadd.f32 0.0, %v2558
      %v2560 = vpop.f32.mrb[0].mxu0
      %2561 = vmatprep.mubr.f32.mxu0 0.0
      %2562 = vmatmul.mubr.f32.gmra.mrb[0].mxu0 %v2371
      %v2563 = vpop.f32.mrb[0].mxu0
      %v2564 = vadd.f32 0.0, %v2563
      %v2565 = vpop.f32.mrb[0].mxu0
      %2566 = vmatprep.mubr.f32.mxu0 0.0
      %2567 = vmatmul.mubr.f32.gmra.mrb[0].mxu0 %v2374
      %v2568 = vpop.f32.mrb[0].mxu0
      %v2569 = vadd.f32 0.0, %v2568
      %v2570 = vpop.f32.mrb[0].mxu0
      %2571 = vmatprep.mubr.f32.mxu0 0.0
      %2572 = vmatmul.mubr.f32.gmra.mrb[0].mxu0 %v2377
      %v2573 = vpop.f32.mrb[0].mxu0
      %v2574 = vadd.f32 0.0, %v2573
      %v2575 = vpop.f32.mrb[0].mxu0
      %2576 = vmatprep.mubr.f32.mxu0 0.0
      %2577 = vmatmul.mubr.f32.gmra.mrb[0].mxu0 %v2380
      %v2578 = vpop.f32.mrb[0].mxu0
      %v2579 = vadd.f32 0.0, %v2578
      %v2580 = vpop.f32.mrb[0].mxu0
      %2581 = vmatprep.mubr.f32.mxu0 0.0
      %2582 = vmatmul.mubr.f32.gmra.mrb[0].mxu0 %v2383
      %v2583 = vpop.f32.mrb[0].mxu0
      %v2584 = vadd.f32 0.0, %v2583
      %v2585 = vpop.f32.mrb[0].mxu0
      %2586 = vmatprep.mubr.f32.mxu0 0.0
      %2587 = vmatmul.mubr.f32.gmra.mrb[0].mxu0 %v2386
      %v2588 = vpop.f32.mrb[0].mxu0
      %v2589 = vadd.f32 0.0, %v2588
      %v2590 = vpop.f32.mrb[0].mxu0
      %2591 = vmatprep.mubr.f32.mxu0 0.0
      %2592 = vmatmul.mubr.f32.gmra.mrb[0].mxu0 %v2389
      %v2593 = vpop.f32.mrb[0].mxu0
      %v2594 = vadd.f32 0.0, %v2593
      %v2595 = vpop.f32.mrb[0].mxu0
      %2596 = vmatprep.mubr.f32.mxu0 0.0
      %2597 = vmatmul.mubr.f32.gmra.mrb[0].mxu0 %v2392
      %v2598 = vpop.f32.mrb[0].mxu0
      %v2599 = vadd.f32 0.0, %v2598
      %v2600 = vpop.f32.mrb[0].mxu0
      %2601 = vmatprep.mubr.f32.mxu0 0.0
      %2602 = vmatmul.mubr.f32.gmra.mrb[0].mxu0 %v2395
      %v2603 = vpop.f32.mrb[0].mxu0
      %v2604 = vadd.f32 0.0, %v2603
      %v2605 = vpop.f32.mrb[0].mxu0
      %2606 = vmatprep.mubr.f32.mxu0 0.0
      %2607 = vmatmul.mubr.f32.gmra.mrb[0].mxu0 %v2398
      %v2608 = vpop.f32.mrb[0].mxu0
      %v2609 = vadd.f32 0.0, %v2608
      %v2610 = vpop.f32.mrb[0].mxu0
      %2611 = vmatprep.mubr.f32.mxu0 0.0
      %2612 = vmatmul.mubr.f32.gmra.mrb[0].mxu0 %v2401
      %v2613 = vpop.f32.mrb[0].mxu0
      %v2614 = vadd.f32 0.0, %v2613
      %v2615 = vpop.f32.mrb[0].mxu0
      %2616 = vmatprep.mubr.f32.mxu0 0.0
      %2617 = vmatmul.mubr.f32.gmra.mrb[0].mxu0 %v2404
      %v2618 = vpop.f32.mrb[0].mxu0
      %v2619 = vadd.f32 0.0, %v2618
      %v2620 = vpop.f32.mrb[0].mxu0
      %2621 = vmatprep.mubr.f32.mxu0 0.0
      %2622 = vmatmul.mubr.f32.gmra.mrb[0].mxu0 %v2407
      %v2623 = vpop.f32.mrb[0].mxu0
      %v2624 = vadd.f32 0.0, %v2623
      %v2625 = vpop.f32.mrb[0].mxu0
      %2626 = vmatprep.mubr.f32.mxu0 0.0
      %2627 = vmatmul.mubr.f32.gmra.mrb[0].mxu0 %v2410
      %v2628 = vpop.f32.mrb[0].mxu0
      %v2629 = vadd.f32 0.0, %v2628
      %v2630 = vpop.f32.mrb[0].mxu0
      %2631 = vmatprep.mubr.f32.mxu0 0.0
      %2632 = vmatmul.mubr.f32.gmra.mrb[0].mxu0 %v2413
      %v2633 = vpop.f32.mrb[0].mxu0
      %v2634 = vadd.f32 0.0, %v2633
      %v2635 = vpop.f32.mrb[0].mxu0
      %2636 = vmatprep.mubr.f32.mxu0 0.0
      %2637 = vmatmul.mubr.f32.gmra.mrb[0].mxu0 %v2416
      %v2638 = vpop.f32.mrb[0].mxu0
      %v2639 = vadd.f32 0.0, %v2638
      %v2640 = vpop.f32.mrb[0].mxu0
      %2641 = vmatprep.mubr.f32.mxu0 0.0
      %2642 = vmatmul.mubr.f32.gmra.mrb[0].mxu0 %v2419
      %v2643 = vpop.f32.mrb[0].mxu0
      %v2644 = vadd.f32 0.0, %v2643
      %v2645 = vpop.f32.mrb[0].mxu0
      %2646 = vmatprep.mubr.f32.mxu0 0.0
      %2647 = vmatmul.mubr.f32.gmra.mrb[0].mxu0 %v2422
      %v2648 = vpop.f32.mrb[0].mxu0
      %v2649 = vadd.f32 0.0, %v2648
      %v2650 = vpop.f32.mrb[0].mxu0
      %2651 = vdwg.mxu0
      %v2653 = vsel %vm820, %v2325, 0
      %2655 = vmatprep.subr.mxu0 0.0
      %2656 = vmatpush1.msra.mxu0 %v2324
      %2657 = vmatprep.subr.mxu0 0.0
      %2658 = vmatpush1.msra.mxu0 %v2653
      %2659 = vmatprep.subr.mxu0 0.0
      %2660 = vmatpush1.msra.mxu0 0.0
      %2661 = vmatprep.subr.mxu0 0.0
      %2662 = vmatpush1.msra.mxu0 0.0
      %2663 = vmatprep.subr.mxu0 0.0
      %2664 = vmatpush1.msra.mxu0 0.0
      %2665 = vmatprep.subr.mxu0 0.0
      %2666 = vmatpush1.msra.mxu0 0.0
      %2667 = vmatprep.subr.mxu0 0.0
      %2668 = vmatpush1.msra.mxu0 0.0
      %2669 = vmatprep.subr.mxu0 0.0
      %2670 = vmatpush1.msra.mxu0 0.0
      %2671 = vmatprep.subr.mxu0 0.0
      %2672 = vmatpush1.msra.mxu0 0.0
      %2673 = vmatprep.subr.mxu0 0.0
      %2674 = vmatpush1.msra.mxu0 0.0
      %2675 = vmatprep.subr.mxu0 0.0
      %2676 = vmatpush1.msra.mxu0 0.0
      %2677 = vmatprep.subr.mxu0 0.0
      %2678 = vmatpush1.msra.mxu0 0.0
      %2679 = vmatprep.subr.mxu0 0.0
      %2680 = vmatpush1.msra.mxu0 0.0
      %2681 = vmatprep.subr.mxu0 0.0
      %2682 = vmatpush1.msra.mxu0 0.0
      %2683 = vmatprep.subr.mxu0 0.0
      %2684 = vmatpush1.msra.mxu0 0.0
      %2685 = vmatprep.subr.mxu0 0.0
      %2686 = vmatpush1.msra.mxu0 0.0
      %2687 = vmatprep.subr.mxu0 0.0
      %2688 = vmatpush1.msra.mxu0 0.0
      %2689 = vmatprep.subr.mxu0 0.0
      %2690 = vmatpush1.msra.mxu0 0.0
      %2691 = vmatprep.subr.mxu0 0.0
      %2692 = vmatpush1.msra.mxu0 0.0
      %2693 = vmatprep.subr.mxu0 0.0
      %2694 = vmatpush1.msra.mxu0 0.0
      %2695 = vmatprep.subr.mxu0 0.0
      %2696 = vmatpush1.msra.mxu0 0.0
      %2697 = vmatprep.subr.mxu0 0.0
      %2698 = vmatpush1.msra.mxu0 0.0
      %2699 = vmatprep.subr.mxu0 0.0
      %2700 = vmatpush1.msra.mxu0 0.0
      %2701 = vmatprep.subr.mxu0 0.0
      %2702 = vmatpush1.msra.mxu0 0.0
      %2703 = vmatprep.subr.mxu0 0.0
      %2704 = vmatpush1.msra.mxu0 0.0
      %2705 = vmatprep.subr.mxu0 0.0
      %2706 = vmatpush1.msra.mxu0 0.0
      %2707 = vmatprep.subr.mxu0 0.0
      %2708 = vmatpush1.msra.mxu0 0.0
      %2709 = vmatprep.subr.mxu0 0.0
      %2710 = vmatpush1.msra.mxu0 0.0
      %2711 = vmatprep.subr.mxu0 0.0
      %2712 = vmatpush1.msra.mxu0 0.0
      %2713 = vmatprep.subr.mxu0 0.0
      %2714 = vmatpush1.msra.mxu0 0.0
      %2715 = vmatprep.subr.mxu0 0.0
      %2716 = vmatpush1.msra.mxu0 0.0
      %2717 = vmatprep.subr.mxu0 0.0
      %2718 = vmatpush1.msra.mxu0 0.0
      %2719 = vmatprep.mubr.f32.mxu0 0.0
      %2720 = vmatmul.mubr.f32.gmra.mrb[0].mxu0 %v2335
      %v2721 = vpop.f32.mrb[0].mxu0
      %v2722 = vadd.f32 %v2494, %v2721
      %v2723 = vpop.f32.mrb[0].mxu0
      %2724 = vmatprep.mubr.f32.mxu0 0.0
      %2725 = vmatmul.mubr.f32.gmra.mrb[0].mxu0 %v2338
      %v2726 = vpop.f32.mrb[0].mxu0
      %v2727 = vadd.f32 %v2499, %v2726
      %v2728 = vpop.f32.mrb[0].mxu0
      %2729 = vmatprep.mubr.f32.mxu0 0.0
      %2730 = vmatmul.mubr.f32.gmra.mrb[0].mxu0 %v2329
      %v2731 = vpop.f32.mrb[0].mxu0
      %v2732 = vadd.f32 %v2504, %v2731
      %v2733 = vpop.f32.mrb[0].mxu0
      %2734 = vmatprep.mubr.f32.mxu0 0.0
      %2735 = vmatmul.mubr.f32.gmra.mrb[0].mxu0 %v2332
      %v2736 = vpop.f32.mrb[0].mxu0
      %v2737 = vadd.f32 %v2509, %v2736
      %v2738 = vpop.f32.mrb[0].mxu0
      %2739 = vmatprep.mubr.f32.mxu0 0.0
      %2740 = vmatmul.mubr.f32.gmra.mrb[0].mxu0 %v2335
      %v2741 = vpop.f32.mrb[0].mxu0
      %v2742 = vadd.f32 %v2514, %v2741
      %v2743 = vpop.f32.mrb[0].mxu0
      %2744 = vmatprep.mubr.f32.mxu0 0.0
      %2745 = vmatmul.mubr.f32.gmra.mrb[0].mxu0 %v2338
      %v2746 = vpop.f32.mrb[0].mxu0
      %v2747 = vadd.f32 %v2519, %v2746
      %v2748 = vpop.f32.mrb[0].mxu0
      %2749 = vmatprep.mubr.f32.mxu0 0.0
      %2750 = vmatmul.mubr.f32.gmra.mrb[0].mxu0 %v2341
      %v2751 = vpop.f32.mrb[0].mxu0
      %v2752 = vadd.f32 %v2524, %v2751
      %v2753 = vpop.f32.mrb[0].mxu0
      %2754 = vmatprep.mubr.f32.mxu0 0.0
      %2755 = vmatmul.mubr.f32.gmra.mrb[0].mxu0 %v2344
      %v2756 = vpop.f32.mrb[0].mxu0
      %v2757 = vadd.f32 %v2529, %v2756
      %v2758 = vpop.f32.mrb[0].mxu0
      %2759 = vmatprep.mubr.f32.mxu0 0.0
      %2760 = vmatmul.mubr.f32.gmra.mrb[0].mxu0 %v2347
      %v2761 = vpop.f32.mrb[0].mxu0
      %v2762 = vadd.f32 %v2534, %v2761
      %v2763 = vpop.f32.mrb[0].mxu0
      %2764 = vmatprep.mubr.f32.mxu0 0.0
      %2765 = vmatmul.mubr.f32.gmra.mrb[0].mxu0 %v2350
      %v2766 = vpop.f32.mrb[0].mxu0
      %v2767 = vadd.f32 %v2539, %v2766
      %v2768 = vpop.f32.mrb[0].mxu0
      %2769 = vmatprep.mubr.f32.mxu0 0.0
      %2770 = vmatmul.mubr.f32.gmra.mrb[0].mxu0 %v2353
      %v2771 = vpop.f32.mrb[0].mxu0
      %v2772 = vadd.f32 %v2544, %v2771
      %v2773 = vpop.f32.mrb[0].mxu0
      %2774 = vmatprep.mubr.f32.mxu0 0.0
      %2775 = vmatmul.mubr.f32.gmra.mrb[0].mxu0 %v2356
      %v2776 = vpop.f32.mrb[0].mxu0
      %v2777 = vadd.f32 %v2549, %v2776
      %v2778 = vpop.f32.mrb[0].mxu0
      %2779 = vmatprep.mubr.f32.mxu0 0.0
      %2780 = vmatmul.mubr.f32.gmra.mrb[0].mxu0 %v2359
      %v2781 = vpop.f32.mrb[0].mxu0
      %v2782 = vadd.f32 %v2554, %v2781
      %v2783 = vpop.f32.mrb[0].mxu0
      %2784 = vmatprep.mubr.f32.mxu0 0.0
      %2785 = vmatmul.mubr.f32.gmra.mrb[0].mxu0 %v2362
      %v2786 = vpop.f32.mrb[0].mxu0
      %v2787 = vadd.f32 %v2559, %v2786
      %v2788 = vpop.f32.mrb[0].mxu0
      %2789 = vmatprep.mubr.f32.mxu0 0.0
      %2790 = vmatmul.mubr.f32.gmra.mrb[0].mxu0 %v2365
      %v2791 = vpop.f32.mrb[0].mxu0
      %v2792 = vadd.f32 %v2564, %v2791
      %v2793 = vpop.f32.mrb[0].mxu0
      %2794 = vmatprep.mubr.f32.mxu0 0.0
      %2795 = vmatmul.mubr.f32.gmra.mrb[0].mxu0 %v2368
      %v2796 = vpop.f32.mrb[0].mxu0
      %v2797 = vadd.f32 %v2569, %v2796
      %v2798 = vpop.f32.mrb[0].mxu0
      %2799 = vmatprep.mubr.f32.mxu0 0.0
      %2800 = vmatmul.mubr.f32.gmra.mrb[0].mxu0 %v2371
      %v2801 = vpop.f32.mrb[0].mxu0
      %v2802 = vadd.f32 %v2574, %v2801
      %v2803 = vpop.f32.mrb[0].mxu0
      %2804 = vmatprep.mubr.f32.mxu0 0.0
      %2805 = vmatmul.mubr.f32.gmra.mrb[0].mxu0 %v2374
      %v2806 = vpop.f32.mrb[0].mxu0
      %v2807 = vadd.f32 %v2579, %v2806
      %v2808 = vpop.f32.mrb[0].mxu0
      %2809 = vmatprep.mubr.f32.mxu0 0.0
      %2810 = vmatmul.mubr.f32.gmra.mrb[0].mxu0 %v2377
      %v2811 = vpop.f32.mrb[0].mxu0
      %v2812 = vadd.f32 %v2584, %v2811
      %v2813 = vpop.f32.mrb[0].mxu0
      %2814 = vmatprep.mubr.f32.mxu0 0.0
      %2815 = vmatmul.mubr.f32.gmra.mrb[0].mxu0 %v2380
      %v2816 = vpop.f32.mrb[0].mxu0
      %v2817 = vadd.f32 %v2589, %v2816
      %v2818 = vpop.f32.mrb[0].mxu0
      %2819 = vmatprep.mubr.f32.mxu0 0.0
      %2820 = vmatmul.mubr.f32.gmra.mrb[0].mxu0 %v2383
      %v2821 = vpop.f32.mrb[0].mxu0
      %v2822 = vadd.f32 %v2594, %v2821
      %v2823 = vpop.f32.mrb[0].mxu0
      %2824 = vmatprep.mubr.f32.mxu0 0.0
      %2825 = vmatmul.mubr.f32.gmra.mrb[0].mxu0 %v2386
      %v2826 = vpop.f32.mrb[0].mxu0
      %v2827 = vadd.f32 %v2599, %v2826
      %v2828 = vpop.f32.mrb[0].mxu0
      %2829 = vmatprep.mubr.f32.mxu0 0.0
      %2830 = vmatmul.mubr.f32.gmra.mrb[0].mxu0 %v2389
      %v2831 = vpop.f32.mrb[0].mxu0
      %v2832 = vadd.f32 %v2604, %v2831
      %v2833 = vpop.f32.mrb[0].mxu0
      %2834 = vmatprep.mubr.f32.mxu0 0.0
      %2835 = vmatmul.mubr.f32.gmra.mrb[0].mxu0 %v2392
      %v2836 = vpop.f32.mrb[0].mxu0
      %v2837 = vadd.f32 %v2609, %v2836
      %v2838 = vpop.f32.mrb[0].mxu0
      %2839 = vmatprep.mubr.f32.mxu0 0.0
      %2840 = vmatmul.mubr.f32.gmra.mrb[0].mxu0 %v2395
      %v2841 = vpop.f32.mrb[0].mxu0
      %v2842 = vadd.f32 %v2614, %v2841
      %v2843 = vpop.f32.mrb[0].mxu0
      %2844 = vmatprep.mubr.f32.mxu0 0.0
      %2845 = vmatmul.mubr.f32.gmra.mrb[0].mxu0 %v2398
      %v2846 = vpop.f32.mrb[0].mxu0
      %v2847 = vadd.f32 %v2619, %v2846
      %v2848 = vpop.f32.mrb[0].mxu0
      %2849 = vmatprep.mubr.f32.mxu0 0.0
      %2850 = vmatmul.mubr.f32.gmra.mrb[0].mxu0 %v2401
      %v2851 = vpop.f32.mrb[0].mxu0
      %v2852 = vadd.f32 %v2624, %v2851
      %v2853 = vpop.f32.mrb[0].mxu0
      %2854 = vmatprep.mubr.f32.mxu0 0.0
      %2855 = vmatmul.mubr.f32.gmra.mrb[0].mxu0 %v2404
      %v2856 = vpop.f32.mrb[0].mxu0
      %v2857 = vadd.f32 %v2629, %v2856
      %v2858 = vpop.f32.mrb[0].mxu0
      %2859 = vmatprep.mubr.f32.mxu0 0.0
      %2860 = vmatmul.mubr.f32.gmra.mrb[0].mxu0 %v2407
      %v2861 = vpop.f32.mrb[0].mxu0
      %v2862 = vadd.f32 %v2634, %v2861
      %v2863 = vpop.f32.mrb[0].mxu0
      %2864 = vmatprep.mubr.f32.mxu0 0.0
      %2865 = vmatmul.mubr.f32.gmra.mrb[0].mxu0 %v2410
      %v2866 = vpop.f32.mrb[0].mxu0
      %v2867 = vadd.f32 %v2639, %v2866
      %v2868 = vpop.f32.mrb[0].mxu0
      %2869 = vmatprep.mubr.f32.mxu0 0.0
      %2870 = vmatmul.mubr.f32.gmra.mrb[0].mxu0 %v2413
      %v2871 = vpop.f32.mrb[0].mxu0
      %v2872 = vadd.f32 %v2644, %v2871
      %v2873 = vpop.f32.mrb[0].mxu0
      %2874 = vmatprep.mubr.f32.mxu0 0.0
      %2875 = vmatmul.mubr.f32.gmra.mrb[0].mxu0 %v2416
      %v2876 = vpop.f32.mrb[0].mxu0
      %v2877 = vadd.f32 %v2649, %v2876
      %v2878 = vpop.f32.mrb[0].mxu0
      %2879 = vdwg.mxu0
      %v2880 = vld [vmem:[%s2 + $0x18] sm:$0xff]
      %v2881 = vld [vmem:[%s2 + $0x20] sm:$0xf]
      %v2883 = vsel %vm820, %v2881, 0
      %2885 = vmatprep.subr.mxu0 0.0
      %2886 = vmatpush1.msra.mxu0 %v2880
      %2887 = vmatprep.subr.mxu0 0.0
      %2888 = vmatpush1.msra.mxu0 %v2883
      %2889 = vmatprep.subr.mxu0 0.0
      %2890 = vmatpush1.msra.mxu0 0.0
      %2891 = vmatprep.subr.mxu0 0.0
      %2892 = vmatpush1.msra.mxu0 0.0
      %2893 = vmatprep.subr.mxu0 0.0
      %2894 = vmatpush1.msra.mxu0 0.0
      %2895 = vmatprep.subr.mxu0 0.0
      %2896 = vmatpush1.msra.mxu0 0.0
      %2897 = vmatprep.subr.mxu0 0.0
      %2898 = vmatpush1.msra.mxu0 0.0
      %2899 = vmatprep.subr.mxu0 0.0
      %2900 = vmatpush1.msra.mxu0 0.0
      %2901 = vmatprep.subr.mxu0 0.0
      %2902 = vmatpush1.msra.mxu0 0.0
      %2903 = vmatprep.subr.mxu0 0.0
      %2904 = vmatpush1.msra.mxu0 0.0
      %2905 = vmatprep.subr.mxu0 0.0
      %2906 = vmatpush1.msra.mxu0 0.0
      %2907 = vmatprep.subr.mxu0 0.0
      %2908 = vmatpush1.msra.mxu0 0.0
      %2909 = vmatprep.subr.mxu0 0.0
      %2910 = vmatpush1.msra.mxu0 0.0
      %2911 = vmatprep.subr.mxu0 0.0
      %2912 = vmatpush1.msra.mxu0 0.0
      %2913 = vmatprep.subr.mxu0 0.0
      %2914 = vmatpush1.msra.mxu0 0.0
      %2915 = vmatprep.subr.mxu0 0.0
      %2916 = vmatpush1.msra.mxu0 0.0
      %2917 = vmatprep.subr.mxu0 0.0
      %2918 = vmatpush1.msra.mxu0 0.0
      %2919 = vmatprep.subr.mxu0 0.0
      %2920 = vmatpush1.msra.mxu0 0.0
      %2921 = vmatprep.subr.mxu0 0.0
      %2922 = vmatpush1.msra.mxu0 0.0
      %2923 = vmatprep.subr.mxu0 0.0
      %2924 = vmatpush1.msra.mxu0 0.0
      %2925 = vmatprep.subr.mxu0 0.0
      %2926 = vmatpush1.msra.mxu0 0.0
      %2927 = vmatprep.subr.mxu0 0.0
      %2928 = vmatpush1.msra.mxu0 0.0
      %2929 = vmatprep.subr.mxu0 0.0
      %2930 = vmatpush1.msra.mxu0 0.0
      %2931 = vmatprep.subr.mxu0 0.0
      %2932 = vmatpush1.msra.mxu0 0.0
      %2933 = vmatprep.subr.mxu0 0.0
      %2934 = vmatpush1.msra.mxu0 0.0
      %2935 = vmatprep.subr.mxu0 0.0
      %2936 = vmatpush1.msra.mxu0 0.0
      %2937 = vmatprep.subr.mxu0 0.0
      %2938 = vmatpush1.msra.mxu0 0.0
      %2939 = vmatprep.subr.mxu0 0.0
      %2940 = vmatpush1.msra.mxu0 0.0
      %2941 = vmatprep.subr.mxu0 0.0
      %2942 = vmatpush1.msra.mxu0 0.0
      %2943 = vmatprep.subr.mxu0 0.0
      %2944 = vmatpush1.msra.mxu0 0.0
      %2945 = vmatprep.subr.mxu0 0.0
      %2946 = vmatpush1.msra.mxu0 0.0
      %2947 = vmatprep.subr.mxu0 0.0
      %2948 = vmatpush1.msra.mxu0 0.0
      %2949 = vmatprep.mubr.f32.mxu0 0.0
      %2950 = vmatmul.mubr.f32.gmra.mrb[0].mxu0 %v2335
      %v2951 = vpop.f32.mrb[0].mxu0
      %v2952 = vadd.f32 0.0, %v2951
      %v2953 = vpop.f32.mrb[0].mxu0
      %2954 = vmatprep.mubr.f32.mxu0 0.0
      %2955 = vmatmul.mubr.f32.gmra.mrb[0].mxu0 %v2338
      %v2956 = vpop.f32.mrb[0].mxu0
      %v2957 = vadd.f32 0.0, %v2956
      %v2958 = vpop.f32.mrb[0].mxu0
      %2959 = vmatprep.mubr.f32.mxu0 0.0
      %2960 = vmatmul.mubr.f32.gmra.mrb[0].mxu0 %v2341
      %v2961 = vpop.f32.mrb[0].mxu0
      %v2962 = vadd.f32 0.0, %v2961
      %v2963 = vpop.f32.mrb[0].mxu0
      %2964 = vmatprep.mubr.f32.mxu0 0.0
      %2965 = vmatmul.mubr.f32.gmra.mrb[0].mxu0 %v2344
      %v2966 = vpop.f32.mrb[0].mxu0
      %v2967 = vadd.f32 0.0, %v2966
      %v2968 = vpop.f32.mrb[0].mxu0
      %2969 = vmatprep.mubr.f32.mxu0 0.0
      %2970 = vmatmul.mubr.f32.gmra.mrb[0].mxu0 %v2347
      %v2971 = vpop.f32.mrb[0].mxu0
      %v2972 = vadd.f32 0.0, %v2971
      %v2973 = vpop.f32.mrb[0].mxu0
      %2974 = vmatprep.mubr.f32.mxu0 0.0
      %2975 = vmatmul.mubr.f32.gmra.mrb[0].mxu0 %v2350
      %v2976 = vpop.f32.mrb[0].mxu0
      %v2977 = vadd.f32 0.0, %v2976
      %v2978 = vpop.f32.mrb[0].mxu0
      %2979 = vmatprep.mubr.f32.mxu0 0.0
      %2980 = vmatmul.mubr.f32.gmra.mrb[0].mxu0 %v2353
      %v2981 = vpop.f32.mrb[0].mxu0
      %v2982 = vadd.f32 0.0, %v2981
      %v2983 = vpop.f32.mrb[0].mxu0
      %2984 = vmatprep.mubr.f32.mxu0 0.0
      %2985 = vmatmul.mubr.f32.gmra.mrb[0].mxu0 %v2356
      %v2986 = vpop.f32.mrb[0].mxu0
      %v2987 = vadd.f32 0.0, %v2986
      %v2988 = vpop.f32.mrb[0].mxu0
      %2989 = vmatprep.mubr.f32.mxu0 0.0
      %2990 = vmatmul.mubr.f32.gmra.mrb[0].mxu0 %v2359
      %v2991 = vpop.f32.mrb[0].mxu0
      %v2992 = vadd.f32 0.0, %v2991
      %v2993 = vpop.f32.mrb[0].mxu0
      %2994 = vmatprep.mubr.f32.mxu0 0.0
      %2995 = vmatmul.mubr.f32.gmra.mrb[0].mxu0 %v2362
      %v2996 = vpop.f32.mrb[0].mxu0
      %v2997 = vadd.f32 0.0, %v2996
      %v2998 = vpop.f32.mrb[0].mxu0
      %2999 = vmatprep.mubr.f32.mxu0 0.0
      %3000 = vmatmul.mubr.f32.gmra.mrb[0].mxu0 %v2365
      %v3001 = vpop.f32.mrb[0].mxu0
      %v3002 = vadd.f32 0.0, %v3001
      %v3003 = vpop.f32.mrb[0].mxu0
      %3004 = vmatprep.mubr.f32.mxu0 0.0
      %3005 = vmatmul.mubr.f32.gmra.mrb[0].mxu0 %v2368
      %v3006 = vpop.f32.mrb[0].mxu0
      %v3007 = vadd.f32 0.0, %v3006
      %v3008 = vpop.f32.mrb[0].mxu0
      %3009 = vmatprep.mubr.f32.mxu0 0.0
      %3010 = vmatmul.mubr.f32.gmra.mrb[0].mxu0 %v2371
      %v3011 = vpop.f32.mrb[0].mxu0
      %v3012 = vadd.f32 0.0, %v3011
      %v3013 = vpop.f32.mrb[0].mxu0
      %3014 = vmatprep.mubr.f32.mxu0 0.0
      %3015 = vmatmul.mubr.f32.gmra.mrb[0].mxu0 %v2374
      %v3016 = vpop.f32.mrb[0].mxu0
      %v3017 = vadd.f32 0.0, %v3016
      %v3018 = vpop.f32.mrb[0].mxu0
      %3019 = vmatprep.mubr.f32.mxu0 0.0
      %3020 = vmatmul.mubr.f32.gmra.mrb[0].mxu0 %v2377
      %v3021 = vpop.f32.mrb[0].mxu0
      %v3022 = vadd.f32 0.0, %v3021
      %v3023 = vpop.f32.mrb[0].mxu0
      %3024 = vmatprep.mubr.f32.mxu0 0.0
      %3025 = vmatmul.mubr.f32.gmra.mrb[0].mxu0 %v2380
      %v3026 = vpop.f32.mrb[0].mxu0
      %v3027 = vadd.f32 0.0, %v3026
      %v3028 = vpop.f32.mrb[0].mxu0
      %3029 = vmatprep.mubr.f32.mxu0 0.0
      %3030 = vmatmul.mubr.f32.gmra.mrb[0].mxu0 %v2383
      %v3031 = vpop.f32.mrb[0].mxu0
      %v3032 = vadd.f32 0.0, %v3031
      %v3033 = vpop.f32.mrb[0].mxu0
      %3034 = vmatprep.mubr.f32.mxu0 0.0
      %3035 = vmatmul.mubr.f32.gmra.mrb[0].mxu0 %v2386
      %v3036 = vpop.f32.mrb[0].mxu0
      %v3037 = vadd.f32 0.0, %v3036
      %v3038 = vpop.f32.mrb[0].mxu0
      %3039 = vmatprep.mubr.f32.mxu0 0.0
      %3040 = vmatmul.mubr.f32.gmra.mrb[0].mxu0 %v2389
      %v3041 = vpop.f32.mrb[0].mxu0
      %v3042 = vadd.f32 0.0, %v3041
      %v3043 = vpop.f32.mrb[0].mxu0
      %3044 = vmatprep.mubr.f32.mxu0 0.0
      %3045 = vmatmul.mubr.f32.gmra.mrb[0].mxu0 %v2392
      %v3046 = vpop.f32.mrb[0].mxu0
      %v3047 = vadd.f32 0.0, %v3046
      %v3048 = vpop.f32.mrb[0].mxu0
      %3049 = vmatprep.mubr.f32.mxu0 0.0
      %3050 = vmatmul.mubr.f32.gmra.mrb[0].mxu0 %v2395
      %v3051 = vpop.f32.mrb[0].mxu0
      %v3052 = vadd.f32 0.0, %v3051
      %v3053 = vpop.f32.mrb[0].mxu0
      %3054 = vmatprep.mubr.f32.mxu0 0.0
      %3055 = vmatmul.mubr.f32.gmra.mrb[0].mxu0 %v2398
      %v3056 = vpop.f32.mrb[0].mxu0
      %v3057 = vadd.f32 0.0, %v3056
      %v3058 = vpop.f32.mrb[0].mxu0
      %3059 = vmatprep.mubr.f32.mxu0 0.0
      %3060 = vmatmul.mubr.f32.gmra.mrb[0].mxu0 %v2401
      %v3061 = vpop.f32.mrb[0].mxu0
      %v3062 = vadd.f32 0.0, %v3061
      %v3063 = vpop.f32.mrb[0].mxu0
      %3064 = vmatprep.mubr.f32.mxu0 0.0
      %3065 = vmatmul.mubr.f32.gmra.mrb[0].mxu0 %v2404
      %v3066 = vpop.f32.mrb[0].mxu0
      %v3067 = vadd.f32 0.0, %v3066
      %v3068 = vpop.f32.mrb[0].mxu0
      %3069 = vmatprep.mubr.f32.mxu0 0.0
      %3070 = vmatmul.mubr.f32.gmra.mrb[0].mxu0 %v2407
      %v3071 = vpop.f32.mrb[0].mxu0
      %v3072 = vadd.f32 0.0, %v3071
      %v3073 = vpop.f32.mrb[0].mxu0
      %3074 = vmatprep.mubr.f32.mxu0 0.0
      %3075 = vmatmul.mubr.f32.gmra.mrb[0].mxu0 %v2410
      %v3076 = vpop.f32.mrb[0].mxu0
      %v3077 = vadd.f32 0.0, %v3076
      %v3078 = vpop.f32.mrb[0].mxu0
      %3079 = vmatprep.mubr.f32.mxu0 0.0
      %3080 = vmatmul.mubr.f32.gmra.mrb[0].mxu0 %v2413
      %v3081 = vpop.f32.mrb[0].mxu0
      %v3082 = vadd.f32 0.0, %v3081
      %v3083 = vpop.f32.mrb[0].mxu0
      %3084 = vmatprep.mubr.f32.mxu0 0.0
      %3085 = vmatmul.mubr.f32.gmra.mrb[0].mxu0 %v2416
      %v3086 = vpop.f32.mrb[0].mxu0
      %v3087 = vadd.f32 0.0, %v3086
      %v3088 = vpop.f32.mrb[0].mxu0
      %3089 = vmatprep.mubr.f32.mxu0 0.0
      %3090 = vmatmul.mubr.f32.gmra.mrb[0].mxu0 %v2419
      %v3091 = vpop.f32.mrb[0].mxu0
      %v3092 = vadd.f32 0.0, %v3091
      %v3093 = vpop.f32.mrb[0].mxu0
      %3094 = vmatprep.mubr.f32.mxu0 0.0
      %3095 = vmatmul.mubr.f32.gmra.mrb[0].mxu0 %v2422
      %v3096 = vpop.f32.mrb[0].mxu0
      %v3097 = vadd.f32 0.0, %v3096
      %v3098 = vpop.f32.mrb[0].mxu0
      %3099 = vmatprep.mubr.f32.mxu0 0.0
      %3100 = vmatmul.mubr.f32.gmra.mrb[0].mxu0 %v2413
      %v3101 = vpop.f32.mrb[0].mxu0
      %v3102 = vadd.f32 0.0, %v3101
      %v3103 = vpop.f32.mrb[0].mxu0
      %3104 = vmatprep.mubr.f32.mxu0 0.0
      %3105 = vmatmul.mubr.f32.gmra.mrb[0].mxu0 %v2416
      %v3106 = vpop.f32.mrb[0].mxu0
      %v3107 = vadd.f32 0.0, %v3106
      %v3108 = vpop.f32.mrb[0].mxu0
      %3109 = vdwg.mxu0
      %v3110 = vadd.f32 %v2722, %v2952
      %v3111 = vadd.f32 %v2727, %v2957
      %v3112 = vadd.f32 %v2732, %v2962
      %v3113 = vadd.f32 %v2737, %v2967
      %v3114 = vadd.f32 %v2742, %v2972
      %v3115 = vadd.f32 %v2747, %v2977
      %v3116 = vadd.f32 %v2752, %v2982
      %v3117 = vadd.f32 %v2757, %v2987
      %v3118 = vadd.f32 %v2762, %v2992
      %v3119 = vadd.f32 %v2767, %v2997
      %v3120 = vadd.f32 %v2772, %v3002
      %v3121 = vadd.f32 %v2777, %v3007
      %v3122 = vadd.f32 %v2782, %v3012
      %v3123 = vadd.f32 %v2787, %v3017
      %v3124 = vadd.f32 %v2792, %v3022
      %v3125 = vadd.f32 %v2797, %v3027
      %v3126 = vadd.f32 %v2802, %v3032
      %v3127 = vadd.f32 %v2807, %v3037
      %v3128 = vadd.f32 %v2812, %v3042
      %v3129 = vadd.f32 %v2817, %v3047
      %v3130 = vadd.f32 %v2822, %v3052
      %v3131 = vadd.f32 %v2827, %v3057
      %v3132 = vadd.f32 %v2832, %v3062
      %v3133 = vadd.f32 %v2837, %v3067
      %v3134 = vadd.f32 %v2842, %v3072
      %v3135 = vadd.f32 %v2847, %v3077
      %v3136 = vadd.f32 %v2852, %v3082
      %v3137 = vadd.f32 %v2857, %v3087
      %v3138 = vadd.f32 %v2862, %v3092
      %v3139 = vadd.f32 %v2867, %v3097
      %v3140 = vadd.f32 %v2872, %v3102
      %v3141 = vadd.f32 %v2877, %v3107
      %v3142 = vsel %vm653, %v3110, 0.0
      %v3143 = vsel %vm653, %v3111, 0.0
      %v3144 = vadd.f32 %v3142, %v3143
      %v3145 = vsel %vm653, %v3112, 0.0
      %v3146 = vadd.f32 %v3144, %v3145
      %v3147 = vsel %vm653, %v3113, 0.0
      %v3148 = vadd.f32 %v3146, %v3147
      %v3149 = vsel %vm653, %v3114, 0.0
      %v3150 = vadd.f32 %v3148, %v3149
      %v3151 = vsel %vm653, %v3115, 0.0
      %v3152 = vadd.f32 %v3150, %v3151
      %v3153 = vsel %vm653, %v3116, 0.0
      %v3154 = vadd.f32 %v3152, %v3153
      %v3155 = vsel %vm653, %v3117, 0.0
      %v3156 = vadd.f32 %v3154, %v3155
      %v3157 = vsel %vm653, %v3118, 0.0
      %v3158 = vadd.f32 %v3156, %v3157
      %v3159 = vsel %vm653, %v3119, 0.0
      %v3160 = vadd.f32 %v3158, %v3159
      %v3161 = vsel %vm653, %v3120, 0.0
      %v3162 = vadd.f32 %v3160, %v3161
      %v3163 = vsel %vm653, %v3121, 0.0
      %v3164 = vadd.f32 %v3162, %v3163
      %v3165 = vsel %vm653, %v3122, 0.0
      %v3166 = vadd.f32 %v3164, %v3165
      %v3167 = vsel %vm653, %v3123, 0.0
      %v3168 = vadd.f32 %v3166, %v3167
      %v3169 = vsel %vm653, %v3124, 0.0
      %v3170 = vadd.f32 %v3168, %v3169
      %v3171 = vsel %vm653, %v3125, 0.0
      %v3172 = vadd.f32 %v3170, %v3171
      %v3173 = vsel %vm653, %v3126, 0.0
      %v3174 = vadd.f32 %v3172, %v3173
      %v3175 = vsel %vm653, %v3127, 0.0
      %v3176 = vadd.f32 %v3174, %v3175
      %v3177 = vsel %vm653, %v3128, 0.0
      %v3178 = vadd.f32 %v3176, %v3177
      %v3179 = vsel %vm653, %v3129, 0.0
      %v3180 = vadd.f32 %v3178, %v3179
      %v3181 = vsel %vm653, %v3130, 0.0
      %v3182 = vadd.f32 %v3180, %v3181
      %v3183 = vsel %vm653, %v3131, 0.0
      %v3184 = vadd.f32 %v3182, %v3183
      %v3185 = vsel %vm653, %v3132, 0.0
      %v3186 = vadd.f32 %v3184, %v3185
      %v3187 = vsel %vm653, %v3133, 0.0
      %v3188 = vadd.f32 %v3186, %v3187
      %v3189 = vsel %vm653, %v3134, 0.0
      %v3190 = vadd.f32 %v3188, %v3189
      %v3191 = vsel %vm653, %v3135, 0.0
      %v3192 = vadd.f32 %v3190, %v3191
      %v3193 = vsel %vm653, %v3136, 0.0
      %v3194 = vadd.f32 %v3192, %v3193
      %v3195 = vsel %vm653, %v3137, 0.0
      %v3196 = vadd.f32 %v3194, %v3195
      %v3197 = vsel %vm653, %v3138, 0.0
      %v3198 = vadd.f32 %v3196, %v3197
      %v3199 = vsel %vm653, %v3139, 0.0
      %v3200 = vadd.f32 %v3198, %v3199
      %v3201 = vsel %vm653, %v3140, 0.0
      %v3202 = vadd.f32 %v3200, %v3201
      %v3203 = vsel %vm653, %v3141, 0.0
      %v3204 = vadd.f32 %v3202, %v3203
      %v3205 = vrot.slane %v3204, 4
      %v3206 = vadd.f32 %v3204, %v3205
      %v3207 = vrot.slane %v3206, 2
      %v3208 = vadd.f32 %v3206, %v3207
      %v3209 = vrot.slane %v3208, 1
      %v3210 = vadd.f32 %v3208, %v3209
      %v3211 = vmul.f32 %v3110, %v3110
      %v3212 = vmul.f32 %v3111, %v3111
      %v3213 = vmul.f32 %v3112, %v3112
      %v3214 = vmul.f32 %v3113, %v3113
      %v3215 = vmul.f32 %v3114, %v3114
      %v3216 = vmul.f32 %v3115, %v3115
      %v3217 = vmul.f32 %v3116, %v3116
      %v3218 = vmul.f32 %v3117, %v3117
      %v3219 = vmul.f32 %v3118, %v3118
      %v3220 = vmul.f32 %v3119, %v3119
      %v3221 = vmul.f32 %v3120, %v3120
      %v3222 = vmul.f32 %v3121, %v3121
      %v3223 = vmul.f32 %v3122, %v3122
      %v3224 = vmul.f32 %v3123, %v3123
      %v3225 = vmul.f32 %v3124, %v3124
      %v3226 = vmul.f32 %v3125, %v3125
      %v3227 = vmul.f32 %v3126, %v3126
      %v3228 = vmul.f32 %v3127, %v3127
      %v3229 = vmul.f32 %v3128, %v3128
      %v3230 = vmul.f32 %v3129, %v3129
      %v3231 = vmul.f32 %v3130, %v3130
      %v3232 = vmul.f32 %v3131, %v3131
      %v3233 = vmul.f32 %v3132, %v3132
      %v3234 = vmul.f32 %v3133, %v3133
      %v3235 = vmul.f32 %v3134, %v3134
      %v3236 = vmul.f32 %v3135, %v3135
      %v3237 = vmul.f32 %v3136, %v3136
      %v3238 = vmul.f32 %v3137, %v3137
      %v3239 = vmul.f32 %v3138, %v3138
      %v3240 = vmul.f32 %v3139, %v3139
      %v3241 = vmul.f32 %v3140, %v3140
      %v3242 = vmul.f32 %v3141, %v3141
      %v3243 = vsel %vm653, %v3211, 0.0
      %v3244 = vsel %vm653, %v3212, 0.0
      %v3245 = vadd.f32 %v3243, %v3244
      %v3246 = vsel %vm653, %v3213, 0.0
      %v3247 = vadd.f32 %v3245, %v3246
      %v3248 = vsel %vm653, %v3214, 0.0
      %v3249 = vadd.f32 %v3247, %v3248
      %v3250 = vsel %vm653, %v3215, 0.0
      %v3251 = vadd.f32 %v3249, %v3250
      %v3252 = vsel %vm653, %v3216, 0.0
      %v3253 = vadd.f32 %v3251, %v3252
      %v3254 = vsel %vm653, %v3217, 0.0
      %v3255 = vadd.f32 %v3253, %v3254
      %v3256 = vsel %vm653, %v3218, 0.0
      %v3257 = vadd.f32 %v3255, %v3256
      %v3258 = vsel %vm653, %v3219, 0.0
      %v3259 = vadd.f32 %v3257, %v3258
      %v3260 = vsel %vm653, %v3220, 0.0
      %v3261 = vadd.f32 %v3259, %v3260
      %v3262 = vsel %vm653, %v3221, 0.0
      %v3263 = vadd.f32 %v3261, %v3262
      %v3264 = vsel %vm653, %v3222, 0.0
      %v3265 = vadd.f32 %v3263, %v3264
      %v3266 = vsel %vm653, %v3223, 0.0
      %v3267 = vadd.f32 %v3265, %v3266
      %v3268 = vsel %vm653, %v3224, 0.0
      %v3269 = vadd.f32 %v3267, %v3268
      %v3270 = vsel %vm653, %v3225, 0.0
      %v3271 = vadd.f32 %v3269, %v3270
      %v3272 = vsel %vm653, %v3226, 0.0
      %v3273 = vadd.f32 %v3271, %v3272
      %v3274 = vsel %vm653, %v3227, 0.0
      %v3275 = vadd.f32 %v3273, %v3274
      %v3276 = vsel %vm653, %v3228, 0.0
      %v3277 = vadd.f32 %v3275, %v3276
      %v3278 = vsel %vm653, %v3229, 0.0
      %v3279 = vadd.f32 %v3277, %v3278
      %v3280 = vsel %vm653, %v3230, 0.0
      %v3281 = vadd.f32 %v3279, %v3280
      %v3282 = vsel %vm653, %v3231, 0.0
      %v3283 = vadd.f32 %v3281, %v3282
      %v3284 = vsel %vm653, %v3232, 0.0
      %v3285 = vadd.f32 %v3283, %v3284
      %v3286 = vsel %vm653, %v3233, 0.0
      %v3287 = vadd.f32 %v3285, %v3286
      %v3288 = vsel %vm653, %v3234, 0.0
      %v3289 = vadd.f32 %v3287, %v3288
      %v3290 = vsel %vm653, %v3235, 0.0
      %v3291 = vadd.f32 %v3289, %v3290
      %v3292 = vsel %vm653, %v3236, 0.0
      %v3293 = vadd.f32 %v3291, %v3292
      %v3294 = vsel %vm653, %v3237, 0.0
      %v3295 = vadd.f32 %v3293, %v3294
      %v3296 = vsel %vm653, %v3238, 0.0
      %v3297 = vadd.f32 %v3295, %v3296
      %v3298 = vsel %vm653, %v3239, 0.0
      %v3299 = vadd.f32 %v3297, %v3298
      %v3300 = vsel %vm653, %v3240, 0.0
      %v3301 = vadd.f32 %v3299, %v3300
      %v3302 = vsel %vm653, %v3241, 0.0
      %v3303 = vadd.f32 %v3301, %v3302
      %v3304 = vsel %vm653, %v3242, 0.0
      %v3305 = vadd.f32 %v3303, %v3304
      %v3306 = vrot.slane %v3305, 4
      %v3307 = vadd.f32 %v3305, %v3306
      %v3308 = vrot.slane %v3307, 2
      %v3309 = vadd.f32 %v3307, %v3308
      %v3310 = vrot.slane %v3309, 1
      %v3311 = vadd.f32 %v3309, %v3310
      %v3312 = vmul.f32 %v3210, 0.00390625
      %v3313 = vmul.f32 %v3311, 0.00390625
      %v3314 = vmul.f32 %v3312, %v3312
      %v3315 = vsub.f32 %v3313, %v3314
      %v3316 = vmax.f32 %v3315, 0.0
      %v3317 = vsub.f32 %v3110, %v3312
      %v3318 = vsub.f32 %v3111, %v3312
      %v3319 = vsub.f32 %v3112, %v3312
      %v3320 = vsub.f32 %v3113, %v3312
      %v3321 = vsub.f32 %v3114, %v3312
      %v3322 = vsub.f32 %v3115, %v3312
      %v3323 = vsub.f32 %v3116, %v3312
      %v3324 = vsub.f32 %v3117, %v3312
      %v3325 = vsub.f32 %v3118, %v3312
      %v3326 = vsub.f32 %v3119, %v3312
      %v3327 = vsub.f32 %v3120, %v3312
      %v3328 = vsub.f32 %v3121, %v3312
      %v3329 = vsub.f32 %v3122, %v3312
      %v3330 = vsub.f32 %v3123, %v3312
      %v3331 = vsub.f32 %v3124, %v3312
      %v3332 = vsub.f32 %v3125, %v3312
      %v3333 = vsub.f32 %v3126, %v3312
      %v3334 = vsub.f32 %v3127, %v3312
      %v3335 = vsub.f32 %v3128, %v3312
      %v3336 = vsub.f32 %v3129, %v3312
      %v3337 = vsub.f32 %v3130, %v3312
      %v3338 = vsub.f32 %v3131, %v3312
      %v3339 = vsub.f32 %v3132, %v3312
      %v3340 = vsub.f32 %v3133, %v3312
      %v3341 = vsub.f32 %v3134, %v3312
      %v3342 = vsub.f32 %v3135, %v3312
      %v3343 = vsub.f32 %v3136, %v3312
      %v3344 = vsub.f32 %v3137, %v3312
      %v3345 = vsub.f32 %v3138, %v3312
      %v3346 = vsub.f32 %v3139, %v3312
      %v3347 = vsub.f32 %v3140, %v3312
      %v3348 = vsub.f32 %v3141, %v3312
      %v3349 = vadd.f32 %v3316, 1e-05
      %v3350 = vrsqrt.pop %v3349
      %v3351 = vmul.f32 %v3317, %v3350
      %v3352 = vmul.f32 %v3318, %v3350
      %v3353 = vmul.f32 %v3319, %v3350
      %v3354 = vmul.f32 %v3320, %v3350
      %v3355 = vmul.f32 %v3321, %v3350
      %v3356 = vmul.f32 %v3322, %v3350
      %v3357 = vmul.f32 %v3323, %v3350
      %v3358 = vmul.f32 %v3324, %v3350
      %v3359 = vmul.f32 %v3325, %v3350
      %v3360 = vmul.f32 %v3326, %v3350
      %v3361 = vmul.f32 %v3327, %v3350
      %v3362 = vmul.f32 %v3328, %v3350
      %v3363 = vmul.f32 %v3329, %v3350
      %v3364 = vmul.f32 %v3330, %v3350
      %v3365 = vmul.f32 %v3331, %v3350
      %v3366 = vmul.f32 %v3332, %v3350
      %v3367 = vmul.f32 %v3333, %v3350
      %v3368 = vmul.f32 %v3334, %v3350
      %v3369 = vmul.f32 %v3335, %v3350
      %v3370 = vmul.f32 %v3336, %v3350
      %v3371 = vmul.f32 %v3337, %v3350
      %v3372 = vmul.f32 %v3338, %v3350
      %v3373 = vmul.f32 %v3339, %v3350
      %v3374 = vmul.f32 %v3340, %v3350
      %v3375 = vmul.f32 %v3341, %v3350
      %v3376 = vmul.f32 %v3342, %v3350
      %v3377 = vmul.f32 %v3343, %v3350
      %v3378 = vmul.f32 %v3344, %v3350
      %v3379 = vmul.f32 %v3345, %v3350
      %v3380 = vmul.f32 %v3346, %v3350
      %v3381 = vmul.f32 %v3347, %v3350
      %v3382 = vmul.f32 %v3348, %v3350
      %v3383 = vadd.f32 %v3351, %v171
      %v3384 = vadd.f32 %v3352, %v172
      %v3385 = vadd.f32 %v3353, %v173
      %v3386 = vadd.f32 %v3354, %v174
      %v3387 = vadd.f32 %v3355, %v175
      %v3388 = vadd.f32 %v3356, %v176
      %v3389 = vadd.f32 %v3357, %v177
      %v3390 = vadd.f32 %v3358, %v178
      %v3391 = vadd.f32 %v3359, %v179
      %v3392 = vadd.f32 %v3360, %v180
      %v3393 = vadd.f32 %v3361, %v181
      %v3394 = vadd.f32 %v3362, %v182
      %v3395 = vadd.f32 %v3363, %v183
      %v3396 = vadd.f32 %v3364, %v184
      %v3397 = vadd.f32 %v3365, %v185
      %v3398 = vadd.f32 %v3366, %v186
      %v3399 = vadd.f32 %v3367, %v187
      %v3400 = vadd.f32 %v3368, %v188
      %v3401 = vadd.f32 %v3369, %v189
      %v3402 = vadd.f32 %v3370, %v190
      %v3403 = vadd.f32 %v3371, %v191
      %v3404 = vadd.f32 %v3372, %v192
      %v3405 = vadd.f32 %v3373, %v193
      %v3406 = vadd.f32 %v3374, %v194
      %v3407 = vadd.f32 %v3375, %v195
      %v3408 = vadd.f32 %v3376, %v196
      %v3409 = vadd.f32 %v3377, %v197
      %v3410 = vadd.f32 %v3378, %v198
      %v3411 = vadd.f32 %v3379, %v199
      %v3412 = vadd.f32 %v3380, %v200
      %v3413 = vadd.f32 %v3381, %v201
      %v3414 = vadd.f32 %v3382, %v202
      %3415 = vst.msk [vmem:[%s170] sm:$0xff] %vm653, %v3383
      %3416 = vst.msk [vmem:[%s170 + $0x8] sm:$0xff] %vm653, %v3384
      %3417 = vst.msk [vmem:[%s170 + $0x10] sm:$0xff] %vm653, %v3385
      %3418 = vst.msk [vmem:[%s170 + $0x18] sm:$0xff] %vm653, %v3386
      %3419 = vst.msk [vmem:[%s170 + $0x20] sm:$0xff] %vm653, %v3387
      %3420 = vst.msk [vmem:[%s170 + $0x28] sm:$0xff] %vm653, %v3388
      %3421 = vst.msk [vmem:[%s170 + $0x30] sm:$0xff] %vm653, %v3389
      %3422 = vst.msk [vmem:[%s170 + $0x38] sm:$0xff] %vm653, %v3390
      %3423 = vst.msk [vmem:[%s170 + $0x40] sm:$0xff] %vm653, %v3391
      %3424 = vst.msk [vmem:[%s170 + $0x48] sm:$0xff] %vm653, %v3392
      %3425 = vst.msk [vmem:[%s170 + $0x50] sm:$0xff] %vm653, %v3393
      %3426 = vst.msk [vmem:[%s170 + $0x58] sm:$0xff] %vm653, %v3394
      %3427 = vst.msk [vmem:[%s170 + $0x60] sm:$0xff] %vm653, %v3395
      %3428 = vst.msk [vmem:[%s170 + $0x68] sm:$0xff] %vm653, %v3396
      %3429 = vst.msk [vmem:[%s170 + $0x70] sm:$0xff] %vm653, %v3397
      %3430 = vst.msk [vmem:[%s170 + $0x78] sm:$0xff] %vm653, %v3398
      %3431 = vst.msk [vmem:[%s170 + $0x80] sm:$0xff] %vm653, %v3399
      %3432 = vst.msk [vmem:[%s170 + $0x88] sm:$0xff] %vm653, %v3400
      %3433 = vst.msk [vmem:[%s170 + $0x90] sm:$0xff] %vm653, %v3401
      %3434 = vst.msk [vmem:[%s170 + $0x98] sm:$0xff] %vm653, %v3402
      %3435 = vst.msk [vmem:[%s170 + $0xa0] sm:$0xff] %vm653, %v3403
      %3436 = vst.msk [vmem:[%s170 + $0xa8] sm:$0xff] %vm653, %v3404
      %3437 = vst.msk [vmem:[%s170 + $0xb0] sm:$0xff] %vm653, %v3405
      %3438 = vst.msk [vmem:[%s170 + $0xb8] sm:$0xff] %vm653, %v3406
      %3439 = vst.msk [vmem:[%s170 + $0xc0] sm:$0xff] %vm653, %v3407
      %3440 = vst.msk [vmem:[%s170 + $0xc8] sm:$0xff] %vm653, %v3408
      %3441 = vst.msk [vmem:[%s170 + $0xd0] sm:$0xff] %vm653, %v3409
      %3442 = vst.msk [vmem:[%s170 + $0xd8] sm:$0xff] %vm653, %v3410
      %3443 = vst.msk [vmem:[%s170 + $0xe0] sm:$0xff] %vm653, %v3411
      %3444 = vst.msk [vmem:[%s170 + $0xe8] sm:$0xff] %vm653, %v3412
      %3445 = vst.msk [vmem:[%s170 + $0xf0] sm:$0xff] %vm653, %v3413
      %3446 = vst.msk [vmem:[%s170 + $0xf8] sm:$0xff] %vm653, %v3414
      %p3447 = scmp.lt.s32.totalorder %s14, 1
      %s3448 = scalar_select %p3447, %s14, 1
      %s3449 = smul.addr %s3448, 32
      %s3450 = smul.addr %s3449, 8
      %s3451 = scalar_lea.vmem %s3, %s3450
      // Predicated region
      $region33: #{tpu_custom_call.1} parent=31 // pred_check
        %p3452 = pneg %p100
      $region34: #{tpu_custom_call.1} parent=31 // pred_check_branch
        %3454 = sbr.rel (%p3452) target = $region36
      $region35: #{tpu_custom_call.1} parent=31 // pred_region
        _
      $region36: #{tpu_custom_call.1} parent=31 // pred_fallthru
        _
    $region32: #{tpu_custom_call.1} parent=5 // pred_fallthru
      _
    %p3455 = scmp.le.s32.totalorder 2, %s9
    // Predicated region
    $region37: #{tpu_custom_call.1} parent=5 // pred_check
      %p3456 = pneg %p3455
    $region38: #{tpu_custom_call.1} parent=5 // pred_check_branch
      %3458 = sbr.rel (%p3456) target = $region40
    $region39: #{tpu_custom_call.1} parent=5 // pred_region
      %s3459 = ssub.s32 %s9, 2
      // Predicated region
      $region41: #{tpu_custom_call.1} parent=39 // pred_check
        %p3460 = pneg %p106
      $region42: #{tpu_custom_call.1} parent=39 // pred_check_branch
        %3462 = sbr.rel (%p3460) target = $region44
      $region43: #{tpu_custom_call.1} parent=39 // pred_region
        %p3463 = scmp.lt.s32.totalorder %s15, 1
        %s3464 = scalar_select %p3463, %s15, 1
        %s3465 = smul.addr %s3464, 32
        %s3466 = smul.addr %s3465, 8
        %s3467 = scalar_lea.vmem %s3, %s3466
      $region44: #{tpu_custom_call.1} parent=39 // pred_fallthru
        _
    $region40: #{tpu_custom_call.1} parent=5 // pred_fallthru
      _
  $region6: #{tpu_custom_call.1} parent=0 // loop_footer
    %s13 = sadd.s32 1, %s9
  $region7: #{tpu_custom_call.1} parent=0 // loop_footer_branch
    %8 = sbr.rel target = $region3
  $region8: #{tpu_custom_call.1} parent=0 // loop_exit
    _

</llo_original>
